<compile_context>
chip_gen: v7x
topology: tpu7x:2x2x1
jax: 0.10.0
libtpu: 0.0.40
codegen_flags: <defaults>
</compile_context>

<pallas_src>
import functools

import jax
import jax.numpy as jnp
from jax.experimental import pallas as pl
from jax.experimental.pallas import tpu as pltpu


def _pick_strip_rows(H, W):
    """Smallest divisor R of H with R*W >= 128 (MXU M-dim) and <= 32 strips."""
    for r in range(1, H + 1):
        if H % r == 0 and r * W >= 128 and H // r <= 32:
            return r
    return H


def _residual_block_kernel(x_ref, w1_ref, b1_ref, w2_ref, b2_ref, o_ref,
                           pad_x, pad_h, *, H, W, C, R, cdtype):
    """Fused conv3x3+MFM -> conv3x3+MFM -> residual add for one batch element.

    refs:
      x_ref  : (1, H, W, C)            unpadded input tile
      w1_ref : (9C, 2C) cdtype         layer-1 weights (HWIO flattened)
      b1_ref : (1, 2C)  f32            layer-1 bias
      w2_ref : (9C, 2C) cdtype         layer-2 weights
      b2_ref : (1, 2C)  f32            layer-2 bias
      o_ref  : (1, H*W, C)             output slab
      pad_x  : (H+2, W+2, C) cdtype    zero-bordered halo scratch for x
      pad_h  : (H+2, W+2, C) cdtype    zero-bordered halo scratch for h
    """
    # ---- zero ONLY the 1-pixel border (interior is fully rewritten each
    # step; border is never written, but scratch contents are not guaranteed,
    # and program_id==0 may never run on this core under "parallel"). ----
    zrow = jnp.zeros((1, W + 2, C), cdtype)
    zcol = jnp.zeros((H + 2, 1, C), cdtype)
    for pad in (pad_x, pad_h):
        pad[0:1, :, :] = zrow
        pad[H + 1:H + 2, :, :] = zrow
        pad[:, 0:1, :] = zcol
        pad[:, W + 1:W + 2, :] = zcol

    x = x_ref[0]                                           # (H, W, C)
    pad_x[1:H + 1, 1:W + 1, :] = x.astype(cdtype)

    def conv_mfm_strip(pad, w_ref, b_ref, r0):
        # Strip-wise im2col: 9 shifted taps of the padded rows [r0, r0+R+2)
        # stacked along channels -> ONE MXU matmul, f32 accumulation.
        taps = [pad[r0 + dy:r0 + dy + R, dx:dx + W, :]
                for dy in range(3) for dx in range(3)]
        patches = jnp.concatenate(taps, axis=-1).reshape(R * W, 9 * C)
        acc = jnp.dot(patches, w_ref[...],
                      preferred_element_type=jnp.float32)  # (R*W, 2C) f32
        acc = acc + b_ref[...]                             # (1, 2C) broadcast
        # MFM 2/1 folded into the strip epilogue (stays in-register).
        return jnp.maximum(acc[:, :C], acc[:, C:])         # (R*W, C) f32

    n_strips = H // R

    # ---- layer 1: x -> h, strips written straight into pad_h's interior ----
    for s in range(n_strips):
        r0 = s * R
        h = conv_mfm_strip(pad_x, w1_ref, b1_ref, r0)
        pad_h[r0 + 1:r0 + 1 + R, 1:W + 1, :] = h.reshape(R, W, C).astype(cdtype)

    # ---- layer 2 + residual: h -> y, stored strip-by-strip ----
    for s in range(n_strips):
        r0 = s * R
        y = conv_mfm_strip(pad_h, w2_ref, b2_ref, r0)
        xs = x_ref[0, r0:r0 + R, :, :].reshape(R * W, C).astype(jnp.float32)
        o_ref[0, r0 * W:(r0 + R) * W, :] = (y + xs).astype(o_ref.dtype)


def _round_up(x, m):
    return (x + m - 1) // m * m


def _tile_padded_bytes(shape, dtype):
    """Approximate Mosaic VMEM footprint: last dim -> x128 lanes, 2nd-last ->
    sublane-tile multiple (8 for 4-byte, 16 for 2-byte dtypes)."""
    dt = jnp.dtype(dtype)
    sub = 8 * max(1, 4 // dt.itemsize)
    lead = 1
    for d in shape[:-2]:
        lead *= d
    return lead * _round_up(shape[-2], sub) * _round_up(shape[-1], 128) * dt.itemsize


def _vmem_limit_bytes(H, W, C, R, in_dtype, cdtype, out_dtype, weight_buffers):
    """Explicit per-step working-set budget, clamped to the chip's VMEM."""
    need = 0
    need += 2 * _tile_padded_bytes((H + 2, W + 2, C), cdtype)        # pad_x, pad_h
    need += 2 * _tile_padded_bytes((1, H, W, C), in_dtype)           # x, double-buffered
    need += 2 * _tile_padded_bytes((1, H * W, C), out_dtype)         # out, double-buffered
    need += 2 * weight_buffers * _tile_padded_bytes((9 * C, 2 * C), cdtype)
    need += 2 * weight_buffers * _tile_padded_bytes((1, 2 * C), jnp.float32)
    need += _tile_padded_bytes((R * W, 9 * C), cdtype)               # im2col strip
    need += 3 * _tile_padded_bytes((R * W, 2 * C), jnp.float32)      # acc / epilogue temps
    need = int(need * 1.4) + (2 << 20)                               # compiler headroom
    try:
        cap = pltpu.get_tpu_info().vmem_capacity_bytes               # 64 MiB v7x, 128 MiB v5e/v6e
    except Exception:
        cap = 64 << 20
    return int(max(24 << 20, min(need, int(cap * 0.9))))


def residual_block_nhwc(x_nhwc, params, *, compute_dtype=jnp.bfloat16):
    """Fused ResidualBlock forward on NHWC input. Returns NHWC.

    compute_dtype controls the MXU operand / halo-scratch dtype only;
    accumulation, bias, MFM and the residual add stay in float32.
    """
    N, H, W_, C = x_nhwc.shape
    cdtype = jnp.dtype(compute_dtype)
    R = _pick_strip_rows(H, W_)

    w1 = params["w1"].reshape(9 * C, 2 * C).astype(cdtype)
    w2 = params["w2"].reshape(9 * C, 2 * C).astype(cdtype)
    b1 = params["b1"].reshape(1, 2 * C).astype(jnp.float32)
    b2 = params["b2"].reshape(1, 2 * C).astype(jnp.float32)

    kern = functools.partial(_residual_block_kernel,
                             H=H, W=W_, C=C, R=R, cdtype=cdtype)

    def call(single_buffer_weights):
        wmode = ({"pipeline_mode": pl.Buffered(1)}
                 if single_buffer_weights else {})
        in_specs = [
            pl.BlockSpec((1, H, W_, C), lambda n: (n, 0, 0, 0)),            # x
            pl.BlockSpec((9 * C, 2 * C), lambda n: (0, 0), **wmode),        # w1 (resident)
            pl.BlockSpec((1, 2 * C), lambda n: (0, 0), **wmode),            # b1
            pl.BlockSpec((9 * C, 2 * C), lambda n: (0, 0), **wmode),        # w2
            pl.BlockSpec((1, 2 * C), lambda n: (0, 0), **wmode),            # b2
        ]
        vmem_limit = _vmem_limit_bytes(H, W_, C, R, x_nhwc.dtype, cdtype,
                                       x_nhwc.dtype,
                                       1 if single_buffer_weights else 2)
        return pl.pallas_call(
            kern,
            out_shape=jax.ShapeDtypeStruct((N, H * W_, C), x_nhwc.dtype),
            grid=(N,),
            in_specs=in_specs,
            out_specs=pl.BlockSpec((1, H * W_, C), lambda n: (n, 0, 0)),
            scratch_shapes=[pltpu.VMEM((H + 2, W_ + 2, C), cdtype),   # pad_x
                            pltpu.VMEM((H + 2, W_ + 2, C), cdtype)],  # pad_h
            compiler_params=pltpu.CompilerParams(
                dimension_semantics=("parallel",),
                vmem_limit_bytes=vmem_limit),
        )(x_nhwc, w1, b1, w2, b2)

    try:
        y_flat = call(True)        # single-buffered, VMEM-resident weights
    except Exception:
        y_flat = call(False)       # fallback: default double-buffered weights

    # Free reshape of the output slab back to NHWC.
    return y_flat.reshape(N, H, W_, C)


def residual_block(x_nchw, params, *, compute_dtype=jnp.bfloat16):
    """ResidualBlock forward.  Input/output are NCHW (PyTorch convention)."""
    x = jnp.transpose(x_nchw, (0, 2, 3, 1))                 # NCHW -> NHWC
    y = residual_block_nhwc(x, params, compute_dtype=compute_dtype)
    return jnp.transpose(y, (0, 3, 1, 2))                   # NHWC -> NCHW


def init_params(key, channels):
    """Deterministic synthetic parameters (HWIO weights, shape (3,3,C,2C))."""
    k1, k2, k3, k4 = jax.random.split(key, 4)
    C = channels
    scale = 0.1
    return {
        "w1": scale * jax.random.normal(k1, (3, 3, C, 2 * C), jnp.float32),
        "b1": scale * jax.random.normal(k2, (2 * C,), jnp.float32),
        "w2": scale * jax.random.normal(k3, (3, 3, C, 2 * C), jnp.float32),
        "b2": scale * jax.random.normal(k4, (2 * C,), jnp.float32),
    }


def _reference_forward(x_nchw, params):
    """Pure-JAX reference (lax.conv) for correctness checking."""
    x = jnp.transpose(x_nchw, (0, 2, 3, 1))

    def conv_mfm_ref(x, w, b):
        y = jax.lax.conv_general_dilated(
            x, w, window_strides=(1, 1), padding=((1, 1), (1, 1)),
            dimension_numbers=("NHWC", "HWIO", "NHWC")) + b
        C = x.shape[-1]
        return jnp.maximum(y[..., :C], y[..., C:])

    h = conv_mfm_ref(x, params["w1"], params["b1"])
    y = conv_mfm_ref(h, params["w2"], params["b2"]) + x
    return jnp.transpose(y, (0, 3, 1, 2))


if __name__ == "__main__":
    key = jax.random.PRNGKey(0)
    kx, kp = jax.random.split(key)

    N, C, H, W = 2, 4, 16, 16
    x = jax.random.normal(kx, (N, C, H, W), jnp.float32)    # NCHW like PyTorch
    params = init_params(kp, C)

    ref = _reference_forward(x, params)

    # f32 MXU operands: matches the PyTorch f32 module tightly.
    out_f32 = residual_block(x, params, compute_dtype=jnp.float32)
    out_f32 = jax.block_until_ready(out_f32)
    assert out_f32.shape == (N, C, H, W)
    assert jnp.allclose(out_f32, ref, atol=1e-4, rtol=1e-4), "f32 mismatch vs reference"

    # bf16 MXU operands (default fast path on v5e/v6e/v7x): looser tolerance.
    out_bf16 = residual_block(x, params)                     # compute_dtype=bf16
    out_bf16 = jax.block_until_ready(out_bf16)
    assert jnp.allclose(out_bf16, ref, atol=1e-1, rtol=1e-1), "bf16 mismatch vs reference"

    print("KERNEL_OK")
</pallas_src>

<mosaic_0001>
module attributes {stable_mosaic.version = 11 : i64} {
  func.func @_residual_block_kernel(%arg0: i32, %arg1: memref<1x16x16x4xf32, #tpu.memory_space<vmem>>, %arg2: memref<36x8xf32, #tpu.memory_space<vmem>>, %arg3: memref<1x8xf32, #tpu.memory_space<vmem>>, %arg4: memref<36x8xf32, #tpu.memory_space<vmem>>, %arg5: memref<1x8xf32, #tpu.memory_space<vmem>>, %arg6: memref<1x256x4xf32, #tpu.memory_space<vmem>>, %arg7: memref<18x18x4xf32, #tpu.memory_space<vmem>>, %arg8: memref<18x18x4xf32, #tpu.memory_space<vmem>>) attributes {dimension_semantics = [#tpu.dimension_semantics<parallel>], iteration_bounds = array<i64: 2>, scalar_prefetch = 0 : i64, scratch_operands = 2 : i64, tpu.core_type = #tpu.core_type<tc>, window_params = [{transform_indices = @transform_0, window_bounds = array<i64: 1, 16, 16, 4>}, {pipeline_mode = #tpu.pipeline_mode<synchronous>, transform_indices = @transform_1, window_bounds = array<i64: 36, 8>}, {pipeline_mode = #tpu.pipeline_mode<synchronous>, transform_indices = @transform_2, window_bounds = array<i64: 1, 8>}, {pipeline_mode = #tpu.pipeline_mode<synchronous>, transform_indices = @transform_3, window_bounds = array<i64: 36, 8>}, {pipeline_mode = #tpu.pipeline_mode<synchronous>, transform_indices = @transform_4, window_bounds = array<i64: 1, 8>}, {transform_indices = @transform_5, window_bounds = array<i64: 1, 256, 4>}]} {
    %cst = arith.constant 0.000000e+00 : f32
    %0 = vector.broadcast %cst : f32 to vector<1x18x4xf32>
    %cst_0 = arith.constant 0.000000e+00 : f32
    %1 = vector.broadcast %cst_0 : f32 to vector<18x1x4xf32>
    %c0 = arith.constant 0 : index
    %c0_1 = arith.constant 0 : index
    %c0_2 = arith.constant 0 : index
    %2 = vector.load %arg7[%c0, %c0_1, %c0_2] : memref<18x18x4xf32, #tpu.memory_space<vmem>>, vector<1x18x4xf32>
    tpu.vector_store %arg7[%c0, %c0_1, %c0_2], %0 {strides = array<i32>} : memref<18x18x4xf32, #tpu.memory_space<vmem>>, vector<1x18x4xf32>,
    %c17 = arith.constant 17 : index
    %c0_3 = arith.constant 0 : index
    %c0_4 = arith.constant 0 : index
    %3 = vector.load %arg7[%c17, %c0_3, %c0_4] : memref<18x18x4xf32, #tpu.memory_space<vmem>>, vector<1x18x4xf32>
    tpu.vector_store %arg7[%c17, %c0_3, %c0_4], %0 {strides = array<i32>} : memref<18x18x4xf32, #tpu.memory_space<vmem>>, vector<1x18x4xf32>,
    %c0_5 = arith.constant 0 : index
    %c0_6 = arith.constant 0 : index
    %c0_7 = arith.constant 0 : index
    %4 = vector.load %arg7[%c0_5, %c0_6, %c0_7] : memref<18x18x4xf32, #tpu.memory_space<vmem>>, vector<18x1x4xf32>
    tpu.vector_store %arg7[%c0_5, %c0_6, %c0_7], %1 {strides = array<i32>} : memref<18x18x4xf32, #tpu.memory_space<vmem>>, vector<18x1x4xf32>,
    %c0_8 = arith.constant 0 : index
    %c17_9 = arith.constant 17 : index
    %c0_10 = arith.constant 0 : index
    %5 = vector.load %arg7[%c0_8, %c17_9, %c0_10] : memref<18x18x4xf32, #tpu.memory_space<vmem>>, vector<18x1x4xf32>
    tpu.vector_store %arg7[%c0_8, %c17_9, %c0_10], %1 {strides = array<i32>} : memref<18x18x4xf32, #tpu.memory_space<vmem>>, vector<18x1x4xf32>,
    %c0_11 = arith.constant 0 : index
    %c0_12 = arith.constant 0 : index
    %c0_13 = arith.constant 0 : index
    %6 = vector.load %arg8[%c0_11, %c0_12, %c0_13] : memref<18x18x4xf32, #tpu.memory_space<vmem>>, vector<1x18x4xf32>
    tpu.vector_store %arg8[%c0_11, %c0_12, %c0_13], %0 {strides = array<i32>} : memref<18x18x4xf32, #tpu.memory_space<vmem>>, vector<1x18x4xf32>,
    %c17_14 = arith.constant 17 : index
    %c0_15 = arith.constant 0 : index
    %c0_16 = arith.constant 0 : index
    %7 = vector.load %arg8[%c17_14, %c0_15, %c0_16] : memref<18x18x4xf32, #tpu.memory_space<vmem>>, vector<1x18x4xf32>
    tpu.vector_store %arg8[%c17_14, %c0_15, %c0_16], %0 {strides = array<i32>} : memref<18x18x4xf32, #tpu.memory_space<vmem>>, vector<1x18x4xf32>,
    %c0_17 = arith.constant 0 : index
    %c0_18 = arith.constant 0 : index
    %c0_19 = arith.constant 0 : index
    %8 = vector.load %arg8[%c0_17, %c0_18, %c0_19] : memref<18x18x4xf32, #tpu.memory_space<vmem>>, vector<18x1x4xf32>
    tpu.vector_store %arg8[%c0_17, %c0_18, %c0_19], %1 {strides = array<i32>} : memref<18x18x4xf32, #tpu.memory_space<vmem>>, vector<18x1x4xf32>,
    %c0_20 = arith.constant 0 : index
    %c17_21 = arith.constant 17 : index
    %c0_22 = arith.constant 0 : index
    %9 = vector.load %arg8[%c0_20, %c17_21, %c0_22] : memref<18x18x4xf32, #tpu.memory_space<vmem>>, vector<18x1x4xf32>
    tpu.vector_store %arg8[%c0_20, %c17_21, %c0_22], %1 {strides = array<i32>} : memref<18x18x4xf32, #tpu.memory_space<vmem>>, vector<18x1x4xf32>,
    %c0_23 = arith.constant 0 : index
    %c0_24 = arith.constant 0 : index
    %c0_25 = arith.constant 0 : index
    %c0_26 = arith.constant 0 : index
    %10 = vector.load %arg1[%c0_23, %c0_24, %c0_25, %c0_26] : memref<1x16x16x4xf32, #tpu.memory_space<vmem>>, vector<1x16x16x4xf32>
    %11 = vector.shape_cast %10 : vector<1x16x16x4xf32> to vector<16x16x4xf32>
    %c1 = arith.constant 1 : index
    %c1_27 = arith.constant 1 : index
    %c0_28 = arith.constant 0 : index
    %12 = vector.load %arg7[%c1, %c1_27, %c0_28] : memref<18x18x4xf32, #tpu.memory_space<vmem>>, vector<16x16x4xf32>
    tpu.vector_store %arg7[%c1, %c1_27, %c0_28], %11 {strides = array<i32>} : memref<18x18x4xf32, #tpu.memory_space<vmem>>, vector<16x16x4xf32>,
    %c0_29 = arith.constant 0 : index
    %c0_30 = arith.constant 0 : index
    %c0_31 = arith.constant 0 : index
    %13 = vector.load %arg7[%c0_29, %c0_30, %c0_31] : memref<18x18x4xf32, #tpu.memory_space<vmem>>, vector<8x16x4xf32>
    %c0_32 = arith.constant 0 : index
    %c1_33 = arith.constant 1 : index
    %c0_34 = arith.constant 0 : index
    %14 = vector.load %arg7[%c0_32, %c1_33, %c0_34] : memref<18x18x4xf32, #tpu.memory_space<vmem>>, vector<8x16x4xf32>
    %c0_35 = arith.constant 0 : index
    %c2 = arith.constant 2 : index
    %c0_36 = arith.constant 0 : index
    %15 = vector.load %arg7[%c0_35, %c2, %c0_36] : memref<18x18x4xf32, #tpu.memory_space<vmem>>, vector<8x16x4xf32>
    %c1_37 = arith.constant 1 : index
    %c0_38 = arith.constant 0 : index
    %c0_39 = arith.constant 0 : index
    %16 = vector.load %arg7[%c1_37, %c0_38, %c0_39] : memref<18x18x4xf32, #tpu.memory_space<vmem>>, vector<8x16x4xf32>
    %c1_40 = arith.constant 1 : index
    %c1_41 = arith.constant 1 : index
    %c0_42 = arith.constant 0 : index
    %17 = vector.load %arg7[%c1_40, %c1_41, %c0_42] : memref<18x18x4xf32, #tpu.memory_space<vmem>>, vector<8x16x4xf32>
    %c1_43 = arith.constant 1 : index
    %c2_44 = arith.constant 2 : index
    %c0_45 = arith.constant 0 : index
    %18 = vector.load %arg7[%c1_43, %c2_44, %c0_45] : memref<18x18x4xf32, #tpu.memory_space<vmem>>, vector<8x16x4xf32>
    %c2_46 = arith.constant 2 : index
    %c0_47 = arith.constant 0 : index
    %c0_48 = arith.constant 0 : index
    %19 = vector.load %arg7[%c2_46, %c0_47, %c0_48] : memref<18x18x4xf32, #tpu.memory_space<vmem>>, vector<8x16x4xf32>
    %c2_49 = arith.constant 2 : index
    %c1_50 = arith.constant 1 : index
    %c0_51 = arith.constant 0 : index
    %20 = vector.load %arg7[%c2_49, %c1_50, %c0_51] : memref<18x18x4xf32, #tpu.memory_space<vmem>>, vector<8x16x4xf32>
    %c2_52 = arith.constant 2 : index
    %c2_53 = arith.constant 2 : index
    %c0_54 = arith.constant 0 : index
    %21 = vector.load %arg7[%c2_52, %c2_53, %c0_54] : memref<18x18x4xf32, #tpu.memory_space<vmem>>, vector<8x16x4xf32>
    %22 = tpu.concatenate %13, %14, %15, %16, %17, %18, %19, %20, %21 in 2 : vector<8x16x4xf32>, vector<8x16x4xf32>, vector<8x16x4xf32>, vector<8x16x4xf32>, vector<8x16x4xf32>, vector<8x16x4xf32>, vector<8x16x4xf32>, vector<8x16x4xf32>, vector<8x16x4xf32> -> vector<8x16x36xf32>
    %23 = vector.shape_cast %22 : vector<8x16x36xf32> to vector<128x36xf32>
    %c0_55 = arith.constant 0 : index
    %c0_56 = arith.constant 0 : index
    %24 = vector.load %arg2[%c0_55, %c0_56] : memref<36x8xf32, #tpu.memory_space<vmem>>, vector<36x8xf32>
    %cst_57 = arith.constant dense<0.000000e+00> : vector<128x8xf32>
    %25 = tpu.matmul %23, %24, %cst_57 {dimension_numbers = #tpu.dot_dimension_numbers<[1], [0], [0], [1], [0, 0, 1, 1], [], []>} : vector<128x36xf32>, vector<36x8xf32>, vector<128x8xf32> -> vector<128x8xf32>
    %c0_58 = arith.constant 0 : index
    %c0_59 = arith.constant 0 : index
    %26 = vector.load %arg3[%c0_58, %c0_59] : memref<1x8xf32, #tpu.memory_space<vmem>>, vector<1x8xf32>
    %27 = vector.broadcast %26 : vector<1x8xf32> to vector<128x8xf32>
    %28 = arith.addf %25, %27 : vector<128x8xf32>
    %29 = vector.extract_strided_slice %28 {offsets = [0, 0], sizes = [128, 4], strides = [1, 1]} : vector<128x8xf32> to vector<128x4xf32>
    %30 = vector.extract_strided_slice %28 {offsets = [0, 4], sizes = [128, 4], strides = [1, 1]} : vector<128x8xf32> to vector<128x4xf32>
    %31 = arith.maximumf %29, %30 : vector<128x4xf32>
    %32 = vector.shape_cast %31 : vector<128x4xf32> to vector<8x16x4xf32>
    %c1_60 = arith.constant 1 : index
    %c1_61 = arith.constant 1 : index
    %c0_62 = arith.constant 0 : index
    %33 = vector.load %arg8[%c1_60, %c1_61, %c0_62] : memref<18x18x4xf32, #tpu.memory_space<vmem>>, vector<8x16x4xf32>
    tpu.vector_store %arg8[%c1_60, %c1_61, %c0_62], %32 {strides = array<i32>} : memref<18x18x4xf32, #tpu.memory_space<vmem>>, vector<8x16x4xf32>,
    %c8 = arith.constant 8 : index
    %c0_63 = arith.constant 0 : index
    %c0_64 = arith.constant 0 : index
    %34 = vector.load %arg7[%c8, %c0_63, %c0_64] : memref<18x18x4xf32, #tpu.memory_space<vmem>>, vector<8x16x4xf32>
    %c8_65 = arith.constant 8 : index
    %c1_66 = arith.constant 1 : index
    %c0_67 = arith.constant 0 : index
    %35 = vector.load %arg7[%c8_65, %c1_66, %c0_67] : memref<18x18x4xf32, #tpu.memory_space<vmem>>, vector<8x16x4xf32>
    %c8_68 = arith.constant 8 : index
    %c2_69 = arith.constant 2 : index
    %c0_70 = arith.constant 0 : index
    %36 = vector.load %arg7[%c8_68, %c2_69, %c0_70] : memref<18x18x4xf32, #tpu.memory_space<vmem>>, vector<8x16x4xf32>
    %c9 = arith.constant 9 : index
    %c0_71 = arith.constant 0 : index
    %c0_72 = arith.constant 0 : index
    %37 = vector.load %arg7[%c9, %c0_71, %c0_72] : memref<18x18x4xf32, #tpu.memory_space<vmem>>, vector<8x16x4xf32>
    %c9_73 = arith.constant 9 : index
    %c1_74 = arith.constant 1 : index
    %c0_75 = arith.constant 0 : index
    %38 = vector.load %arg7[%c9_73, %c1_74, %c0_75] : memref<18x18x4xf32, #tpu.memory_space<vmem>>, vector<8x16x4xf32>
    %c9_76 = arith.constant 9 : index
    %c2_77 = arith.constant 2 : index
    %c0_78 = arith.constant 0 : index
    %39 = vector.load %arg7[%c9_76, %c2_77, %c0_78] : memref<18x18x4xf32, #tpu.memory_space<vmem>>, vector<8x16x4xf32>
    %c10 = arith.constant 10 : index
    %c0_79 = arith.constant 0 : index
    %c0_80 = arith.constant 0 : index
    %40 = vector.load %arg7[%c10, %c0_79, %c0_80] : memref<18x18x4xf32, #tpu.memory_space<vmem>>, vector<8x16x4xf32>
    %c10_81 = arith.constant 10 : index
    %c1_82 = arith.constant 1 : index
    %c0_83 = arith.constant 0 : index
    %41 = vector.load %arg7[%c10_81, %c1_82, %c0_83] : memref<18x18x4xf32, #tpu.memory_space<vmem>>, vector<8x16x4xf32>
    %c10_84 = arith.constant 10 : index
    %c2_85 = arith.constant 2 : index
    %c0_86 = arith.constant 0 : index
    %42 = vector.load %arg7[%c10_84, %c2_85, %c0_86] : memref<18x18x4xf32, #tpu.memory_space<vmem>>, vector<8x16x4xf32>
    %43 = tpu.concatenate %34, %35, %36, %37, %38, %39, %40, %41, %42 in 2 : vector<8x16x4xf32>, vector<8x16x4xf32>, vector<8x16x4xf32>, vector<8x16x4xf32>, vector<8x16x4xf32>, vector<8x16x4xf32>, vector<8x16x4xf32>, vector<8x16x4xf32>, vector<8x16x4xf32> -> vector<8x16x36xf32>
    %44 = vector.shape_cast %43 : vector<8x16x36xf32> to vector<128x36xf32>
    %c0_87 = arith.constant 0 : index
    %c0_88 = arith.constant 0 : index
    %45 = vector.load %arg2[%c0_87, %c0_88] : memref<36x8xf32, #tpu.memory_space<vmem>>, vector<36x8xf32>
    %cst_89 = arith.constant dense<0.000000e+00> : vector<128x8xf32>
    %46 = tpu.matmul %44, %45, %cst_89 {dimension_numbers = #tpu.dot_dimension_numbers<[1], [0], [0], [1], [0, 0, 1, 1], [], []>} : vector<128x36xf32>, vector<36x8xf32>, vector<128x8xf32> -> vector<128x8xf32>
    %c0_90 = arith.constant 0 : index
    %c0_91 = arith.constant 0 : index
    %47 = vector.load %arg3[%c0_90, %c0_91] : memref<1x8xf32, #tpu.memory_space<vmem>>, vector<1x8xf32>
    %48 = vector.broadcast %47 : vector<1x8xf32> to vector<128x8xf32>
    %49 = arith.addf %46, %48 : vector<128x8xf32>
    %50 = vector.extract_strided_slice %49 {offsets = [0, 0], sizes = [128, 4], strides = [1, 1]} : vector<128x8xf32> to vector<128x4xf32>
    %51 = vector.extract_strided_slice %49 {offsets = [0, 4], sizes = [128, 4], strides = [1, 1]} : vector<128x8xf32> to vector<128x4xf32>
    %52 = arith.maximumf %50, %51 : vector<128x4xf32>
    %53 = vector.shape_cast %52 : vector<128x4xf32> to vector<8x16x4xf32>
    %c9_92 = arith.constant 9 : index
    %c1_93 = arith.constant 1 : index
    %c0_94 = arith.constant 0 : index
    %54 = vector.load %arg8[%c9_92, %c1_93, %c0_94] : memref<18x18x4xf32, #tpu.memory_space<vmem>>, vector<8x16x4xf32>
    tpu.vector_store %arg8[%c9_92, %c1_93, %c0_94], %53 {strides = array<i32>} : memref<18x18x4xf32, #tpu.memory_space<vmem>>, vector<8x16x4xf32>,
    %c0_95 = arith.constant 0 : index
    %c0_96 = arith.constant 0 : index
    %c0_97 = arith.constant 0 : index
    %55 = vector.load %arg8[%c0_95, %c0_96, %c0_97] : memref<18x18x4xf32, #tpu.memory_space<vmem>>, vector<8x16x4xf32>
    %c0_98 = arith.constant 0 : index
    %c1_99 = arith.constant 1 : index
    %c0_100 = arith.constant 0 : index
    %56 = vector.load %arg8[%c0_98, %c1_99, %c0_100] : memref<18x18x4xf32, #tpu.memory_space<vmem>>, vector<8x16x4xf32>
    %c0_101 = arith.constant 0 : index
    %c2_102 = arith.constant 2 : index
    %c0_103 = arith.constant 0 : index
    %57 = vector.load %arg8[%c0_101, %c2_102, %c0_103] : memref<18x18x4xf32, #tpu.memory_space<vmem>>, vector<8x16x4xf32>
    %c1_104 = arith.constant 1 : index
    %c0_105 = arith.constant 0 : index
    %c0_106 = arith.constant 0 : index
    %58 = vector.load %arg8[%c1_104, %c0_105, %c0_106] : memref<18x18x4xf32, #tpu.memory_space<vmem>>, vector<8x16x4xf32>
    %c1_107 = arith.constant 1 : index
    %c1_108 = arith.constant 1 : index
    %c0_109 = arith.constant 0 : index
    %59 = vector.load %arg8[%c1_107, %c1_108, %c0_109] : memref<18x18x4xf32, #tpu.memory_space<vmem>>, vector<8x16x4xf32>
    %c1_110 = arith.constant 1 : index
    %c2_111 = arith.constant 2 : index
    %c0_112 = arith.constant 0 : index
    %60 = vector.load %arg8[%c1_110, %c2_111, %c0_112] : memref<18x18x4xf32, #tpu.memory_space<vmem>>, vector<8x16x4xf32>
    %c2_113 = arith.constant 2 : index
    %c0_114 = arith.constant 0 : index
    %c0_115 = arith.constant 0 : index
    %61 = vector.load %arg8[%c2_113, %c0_114, %c0_115] : memref<18x18x4xf32, #tpu.memory_space<vmem>>, vector<8x16x4xf32>
    %c2_116 = arith.constant 2 : index
    %c1_117 = arith.constant 1 : index
    %c0_118 = arith.constant 0 : index
    %62 = vector.load %arg8[%c2_116, %c1_117, %c0_118] : memref<18x18x4xf32, #tpu.memory_space<vmem>>, vector<8x16x4xf32>
    %c2_119 = arith.constant 2 : index
    %c2_120 = arith.constant 2 : index
    %c0_121 = arith.constant 0 : index
    %63 = vector.load %arg8[%c2_119, %c2_120, %c0_121] : memref<18x18x4xf32, #tpu.memory_space<vmem>>, vector<8x16x4xf32>
    %64 = tpu.concatenate %55, %56, %57, %58, %59, %60, %61, %62, %63 in 2 : vector<8x16x4xf32>, vector<8x16x4xf32>, vector<8x16x4xf32>, vector<8x16x4xf32>, vector<8x16x4xf32>, vector<8x16x4xf32>, vector<8x16x4xf32>, vector<8x16x4xf32>, vector<8x16x4xf32> -> vector<8x16x36xf32>
    %65 = vector.shape_cast %64 : vector<8x16x36xf32> to vector<128x36xf32>
    %c0_122 = arith.constant 0 : index
    %c0_123 = arith.constant 0 : index
    %66 = vector.load %arg4[%c0_122, %c0_123] : memref<36x8xf32, #tpu.memory_space<vmem>>, vector<36x8xf32>
    %cst_124 = arith.constant dense<0.000000e+00> : vector<128x8xf32>
    %67 = tpu.matmul %65, %66, %cst_124 {dimension_numbers = #tpu.dot_dimension_numbers<[1], [0], [0], [1], [0, 0, 1, 1], [], []>} : vector<128x36xf32>, vector<36x8xf32>, vector<128x8xf32> -> vector<128x8xf32>
    %c0_125 = arith.constant 0 : index
    %c0_126 = arith.constant 0 : index
    %68 = vector.load %arg5[%c0_125, %c0_126] : memref<1x8xf32, #tpu.memory_space<vmem>>, vector<1x8xf32>
    %69 = vector.broadcast %68 : vector<1x8xf32> to vector<128x8xf32>
    %70 = arith.addf %67, %69 : vector<128x8xf32>
    %71 = vector.extract_strided_slice %70 {offsets = [0, 0], sizes = [128, 4], strides = [1, 1]} : vector<128x8xf32> to vector<128x4xf32>
    %72 = vector.extract_strided_slice %70 {offsets = [0, 4], sizes = [128, 4], strides = [1, 1]} : vector<128x8xf32> to vector<128x4xf32>
    %73 = arith.maximumf %71, %72 : vector<128x4xf32>
    %c0_127 = arith.constant 0 : index
    %c0_128 = arith.constant 0 : index
    %c0_129 = arith.constant 0 : index
    %c0_130 = arith.constant 0 : index
    %74 = vector.load %arg1[%c0_127, %c0_128, %c0_129, %c0_130] : memref<1x16x16x4xf32, #tpu.memory_space<vmem>>, vector<1x8x16x4xf32>
    %75 = vector.shape_cast %74 : vector<1x8x16x4xf32> to vector<8x16x4xf32>
    %76 = vector.shape_cast %75 : vector<8x16x4xf32> to vector<128x4xf32>
    %77 = arith.addf %73, %76 : vector<128x4xf32>
    %c0_131 = arith.constant 0 : index
    %c0_132 = arith.constant 0 : index
    %c0_133 = arith.constant 0 : index
    %78 = vector.load %arg6[%c0_131, %c0_132, %c0_133] : memref<1x256x4xf32, #tpu.memory_space<vmem>>, vector<1x128x4xf32>
    %79 = vector.shape_cast %78 : vector<1x128x4xf32> to vector<128x4xf32>
    %80 = vector.shape_cast %77 : vector<128x4xf32> to vector<1x128x4xf32>
    tpu.vector_store %arg6[%c0_131, %c0_132, %c0_133], %80 {strides = array<i32>} : memref<1x256x4xf32, #tpu.memory_space<vmem>>, vector<1x128x4xf32>,
    %c8_134 = arith.constant 8 : index
    %c0_135 = arith.constant 0 : index
    %c0_136 = arith.constant 0 : index
    %81 = vector.load %arg8[%c8_134, %c0_135, %c0_136] : memref<18x18x4xf32, #tpu.memory_space<vmem>>, vector<8x16x4xf32>
    %c8_137 = arith.constant 8 : index
    %c1_138 = arith.constant 1 : index
    %c0_139 = arith.constant 0 : index
    %82 = vector.load %arg8[%c8_137, %c1_138, %c0_139] : memref<18x18x4xf32, #tpu.memory_space<vmem>>, vector<8x16x4xf32>
    %c8_140 = arith.constant 8 : index
    %c2_141 = arith.constant 2 : index
    %c0_142 = arith.constant 0 : index
    %83 = vector.load %arg8[%c8_140, %c2_141, %c0_142] : memref<18x18x4xf32, #tpu.memory_space<vmem>>, vector<8x16x4xf32>
    %c9_143 = arith.constant 9 : index
    %c0_144 = arith.constant 0 : index
    %c0_145 = arith.constant 0 : index
    %84 = vector.load %arg8[%c9_143, %c0_144, %c0_145] : memref<18x18x4xf32, #tpu.memory_space<vmem>>, vector<8x16x4xf32>
    %c9_146 = arith.constant 9 : index
    %c1_147 = arith.constant 1 : index
    %c0_148 = arith.constant 0 : index
    %85 = vector.load %arg8[%c9_146, %c1_147, %c0_148] : memref<18x18x4xf32, #tpu.memory_space<vmem>>, vector<8x16x4xf32>
    %c9_149 = arith.constant 9 : index
    %c2_150 = arith.constant 2 : index
    %c0_151 = arith.constant 0 : index
    %86 = vector.load %arg8[%c9_149, %c2_150, %c0_151] : memref<18x18x4xf32, #tpu.memory_space<vmem>>, vector<8x16x4xf32>
    %c10_152 = arith.constant 10 : index
    %c0_153 = arith.constant 0 : index
    %c0_154 = arith.constant 0 : index
    %87 = vector.load %arg8[%c10_152, %c0_153, %c0_154] : memref<18x18x4xf32, #tpu.memory_space<vmem>>, vector<8x16x4xf32>
    %c10_155 = arith.constant 10 : index
    %c1_156 = arith.constant 1 : index
    %c0_157 = arith.constant 0 : index
    %88 = vector.load %arg8[%c10_155, %c1_156, %c0_157] : memref<18x18x4xf32, #tpu.memory_space<vmem>>, vector<8x16x4xf32>
    %c10_158 = arith.constant 10 : index
    %c2_159 = arith.constant 2 : index
    %c0_160 = arith.constant 0 : index
    %89 = vector.load %arg8[%c10_158, %c2_159, %c0_160] : memref<18x18x4xf32, #tpu.memory_space<vmem>>, vector<8x16x4xf32>
    %90 = tpu.concatenate %81, %82, %83, %84, %85, %86, %87, %88, %89 in 2 : vector<8x16x4xf32>, vector<8x16x4xf32>, vector<8x16x4xf32>, vector<8x16x4xf32>, vector<8x16x4xf32>, vector<8x16x4xf32>, vector<8x16x4xf32>, vector<8x16x4xf32>, vector<8x16x4xf32> -> vector<8x16x36xf32>
    %91 = vector.shape_cast %90 : vector<8x16x36xf32> to vector<128x36xf32>
    %c0_161 = arith.constant 0 : index
    %c0_162 = arith.constant 0 : index
    %92 = vector.load %arg4[%c0_161, %c0_162] : memref<36x8xf32, #tpu.memory_space<vmem>>, vector<36x8xf32>
    %cst_163 = arith.constant dense<0.000000e+00> : vector<128x8xf32>
    %93 = tpu.matmul %91, %92, %cst_163 {dimension_numbers = #tpu.dot_dimension_numbers<[1], [0], [0], [1], [0, 0, 1, 1], [], []>} : vector<128x36xf32>, vector<36x8xf32>, vector<128x8xf32> -> vector<128x8xf32>
    %c0_164 = arith.constant 0 : index
    %c0_165 = arith.constant 0 : index
    %94 = vector.load %arg5[%c0_164, %c0_165] : memref<1x8xf32, #tpu.memory_space<vmem>>, vector<1x8xf32>
    %95 = vector.broadcast %94 : vector<1x8xf32> to vector<128x8xf32>
    %96 = arith.addf %93, %95 : vector<128x8xf32>
    %97 = vector.extract_strided_slice %96 {offsets = [0, 0], sizes = [128, 4], strides = [1, 1]} : vector<128x8xf32> to vector<128x4xf32>
    %98 = vector.extract_strided_slice %96 {offsets = [0, 4], sizes = [128, 4], strides = [1, 1]} : vector<128x8xf32> to vector<128x4xf32>
    %99 = arith.maximumf %97, %98 : vector<128x4xf32>
    %c0_166 = arith.constant 0 : index
    %c8_167 = arith.constant 8 : index
    %c0_168 = arith.constant 0 : index
    %c0_169 = arith.constant 0 : index
    %100 = vector.load %arg1[%c0_166, %c8_167, %c0_168, %c0_169] : memref<1x16x16x4xf32, #tpu.memory_space<vmem>>, vector<1x8x16x4xf32>
    %101 = vector.shape_cast %100 : vector<1x8x16x4xf32> to vector<8x16x4xf32>
    %102 = vector.shape_cast %101 : vector<8x16x4xf32> to vector<128x4xf32>
    %103 = arith.addf %99, %102 : vector<128x4xf32>
    %c0_170 = arith.constant 0 : index
    %c128 = arith.constant 128 : index
    %c0_171 = arith.constant 0 : index
    %104 = vector.load %arg6[%c0_170, %c128, %c0_171] : memref<1x256x4xf32, #tpu.memory_space<vmem>>, vector<1x128x4xf32>
    %105 = vector.shape_cast %104 : vector<1x128x4xf32> to vector<128x4xf32>
    %106 = vector.shape_cast %103 : vector<128x4xf32> to vector<1x128x4xf32>
    tpu.vector_store %arg6[%c0_170, %c128, %c0_171], %106 {strides = array<i32>} : memref<1x256x4xf32, #tpu.memory_space<vmem>>, vector<1x128x4xf32>,
    return
  }
  func.func @transform_0(%arg0: i32) -> (i32, i32, i32, i32) {
    %c0_i32 = arith.constant 0 : i32
    %c0_i32_0 = arith.constant 0 : i32
    %c0_i32_1 = arith.constant 0 : i32
    %c0_i32_2 = arith.constant 0 : i32
    return %arg0, %c0_i32, %c0_i32_0, %c0_i32_1 : i32, i32, i32, i32
  }
  func.func @transform_1(%arg0: i32) -> (i32, i32) {
    %c0_i32 = arith.constant 0 : i32
    %c0_i32_0 = arith.constant 0 : i32
    %c0_i32_1 = arith.constant 0 : i32
    return %c0_i32, %c0_i32_0 : i32, i32
  }
  func.func @transform_2(%arg0: i32) -> (i32, i32) {
    %c0_i32 = arith.constant 0 : i32
    %c0_i32_0 = arith.constant 0 : i32
    %c0_i32_1 = arith.constant 0 : i32
    return %c0_i32, %c0_i32_0 : i32, i32
  }
  func.func @transform_3(%arg0: i32) -> (i32, i32) {
    %c0_i32 = arith.constant 0 : i32
    %c0_i32_0 = arith.constant 0 : i32
    %c0_i32_1 = arith.constant 0 : i32
    return %c0_i32, %c0_i32_0 : i32, i32
  }
  func.func @transform_4(%arg0: i32) -> (i32, i32) {
    %c0_i32 = arith.constant 0 : i32
    %c0_i32_0 = arith.constant 0 : i32
    %c0_i32_1 = arith.constant 0 : i32
    return %c0_i32, %c0_i32_0 : i32, i32
  }
  func.func @transform_5(%arg0: i32) -> (i32, i32, i32) {
    %c0_i32 = arith.constant 0 : i32
    %c0_i32_0 = arith.constant 0 : i32
    %c0_i32_1 = arith.constant 0 : i32
    return %arg0, %c0_i32, %c0_i32_0 : i32, i32, i32
  }
}

module attributes {stable_mosaic.version = 11 : i64} {
  func.func @_residual_block_kernel(%arg0: i32, %arg1: memref<1x16x16x4xf32, #tpu.memory_space<vmem>>, %arg2: memref<36x8xf32, #tpu.memory_space<vmem>>, %arg3: memref<1x8xf32, #tpu.memory_space<vmem>>, %arg4: memref<36x8xf32, #tpu.memory_space<vmem>>, %arg5: memref<1x8xf32, #tpu.memory_space<vmem>>, %arg6: memref<1x256x4xf32, #tpu.memory_space<vmem>>, %arg7: memref<18x18x4xf32, #tpu.memory_space<vmem>>, %arg8: memref<18x18x4xf32, #tpu.memory_space<vmem>>) attributes {dimension_semantics = [#tpu.dimension_semantics<parallel>], iteration_bounds = array<i64: 2>, scalar_prefetch = 0 : i64, scratch_operands = 2 : i64, tpu.core_type = #tpu.core_type<tc>, window_params = [{transform_indices = @transform_0, window_bounds = array<i64: 1, 16, 16, 4>}, {pipeline_mode = #tpu.pipeline_mode<synchronous>, transform_indices = @transform_1, window_bounds = array<i64: 36, 8>}, {pipeline_mode = #tpu.pipeline_mode<synchronous>, transform_indices = @transform_2, window_bounds = array<i64: 1, 8>}, {pipeline_mode = #tpu.pipeline_mode<synchronous>, transform_indices = @transform_3, window_bounds = array<i64: 36, 8>}, {pipeline_mode = #tpu.pipeline_mode<synchronous>, transform_indices = @transform_4, window_bounds = array<i64: 1, 8>}, {transform_indices = @transform_5, window_bounds = array<i64: 1, 256, 4>}]} {
    %cst = arith.constant 0.000000e+00 : f32
    %0 = vector.broadcast %cst : f32 to vector<1x18x4xf32>
    %cst_0 = arith.constant 0.000000e+00 : f32
    %1 = vector.broadcast %cst_0 : f32 to vector<18x1x4xf32>
    %c0 = arith.constant 0 : index
    %c0_1 = arith.constant 0 : index
    %c0_2 = arith.constant 0 : index
    %2 = vector.load %arg7[%c0, %c0_1, %c0_2] : memref<18x18x4xf32, #tpu.memory_space<vmem>>, vector<1x18x4xf32>
    tpu.vector_store %arg7[%c0, %c0_1, %c0_2], %0 {strides = array<i32>} : memref<18x18x4xf32, #tpu.memory_space<vmem>>, vector<1x18x4xf32>,
    %c17 = arith.constant 17 : index
    %c0_3 = arith.constant 0 : index
    %c0_4 = arith.constant 0 : index
    %3 = vector.load %arg7[%c17, %c0_3, %c0_4] : memref<18x18x4xf32, #tpu.memory_space<vmem>>, vector<1x18x4xf32>
    tpu.vector_store %arg7[%c17, %c0_3, %c0_4], %0 {strides = array<i32>} : memref<18x18x4xf32, #tpu.memory_space<vmem>>, vector<1x18x4xf32>,
    %c0_5 = arith.constant 0 : index
    %c0_6 = arith.constant 0 : index
    %c0_7 = arith.constant 0 : index
    %4 = vector.load %arg7[%c0_5, %c0_6, %c0_7] : memref<18x18x4xf32, #tpu.memory_space<vmem>>, vector<18x1x4xf32>
    tpu.vector_store %arg7[%c0_5, %c0_6, %c0_7], %1 {strides = array<i32>} : memref<18x18x4xf32, #tpu.memory_space<vmem>>, vector<18x1x4xf32>,
    %c0_8 = arith.constant 0 : index
    %c17_9 = arith.constant 17 : index
    %c0_10 = arith.constant 0 : index
    %5 = vector.load %arg7[%c0_8, %c17_9, %c0_10] : memref<18x18x4xf32, #tpu.memory_space<vmem>>, vector<18x1x4xf32>
    tpu.vector_store %arg7[%c0_8, %c17_9, %c0_10], %1 {strides = array<i32>} : memref<18x18x4xf32, #tpu.memory_space<vmem>>, vector<18x1x4xf32>,
    %c0_11 = arith.constant 0 : index
    %c0_12 = arith.constant 0 : index
    %c0_13 = arith.constant 0 : index
    %6 = vector.load %arg8[%c0_11, %c0_12, %c0_13] : memref<18x18x4xf32, #tpu.memory_space<vmem>>, vector<1x18x4xf32>
    tpu.vector_store %arg8[%c0_11, %c0_12, %c0_13], %0 {strides = array<i32>} : memref<18x18x4xf32, #tpu.memory_space<vmem>>, vector<1x18x4xf32>,
    %c17_14 = arith.constant 17 : index
    %c0_15 = arith.constant 0 : index
    %c0_16 = arith.constant 0 : index
    %7 = vector.load %arg8[%c17_14, %c0_15, %c0_16] : memref<18x18x4xf32, #tpu.memory_space<vmem>>, vector<1x18x4xf32>
    tpu.vector_store %arg8[%c17_14, %c0_15, %c0_16], %0 {strides = array<i32>} : memref<18x18x4xf32, #tpu.memory_space<vmem>>, vector<1x18x4xf32>,
    %c0_17 = arith.constant 0 : index
    %c0_18 = arith.constant 0 : index
    %c0_19 = arith.constant 0 : index
    %8 = vector.load %arg8[%c0_17, %c0_18, %c0_19] : memref<18x18x4xf32, #tpu.memory_space<vmem>>, vector<18x1x4xf32>
    tpu.vector_store %arg8[%c0_17, %c0_18, %c0_19], %1 {strides = array<i32>} : memref<18x18x4xf32, #tpu.memory_space<vmem>>, vector<18x1x4xf32>,
    %c0_20 = arith.constant 0 : index
    %c17_21 = arith.constant 17 : index
    %c0_22 = arith.constant 0 : index
    %9 = vector.load %arg8[%c0_20, %c17_21, %c0_22] : memref<18x18x4xf32, #tpu.memory_space<vmem>>, vector<18x1x4xf32>
    tpu.vector_store %arg8[%c0_20, %c17_21, %c0_22], %1 {strides = array<i32>} : memref<18x18x4xf32, #tpu.memory_space<vmem>>, vector<18x1x4xf32>,
    %c0_23 = arith.constant 0 : index
    %c0_24 = arith.constant 0 : index
    %c0_25 = arith.constant 0 : index
    %c0_26 = arith.constant 0 : index
    %10 = vector.load %arg1[%c0_23, %c0_24, %c0_25, %c0_26] : memref<1x16x16x4xf32, #tpu.memory_space<vmem>>, vector<1x16x16x4xf32>
    %11 = vector.shape_cast %10 : vector<1x16x16x4xf32> to vector<16x16x4xf32>
    %c1 = arith.constant 1 : index
    %c1_27 = arith.constant 1 : index
    %c0_28 = arith.constant 0 : index
    %12 = vector.load %arg7[%c1, %c1_27, %c0_28] : memref<18x18x4xf32, #tpu.memory_space<vmem>>, vector<16x16x4xf32>
    tpu.vector_store %arg7[%c1, %c1_27, %c0_28], %11 {strides = array<i32>} : memref<18x18x4xf32, #tpu.memory_space<vmem>>, vector<16x16x4xf32>,
    %c0_29 = arith.constant 0 : index
    %c0_30 = arith.constant 0 : index
    %c0_31 = arith.constant 0 : index
    %13 = vector.load %arg7[%c0_29, %c0_30, %c0_31] : memref<18x18x4xf32, #tpu.memory_space<vmem>>, vector<8x16x4xf32>
    %c0_32 = arith.constant 0 : index
    %c1_33 = arith.constant 1 : index
    %c0_34 = arith.constant 0 : index
    %14 = vector.load %arg7[%c0_32, %c1_33, %c0_34] : memref<18x18x4xf32, #tpu.memory_space<vmem>>, vector<8x16x4xf32>
    %c0_35 = arith.constant 0 : index
    %c2 = arith.constant 2 : index
    %c0_36 = arith.constant 0 : index
    %15 = vector.load %arg7[%c0_35, %c2, %c0_36] : memref<18x18x4xf32, #tpu.memory_space<vmem>>, vector<8x16x4xf32>
    %c1_37 = arith.constant 1 : index
    %c0_38 = arith.constant 0 : index
    %c0_39 = arith.constant 0 : index
    %16 = vector.load %arg7[%c1_37, %c0_38, %c0_39] : memref<18x18x4xf32, #tpu.memory_space<vmem>>, vector<8x16x4xf32>
    %c1_40 = arith.constant 1 : index
    %c1_41 = arith.constant 1 : index
    %c0_42 = arith.constant 0 : index
    %17 = vector.load %arg7[%c1_40, %c1_41, %c0_42] : memref<18x18x4xf32, #tpu.memory_space<vmem>>, vector<8x16x4xf32>
    %c1_43 = arith.constant 1 : index
    %c2_44 = arith.constant 2 : index
    %c0_45 = arith.constant 0 : index
    %18 = vector.load %arg7[%c1_43, %c2_44, %c0_45] : memref<18x18x4xf32, #tpu.memory_space<vmem>>, vector<8x16x4xf32>
    %c2_46 = arith.constant 2 : index
    %c0_47 = arith.constant 0 : index
    %c0_48 = arith.constant 0 : index
    %19 = vector.load %arg7[%c2_46, %c0_47, %c0_48] : memref<18x18x4xf32, #tpu.memory_space<vmem>>, vector<8x16x4xf32>
    %c2_49 = arith.constant 2 : index
    %c1_50 = arith.constant 1 : index
    %c0_51 = arith.constant 0 : index
    %20 = vector.load %arg7[%c2_49, %c1_50, %c0_51] : memref<18x18x4xf32, #tpu.memory_space<vmem>>, vector<8x16x4xf32>
    %c2_52 = arith.constant 2 : index
    %c2_53 = arith.constant 2 : index
    %c0_54 = arith.constant 0 : index
    %21 = vector.load %arg7[%c2_52, %c2_53, %c0_54] : memref<18x18x4xf32, #tpu.memory_space<vmem>>, vector<8x16x4xf32>
    %22 = tpu.concatenate %13, %14, %15, %16, %17, %18, %19, %20, %21 in 2 : vector<8x16x4xf32>, vector<8x16x4xf32>, vector<8x16x4xf32>, vector<8x16x4xf32>, vector<8x16x4xf32>, vector<8x16x4xf32>, vector<8x16x4xf32>, vector<8x16x4xf32>, vector<8x16x4xf32> -> vector<8x16x36xf32>
    %23 = vector.shape_cast %22 : vector<8x16x36xf32> to vector<128x36xf32>
    %c0_55 = arith.constant 0 : index
    %c0_56 = arith.constant 0 : index
    %24 = vector.load %arg2[%c0_55, %c0_56] : memref<36x8xf32, #tpu.memory_space<vmem>>, vector<36x8xf32>
    %cst_57 = arith.constant dense<0.000000e+00> : vector<128x8xf32>
    %25 = tpu.matmul %23, %24, %cst_57 {dimension_numbers = #tpu.dot_dimension_numbers<[1], [0], [0], [1], [0, 0, 1, 1], [], []>} : vector<128x36xf32>, vector<36x8xf32>, vector<128x8xf32> -> vector<128x8xf32>
    %c0_58 = arith.constant 0 : index
    %c0_59 = arith.constant 0 : index
    %26 = vector.load %arg3[%c0_58, %c0_59] : memref<1x8xf32, #tpu.memory_space<vmem>>, vector<1x8xf32>
    %27 = vector.broadcast %26 : vector<1x8xf32> to vector<128x8xf32>
    %28 = arith.addf %25, %27 : vector<128x8xf32>
    %29 = vector.extract_strided_slice %28 {offsets = [0, 0], sizes = [128, 4], strides = [1, 1]} : vector<128x8xf32> to vector<128x4xf32>
    %30 = vector.extract_strided_slice %28 {offsets = [0, 4], sizes = [128, 4], strides = [1, 1]} : vector<128x8xf32> to vector<128x4xf32>
    %31 = arith.maximumf %29, %30 : vector<128x4xf32>
    %32 = vector.shape_cast %31 : vector<128x4xf32> to vector<8x16x4xf32>
    %c1_60 = arith.constant 1 : index
    %c1_61 = arith.constant 1 : index
    %c0_62 = arith.constant 0 : index
    %33 = vector.load %arg8[%c1_60, %c1_61, %c0_62] : memref<18x18x4xf32, #tpu.memory_space<vmem>>, vector<8x16x4xf32>
    tpu.vector_store %arg8[%c1_60, %c1_61, %c0_62], %32 {strides = array<i32>} : memref<18x18x4xf32, #tpu.memory_space<vmem>>, vector<8x16x4xf32>,
    %c8 = arith.constant 8 : index
    %c0_63 = arith.constant 0 : index
    %c0_64 = arith.constant 0 : index
    %34 = vector.load %arg7[%c8, %c0_63, %c0_64] : memref<18x18x4xf32, #tpu.memory_space<vmem>>, vector<8x16x4xf32>
    %c8_65 = arith.constant 8 : index
    %c1_66 = arith.constant 1 : index
    %c0_67 = arith.constant 0 : index
    %35 = vector.load %arg7[%c8_65, %c1_66, %c0_67] : memref<18x18x4xf32, #tpu.memory_space<vmem>>, vector<8x16x4xf32>
    %c8_68 = arith.constant 8 : index
    %c2_69 = arith.constant 2 : index
    %c0_70 = arith.constant 0 : index
    %36 = vector.load %arg7[%c8_68, %c2_69, %c0_70] : memref<18x18x4xf32, #tpu.memory_space<vmem>>, vector<8x16x4xf32>
    %c9 = arith.constant 9 : index
    %c0_71 = arith.constant 0 : index
    %c0_72 = arith.constant 0 : index
    %37 = vector.load %arg7[%c9, %c0_71, %c0_72] : memref<18x18x4xf32, #tpu.memory_space<vmem>>, vector<8x16x4xf32>
    %c9_73 = arith.constant 9 : index
    %c1_74 = arith.constant 1 : index
    %c0_75 = arith.constant 0 : index
    %38 = vector.load %arg7[%c9_73, %c1_74, %c0_75] : memref<18x18x4xf32, #tpu.memory_space<vmem>>, vector<8x16x4xf32>
    %c9_76 = arith.constant 9 : index
    %c2_77 = arith.constant 2 : index
    %c0_78 = arith.constant 0 : index
    %39 = vector.load %arg7[%c9_76, %c2_77, %c0_78] : memref<18x18x4xf32, #tpu.memory_space<vmem>>, vector<8x16x4xf32>
    %c10 = arith.constant 10 : index
    %c0_79 = arith.constant 0 : index
    %c0_80 = arith.constant 0 : index
    %40 = vector.load %arg7[%c10, %c0_79, %c0_80] : memref<18x18x4xf32, #tpu.memory_space<vmem>>, vector<8x16x4xf32>
    %c10_81 = arith.constant 10 : index
    %c1_82 = arith.constant 1 : index
    %c0_83 = arith.constant 0 : index
    %41 = vector.load %arg7[%c10_81, %c1_82, %c0_83] : memref<18x18x4xf32, #tpu.memory_space<vmem>>, vector<8x16x4xf32>
    %c10_84 = arith.constant 10 : index
    %c2_85 = arith.constant 2 : index
    %c0_86 = arith.constant 0 : index
    %42 = vector.load %arg7[%c10_84, %c2_85, %c0_86] : memref<18x18x4xf32, #tpu.memory_space<vmem>>, vector<8x16x4xf32>
    %43 = tpu.concatenate %34, %35, %36, %37, %38, %39, %40, %41, %42 in 2 : vector<8x16x4xf32>, vector<8x16x4xf32>, vector<8x16x4xf32>, vector<8x16x4xf32>, vector<8x16x4xf32>, vector<8x16x4xf32>, vector<8x16x4xf32>, vector<8x16x4xf32>, vector<8x16x4xf32> -> vector<8x16x36xf32>
    %44 = vector.shape_cast %43 : vector<8x16x36xf32> to vector<128x36xf32>
    %c0_87 = arith.constant 0 : index
    %c0_88 = arith.constant 0 : index
    %45 = vector.load %arg2[%c0_87, %c0_88] : memref<36x8xf32, #tpu.memory_space<vmem>>, vector<36x8xf32>
    %cst_89 = arith.constant dense<0.000000e+00> : vector<128x8xf32>
    %46 = tpu.matmul %44, %45, %cst_89 {dimension_numbers = #tpu.dot_dimension_numbers<[1], [0], [0], [1], [0, 0, 1, 1], [], []>} : vector<128x36xf32>, vector<36x8xf32>, vector<128x8xf32> -> vector<128x8xf32>
    %c0_90 = arith.constant 0 : index
    %c0_91 = arith.constant 0 : index
    %47 = vector.load %arg3[%c0_90, %c0_91] : memref<1x8xf32, #tpu.memory_space<vmem>>, vector<1x8xf32>
    %48 = vector.broadcast %47 : vector<1x8xf32> to vector<128x8xf32>
    %49 = arith.addf %46, %48 : vector<128x8xf32>
    %50 = vector.extract_strided_slice %49 {offsets = [0, 0], sizes = [128, 4], strides = [1, 1]} : vector<128x8xf32> to vector<128x4xf32>
    %51 = vector.extract_strided_slice %49 {offsets = [0, 4], sizes = [128, 4], strides = [1, 1]} : vector<128x8xf32> to vector<128x4xf32>
    %52 = arith.maximumf %50, %51 : vector<128x4xf32>
    %53 = vector.shape_cast %52 : vector<128x4xf32> to vector<8x16x4xf32>
    %c9_92 = arith.constant 9 : index
    %c1_93 = arith.constant 1 : index
    %c0_94 = arith.constant 0 : index
    %54 = vector.load %arg8[%c9_92, %c1_93, %c0_94] : memref<18x18x4xf32, #tpu.memory_space<vmem>>, vector<8x16x4xf32>
    tpu.vector_store %arg8[%c9_92, %c1_93, %c0_94], %53 {strides = array<i32>} : memref<18x18x4xf32, #tpu.memory_space<vmem>>, vector<8x16x4xf32>,
    %c0_95 = arith.constant 0 : index
    %c0_96 = arith.constant 0 : index
    %c0_97 = arith.constant 0 : index
    %55 = vector.load %arg8[%c0_95, %c0_96, %c0_97] : memref<18x18x4xf32, #tpu.memory_space<vmem>>, vector<8x16x4xf32>
    %c0_98 = arith.constant 0 : index
    %c1_99 = arith.constant 1 : index
    %c0_100 = arith.constant 0 : index
    %56 = vector.load %arg8[%c0_98, %c1_99, %c0_100] : memref<18x18x4xf32, #tpu.memory_space<vmem>>, vector<8x16x4xf32>
    %c0_101 = arith.constant 0 : index
    %c2_102 = arith.constant 2 : index
    %c0_103 = arith.constant 0 : index
    %57 = vector.load %arg8[%c0_101, %c2_102, %c0_103] : memref<18x18x4xf32, #tpu.memory_space<vmem>>, vector<8x16x4xf32>
    %c1_104 = arith.constant 1 : index
    %c0_105 = arith.constant 0 : index
    %c0_106 = arith.constant 0 : index
    %58 = vector.load %arg8[%c1_104, %c0_105, %c0_106] : memref<18x18x4xf32, #tpu.memory_space<vmem>>, vector<8x16x4xf32>
    %c1_107 = arith.constant 1 : index
    %c1_108 = arith.constant 1 : index
    %c0_109 = arith.constant 0 : index
    %59 = vector.load %arg8[%c1_107, %c1_108, %c0_109] : memref<18x18x4xf32, #tpu.memory_space<vmem>>, vector<8x16x4xf32>
    %c1_110 = arith.constant 1 : index
    %c2_111 = arith.constant 2 : index
    %c0_112 = arith.constant 0 : index
    %60 = vector.load %arg8[%c1_110, %c2_111, %c0_112] : memref<18x18x4xf32, #tpu.memory_space<vmem>>, vector<8x16x4xf32>
    %c2_113 = arith.constant 2 : index
    %c0_114 = arith.constant 0 : index
    %c0_115 = arith.constant 0 : index
    %61 = vector.load %arg8[%c2_113, %c0_114, %c0_115] : memref<18x18x4xf32, #tpu.memory_space<vmem>>, vector<8x16x4xf32>
    %c2_116 = arith.constant 2 : index
    %c1_117 = arith.constant 1 : index
    %c0_118 = arith.constant 0 : index
    %62 = vector.load %arg8[%c2_116, %c1_117, %c0_118] : memref<18x18x4xf32, #tpu.memory_space<vmem>>, vector<8x16x4xf32>
    %c2_119 = arith.constant 2 : index
    %c2_120 = arith.constant 2 : index
    %c0_121 = arith.constant 0 : index
    %63 = vector.load %arg8[%c2_119, %c2_120, %c0_121] : memref<18x18x4xf32, #tpu.memory_space<vmem>>, vector<8x16x4xf32>
    %64 = tpu.concatenate %55, %56, %57, %58, %59, %60, %61, %62, %63 in 2 : vector<8x16x4xf32>, vector<8x16x4xf32>, vector<8x16x4xf32>, vector<8x16x4xf32>, vector<8x16x4xf32>, vector<8x16x4xf32>, vector<8x16x4xf32>, vector<8x16x4xf32>, vector<8x16x4xf32> -> vector<8x16x36xf32>
    %65 = vector.shape_cast %64 : vector<8x16x36xf32> to vector<128x36xf32>
    %c0_122 = arith.constant 0 : index
    %c0_123 = arith.constant 0 : index
    %66 = vector.load %arg4[%c0_122, %c0_123] : memref<36x8xf32, #tpu.memory_space<vmem>>, vector<36x8xf32>
    %cst_124 = arith.constant dense<0.000000e+00> : vector<128x8xf32>
    %67 = tpu.matmul %65, %66, %cst_124 {dimension_numbers = #tpu.dot_dimension_numbers<[1], [0], [0], [1], [0, 0, 1, 1], [], []>} : vector<128x36xf32>, vector<36x8xf32>, vector<128x8xf32> -> vector<128x8xf32>
    %c0_125 = arith.constant 0 : index
    %c0_126 = arith.constant 0 : index
    %68 = vector.load %arg5[%c0_125, %c0_126] : memref<1x8xf32, #tpu.memory_space<vmem>>, vector<1x8xf32>
    %69 = vector.broadcast %68 : vector<1x8xf32> to vector<128x8xf32>
    %70 = arith.addf %67, %69 : vector<128x8xf32>
    %71 = vector.extract_strided_slice %70 {offsets = [0, 0], sizes = [128, 4], strides = [1, 1]} : vector<128x8xf32> to vector<128x4xf32>
    %72 = vector.extract_strided_slice %70 {offsets = [0, 4], sizes = [128, 4], strides = [1, 1]} : vector<128x8xf32> to vector<128x4xf32>
    %73 = arith.maximumf %71, %72 : vector<128x4xf32>
    %c0_127 = arith.constant 0 : index
    %c0_128 = arith.constant 0 : index
    %c0_129 = arith.constant 0 : index
    %c0_130 = arith.constant 0 : index
    %74 = vector.load %arg1[%c0_127, %c0_128, %c0_129, %c0_130] : memref<1x16x16x4xf32, #tpu.memory_space<vmem>>, vector<1x8x16x4xf32>
    %75 = vector.shape_cast %74 : vector<1x8x16x4xf32> to vector<8x16x4xf32>
    %76 = vector.shape_cast %75 : vector<8x16x4xf32> to vector<128x4xf32>
    %77 = arith.addf %73, %76 : vector<128x4xf32>
    %c0_131 = arith.constant 0 : index
    %c0_132 = arith.constant 0 : index
    %c0_133 = arith.constant 0 : index
    %78 = vector.load %arg6[%c0_131, %c0_132, %c0_133] : memref<1x256x4xf32, #tpu.memory_space<vmem>>, vector<1x128x4xf32>
    %79 = vector.shape_cast %78 : vector<1x128x4xf32> to vector<128x4xf32>
    %80 = vector.shape_cast %77 : vector<128x4xf32> to vector<1x128x4xf32>
    tpu.vector_store %arg6[%c0_131, %c0_132, %c0_133], %80 {strides = array<i32>} : memref<1x256x4xf32, #tpu.memory_space<vmem>>, vector<1x128x4xf32>,
    %c8_134 = arith.constant 8 : index
    %c0_135 = arith.constant 0 : index
    %c0_136 = arith.constant 0 : index
    %81 = vector.load %arg8[%c8_134, %c0_135, %c0_136] : memref<18x18x4xf32, #tpu.memory_space<vmem>>, vector<8x16x4xf32>
    %c8_137 = arith.constant 8 : index
    %c1_138 = arith.constant 1 : index
    %c0_139 = arith.constant 0 : index
    %82 = vector.load %arg8[%c8_137, %c1_138, %c0_139] : memref<18x18x4xf32, #tpu.memory_space<vmem>>, vector<8x16x4xf32>
    %c8_140 = arith.constant 8 : index
    %c2_141 = arith.constant 2 : index
    %c0_142 = arith.constant 0 : index
    %83 = vector.load %arg8[%c8_140, %c2_141, %c0_142] : memref<18x18x4xf32, #tpu.memory_space<vmem>>, vector<8x16x4xf32>
    %c9_143 = arith.constant 9 : index
    %c0_144 = arith.constant 0 : index
    %c0_145 = arith.constant 0 : index
    %84 = vector.load %arg8[%c9_143, %c0_144, %c0_145] : memref<18x18x4xf32, #tpu.memory_space<vmem>>, vector<8x16x4xf32>
    %c9_146 = arith.constant 9 : index
    %c1_147 = arith.constant 1 : index
    %c0_148 = arith.constant 0 : index
    %85 = vector.load %arg8[%c9_146, %c1_147, %c0_148] : memref<18x18x4xf32, #tpu.memory_space<vmem>>, vector<8x16x4xf32>
    %c9_149 = arith.constant 9 : index
    %c2_150 = arith.constant 2 : index
    %c0_151 = arith.constant 0 : index
    %86 = vector.load %arg8[%c9_149, %c2_150, %c0_151] : memref<18x18x4xf32, #tpu.memory_space<vmem>>, vector<8x16x4xf32>
    %c10_152 = arith.constant 10 : index
    %c0_153 = arith.constant 0 : index
    %c0_154 = arith.constant 0 : index
    %87 = vector.load %arg8[%c10_152, %c0_153, %c0_154] : memref<18x18x4xf32, #tpu.memory_space<vmem>>, vector<8x16x4xf32>
    %c10_155 = arith.constant 10 : index
    %c1_156 = arith.constant 1 : index
    %c0_157 = arith.constant 0 : index
    %88 = vector.load %arg8[%c10_155, %c1_156, %c0_157] : memref<18x18x4xf32, #tpu.memory_space<vmem>>, vector<8x16x4xf32>
    %c10_158 = arith.constant 10 : index
    %c2_159 = arith.constant 2 : index
    %c0_160 = arith.constant 0 : index
    %89 = vector.load %arg8[%c10_158, %c2_159, %c0_160] : memref<18x18x4xf32, #tpu.memory_space<vmem>>, vector<8x16x4xf32>
    %90 = tpu.concatenate %81, %82, %83, %84, %85, %86, %87, %88, %89 in 2 : vector<8x16x4xf32>, vector<8x16x4xf32>, vector<8x16x4xf32>, vector<8x16x4xf32>, vector<8x16x4xf32>, vector<8x16x4xf32>, vector<8x16x4xf32>, vector<8x16x4xf32>, vector<8x16x4xf32> -> vector<8x16x36xf32>
    %91 = vector.shape_cast %90 : vector<8x16x36xf32> to vector<128x36xf32>
    %c0_161 = arith.constant 0 : index
    %c0_162 = arith.constant 0 : index
    %92 = vector.load %arg4[%c0_161, %c0_162] : memref<36x8xf32, #tpu.memory_space<vmem>>, vector<36x8xf32>
    %cst_163 = arith.constant dense<0.000000e+00> : vector<128x8xf32>
    %93 = tpu.matmul %91, %92, %cst_163 {dimension_numbers = #tpu.dot_dimension_numbers<[1], [0], [0], [1], [0, 0, 1, 1], [], []>} : vector<128x36xf32>, vector<36x8xf32>, vector<128x8xf32> -> vector<128x8xf32>
    %c0_164 = arith.constant 0 : index
    %c0_165 = arith.constant 0 : index
    %94 = vector.load %arg5[%c0_164, %c0_165] : memref<1x8xf32, #tpu.memory_space<vmem>>, vector<1x8xf32>
    %95 = vector.broadcast %94 : vector<1x8xf32> to vector<128x8xf32>
    %96 = arith.addf %93, %95 : vector<128x8xf32>
    %97 = vector.extract_strided_slice %96 {offsets = [0, 0], sizes = [128, 4], strides = [1, 1]} : vector<128x8xf32> to vector<128x4xf32>
    %98 = vector.extract_strided_slice %96 {offsets = [0, 4], sizes = [128, 4], strides = [1, 1]} : vector<128x8xf32> to vector<128x4xf32>
    %99 = arith.maximumf %97, %98 : vector<128x4xf32>
    %c0_166 = arith.constant 0 : index
    %c8_167 = arith.constant 8 : index
    %c0_168 = arith.constant 0 : index
    %c0_169 = arith.constant 0 : index
    %100 = vector.load %arg1[%c0_166, %c8_167, %c0_168, %c0_169] : memref<1x16x16x4xf32, #tpu.memory_space<vmem>>, vector<1x8x16x4xf32>
    %101 = vector.shape_cast %100 : vector<1x8x16x4xf32> to vector<8x16x4xf32>
    %102 = vector.shape_cast %101 : vector<8x16x4xf32> to vector<128x4xf32>
    %103 = arith.addf %99, %102 : vector<128x4xf32>
    %c0_170 = arith.constant 0 : index
    %c128 = arith.constant 128 : index
    %c0_171 = arith.constant 0 : index
    %104 = vector.load %arg6[%c0_170, %c128, %c0_171] : memref<1x256x4xf32, #tpu.memory_space<vmem>>, vector<1x128x4xf32>
    %105 = vector.shape_cast %104 : vector<1x128x4xf32> to vector<128x4xf32>
    %106 = vector.shape_cast %103 : vector<128x4xf32> to vector<1x128x4xf32>
    tpu.vector_store %arg6[%c0_170, %c128, %c0_171], %106 {strides = array<i32>} : memref<1x256x4xf32, #tpu.memory_space<vmem>>, vector<1x128x4xf32>,
    return
  }
  func.func @transform_0(%arg0: i32) -> (i32, i32, i32, i32) {
    %c0_i32 = arith.constant 0 : i32
    %c0_i32_0 = arith.constant 0 : i32
    %c0_i32_1 = arith.constant 0 : i32
    %c0_i32_2 = arith.constant 0 : i32
    return %arg0, %c0_i32, %c0_i32_0, %c0_i32_1 : i32, i32, i32, i32
  }
  func.func @transform_1(%arg0: i32) -> (i32, i32) {
    %c0_i32 = arith.constant 0 : i32
    %c0_i32_0 = arith.constant 0 : i32
    %c0_i32_1 = arith.constant 0 : i32
    return %c0_i32, %c0_i32_0 : i32, i32
  }
  func.func @transform_2(%arg0: i32) -> (i32, i32) {
    %c0_i32 = arith.constant 0 : i32
    %c0_i32_0 = arith.constant 0 : i32
    %c0_i32_1 = arith.constant 0 : i32
    return %c0_i32, %c0_i32_0 : i32, i32
  }
  func.func @transform_3(%arg0: i32) -> (i32, i32) {
    %c0_i32 = arith.constant 0 : i32
    %c0_i32_0 = arith.constant 0 : i32
    %c0_i32_1 = arith.constant 0 : i32
    return %c0_i32, %c0_i32_0 : i32, i32
  }
  func.func @transform_4(%arg0: i32) -> (i32, i32) {
    %c0_i32 = arith.constant 0 : i32
    %c0_i32_0 = arith.constant 0 : i32
    %c0_i32_1 = arith.constant 0 : i32
    return %c0_i32, %c0_i32_0 : i32, i32
  }
  func.func @transform_5(%arg0: i32) -> (i32, i32, i32) {
    %c0_i32 = arith.constant 0 : i32
    %c0_i32_0 = arith.constant 0 : i32
    %c0_i32_1 = arith.constant 0 : i32
    return %arg0, %c0_i32, %c0_i32_0 : i32, i32, i32
  }
}

</mosaic_0001>

<llo_original>
// kernel: tpu_custom_call.1
$region0: #{tpu_custom_call.1}
  #allocation0 [shape = 'u32[]', space=smem, size = 0x4, offset = 0x4, fixed_abs, tag = 'smem constant byte address 0x4 - core index']
  #allocation1 [shape = 'u32[144,128]{1,0:T(1,128)}', space=vmem, size = 0x12000, scoped, tag = 'internal scratch']
  #allocation2 [shape = 'f32[18,18,4]{2,1,0:T(8,128)}', space=vmem, size = 0x36000, scoped, tag = 'scratch operand']
  #allocation3 [shape = 'f32[18,18,4]{2,1,0:T(8,128)}', space=vmem, size = 0x36000, scoped, tag = 'scratch operand']
  %s0 = inlined_call_operand.vmem [shape: f32[2,16,16,4], index: 0, kind: input, shape index: {}]
  %s1 = inlined_call_operand.vmem [shape: f32[36,8], index: 1, kind: input, shape index: {}]
  %s2 = inlined_call_operand.vmem [shape: f32[1,8], index: 2, kind: input, shape index: {}]
  %s3 = inlined_call_operand.vmem [shape: f32[36,8], index: 3, kind: input, shape index: {}]
  %s4 = inlined_call_operand.vmem [shape: f32[1,8], index: 4, kind: input, shape index: {}]
  %s5 = inlined_call_operand.vmem [shape: f32[2,256,4], index: 5, kind: output, shape index: {}]
  %s6 = sld [smem:[#allocation0]]
  $region53: #{tpu_custom_call.1} parent=0
    _
  %s8 = ssub.s32 1, %s6
  %s9 = scalar_select 0, %s8, %s6
  loop: start=0, step=1, limit=4
  $region2: #{tpu_custom_call.1} parent=0 // loop_pre_header
    _
  $region3: #{tpu_custom_call.1} parent=0 // loop_header
    %s11 = sphi 0, %s15
    %p12 = scmp.ge.s32.totalorder %s11, 4
    %s21 = sphi 0, %s23
    %s24 = sphi 0, %s21
    %s25 = sphi 0, %s24
    %s41 = sphi 0, %s25
    %s45 = sphi 0, %s45
    %s47 = sphi 0, %s45
    %s48 = sphi 0, %s47
    %s62 = sphi 0, %s48
    %s66 = sphi 0, %s66
    %s68 = sphi 0, %s66
    %s69 = sphi 0, %s68
    %s83 = sphi 0, %s69
    %s87 = sphi 0, %s87
    %s89 = sphi 0, %s87
    %s90 = sphi 0, %s89
    %s104 = sphi 0, %s90
    %s108 = sphi 0, %s108
    %s110 = sphi 0, %s108
    %s111 = sphi 0, %s110
    %s125 = sphi 0, %s111
    %s131 = sphi 0, %s133
    %s134 = sphi 0, %s131
    %s135 = sphi 0, %s134
    %s151 = sphi 0, %s135
  $region4: #{tpu_custom_call.1} parent=0 // loop_header_branch
    %14 = sbr.rel (%p12) target = $region8
  $region5: #{tpu_custom_call.1} parent=0 // loop_body
    %s16 = ssub.s32 %s11, 1
    %s17 = ssub.s32 %s11, 2
    %s18 = sadd.s32 %s11, 1
    %s19 = ssub.s32 %s11, %s18
    %p20 = scmp.eq.s32.totalorder %s19, 0
    %s22 = sadd.s32 %s21, 1
    %s23 = scalar_select %p20, %s21, %s22
    %p26 = pneg %p20
    %p27 = scmp.eq.s32.totalorder %s11, 1
    %p28 = por %p26, %p27
    %p29 = scmp.ne.s32.totalorder %s21, %s24
    %p30 = scmp.eq.s32.totalorder %s11, 0
    %p31 = por %p29, %p30
    %p32 = scmp.ne.s32.totalorder %s21, %s24
    %p33 = scmp.eq.s32.totalorder %s16, 1
    %p34 = por %p32, %p33
    %p35 = scmp.ne.s32.totalorder %s24, %s25
    %p36 = scmp.eq.s32.totalorder %s16, 0
    %p37 = por %p35, %p36
    %p38 = scmp.ne.s32.totalorder %s24, %s25
    %p39 = scmp.eq.s32.totalorder %s17, 1
    %p40 = por %p38, %p39
    %p42 = scmp.ne.s32.totalorder %s25, %s41
    %p43 = scmp.eq.s32.totalorder %s17, 0
    %p44 = por %p42, %p43
    %s46 = sadd.s32 %s45, 1
    %p49 = scmp.eq.s32.totalorder %s11, 1
    %p50 = scmp.ne.s32.totalorder %s45, %s47
    %p51 = scmp.eq.s32.totalorder %s11, 0
    %p52 = por %p50, %p51
    %p53 = scmp.ne.s32.totalorder %s45, %s47
    %p54 = scmp.eq.s32.totalorder %s16, 1
    %p55 = por %p53, %p54
    %p56 = scmp.ne.s32.totalorder %s47, %s48
    %p57 = scmp.eq.s32.totalorder %s16, 0
    %p58 = por %p56, %p57
    %p59 = scmp.ne.s32.totalorder %s47, %s48
    %p60 = scmp.eq.s32.totalorder %s17, 1
    %p61 = por %p59, %p60
    %p63 = scmp.ne.s32.totalorder %s48, %s62
    %p64 = scmp.eq.s32.totalorder %s17, 0
    %p65 = por %p63, %p64
    %s67 = sadd.s32 %s66, 1
    %p70 = scmp.eq.s32.totalorder %s11, 1
    %p71 = scmp.ne.s32.totalorder %s66, %s68
    %p72 = scmp.eq.s32.totalorder %s11, 0
    %p73 = por %p71, %p72
    %p74 = scmp.ne.s32.totalorder %s66, %s68
    %p75 = scmp.eq.s32.totalorder %s16, 1
    %p76 = por %p74, %p75
    %p77 = scmp.ne.s32.totalorder %s68, %s69
    %p78 = scmp.eq.s32.totalorder %s16, 0
    %p79 = por %p77, %p78
    %p80 = scmp.ne.s32.totalorder %s68, %s69
    %p81 = scmp.eq.s32.totalorder %s17, 1
    %p82 = por %p80, %p81
    %p84 = scmp.ne.s32.totalorder %s69, %s83
    %p85 = scmp.eq.s32.totalorder %s17, 0
    %p86 = por %p84, %p85
    %s88 = sadd.s32 %s87, 1
    %p91 = scmp.eq.s32.totalorder %s11, 1
    %p92 = scmp.ne.s32.totalorder %s87, %s89
    %p93 = scmp.eq.s32.totalorder %s11, 0
    %p94 = por %p92, %p93
    %p95 = scmp.ne.s32.totalorder %s87, %s89
    %p96 = scmp.eq.s32.totalorder %s16, 1
    %p97 = por %p95, %p96
    %p98 = scmp.ne.s32.totalorder %s89, %s90
    %p99 = scmp.eq.s32.totalorder %s16, 0
    %p100 = por %p98, %p99
    %p101 = scmp.ne.s32.totalorder %s89, %s90
    %p102 = scmp.eq.s32.totalorder %s17, 1
    %p103 = por %p101, %p102
    %p105 = scmp.ne.s32.totalorder %s90, %s104
    %p106 = scmp.eq.s32.totalorder %s17, 0
    %p107 = por %p105, %p106
    %s109 = sadd.s32 %s108, 1
    %p112 = scmp.eq.s32.totalorder %s11, 1
    %p113 = scmp.ne.s32.totalorder %s108, %s110
    %p114 = scmp.eq.s32.totalorder %s11, 0
    %p115 = por %p113, %p114
    %p116 = scmp.ne.s32.totalorder %s108, %s110
    %p117 = scmp.eq.s32.totalorder %s16, 1
    %p118 = por %p116, %p117
    %p119 = scmp.ne.s32.totalorder %s110, %s111
    %p120 = scmp.eq.s32.totalorder %s16, 0
    %p121 = por %p119, %p120
    %p122 = scmp.ne.s32.totalorder %s110, %s111
    %p123 = scmp.eq.s32.totalorder %s17, 1
    %p124 = por %p122, %p123
    %p126 = scmp.ne.s32.totalorder %s111, %s125
    %p127 = scmp.eq.s32.totalorder %s17, 0
    %p128 = por %p126, %p127
    %s129 = ssub.s32 %s11, %s18
    %p130 = scmp.eq.s32.totalorder %s129, 0
    %s132 = sadd.s32 %s131, 1
    %s133 = scalar_select %p130, %s131, %s132
    %p136 = pneg %p130
    %p137 = scmp.eq.s32.totalorder %s11, 1
    %p138 = por %p136, %p137
    %p139 = scmp.ne.s32.totalorder %s131, %s134
    %p140 = scmp.eq.s32.totalorder %s11, 0
    %p141 = por %p139, %p140
    %p142 = scmp.ne.s32.totalorder %s131, %s134
    %p143 = scmp.eq.s32.totalorder %s16, 1
    %p144 = por %p142, %p143
    %p145 = scmp.ne.s32.totalorder %s134, %s135
    %p146 = scmp.eq.s32.totalorder %s16, 0
    %p147 = por %p145, %p146
    %p148 = scmp.ne.s32.totalorder %s134, %s135
    %p149 = scmp.eq.s32.totalorder %s17, 1
    %p150 = por %p148, %p149
    %p152 = scmp.ne.s32.totalorder %s135, %s151
    %p153 = scmp.eq.s32.totalorder %s17, 0
    %p154 = por %p152, %p153
    %p155 = scmp.le.s32.totalorder 1, %s11
    %p156 = scmp.lt.s32.totalorder %s11, 3
    %p157 = pnand %p155, %p156
    %p158 = pneg %p157
    // Predicated region
    $region9: #{tpu_custom_call.1} parent=5 // pred_check
      _
    $region10: #{tpu_custom_call.1} parent=5 // pred_check_branch
      %160 = sbr.rel (%p157) target = $region12
    $region11: #{tpu_custom_call.1} parent=5 // pred_region
      %s161 = ssub.s32 %s11, 1
      // Predicated region
      $region13: #{tpu_custom_call.1} parent=11 // pred_check
        %p162 = pneg %p58
      $region14: #{tpu_custom_call.1} parent=11 // pred_check_branch
        %164 = sbr.rel (%p162) target = $region16
      $region15: #{tpu_custom_call.1} parent=11 // pred_region
        _
      $region16: #{tpu_custom_call.1} parent=11 // pred_fallthru
        _
      // Predicated region
      $region17: #{tpu_custom_call.1} parent=11 // pred_check
        %p165 = pneg %p79
      $region18: #{tpu_custom_call.1} parent=11 // pred_check_branch
        %167 = sbr.rel (%p165) target = $region20
      $region19: #{tpu_custom_call.1} parent=11 // pred_region
        _
      $region20: #{tpu_custom_call.1} parent=11 // pred_fallthru
        _
      // Predicated region
      $region21: #{tpu_custom_call.1} parent=11 // pred_check
        %p168 = pneg %p100
      $region22: #{tpu_custom_call.1} parent=11 // pred_check_branch
        %170 = sbr.rel (%p168) target = $region24
      $region23: #{tpu_custom_call.1} parent=11 // pred_region
        _
      $region24: #{tpu_custom_call.1} parent=11 // pred_fallthru
        _
      // Predicated region
      $region25: #{tpu_custom_call.1} parent=11 // pred_check
        %p171 = pneg %p121
      $region26: #{tpu_custom_call.1} parent=11 // pred_check_branch
        %173 = sbr.rel (%p171) target = $region28
      $region27: #{tpu_custom_call.1} parent=11 // pred_region
        _
      $region28: #{tpu_custom_call.1} parent=11 // pred_fallthru
        _
    $region12: #{tpu_custom_call.1} parent=5 // pred_fallthru
      _
    %p174 = scmp.lt.s32.totalorder %s11, 2
    // Predicated region
    $region29: #{tpu_custom_call.1} parent=5 // pred_check
      %p175 = pneg %p174
    $region30: #{tpu_custom_call.1} parent=5 // pred_check_branch
      %177 = sbr.rel (%p175) target = $region32
    $region31: #{tpu_custom_call.1} parent=5 // pred_region
      // Predicated region
      $region33: #{tpu_custom_call.1} parent=31 // pred_check
        %p178 = pneg %p31
      $region34: #{tpu_custom_call.1} parent=31 // pred_check_branch
        %180 = sbr.rel (%p178) target = $region36
      $region35: #{tpu_custom_call.1} parent=31 // pred_region
        %p181 = scmp.lt.s32.totalorder %s11, 1
        %s182 = scalar_select %p181, %s11, 1
        %s183 = smul.addr %s182, 32
        %s184 = smul.addr %s183, 8
        %s185 = scalar_lea.vmem %s0, %s184
      $region36: #{tpu_custom_call.1} parent=31 // pred_fallthru
        _
    $region32: #{tpu_custom_call.1} parent=5 // pred_fallthru
      _
    %p186 = scmp.le.s32.totalorder 1, %s11
    %p187 = scmp.lt.s32.totalorder %s11, 3
    %p188 = pnand %p186, %p187
    %p189 = pneg %p188
    // Predicated region
    $region37: #{tpu_custom_call.1} parent=5 // pred_check
      _
    $region38: #{tpu_custom_call.1} parent=5 // pred_check_branch
      %191 = sbr.rel (%p188) target = $region40
    $region39: #{tpu_custom_call.1} parent=5 // pred_region
      %s192 = ssub.s32 %s11, 1
      %p193 = scmp.lt.s32.totalorder %s16, 1
      %s194 = scalar_select %p193, %s16, 1
      %s195 = smul.addr %s194, 32
      %s196 = smul.addr %s195, 8
      %s197 = scalar_lea.vmem %s0, %s196
      %p198 = pneg %p37
      %p199 = pneg %p34
      %p200 = pneg %p58
      %p201 = pneg %p55
      %p202 = pneg %p79
      %p203 = pneg %p76
      %p204 = pneg %p100
      %p205 = pneg %p97
      %p206 = pneg %p121
      %p207 = pneg %p118
      %p208 = pneg %p147
      %p209 = pneg %p144
      %p210 = scmp.lt.s32.totalorder %s16, 1
      %s211 = scalar_select %p210, %s16, 1
      %s212 = smul.addr %s211, 32
      %s213 = smul.addr %s212, 8
      %s214 = scalar_lea.vmem %s5, %s213
      %p215 = scmp.lt.s32.totalorder %s16, 1
      %s216 = scalar_select %p215, %s16, 1
      %s217 = smul.addr %s216, 32
      %s218 = smul.addr %s217, 8
      %s219 = scalar_lea.vmem %s0, %s218
      %p220 = scmp.lt.s32.totalorder %s16, 1
      %s221 = scalar_select %p220, %s16, 1
      %s222 = smul.addr %s221, 32
      %s223 = smul.addr %s222, 8
      %s224 = scalar_lea.vmem %s5, %s223
      %vm225 = vcmask 31744
      %226 = vst.msk [vmem:[#allocation2] sm:$0xff] %vm225, 0.0
      %227 = vst.msk [vmem:[#allocation2 + $0x8] sm:$0xff] %vm225, 0.0
      %vm228 = vcmask 25600
      %229 = vst.msk [vmem:[#allocation2 + $0x10] sm:$0x3] %vm228, 0.0
      %s230 = scalar_lea.vmem [#allocation2], 408
      %231 = vst.msk [vmem:[%s230] sm:$0xff] %vm225, 0.0
      %232 = vst.msk [vmem:[%s230 + $0x8] sm:$0xff] %vm225, 0.0
      %233 = vst.msk [vmem:[%s230 + $0x10] sm:$0x3] %vm228, 0.0
      %vm234 = vcmask 24576
      %235 = vst.msk [vmem:[#allocation2] sm:$0x1] %vm234, 0.0
      %236 = vst.msk [vmem:[#allocation2 + $0x18] sm:$0x1] %vm234, 0.0
      %237 = vst.msk [vmem:[#allocation2 + $0x30] sm:$0x1] %vm234, 0.0
      %238 = vst.msk [vmem:[#allocation2 + $0x48] sm:$0x1] %vm234, 0.0
      %239 = vst.msk [vmem:[#allocation2 + $0x60] sm:$0x1] %vm234, 0.0
      %240 = vst.msk [vmem:[#allocation2 + $0x78] sm:$0x1] %vm234, 0.0
      %241 = vst.msk [vmem:[#allocation2 + $0x90] sm:$0x1] %vm234, 0.0
      %242 = vst.msk [vmem:[#allocation2 + $0xa8] sm:$0x1] %vm234, 0.0
      %243 = vst.msk [vmem:[#allocation2 + $0xc0] sm:$0x1] %vm234, 0.0
      %244 = vst.msk [vmem:[#allocation2 + $0xd8] sm:$0x1] %vm234, 0.0
      %245 = vst.msk [vmem:[#allocation2 + $0xf0] sm:$0x1] %vm234, 0.0
      %246 = vst.msk [vmem:[#allocation2 + $0x108] sm:$0x1] %vm234, 0.0
      %247 = vst.msk [vmem:[#allocation2 + $0x120] sm:$0x1] %vm234, 0.0
      %248 = vst.msk [vmem:[#allocation2 + $0x138] sm:$0x1] %vm234, 0.0
      %249 = vst.msk [vmem:[#allocation2 + $0x150] sm:$0x1] %vm234, 0.0
      %250 = vst.msk [vmem:[#allocation2 + $0x168] sm:$0x1] %vm234, 0.0
      %251 = vst.msk [vmem:[#allocation2 + $0x180] sm:$0x1] %vm234, 0.0
      %252 = vst.msk [vmem:[#allocation2 + $0x198] sm:$0x1] %vm234, 0.0
      %253 = vst.msk [vmem:[#allocation2 + $0x11] sm:$0x1] %vm234, 0.0
      %254 = vst.msk [vmem:[#allocation2 + $0x29] sm:$0x1] %vm234, 0.0
      %255 = vst.msk [vmem:[#allocation2 + $0x41] sm:$0x1] %vm234, 0.0
      %256 = vst.msk [vmem:[#allocation2 + $0x59] sm:$0x1] %vm234, 0.0
      %257 = vst.msk [vmem:[#allocation2 + $0x71] sm:$0x1] %vm234, 0.0
      %258 = vst.msk [vmem:[#allocation2 + $0x89] sm:$0x1] %vm234, 0.0
      %259 = vst.msk [vmem:[#allocation2 + $0xa1] sm:$0x1] %vm234, 0.0
      %260 = vst.msk [vmem:[#allocation2 + $0xb9] sm:$0x1] %vm234, 0.0
      %261 = vst.msk [vmem:[#allocation2 + $0xd1] sm:$0x1] %vm234, 0.0
      %262 = vst.msk [vmem:[#allocation2 + $0xe9] sm:$0x1] %vm234, 0.0
      %263 = vst.msk [vmem:[#allocation2 + $0x101] sm:$0x1] %vm234, 0.0
      %264 = vst.msk [vmem:[#allocation2 + $0x119] sm:$0x1] %vm234, 0.0
      %265 = vst.msk [vmem:[#allocation2 + $0x131] sm:$0x1] %vm234, 0.0
      %266 = vst.msk [vmem:[#allocation2 + $0x149] sm:$0x1] %vm234, 0.0
      %267 = vst.msk [vmem:[#allocation2 + $0x161] sm:$0x1] %vm234, 0.0
      %268 = vst.msk [vmem:[#allocation2 + $0x179] sm:$0x1] %vm234, 0.0
      %269 = vst.msk [vmem:[#allocation2 + $0x191] sm:$0x1] %vm234, 0.0
      %270 = vst.msk [vmem:[#allocation2 + $0x1a9] sm:$0x1] %vm234, 0.0
      %271 = vst.msk [vmem:[#allocation3] sm:$0xff] %vm225, 0.0
      %272 = vst.msk [vmem:[#allocation3 + $0x8] sm:$0xff] %vm225, 0.0
      %273 = vst.msk [vmem:[#allocation3 + $0x10] sm:$0x3] %vm228, 0.0
      %s274 = scalar_lea.vmem [#allocation3], 408
      %275 = vst.msk [vmem:[%s274] sm:$0xff] %vm225, 0.0
      %276 = vst.msk [vmem:[%s274 + $0x8] sm:$0xff] %vm225, 0.0
      %277 = vst.msk [vmem:[%s274 + $0x10] sm:$0x3] %vm228, 0.0
      %278 = vst.msk [vmem:[#allocation3] sm:$0x1] %vm234, 0.0
      %279 = vst.msk [vmem:[#allocation3 + $0x18] sm:$0x1] %vm234, 0.0
      %280 = vst.msk [vmem:[#allocation3 + $0x30] sm:$0x1] %vm234, 0.0
      %281 = vst.msk [vmem:[#allocation3 + $0x48] sm:$0x1] %vm234, 0.0
      %282 = vst.msk [vmem:[#allocation3 + $0x60] sm:$0x1] %vm234, 0.0
      %283 = vst.msk [vmem:[#allocation3 + $0x78] sm:$0x1] %vm234, 0.0
      %284 = vst.msk [vmem:[#allocation3 + $0x90] sm:$0x1] %vm234, 0.0
      %285 = vst.msk [vmem:[#allocation3 + $0xa8] sm:$0x1] %vm234, 0.0
      %286 = vst.msk [vmem:[#allocation3 + $0xc0] sm:$0x1] %vm234, 0.0
      %287 = vst.msk [vmem:[#allocation3 + $0xd8] sm:$0x1] %vm234, 0.0
      %288 = vst.msk [vmem:[#allocation3 + $0xf0] sm:$0x1] %vm234, 0.0
      %289 = vst.msk [vmem:[#allocation3 + $0x108] sm:$0x1] %vm234, 0.0
      %290 = vst.msk [vmem:[#allocation3 + $0x120] sm:$0x1] %vm234, 0.0
      %291 = vst.msk [vmem:[#allocation3 + $0x138] sm:$0x1] %vm234, 0.0
      %292 = vst.msk [vmem:[#allocation3 + $0x150] sm:$0x1] %vm234, 0.0
      %293 = vst.msk [vmem:[#allocation3 + $0x168] sm:$0x1] %vm234, 0.0
      %294 = vst.msk [vmem:[#allocation3 + $0x180] sm:$0x1] %vm234, 0.0
      %295 = vst.msk [vmem:[#allocation3 + $0x198] sm:$0x1] %vm234, 0.0
      %296 = vst.msk [vmem:[#allocation3 + $0x11] sm:$0x1] %vm234, 0.0
      %297 = vst.msk [vmem:[#allocation3 + $0x29] sm:$0x1] %vm234, 0.0
      %298 = vst.msk [vmem:[#allocation3 + $0x41] sm:$0x1] %vm234, 0.0
      %299 = vst.msk [vmem:[#allocation3 + $0x59] sm:$0x1] %vm234, 0.0
      %300 = vst.msk [vmem:[#allocation3 + $0x71] sm:$0x1] %vm234, 0.0
      %301 = vst.msk [vmem:[#allocation3 + $0x89] sm:$0x1] %vm234, 0.0
      %302 = vst.msk [vmem:[#allocation3 + $0xa1] sm:$0x1] %vm234, 0.0
      %303 = vst.msk [vmem:[#allocation3 + $0xb9] sm:$0x1] %vm234, 0.0
      %304 = vst.msk [vmem:[#allocation3 + $0xd1] sm:$0x1] %vm234, 0.0
      %305 = vst.msk [vmem:[#allocation3 + $0xe9] sm:$0x1] %vm234, 0.0
      %306 = vst.msk [vmem:[#allocation3 + $0x101] sm:$0x1] %vm234, 0.0
      %307 = vst.msk [vmem:[#allocation3 + $0x119] sm:$0x1] %vm234, 0.0
      %308 = vst.msk [vmem:[#allocation3 + $0x131] sm:$0x1] %vm234, 0.0
      %309 = vst.msk [vmem:[#allocation3 + $0x149] sm:$0x1] %vm234, 0.0
      %310 = vst.msk [vmem:[#allocation3 + $0x161] sm:$0x1] %vm234, 0.0
      %311 = vst.msk [vmem:[#allocation3 + $0x179] sm:$0x1] %vm234, 0.0
      %312 = vst.msk [vmem:[#allocation3 + $0x191] sm:$0x1] %vm234, 0.0
      %313 = vst.msk [vmem:[#allocation3 + $0x1a9] sm:$0x1] %vm234, 0.0
      %v314 = vld [vmem:[%s219] sm:$0xff]
      %v315 = vld [vmem:[%s219 + $0x8] sm:$0xff]
      %v316 = vld [vmem:[%s219 + $0x10] sm:$0xff]
      %v317 = vld [vmem:[%s219 + $0x18] sm:$0xff]
      %v318 = vld [vmem:[%s219 + $0x20] sm:$0xff]
      %v319 = vld [vmem:[%s219 + $0x28] sm:$0xff]
      %v320 = vld [vmem:[%s219 + $0x30] sm:$0xff]
      %v321 = vld [vmem:[%s219 + $0x38] sm:$0xff]
      %v322 = vld [vmem:[%s219 + $0x40] sm:$0xff]
      %v323 = vld [vmem:[%s219 + $0x48] sm:$0xff]
      %v324 = vld [vmem:[%s219 + $0x50] sm:$0xff]
      %v325 = vld [vmem:[%s219 + $0x58] sm:$0xff]
      %v326 = vld [vmem:[%s219 + $0x60] sm:$0xff]
      %v327 = vld [vmem:[%s219 + $0x68] sm:$0xff]
      %v328 = vld [vmem:[%s219 + $0x70] sm:$0xff]
      %v329 = vld [vmem:[%s219 + $0x78] sm:$0xff]
      %v330 = vld [vmem:[%s219 + $0x80] sm:$0xff]
      %v331 = vld [vmem:[%s219 + $0x88] sm:$0xff]
      %v332 = vld [vmem:[%s219 + $0x90] sm:$0xff]
      %v333 = vld [vmem:[%s219 + $0x98] sm:$0xff]
      %v334 = vld [vmem:[%s219 + $0xa0] sm:$0xff]
      %v335 = vld [vmem:[%s219 + $0xa8] sm:$0xff]
      %v336 = vld [vmem:[%s219 + $0xb0] sm:$0xff]
      %v337 = vld [vmem:[%s219 + $0xb8] sm:$0xff]
      %v338 = vld [vmem:[%s219 + $0xc0] sm:$0xff]
      %v339 = vld [vmem:[%s219 + $0xc8] sm:$0xff]
      %v340 = vld [vmem:[%s219 + $0xd0] sm:$0xff]
      %v341 = vld [vmem:[%s219 + $0xd8] sm:$0xff]
      %v342 = vld [vmem:[%s219 + $0xe0] sm:$0xff]
      %v343 = vld [vmem:[%s219 + $0xe8] sm:$0xff]
      %v344 = vld [vmem:[%s219 + $0xf0] sm:$0xff]
      %v345 = vld [vmem:[%s219 + $0xf8] sm:$0xff]
      %s346 = scalar_lea.vmem [#allocation2], 24
      %347 = vst.msk [vmem:[%s346 + $0x1] sm:$0xff] %vm225, %v314
      %348 = vst.msk [vmem:[%s346 + $0x9] sm:$0xff] %vm225, %v315
      %349 = vst.msk [vmem:[%s346 + $0x19] sm:$0xff] %vm225, %v316
      %350 = vst.msk [vmem:[%s346 + $0x21] sm:$0xff] %vm225, %v317
      %351 = vst.msk [vmem:[%s346 + $0x31] sm:$0xff] %vm225, %v318
      %352 = vst.msk [vmem:[%s346 + $0x39] sm:$0xff] %vm225, %v319
      %353 = vst.msk [vmem:[%s346 + $0x49] sm:$0xff] %vm225, %v320
      %354 = vst.msk [vmem:[%s346 + $0x51] sm:$0xff] %vm225, %v321
      %355 = vst.msk [vmem:[%s346 + $0x61] sm:$0xff] %vm225, %v322
      %356 = vst.msk [vmem:[%s346 + $0x69] sm:$0xff] %vm225, %v323
      %357 = vst.msk [vmem:[%s346 + $0x79] sm:$0xff] %vm225, %v324
      %358 = vst.msk [vmem:[%s346 + $0x81] sm:$0xff] %vm225, %v325
      %359 = vst.msk [vmem:[%s346 + $0x91] sm:$0xff] %vm225, %v326
      %360 = vst.msk [vmem:[%s346 + $0x99] sm:$0xff] %vm225, %v327
      %361 = vst.msk [vmem:[%s346 + $0xa9] sm:$0xff] %vm225, %v328
      %362 = vst.msk [vmem:[%s346 + $0xb1] sm:$0xff] %vm225, %v329
      %363 = vst.msk [vmem:[%s346 + $0xc1] sm:$0xff] %vm225, %v330
      %364 = vst.msk [vmem:[%s346 + $0xc9] sm:$0xff] %vm225, %v331
      %365 = vst.msk [vmem:[%s346 + $0xd9] sm:$0xff] %vm225, %v332
      %366 = vst.msk [vmem:[%s346 + $0xe1] sm:$0xff] %vm225, %v333
      %367 = vst.msk [vmem:[%s346 + $0xf1] sm:$0xff] %vm225, %v334
      %368 = vst.msk [vmem:[%s346 + $0xf9] sm:$0xff] %vm225, %v335
      %369 = vst.msk [vmem:[%s346 + $0x109] sm:$0xff] %vm225, %v336
      %370 = vst.msk [vmem:[%s346 + $0x111] sm:$0xff] %vm225, %v337
      %371 = vst.msk [vmem:[%s346 + $0x121] sm:$0xff] %vm225, %v338
      %372 = vst.msk [vmem:[%s346 + $0x129] sm:$0xff] %vm225, %v339
      %373 = vst.msk [vmem:[%s346 + $0x139] sm:$0xff] %vm225, %v340
      %374 = vst.msk [vmem:[%s346 + $0x141] sm:$0xff] %vm225, %v341
      %375 = vst.msk [vmem:[%s346 + $0x151] sm:$0xff] %vm225, %v342
      %376 = vst.msk [vmem:[%s346 + $0x159] sm:$0xff] %vm225, %v343
      %377 = vst.msk [vmem:[%s346 + $0x169] sm:$0xff] %vm225, %v344
      %378 = vst.msk [vmem:[%s346 + $0x171] sm:$0xff] %vm225, %v345
      %v379 = vld [vmem:[#allocation2] sm:$0xff]
      %v380 = vld [vmem:[#allocation2 + $0x8] sm:$0xff]
      %v381 = vld [vmem:[#allocation2 + $0x18] sm:$0xff]
      %v382 = vld [vmem:[#allocation2 + $0x20] sm:$0xff]
      %v383 = vld [vmem:[#allocation2 + $0x30] sm:$0xff]
      %v384 = vld [vmem:[#allocation2 + $0x38] sm:$0xff]
      %v385 = vld [vmem:[#allocation2 + $0x48] sm:$0xff]
      %v386 = vld [vmem:[#allocation2 + $0x50] sm:$0xff]
      %v387 = vld [vmem:[#allocation2 + $0x60] sm:$0xff]
      %v388 = vld [vmem:[#allocation2 + $0x68] sm:$0xff]
      %v389 = vld [vmem:[#allocation2 + $0x78] sm:$0xff]
      %v390 = vld [vmem:[#allocation2 + $0x80] sm:$0xff]
      %v391 = vld [vmem:[#allocation2 + $0x90] sm:$0xff]
      %v392 = vld [vmem:[#allocation2 + $0x98] sm:$0xff]
      %v393 = vld [vmem:[#allocation2 + $0xa8] sm:$0xff]
      %v394 = vld [vmem:[#allocation2 + $0xb0] sm:$0xff]
      %v395 = vld [vmem:[#allocation2 + $0x1] sm:$0xff]
      %v396 = vld [vmem:[#allocation2 + $0x9] sm:$0xff]
      %v397 = vld [vmem:[#allocation2 + $0x19] sm:$0xff]
      %v398 = vld [vmem:[#allocation2 + $0x21] sm:$0xff]
      %v399 = vld [vmem:[#allocation2 + $0x31] sm:$0xff]
      %v400 = vld [vmem:[#allocation2 + $0x39] sm:$0xff]
      %v401 = vld [vmem:[#allocation2 + $0x49] sm:$0xff]
      %v402 = vld [vmem:[#allocation2 + $0x51] sm:$0xff]
      %v403 = vld [vmem:[#allocation2 + $0x61] sm:$0xff]
      %v404 = vld [vmem:[#allocation2 + $0x69] sm:$0xff]
      %v405 = vld [vmem:[#allocation2 + $0x79] sm:$0xff]
      %v406 = vld [vmem:[#allocation2 + $0x81] sm:$0xff]
      %v407 = vld [vmem:[#allocation2 + $0x91] sm:$0xff]
      %v408 = vld [vmem:[#allocation2 + $0x99] sm:$0xff]
      %v409 = vld [vmem:[#allocation2 + $0xa9] sm:$0xff]
      %v410 = vld [vmem:[#allocation2 + $0xb1] sm:$0xff]
      %v411 = vld [vmem:[#allocation2 + $0x2] sm:$0xff]
      %v412 = vld [vmem:[#allocation2 + $0xa] sm:$0xff]
      %v413 = vld [vmem:[#allocation2 + $0x1a] sm:$0xff]
      %v414 = vld [vmem:[#allocation2 + $0x22] sm:$0xff]
      %v415 = vld [vmem:[#allocation2 + $0x32] sm:$0xff]
      %v416 = vld [vmem:[#allocation2 + $0x3a] sm:$0xff]
      %v417 = vld [vmem:[#allocation2 + $0x4a] sm:$0xff]
      %v418 = vld [vmem:[#allocation2 + $0x52] sm:$0xff]
      %v419 = vld [vmem:[#allocation2 + $0x62] sm:$0xff]
      %v420 = vld [vmem:[#allocation2 + $0x6a] sm:$0xff]
      %v421 = vld [vmem:[#allocation2 + $0x7a] sm:$0xff]
      %v422 = vld [vmem:[#allocation2 + $0x82] sm:$0xff]
      %v423 = vld [vmem:[#allocation2 + $0x92] sm:$0xff]
      %v424 = vld [vmem:[#allocation2 + $0x9a] sm:$0xff]
      %v425 = vld [vmem:[#allocation2 + $0xaa] sm:$0xff]
      %v426 = vld [vmem:[#allocation2 + $0xb2] sm:$0xff]
      %v427 = vld [vmem:[%s346] sm:$0xff]
      %v428 = vld [vmem:[%s346 + $0x8] sm:$0xff]
      %v429 = vld [vmem:[%s346 + $0x18] sm:$0xff]
      %v430 = vld [vmem:[%s346 + $0x20] sm:$0xff]
      %v431 = vld [vmem:[%s346 + $0x30] sm:$0xff]
      %v432 = vld [vmem:[%s346 + $0x38] sm:$0xff]
      %v433 = vld [vmem:[%s346 + $0x48] sm:$0xff]
      %v434 = vld [vmem:[%s346 + $0x50] sm:$0xff]
      %v435 = vld [vmem:[%s346 + $0x60] sm:$0xff]
      %v436 = vld [vmem:[%s346 + $0x68] sm:$0xff]
      %v437 = vld [vmem:[%s346 + $0x78] sm:$0xff]
      %v438 = vld [vmem:[%s346 + $0x80] sm:$0xff]
      %v439 = vld [vmem:[%s346 + $0x90] sm:$0xff]
      %v440 = vld [vmem:[%s346 + $0x98] sm:$0xff]
      %v441 = vld [vmem:[%s346 + $0xa8] sm:$0xff]
      %v442 = vld [vmem:[%s346 + $0xb0] sm:$0xff]
      %v443 = vld [vmem:[%s346 + $0x1] sm:$0xff]
      %v444 = vld [vmem:[%s346 + $0x9] sm:$0xff]
      %v445 = vld [vmem:[%s346 + $0x19] sm:$0xff]
      %v446 = vld [vmem:[%s346 + $0x21] sm:$0xff]
      %v447 = vld [vmem:[%s346 + $0x31] sm:$0xff]
      %v448 = vld [vmem:[%s346 + $0x39] sm:$0xff]
      %v449 = vld [vmem:[%s346 + $0x49] sm:$0xff]
      %v450 = vld [vmem:[%s346 + $0x51] sm:$0xff]
      %v451 = vld [vmem:[%s346 + $0x61] sm:$0xff]
      %v452 = vld [vmem:[%s346 + $0x69] sm:$0xff]
      %v453 = vld [vmem:[%s346 + $0x79] sm:$0xff]
      %v454 = vld [vmem:[%s346 + $0x81] sm:$0xff]
      %v455 = vld [vmem:[%s346 + $0x91] sm:$0xff]
      %v456 = vld [vmem:[%s346 + $0x99] sm:$0xff]
      %v457 = vld [vmem:[%s346 + $0xa9] sm:$0xff]
      %v458 = vld [vmem:[%s346 + $0xb1] sm:$0xff]
      %v459 = vld [vmem:[%s346 + $0x2] sm:$0xff]
      %v460 = vld [vmem:[%s346 + $0xa] sm:$0xff]
      %v461 = vld [vmem:[%s346 + $0x1a] sm:$0xff]
      %v462 = vld [vmem:[%s346 + $0x22] sm:$0xff]
      %v463 = vld [vmem:[%s346 + $0x32] sm:$0xff]
      %v464 = vld [vmem:[%s346 + $0x3a] sm:$0xff]
      %v465 = vld [vmem:[%s346 + $0x4a] sm:$0xff]
      %v466 = vld [vmem:[%s346 + $0x52] sm:$0xff]
      %v467 = vld [vmem:[%s346 + $0x62] sm:$0xff]
      %v468 = vld [vmem:[%s346 + $0x6a] sm:$0xff]
      %v469 = vld [vmem:[%s346 + $0x7a] sm:$0xff]
      %v470 = vld [vmem:[%s346 + $0x82] sm:$0xff]
      %v471 = vld [vmem:[%s346 + $0x92] sm:$0xff]
      %v472 = vld [vmem:[%s346 + $0x9a] sm:$0xff]
      %v473 = vld [vmem:[%s346 + $0xaa] sm:$0xff]
      %v474 = vld [vmem:[%s346 + $0xb2] sm:$0xff]
      %s475 = scalar_lea.vmem [#allocation2], 48
      %v476 = vld [vmem:[%s475] sm:$0xff]
      %v477 = vld [vmem:[%s475 + $0x8] sm:$0xff]
      %v478 = vld [vmem:[%s475 + $0x18] sm:$0xff]
      %v479 = vld [vmem:[%s475 + $0x20] sm:$0xff]
      %v480 = vld [vmem:[%s475 + $0x30] sm:$0xff]
      %v481 = vld [vmem:[%s475 + $0x38] sm:$0xff]
      %v482 = vld [vmem:[%s475 + $0x48] sm:$0xff]
      %v483 = vld [vmem:[%s475 + $0x50] sm:$0xff]
      %v484 = vld [vmem:[%s475 + $0x60] sm:$0xff]
      %v485 = vld [vmem:[%s475 + $0x68] sm:$0xff]
      %v486 = vld [vmem:[%s475 + $0x78] sm:$0xff]
      %v487 = vld [vmem:[%s475 + $0x80] sm:$0xff]
      %v488 = vld [vmem:[%s475 + $0x90] sm:$0xff]
      %v489 = vld [vmem:[%s475 + $0x98] sm:$0xff]
      %v490 = vld [vmem:[%s475 + $0xa8] sm:$0xff]
      %v491 = vld [vmem:[%s475 + $0xb0] sm:$0xff]
      %v492 = vld [vmem:[%s475 + $0x1] sm:$0xff]
      %v493 = vld [vmem:[%s475 + $0x9] sm:$0xff]
      %v494 = vld [vmem:[%s475 + $0x19] sm:$0xff]
      %v495 = vld [vmem:[%s475 + $0x21] sm:$0xff]
      %v496 = vld [vmem:[%s475 + $0x31] sm:$0xff]
      %v497 = vld [vmem:[%s475 + $0x39] sm:$0xff]
      %v498 = vld [vmem:[%s475 + $0x49] sm:$0xff]
      %v499 = vld [vmem:[%s475 + $0x51] sm:$0xff]
      %v500 = vld [vmem:[%s475 + $0x61] sm:$0xff]
      %v501 = vld [vmem:[%s475 + $0x69] sm:$0xff]
      %v502 = vld [vmem:[%s475 + $0x79] sm:$0xff]
      %v503 = vld [vmem:[%s475 + $0x81] sm:$0xff]
      %v504 = vld [vmem:[%s475 + $0x91] sm:$0xff]
      %v505 = vld [vmem:[%s475 + $0x99] sm:$0xff]
      %v506 = vld [vmem:[%s475 + $0xa9] sm:$0xff]
      %v507 = vld [vmem:[%s475 + $0xb1] sm:$0xff]
      %v508 = vld [vmem:[%s475 + $0x2] sm:$0xff]
      %v509 = vld [vmem:[%s475 + $0xa] sm:$0xff]
      %v510 = vld [vmem:[%s475 + $0x1a] sm:$0xff]
      %v511 = vld [vmem:[%s475 + $0x22] sm:$0xff]
      %v512 = vld [vmem:[%s475 + $0x32] sm:$0xff]
      %v513 = vld [vmem:[%s475 + $0x3a] sm:$0xff]
      %v514 = vld [vmem:[%s475 + $0x4a] sm:$0xff]
      %v515 = vld [vmem:[%s475 + $0x52] sm:$0xff]
      %v516 = vld [vmem:[%s475 + $0x62] sm:$0xff]
      %v517 = vld [vmem:[%s475 + $0x6a] sm:$0xff]
      %v518 = vld [vmem:[%s475 + $0x7a] sm:$0xff]
      %v519 = vld [vmem:[%s475 + $0x82] sm:$0xff]
      %v520 = vld [vmem:[%s475 + $0x92] sm:$0xff]
      %v521 = vld [vmem:[%s475 + $0x9a] sm:$0xff]
      %v522 = vld [vmem:[%s475 + $0xaa] sm:$0xff]
      %v523 = vld [vmem:[%s475 + $0xb2] sm:$0xff]
      %540 = vrot.lane.b32.xlu0 %v395, 4
      %v541 = vpop.permute.xlu0 %540
      %542 = vrot.lane.b32.xlu0 %v396, 4
      %v543 = vpop.permute.xlu0 %542
      %544 = vrot.lane.b32.xlu0 %v397, 4
      %v545 = vpop.permute.xlu0 %544
      %546 = vrot.lane.b32.xlu0 %v398, 4
      %v547 = vpop.permute.xlu0 %546
      %548 = vrot.lane.b32.xlu0 %v399, 4
      %v549 = vpop.permute.xlu0 %548
      %550 = vrot.lane.b32.xlu0 %v400, 4
      %v551 = vpop.permute.xlu0 %550
      %552 = vrot.lane.b32.xlu0 %v401, 4
      %v553 = vpop.permute.xlu0 %552
      %554 = vrot.lane.b32.xlu0 %v402, 4
      %v555 = vpop.permute.xlu0 %554
      %556 = vrot.lane.b32.xlu0 %v403, 4
      %v557 = vpop.permute.xlu0 %556
      %558 = vrot.lane.b32.xlu0 %v404, 4
      %v559 = vpop.permute.xlu0 %558
      %560 = vrot.lane.b32.xlu0 %v405, 4
      %v561 = vpop.permute.xlu0 %560
      %562 = vrot.lane.b32.xlu0 %v406, 4
      %v563 = vpop.permute.xlu0 %562
      %564 = vrot.lane.b32.xlu0 %v407, 4
      %v565 = vpop.permute.xlu0 %564
      %566 = vrot.lane.b32.xlu0 %v408, 4
      %v567 = vpop.permute.xlu0 %566
      %568 = vrot.lane.b32.xlu0 %v409, 4
      %v569 = vpop.permute.xlu0 %568
      %570 = vrot.lane.b32.xlu0 %v410, 4
      %v571 = vpop.permute.xlu0 %570
      %604 = vrot.lane.b32.xlu0 %v411, 8
      %v605 = vpop.permute.xlu0 %604
      %606 = vrot.lane.b32.xlu0 %v412, 8
      %v607 = vpop.permute.xlu0 %606
      %608 = vrot.lane.b32.xlu0 %v413, 8
      %v609 = vpop.permute.xlu0 %608
      %610 = vrot.lane.b32.xlu0 %v414, 8
      %v611 = vpop.permute.xlu0 %610
      %612 = vrot.lane.b32.xlu0 %v415, 8
      %v613 = vpop.permute.xlu0 %612
      %614 = vrot.lane.b32.xlu0 %v416, 8
      %v615 = vpop.permute.xlu0 %614
      %616 = vrot.lane.b32.xlu0 %v417, 8
      %v617 = vpop.permute.xlu0 %616
      %618 = vrot.lane.b32.xlu0 %v418, 8
      %v619 = vpop.permute.xlu0 %618
      %620 = vrot.lane.b32.xlu0 %v419, 8
      %v621 = vpop.permute.xlu0 %620
      %622 = vrot.lane.b32.xlu0 %v420, 8
      %v623 = vpop.permute.xlu0 %622
      %624 = vrot.lane.b32.xlu0 %v421, 8
      %v625 = vpop.permute.xlu0 %624
      %626 = vrot.lane.b32.xlu0 %v422, 8
      %v627 = vpop.permute.xlu0 %626
      %628 = vrot.lane.b32.xlu0 %v423, 8
      %v629 = vpop.permute.xlu0 %628
      %630 = vrot.lane.b32.xlu0 %v424, 8
      %v631 = vpop.permute.xlu0 %630
      %632 = vrot.lane.b32.xlu0 %v425, 8
      %v633 = vpop.permute.xlu0 %632
      %634 = vrot.lane.b32.xlu0 %v426, 8
      %v635 = vpop.permute.xlu0 %634
      %668 = vrot.lane.b32.xlu0 %v427, 12
      %v669 = vpop.permute.xlu0 %668
      %670 = vrot.lane.b32.xlu0 %v428, 12
      %v671 = vpop.permute.xlu0 %670
      %672 = vrot.lane.b32.xlu0 %v429, 12
      %v673 = vpop.permute.xlu0 %672
      %674 = vrot.lane.b32.xlu0 %v430, 12
      %v675 = vpop.permute.xlu0 %674
      %676 = vrot.lane.b32.xlu0 %v431, 12
      %v677 = vpop.permute.xlu0 %676
      %678 = vrot.lane.b32.xlu0 %v432, 12
      %v679 = vpop.permute.xlu0 %678
      %680 = vrot.lane.b32.xlu0 %v433, 12
      %v681 = vpop.permute.xlu0 %680
      %682 = vrot.lane.b32.xlu0 %v434, 12
      %v683 = vpop.permute.xlu0 %682
      %684 = vrot.lane.b32.xlu0 %v435, 12
      %v685 = vpop.permute.xlu0 %684
      %686 = vrot.lane.b32.xlu0 %v436, 12
      %v687 = vpop.permute.xlu0 %686
      %688 = vrot.lane.b32.xlu0 %v437, 12
      %v689 = vpop.permute.xlu0 %688
      %690 = vrot.lane.b32.xlu0 %v438, 12
      %v691 = vpop.permute.xlu0 %690
      %692 = vrot.lane.b32.xlu0 %v439, 12
      %v693 = vpop.permute.xlu0 %692
      %694 = vrot.lane.b32.xlu0 %v440, 12
      %v695 = vpop.permute.xlu0 %694
      %696 = vrot.lane.b32.xlu0 %v441, 12
      %v697 = vpop.permute.xlu0 %696
      %698 = vrot.lane.b32.xlu0 %v442, 12
      %v699 = vpop.permute.xlu0 %698
      %732 = vrot.lane.b32.xlu0 %v443, 16
      %v733 = vpop.permute.xlu0 %732
      %734 = vrot.lane.b32.xlu0 %v444, 16
      %v735 = vpop.permute.xlu0 %734
      %736 = vrot.lane.b32.xlu0 %v445, 16
      %v737 = vpop.permute.xlu0 %736
      %738 = vrot.lane.b32.xlu0 %v446, 16
      %v739 = vpop.permute.xlu0 %738
      %740 = vrot.lane.b32.xlu0 %v447, 16
      %v741 = vpop.permute.xlu0 %740
      %742 = vrot.lane.b32.xlu0 %v448, 16
      %v743 = vpop.permute.xlu0 %742
      %744 = vrot.lane.b32.xlu0 %v449, 16
      %v745 = vpop.permute.xlu0 %744
      %746 = vrot.lane.b32.xlu0 %v450, 16
      %v747 = vpop.permute.xlu0 %746
      %748 = vrot.lane.b32.xlu0 %v451, 16
      %v749 = vpop.permute.xlu0 %748
      %750 = vrot.lane.b32.xlu0 %v452, 16
      %v751 = vpop.permute.xlu0 %750
      %752 = vrot.lane.b32.xlu0 %v453, 16
      %v753 = vpop.permute.xlu0 %752
      %754 = vrot.lane.b32.xlu0 %v454, 16
      %v755 = vpop.permute.xlu0 %754
      %756 = vrot.lane.b32.xlu0 %v455, 16
      %v757 = vpop.permute.xlu0 %756
      %758 = vrot.lane.b32.xlu0 %v456, 16
      %v759 = vpop.permute.xlu0 %758
      %760 = vrot.lane.b32.xlu0 %v457, 16
      %v761 = vpop.permute.xlu0 %760
      %762 = vrot.lane.b32.xlu0 %v458, 16
      %v763 = vpop.permute.xlu0 %762
      %796 = vrot.lane.b32.xlu0 %v459, 20
      %v797 = vpop.permute.xlu0 %796
      %798 = vrot.lane.b32.xlu0 %v460, 20
      %v799 = vpop.permute.xlu0 %798
      %800 = vrot.lane.b32.xlu0 %v461, 20
      %v801 = vpop.permute.xlu0 %800
      %802 = vrot.lane.b32.xlu0 %v462, 20
      %v803 = vpop.permute.xlu0 %802
      %804 = vrot.lane.b32.xlu0 %v463, 20
      %v805 = vpop.permute.xlu0 %804
      %806 = vrot.lane.b32.xlu0 %v464, 20
      %v807 = vpop.permute.xlu0 %806
      %808 = vrot.lane.b32.xlu0 %v465, 20
      %v809 = vpop.permute.xlu0 %808
      %810 = vrot.lane.b32.xlu0 %v466, 20
      %v811 = vpop.permute.xlu0 %810
      %812 = vrot.lane.b32.xlu0 %v467, 20
      %v813 = vpop.permute.xlu0 %812
      %814 = vrot.lane.b32.xlu0 %v468, 20
      %v815 = vpop.permute.xlu0 %814
      %816 = vrot.lane.b32.xlu0 %v469, 20
      %v817 = vpop.permute.xlu0 %816
      %818 = vrot.lane.b32.xlu0 %v470, 20
      %v819 = vpop.permute.xlu0 %818
      %820 = vrot.lane.b32.xlu0 %v471, 20
      %v821 = vpop.permute.xlu0 %820
      %822 = vrot.lane.b32.xlu0 %v472, 20
      %v823 = vpop.permute.xlu0 %822
      %824 = vrot.lane.b32.xlu0 %v473, 20
      %v825 = vpop.permute.xlu0 %824
      %826 = vrot.lane.b32.xlu0 %v474, 20
      %v827 = vpop.permute.xlu0 %826
      %860 = vrot.lane.b32.xlu0 %v476, 24
      %v861 = vpop.permute.xlu0 %860
      %862 = vrot.lane.b32.xlu0 %v477, 24
      %v863 = vpop.permute.xlu0 %862
      %864 = vrot.lane.b32.xlu0 %v478, 24
      %v865 = vpop.permute.xlu0 %864
      %866 = vrot.lane.b32.xlu0 %v479, 24
      %v867 = vpop.permute.xlu0 %866
      %868 = vrot.lane.b32.xlu0 %v480, 24
      %v869 = vpop.permute.xlu0 %868
      %870 = vrot.lane.b32.xlu0 %v481, 24
      %v871 = vpop.permute.xlu0 %870
      %872 = vrot.lane.b32.xlu0 %v482, 24
      %v873 = vpop.permute.xlu0 %872
      %874 = vrot.lane.b32.xlu0 %v483, 24
      %v875 = vpop.permute.xlu0 %874
      %876 = vrot.lane.b32.xlu0 %v484, 24
      %v877 = vpop.permute.xlu0 %876
      %878 = vrot.lane.b32.xlu0 %v485, 24
      %v879 = vpop.permute.xlu0 %878
      %880 = vrot.lane.b32.xlu0 %v486, 24
      %v881 = vpop.permute.xlu0 %880
      %882 = vrot.lane.b32.xlu0 %v487, 24
      %v883 = vpop.permute.xlu0 %882
      %884 = vrot.lane.b32.xlu0 %v488, 24
      %v885 = vpop.permute.xlu0 %884
      %886 = vrot.lane.b32.xlu0 %v489, 24
      %v887 = vpop.permute.xlu0 %886
      %888 = vrot.lane.b32.xlu0 %v490, 24
      %v889 = vpop.permute.xlu0 %888
      %890 = vrot.lane.b32.xlu0 %v491, 24
      %v891 = vpop.permute.xlu0 %890
      %924 = vrot.lane.b32.xlu0 %v492, 28
      %v925 = vpop.permute.xlu0 %924
      %926 = vrot.lane.b32.xlu0 %v493, 28
      %v927 = vpop.permute.xlu0 %926
      %928 = vrot.lane.b32.xlu0 %v494, 28
      %v929 = vpop.permute.xlu0 %928
      %930 = vrot.lane.b32.xlu0 %v495, 28
      %v931 = vpop.permute.xlu0 %930
      %932 = vrot.lane.b32.xlu0 %v496, 28
      %v933 = vpop.permute.xlu0 %932
      %934 = vrot.lane.b32.xlu0 %v497, 28
      %v935 = vpop.permute.xlu0 %934
      %936 = vrot.lane.b32.xlu0 %v498, 28
      %v937 = vpop.permute.xlu0 %936
      %938 = vrot.lane.b32.xlu0 %v499, 28
      %v939 = vpop.permute.xlu0 %938
      %940 = vrot.lane.b32.xlu0 %v500, 28
      %v941 = vpop.permute.xlu0 %940
      %942 = vrot.lane.b32.xlu0 %v501, 28
      %v943 = vpop.permute.xlu0 %942
      %944 = vrot.lane.b32.xlu0 %v502, 28
      %v945 = vpop.permute.xlu0 %944
      %946 = vrot.lane.b32.xlu0 %v503, 28
      %v947 = vpop.permute.xlu0 %946
      %948 = vrot.lane.b32.xlu0 %v504, 28
      %v949 = vpop.permute.xlu0 %948
      %950 = vrot.lane.b32.xlu0 %v505, 28
      %v951 = vpop.permute.xlu0 %950
      %952 = vrot.lane.b32.xlu0 %v506, 28
      %v953 = vpop.permute.xlu0 %952
      %954 = vrot.lane.b32.xlu0 %v507, 28
      %v955 = vpop.permute.xlu0 %954
      %988 = vrot.lane.b32.xlu0 %v508, 32
      %v989 = vpop.permute.xlu0 %988
      %990 = vrot.lane.b32.xlu0 %v509, 32
      %v991 = vpop.permute.xlu0 %990
      %992 = vrot.lane.b32.xlu0 %v510, 32
      %v993 = vpop.permute.xlu0 %992
      %994 = vrot.lane.b32.xlu0 %v511, 32
      %v995 = vpop.permute.xlu0 %994
      %996 = vrot.lane.b32.xlu0 %v512, 32
      %v997 = vpop.permute.xlu0 %996
      %998 = vrot.lane.b32.xlu0 %v513, 32
      %v999 = vpop.permute.xlu0 %998
      %1000 = vrot.lane.b32.xlu0 %v514, 32
      %v1001 = vpop.permute.xlu0 %1000
      %1002 = vrot.lane.b32.xlu0 %v515, 32
      %v1003 = vpop.permute.xlu0 %1002
      %1004 = vrot.lane.b32.xlu0 %v516, 32
      %v1005 = vpop.permute.xlu0 %1004
      %1006 = vrot.lane.b32.xlu0 %v517, 32
      %v1007 = vpop.permute.xlu0 %1006
      %1008 = vrot.lane.b32.xlu0 %v518, 32
      %v1009 = vpop.permute.xlu0 %1008
      %1010 = vrot.lane.b32.xlu0 %v519, 32
      %v1011 = vpop.permute.xlu0 %1010
      %1012 = vrot.lane.b32.xlu0 %v520, 32
      %v1013 = vpop.permute.xlu0 %1012
      %1014 = vrot.lane.b32.xlu0 %v521, 32
      %v1015 = vpop.permute.xlu0 %1014
      %1016 = vrot.lane.b32.xlu0 %v522, 32
      %v1017 = vpop.permute.xlu0 %1016
      %1018 = vrot.lane.b32.xlu0 %v523, 32
      %v1019 = vpop.permute.xlu0 %1018
      %v1036 = vsel %vm225, %v379, %v541
      %v1037 = vsel %vm225, %v380, %v543
      %v1038 = vsel %vm225, %v381, %v545
      %v1039 = vsel %vm225, %v382, %v547
      %v1040 = vsel %vm225, %v383, %v549
      %v1041 = vsel %vm225, %v384, %v551
      %v1042 = vsel %vm225, %v385, %v553
      %v1043 = vsel %vm225, %v386, %v555
      %v1044 = vsel %vm225, %v387, %v557
      %v1045 = vsel %vm225, %v388, %v559
      %v1046 = vsel %vm225, %v389, %v561
      %v1047 = vsel %vm225, %v390, %v563
      %v1048 = vsel %vm225, %v391, %v565
      %v1049 = vsel %vm225, %v392, %v567
      %v1050 = vsel %vm225, %v393, %v569
      %v1051 = vsel %vm225, %v394, %v571
      %vm1052 = vcmask 64512
      %v1053 = vsel %vm1052, %v1036, %v605
      %v1054 = vsel %vm1052, %v1037, %v607
      %v1055 = vsel %vm1052, %v1038, %v609
      %v1056 = vsel %vm1052, %v1039, %v611
      %v1057 = vsel %vm1052, %v1040, %v613
      %v1058 = vsel %vm1052, %v1041, %v615
      %v1059 = vsel %vm1052, %v1042, %v617
      %v1060 = vsel %vm1052, %v1043, %v619
      %v1061 = vsel %vm1052, %v1044, %v621
      %v1062 = vsel %vm1052, %v1045, %v623
      %v1063 = vsel %vm1052, %v1046, %v625
      %v1064 = vsel %vm1052, %v1047, %v627
      %v1065 = vsel %vm1052, %v1048, %v629
      %v1066 = vsel %vm1052, %v1049, %v631
      %v1067 = vsel %vm1052, %v1050, %v633
      %v1068 = vsel %vm1052, %v1051, %v635
      %vm1069 = vcmask 97280
      %v1070 = vsel %vm1069, %v1053, %v669
      %v1071 = vsel %vm1069, %v1054, %v671
      %v1072 = vsel %vm1069, %v1055, %v673
      %v1073 = vsel %vm1069, %v1056, %v675
      %v1074 = vsel %vm1069, %v1057, %v677
      %v1075 = vsel %vm1069, %v1058, %v679
      %v1076 = vsel %vm1069, %v1059, %v681
      %v1077 = vsel %vm1069, %v1060, %v683
      %v1078 = vsel %vm1069, %v1061, %v685
      %v1079 = vsel %vm1069, %v1062, %v687
      %v1080 = vsel %vm1069, %v1063, %v689
      %v1081 = vsel %vm1069, %v1064, %v691
      %v1082 = vsel %vm1069, %v1065, %v693
      %v1083 = vsel %vm1069, %v1066, %v695
      %v1084 = vsel %vm1069, %v1067, %v697
      %v1085 = vsel %vm1069, %v1068, %v699
      %vm1086 = vcmask 130048
      %v1087 = vsel %vm1086, %v1070, %v733
      %v1088 = vsel %vm1086, %v1071, %v735
      %v1089 = vsel %vm1086, %v1072, %v737
      %v1090 = vsel %vm1086, %v1073, %v739
      %v1091 = vsel %vm1086, %v1074, %v741
      %v1092 = vsel %vm1086, %v1075, %v743
      %v1093 = vsel %vm1086, %v1076, %v745
      %v1094 = vsel %vm1086, %v1077, %v747
      %v1095 = vsel %vm1086, %v1078, %v749
      %v1096 = vsel %vm1086, %v1079, %v751
      %v1097 = vsel %vm1086, %v1080, %v753
      %v1098 = vsel %vm1086, %v1081, %v755
      %v1099 = vsel %vm1086, %v1082, %v757
      %v1100 = vsel %vm1086, %v1083, %v759
      %v1101 = vsel %vm1086, %v1084, %v761
      %v1102 = vsel %vm1086, %v1085, %v763
      %vm1103 = vcmask 162816
      %v1104 = vsel %vm1103, %v1087, %v797
      %v1105 = vsel %vm1103, %v1088, %v799
      %v1106 = vsel %vm1103, %v1089, %v801
      %v1107 = vsel %vm1103, %v1090, %v803
      %v1108 = vsel %vm1103, %v1091, %v805
      %v1109 = vsel %vm1103, %v1092, %v807
      %v1110 = vsel %vm1103, %v1093, %v809
      %v1111 = vsel %vm1103, %v1094, %v811
      %v1112 = vsel %vm1103, %v1095, %v813
      %v1113 = vsel %vm1103, %v1096, %v815
      %v1114 = vsel %vm1103, %v1097, %v817
      %v1115 = vsel %vm1103, %v1098, %v819
      %v1116 = vsel %vm1103, %v1099, %v821
      %v1117 = vsel %vm1103, %v1100, %v823
      %v1118 = vsel %vm1103, %v1101, %v825
      %v1119 = vsel %vm1103, %v1102, %v827
      %vm1120 = vcmask 195584
      %v1121 = vsel %vm1120, %v1104, %v861
      %v1122 = vsel %vm1120, %v1105, %v863
      %v1123 = vsel %vm1120, %v1106, %v865
      %v1124 = vsel %vm1120, %v1107, %v867
      %v1125 = vsel %vm1120, %v1108, %v869
      %v1126 = vsel %vm1120, %v1109, %v871
      %v1127 = vsel %vm1120, %v1110, %v873
      %v1128 = vsel %vm1120, %v1111, %v875
      %v1129 = vsel %vm1120, %v1112, %v877
      %v1130 = vsel %vm1120, %v1113, %v879
      %v1131 = vsel %vm1120, %v1114, %v881
      %v1132 = vsel %vm1120, %v1115, %v883
      %v1133 = vsel %vm1120, %v1116, %v885
      %v1134 = vsel %vm1120, %v1117, %v887
      %v1135 = vsel %vm1120, %v1118, %v889
      %v1136 = vsel %vm1120, %v1119, %v891
      %vm1137 = vcmask 228352
      %v1138 = vsel %vm1137, %v1121, %v925
      %v1139 = vsel %vm1137, %v1122, %v927
      %v1140 = vsel %vm1137, %v1123, %v929
      %v1141 = vsel %vm1137, %v1124, %v931
      %v1142 = vsel %vm1137, %v1125, %v933
      %v1143 = vsel %vm1137, %v1126, %v935
      %v1144 = vsel %vm1137, %v1127, %v937
      %v1145 = vsel %vm1137, %v1128, %v939
      %v1146 = vsel %vm1137, %v1129, %v941
      %v1147 = vsel %vm1137, %v1130, %v943
      %v1148 = vsel %vm1137, %v1131, %v945
      %v1149 = vsel %vm1137, %v1132, %v947
      %v1150 = vsel %vm1137, %v1133, %v949
      %v1151 = vsel %vm1137, %v1134, %v951
      %v1152 = vsel %vm1137, %v1135, %v953
      %v1153 = vsel %vm1137, %v1136, %v955
      %vm1154 = vcmask 261120
      %v1155 = vsel %vm1154, %v1138, %v989
      %v1156 = vsel %vm1154, %v1139, %v991
      %v1157 = vsel %vm1154, %v1140, %v993
      %v1158 = vsel %vm1154, %v1141, %v995
      %v1159 = vsel %vm1154, %v1142, %v997
      %v1160 = vsel %vm1154, %v1143, %v999
      %v1161 = vsel %vm1154, %v1144, %v1001
      %v1162 = vsel %vm1154, %v1145, %v1003
      %v1163 = vsel %vm1154, %v1146, %v1005
      %v1164 = vsel %vm1154, %v1147, %v1007
      %v1165 = vsel %vm1154, %v1148, %v1009
      %v1166 = vsel %vm1154, %v1149, %v1011
      %v1167 = vsel %vm1154, %v1150, %v1013
      %v1168 = vsel %vm1154, %v1151, %v1015
      %v1169 = vsel %vm1154, %v1152, %v1017
      %v1170 = vsel %vm1154, %v1153, %v1019
      %v1171 = vld [vmem:[%s1] sm:$0xff]
      %v1172 = vld [vmem:[%s1 + $0x8] sm:$0xff]
      %v1173 = vld [vmem:[%s1 + $0x10] sm:$0xff]
      %v1174 = vld [vmem:[%s1 + $0x18] sm:$0xff]
      %v1175 = vld [vmem:[%s1 + $0x20] sm:$0xf]
      %v1176 = vld [vmem:[%s2] sm:$0x1]
      %v1178 = vlaneseq
      %v1179 = vshrl.u32 %v1178, 7
      %v1180 = vsub.s32 0, %v1179
      %v1181 = vrot.slane %v1176, %v1180
      %vm1183 = vcmask 293888
      %v1185 = vsel %vm1183, %v1155, 0
      %v1188 = vsel %vm1183, %v1156, 0
      %v1191 = vsel %vm1183, %v1157, 0
      %v1194 = vsel %vm1183, %v1158, 0
      %v1197 = vsel %vm1183, %v1159, 0
      %v1200 = vsel %vm1183, %v1160, 0
      %v1203 = vsel %vm1183, %v1161, 0
      %v1206 = vsel %vm1183, %v1162, 0
      %v1209 = vsel %vm1183, %v1163, 0
      %v1212 = vsel %vm1183, %v1164, 0
      %v1215 = vsel %vm1183, %v1165, 0
      %v1218 = vsel %vm1183, %v1166, 0
      %v1221 = vsel %vm1183, %v1167, 0
      %v1224 = vsel %vm1183, %v1168, 0
      %v1227 = vsel %vm1183, %v1169, 0
      %v1230 = vsel %vm1183, %v1170, 0
      %vm1232 = vcmask 1043456
      %v1234 = vsel %vm1232, %v1175, 0
      %1236 = vmatprep.subr.mxu0 0.0
      %1237 = vmatpush1.msra.mxu0 %v1171
      %1238 = vmatprep.subr.mxu0 0.0
      %1239 = vmatpush1.msra.mxu0 %v1172
      %1240 = vmatprep.subr.mxu0 0.0
      %1241 = vmatpush1.msra.mxu0 %v1173
      %1242 = vmatprep.subr.mxu0 0.0
      %1243 = vmatpush1.msra.mxu0 %v1174
      %1244 = vmatprep.subr.mxu0 0.0
      %1245 = vmatpush1.msra.mxu0 %v1234
      %1246 = vmatprep.subr.mxu0 0.0
      %1247 = vmatpush1.msra.mxu0 0.0
      %1248 = vmatprep.subr.mxu0 0.0
      %1249 = vmatpush1.msra.mxu0 0.0
      %1250 = vmatprep.subr.mxu0 0.0
      %1251 = vmatpush1.msra.mxu0 0.0
      %1252 = vmatprep.subr.mxu0 0.0
      %1253 = vmatpush1.msra.mxu0 0.0
      %1254 = vmatprep.subr.mxu0 0.0
      %1255 = vmatpush1.msra.mxu0 0.0
      %1256 = vmatprep.subr.mxu0 0.0
      %1257 = vmatpush1.msra.mxu0 0.0
      %1258 = vmatprep.subr.mxu0 0.0
      %1259 = vmatpush1.msra.mxu0 0.0
      %1260 = vmatprep.subr.mxu0 0.0
      %1261 = vmatpush1.msra.mxu0 0.0
      %1262 = vmatprep.subr.mxu0 0.0
      %1263 = vmatpush1.msra.mxu0 0.0
      %1264 = vmatprep.subr.mxu0 0.0
      %1265 = vmatpush1.msra.mxu0 0.0
      %1266 = vmatprep.subr.mxu0 0.0
      %1267 = vmatpush1.msra.mxu0 0.0
      %1268 = vmatprep.subr.mxu0 0.0
      %1269 = vmatpush1.msra.mxu0 0.0
      %1270 = vmatprep.subr.mxu0 0.0
      %1271 = vmatpush1.msra.mxu0 0.0
      %1272 = vmatprep.subr.mxu0 0.0
      %1273 = vmatpush1.msra.mxu0 0.0
      %1274 = vmatprep.subr.mxu0 0.0
      %1275 = vmatpush1.msra.mxu0 0.0
      %1276 = vmatprep.subr.mxu0 0.0
      %1277 = vmatpush1.msra.mxu0 0.0
      %1278 = vmatprep.subr.mxu0 0.0
      %1279 = vmatpush1.msra.mxu0 0.0
      %1280 = vmatprep.subr.mxu0 0.0
      %1281 = vmatpush1.msra.mxu0 0.0
      %1282 = vmatprep.subr.mxu0 0.0
      %1283 = vmatpush1.msra.mxu0 0.0
      %1284 = vmatprep.subr.mxu0 0.0
      %1285 = vmatpush1.msra.mxu0 0.0
      %1286 = vmatprep.subr.mxu0 0.0
      %1287 = vmatpush1.msra.mxu0 0.0
      %1288 = vmatprep.subr.mxu0 0.0
      %1289 = vmatpush1.msra.mxu0 0.0
      %1290 = vmatprep.subr.mxu0 0.0
      %1291 = vmatpush1.msra.mxu0 0.0
      %1292 = vmatprep.subr.mxu0 0.0
      %1293 = vmatpush1.msra.mxu0 0.0
      %1294 = vmatprep.subr.mxu0 0.0
      %1295 = vmatpush1.msra.mxu0 0.0
      %1296 = vmatprep.subr.mxu0 0.0
      %1297 = vmatpush1.msra.mxu0 0.0
      %1298 = vmatprep.subr.mxu0 0.0
      %1299 = vmatpush1.msra.mxu0 0.0
      %1300 = vmatprep.mubr.f32.mxu0 0.0
      %1301 = vmatmul.mubr.f32.gmra.mrb[0].mxu0 %v1185
      %v1302 = vpop.f32.mrb[0].mxu0
      %v1303 = vadd.f32 %v1181, %v1302
      %v1304 = vpop.f32.mrb[0].mxu0
      %1305 = vmatprep.mubr.f32.mxu0 0.0
      %1306 = vmatmul.mubr.f32.gmra.mrb[0].mxu0 %v1188
      %v1307 = vpop.f32.mrb[0].mxu0
      %v1308 = vadd.f32 %v1181, %v1307
      %v1309 = vpop.f32.mrb[0].mxu0
      %1310 = vmatprep.mubr.f32.mxu0 0.0
      %1311 = vmatmul.mubr.f32.gmra.mrb[0].mxu0 %v1191
      %v1312 = vpop.f32.mrb[0].mxu0
      %v1313 = vadd.f32 %v1181, %v1312
      %v1314 = vpop.f32.mrb[0].mxu0
      %1315 = vmatprep.mubr.f32.mxu0 0.0
      %1316 = vmatmul.mubr.f32.gmra.mrb[0].mxu0 %v1194
      %v1317 = vpop.f32.mrb[0].mxu0
      %v1318 = vadd.f32 %v1181, %v1317
      %v1319 = vpop.f32.mrb[0].mxu0
      %1320 = vmatprep.mubr.f32.mxu0 0.0
      %1321 = vmatmul.mubr.f32.gmra.mrb[0].mxu0 %v1197
      %v1322 = vpop.f32.mrb[0].mxu0
      %v1323 = vadd.f32 %v1181, %v1322
      %v1324 = vpop.f32.mrb[0].mxu0
      %1325 = vmatprep.mubr.f32.mxu0 0.0
      %1326 = vmatmul.mubr.f32.gmra.mrb[0].mxu0 %v1200
      %v1327 = vpop.f32.mrb[0].mxu0
      %v1328 = vadd.f32 %v1181, %v1327
      %v1329 = vpop.f32.mrb[0].mxu0
      %1330 = vmatprep.mubr.f32.mxu0 0.0
      %1331 = vmatmul.mubr.f32.gmra.mrb[0].mxu0 %v1203
      %v1332 = vpop.f32.mrb[0].mxu0
      %v1333 = vadd.f32 %v1181, %v1332
      %v1334 = vpop.f32.mrb[0].mxu0
      %1335 = vmatprep.mubr.f32.mxu0 0.0
      %1336 = vmatmul.mubr.f32.gmra.mrb[0].mxu0 %v1206
      %v1337 = vpop.f32.mrb[0].mxu0
      %v1338 = vadd.f32 %v1181, %v1337
      %v1339 = vpop.f32.mrb[0].mxu0
      %1340 = vmatprep.mubr.f32.mxu0 0.0
      %1341 = vmatmul.mubr.f32.gmra.mrb[0].mxu0 %v1209
      %v1342 = vpop.f32.mrb[0].mxu0
      %v1343 = vadd.f32 %v1181, %v1342
      %v1344 = vpop.f32.mrb[0].mxu0
      %1345 = vmatprep.mubr.f32.mxu0 0.0
      %1346 = vmatmul.mubr.f32.gmra.mrb[0].mxu0 %v1212
      %v1347 = vpop.f32.mrb[0].mxu0
      %v1348 = vadd.f32 %v1181, %v1347
      %v1349 = vpop.f32.mrb[0].mxu0
      %1350 = vmatprep.mubr.f32.mxu0 0.0
      %1351 = vmatmul.mubr.f32.gmra.mrb[0].mxu0 %v1215
      %v1352 = vpop.f32.mrb[0].mxu0
      %v1353 = vadd.f32 %v1181, %v1352
      %v1354 = vpop.f32.mrb[0].mxu0
      %1355 = vmatprep.mubr.f32.mxu0 0.0
      %1356 = vmatmul.mubr.f32.gmra.mrb[0].mxu0 %v1218
      %v1357 = vpop.f32.mrb[0].mxu0
      %v1358 = vadd.f32 %v1181, %v1357
      %v1359 = vpop.f32.mrb[0].mxu0
      %1360 = vmatprep.mubr.f32.mxu0 0.0
      %1361 = vmatmul.mubr.f32.gmra.mrb[0].mxu0 %v1221
      %v1362 = vpop.f32.mrb[0].mxu0
      %v1363 = vadd.f32 %v1181, %v1362
      %v1364 = vpop.f32.mrb[0].mxu0
      %1365 = vmatprep.mubr.f32.mxu0 0.0
      %1366 = vmatmul.mubr.f32.gmra.mrb[0].mxu0 %v1224
      %v1367 = vpop.f32.mrb[0].mxu0
      %v1368 = vadd.f32 %v1181, %v1367
      %v1369 = vpop.f32.mrb[0].mxu0
      %1370 = vmatprep.mubr.f32.mxu0 0.0
      %1371 = vmatmul.mubr.f32.gmra.mrb[0].mxu0 %v1227
      %v1372 = vpop.f32.mrb[0].mxu0
      %v1373 = vadd.f32 %v1181, %v1372
      %v1374 = vpop.f32.mrb[0].mxu0
      %1375 = vmatprep.mubr.f32.mxu0 0.0
      %1376 = vmatmul.mubr.f32.gmra.mrb[0].mxu0 %v1230
      %v1377 = vpop.f32.mrb[0].mxu0
      %v1378 = vadd.f32 %v1181, %v1377
      %v1379 = vpop.f32.mrb[0].mxu0
      %1380 = vdwg.mxu0
      %1397 = vrot.lane.b32.xlu0 %v1303, 124
      %v1398 = vpop.permute.xlu0 %1397
      %1399 = vrot.lane.b32.xlu0 %v1308, 124
      %v1400 = vpop.permute.xlu0 %1399
      %1401 = vrot.lane.b32.xlu0 %v1313, 124
      %v1402 = vpop.permute.xlu0 %1401
      %1403 = vrot.lane.b32.xlu0 %v1318, 124
      %v1404 = vpop.permute.xlu0 %1403
      %1405 = vrot.lane.b32.xlu0 %v1323, 124
      %v1406 = vpop.permute.xlu0 %1405
      %1407 = vrot.lane.b32.xlu0 %v1328, 124
      %v1408 = vpop.permute.xlu0 %1407
      %1409 = vrot.lane.b32.xlu0 %v1333, 124
      %v1410 = vpop.permute.xlu0 %1409
      %1411 = vrot.lane.b32.xlu0 %v1338, 124
      %v1412 = vpop.permute.xlu0 %1411
      %1413 = vrot.lane.b32.xlu0 %v1343, 124
      %v1414 = vpop.permute.xlu0 %1413
      %1415 = vrot.lane.b32.xlu0 %v1348, 124
      %v1416 = vpop.permute.xlu0 %1415
      %1417 = vrot.lane.b32.xlu0 %v1353, 124
      %v1418 = vpop.permute.xlu0 %1417
      %1419 = vrot.lane.b32.xlu0 %v1358, 124
      %v1420 = vpop.permute.xlu0 %1419
      %1421 = vrot.lane.b32.xlu0 %v1363, 124
      %v1422 = vpop.permute.xlu0 %1421
      %1423 = vrot.lane.b32.xlu0 %v1368, 124
      %v1424 = vpop.permute.xlu0 %1423
      %1425 = vrot.lane.b32.xlu0 %v1373, 124
      %v1426 = vpop.permute.xlu0 %1425
      %1427 = vrot.lane.b32.xlu0 %v1378, 124
      %v1428 = vpop.permute.xlu0 %1427
      %v1445 = vmax.f32 %v1303, %v1398
      %v1446 = vmax.f32 %v1308, %v1400
      %v1447 = vmax.f32 %v1313, %v1402
      %v1448 = vmax.f32 %v1318, %v1404
      %v1449 = vmax.f32 %v1323, %v1406
      %v1450 = vmax.f32 %v1328, %v1408
      %v1451 = vmax.f32 %v1333, %v1410
      %v1452 = vmax.f32 %v1338, %v1412
      %v1453 = vmax.f32 %v1343, %v1414
      %v1454 = vmax.f32 %v1348, %v1416
      %v1455 = vmax.f32 %v1353, %v1418
      %v1456 = vmax.f32 %v1358, %v1420
      %v1457 = vmax.f32 %v1363, %v1422
      %v1458 = vmax.f32 %v1368, %v1424
      %v1459 = vmax.f32 %v1373, %v1426
      %v1460 = vmax.f32 %v1378, %v1428
      %s1461 = scalar_lea.vmem [#allocation3], 24
      %1462 = vst.msk [vmem:[%s1461 + $0x1] sm:$0xff] %vm225, %v1445
      %1463 = vst.msk [vmem:[%s1461 + $0x9] sm:$0xff] %vm225, %v1446
      %1464 = vst.msk [vmem:[%s1461 + $0x19] sm:$0xff] %vm225, %v1447
      %1465 = vst.msk [vmem:[%s1461 + $0x21] sm:$0xff] %vm225, %v1448
      %1466 = vst.msk [vmem:[%s1461 + $0x31] sm:$0xff] %vm225, %v1449
      %1467 = vst.msk [vmem:[%s1461 + $0x39] sm:$0xff] %vm225, %v1450
      %1468 = vst.msk [vmem:[%s1461 + $0x49] sm:$0xff] %vm225, %v1451
      %1469 = vst.msk [vmem:[%s1461 + $0x51] sm:$0xff] %vm225, %v1452
      %1470 = vst.msk [vmem:[%s1461 + $0x61] sm:$0xff] %vm225, %v1453
      %1471 = vst.msk [vmem:[%s1461 + $0x69] sm:$0xff] %vm225, %v1454
      %1472 = vst.msk [vmem:[%s1461 + $0x79] sm:$0xff] %vm225, %v1455
      %1473 = vst.msk [vmem:[%s1461 + $0x81] sm:$0xff] %vm225, %v1456
      %1474 = vst.msk [vmem:[%s1461 + $0x91] sm:$0xff] %vm225, %v1457
      %1475 = vst.msk [vmem:[%s1461 + $0x99] sm:$0xff] %vm225, %v1458
      %1476 = vst.msk [vmem:[%s1461 + $0xa9] sm:$0xff] %vm225, %v1459
      %1477 = vst.msk [vmem:[%s1461 + $0xb1] sm:$0xff] %vm225, %v1460
      %s1478 = scalar_lea.vmem [#allocation2], 192
      %v1479 = vld [vmem:[%s1478] sm:$0xff]
      %v1480 = vld [vmem:[%s1478 + $0x8] sm:$0xff]
      %v1481 = vld [vmem:[%s1478 + $0x18] sm:$0xff]
      %v1482 = vld [vmem:[%s1478 + $0x20] sm:$0xff]
      %v1483 = vld [vmem:[%s1478 + $0x30] sm:$0xff]
      %v1484 = vld [vmem:[%s1478 + $0x38] sm:$0xff]
      %v1485 = vld [vmem:[%s1478 + $0x48] sm:$0xff]
      %v1486 = vld [vmem:[%s1478 + $0x50] sm:$0xff]
      %v1487 = vld [vmem:[%s1478 + $0x60] sm:$0xff]
      %v1488 = vld [vmem:[%s1478 + $0x68] sm:$0xff]
      %v1489 = vld [vmem:[%s1478 + $0x78] sm:$0xff]
      %v1490 = vld [vmem:[%s1478 + $0x80] sm:$0xff]
      %v1491 = vld [vmem:[%s1478 + $0x90] sm:$0xff]
      %v1492 = vld [vmem:[%s1478 + $0x98] sm:$0xff]
      %v1493 = vld [vmem:[%s1478 + $0xa8] sm:$0xff]
      %v1494 = vld [vmem:[%s1478 + $0xb0] sm:$0xff]
      %v1495 = vld [vmem:[%s1478 + $0x1] sm:$0xff]
      %v1496 = vld [vmem:[%s1478 + $0x9] sm:$0xff]
      %v1497 = vld [vmem:[%s1478 + $0x19] sm:$0xff]
      %v1498 = vld [vmem:[%s1478 + $0x21] sm:$0xff]
      %v1499 = vld [vmem:[%s1478 + $0x31] sm:$0xff]
      %v1500 = vld [vmem:[%s1478 + $0x39] sm:$0xff]
      %v1501 = vld [vmem:[%s1478 + $0x49] sm:$0xff]
      %v1502 = vld [vmem:[%s1478 + $0x51] sm:$0xff]
      %v1503 = vld [vmem:[%s1478 + $0x61] sm:$0xff]
      %v1504 = vld [vmem:[%s1478 + $0x69] sm:$0xff]
      %v1505 = vld [vmem:[%s1478 + $0x79] sm:$0xff]
      %v1506 = vld [vmem:[%s1478 + $0x81] sm:$0xff]
      %v1507 = vld [vmem:[%s1478 + $0x91] sm:$0xff]
      %v1508 = vld [vmem:[%s1478 + $0x99] sm:$0xff]
      %v1509 = vld [vmem:[%s1478 + $0xa9] sm:$0xff]
      %v1510 = vld [vmem:[%s1478 + $0xb1] sm:$0xff]
      %v1511 = vld [vmem:[%s1478 + $0x2] sm:$0xff]
      %v1512 = vld [vmem:[%s1478 + $0xa] sm:$0xff]
      %v1513 = vld [vmem:[%s1478 + $0x1a] sm:$0xff]
      %v1514 = vld [vmem:[%s1478 + $0x22] sm:$0xff]
      %v1515 = vld [vmem:[%s1478 + $0x32] sm:$0xff]
      %v1516 = vld [vmem:[%s1478 + $0x3a] sm:$0xff]
      %v1517 = vld [vmem:[%s1478 + $0x4a] sm:$0xff]
      %v1518 = vld [vmem:[%s1478 + $0x52] sm:$0xff]
      %v1519 = vld [vmem:[%s1478 + $0x62] sm:$0xff]
      %v1520 = vld [vmem:[%s1478 + $0x6a] sm:$0xff]
      %v1521 = vld [vmem:[%s1478 + $0x7a] sm:$0xff]
      %v1522 = vld [vmem:[%s1478 + $0x82] sm:$0xff]
      %v1523 = vld [vmem:[%s1478 + $0x92] sm:$0xff]
      %v1524 = vld [vmem:[%s1478 + $0x9a] sm:$0xff]
      %v1525 = vld [vmem:[%s1478 + $0xaa] sm:$0xff]
      %v1526 = vld [vmem:[%s1478 + $0xb2] sm:$0xff]
      %s1527 = scalar_lea.vmem [#allocation2], 216
      %v1528 = vld [vmem:[%s1527] sm:$0xff]
      %v1529 = vld [vmem:[%s1527 + $0x8] sm:$0xff]
      %v1530 = vld [vmem:[%s1527 + $0x18] sm:$0xff]
      %v1531 = vld [vmem:[%s1527 + $0x20] sm:$0xff]
      %v1532 = vld [vmem:[%s1527 + $0x30] sm:$0xff]
      %v1533 = vld [vmem:[%s1527 + $0x38] sm:$0xff]
      %v1534 = vld [vmem:[%s1527 + $0x48] sm:$0xff]
      %v1535 = vld [vmem:[%s1527 + $0x50] sm:$0xff]
      %v1536 = vld [vmem:[%s1527 + $0x60] sm:$0xff]
      %v1537 = vld [vmem:[%s1527 + $0x68] sm:$0xff]
      %v1538 = vld [vmem:[%s1527 + $0x78] sm:$0xff]
      %v1539 = vld [vmem:[%s1527 + $0x80] sm:$0xff]
      %v1540 = vld [vmem:[%s1527 + $0x90] sm:$0xff]
      %v1541 = vld [vmem:[%s1527 + $0x98] sm:$0xff]
      %v1542 = vld [vmem:[%s1527 + $0xa8] sm:$0xff]
      %v1543 = vld [vmem:[%s1527 + $0xb0] sm:$0xff]
      %v1544 = vld [vmem:[%s1527 + $0x1] sm:$0xff]
      %v1545 = vld [vmem:[%s1527 + $0x9] sm:$0xff]
      %v1546 = vld [vmem:[%s1527 + $0x19] sm:$0xff]
      %v1547 = vld [vmem:[%s1527 + $0x21] sm:$0xff]
      %v1548 = vld [vmem:[%s1527 + $0x31] sm:$0xff]
      %v1549 = vld [vmem:[%s1527 + $0x39] sm:$0xff]
      %v1550 = vld [vmem:[%s1527 + $0x49] sm:$0xff]
      %v1551 = vld [vmem:[%s1527 + $0x51] sm:$0xff]
      %v1552 = vld [vmem:[%s1527 + $0x61] sm:$0xff]
      %v1553 = vld [vmem:[%s1527 + $0x69] sm:$0xff]
      %v1554 = vld [vmem:[%s1527 + $0x79] sm:$0xff]
      %v1555 = vld [vmem:[%s1527 + $0x81] sm:$0xff]
      %v1556 = vld [vmem:[%s1527 + $0x91] sm:$0xff]
      %v1557 = vld [vmem:[%s1527 + $0x99] sm:$0xff]
      %v1558 = vld [vmem:[%s1527 + $0xa9] sm:$0xff]
      %v1559 = vld [vmem:[%s1527 + $0xb1] sm:$0xff]
      %v1560 = vld [vmem:[%s1527 + $0x2] sm:$0xff]
      %v1561 = vld [vmem:[%s1527 + $0xa] sm:$0xff]
      %v1562 = vld [vmem:[%s1527 + $0x1a] sm:$0xff]
      %v1563 = vld [vmem:[%s1527 + $0x22] sm:$0xff]
      %v1564 = vld [vmem:[%s1527 + $0x32] sm:$0xff]
      %v1565 = vld [vmem:[%s1527 + $0x3a] sm:$0xff]
      %v1566 = vld [vmem:[%s1527 + $0x4a] sm:$0xff]
      %v1567 = vld [vmem:[%s1527 + $0x52] sm:$0xff]
      %v1568 = vld [vmem:[%s1527 + $0x62] sm:$0xff]
      %v1569 = vld [vmem:[%s1527 + $0x6a] sm:$0xff]
      %v1570 = vld [vmem:[%s1527 + $0x7a] sm:$0xff]
      %v1571 = vld [vmem:[%s1527 + $0x82] sm:$0xff]
      %v1572 = vld [vmem:[%s1527 + $0x92] sm:$0xff]
      %v1573 = vld [vmem:[%s1527 + $0x9a] sm:$0xff]
      %v1574 = vld [vmem:[%s1527 + $0xaa] sm:$0xff]
      %v1575 = vld [vmem:[%s1527 + $0xb2] sm:$0xff]
      %s1576 = scalar_lea.vmem [#allocation2], 240
      %v1577 = vld [vmem:[%s1576] sm:$0xff]
      %v1578 = vld [vmem:[%s1576 + $0x8] sm:$0xff]
      %v1579 = vld [vmem:[%s1576 + $0x18] sm:$0xff]
      %v1580 = vld [vmem:[%s1576 + $0x20] sm:$0xff]
      %v1581 = vld [vmem:[%s1576 + $0x30] sm:$0xff]
      %v1582 = vld [vmem:[%s1576 + $0x38] sm:$0xff]
      %v1583 = vld [vmem:[%s1576 + $0x48] sm:$0xff]
      %v1584 = vld [vmem:[%s1576 + $0x50] sm:$0xff]
      %v1585 = vld [vmem:[%s1576 + $0x60] sm:$0xff]
      %v1586 = vld [vmem:[%s1576 + $0x68] sm:$0xff]
      %v1587 = vld [vmem:[%s1576 + $0x78] sm:$0xff]
      %v1588 = vld [vmem:[%s1576 + $0x80] sm:$0xff]
      %v1589 = vld [vmem:[%s1576 + $0x90] sm:$0xff]
      %v1590 = vld [vmem:[%s1576 + $0x98] sm:$0xff]
      %v1591 = vld [vmem:[%s1576 + $0xa8] sm:$0xff]
      %v1592 = vld [vmem:[%s1576 + $0xb0] sm:$0xff]
      %v1593 = vld [vmem:[%s1576 + $0x1] sm:$0xff]
      %v1594 = vld [vmem:[%s1576 + $0x9] sm:$0xff]
      %v1595 = vld [vmem:[%s1576 + $0x19] sm:$0xff]
      %v1596 = vld [vmem:[%s1576 + $0x21] sm:$0xff]
      %v1597 = vld [vmem:[%s1576 + $0x31] sm:$0xff]
      %v1598 = vld [vmem:[%s1576 + $0x39] sm:$0xff]
      %v1599 = vld [vmem:[%s1576 + $0x49] sm:$0xff]
      %v1600 = vld [vmem:[%s1576 + $0x51] sm:$0xff]
      %v1601 = vld [vmem:[%s1576 + $0x61] sm:$0xff]
      %v1602 = vld [vmem:[%s1576 + $0x69] sm:$0xff]
      %v1603 = vld [vmem:[%s1576 + $0x79] sm:$0xff]
      %v1604 = vld [vmem:[%s1576 + $0x81] sm:$0xff]
      %v1605 = vld [vmem:[%s1576 + $0x91] sm:$0xff]
      %v1606 = vld [vmem:[%s1576 + $0x99] sm:$0xff]
      %v1607 = vld [vmem:[%s1576 + $0xa9] sm:$0xff]
      %v1608 = vld [vmem:[%s1576 + $0xb1] sm:$0xff]
      %v1609 = vld [vmem:[%s1576 + $0x2] sm:$0xff]
      %v1610 = vld [vmem:[%s1576 + $0xa] sm:$0xff]
      %v1611 = vld [vmem:[%s1576 + $0x1a] sm:$0xff]
      %v1612 = vld [vmem:[%s1576 + $0x22] sm:$0xff]
      %v1613 = vld [vmem:[%s1576 + $0x32] sm:$0xff]
      %v1614 = vld [vmem:[%s1576 + $0x3a] sm:$0xff]
      %v1615 = vld [vmem:[%s1576 + $0x4a] sm:$0xff]
      %v1616 = vld [vmem:[%s1576 + $0x52] sm:$0xff]
      %v1617 = vld [vmem:[%s1576 + $0x62] sm:$0xff]
      %v1618 = vld [vmem:[%s1576 + $0x6a] sm:$0xff]
      %v1619 = vld [vmem:[%s1576 + $0x7a] sm:$0xff]
      %v1620 = vld [vmem:[%s1576 + $0x82] sm:$0xff]
      %v1621 = vld [vmem:[%s1576 + $0x92] sm:$0xff]
      %v1622 = vld [vmem:[%s1576 + $0x9a] sm:$0xff]
      %v1623 = vld [vmem:[%s1576 + $0xaa] sm:$0xff]
      %v1624 = vld [vmem:[%s1576 + $0xb2] sm:$0xff]
      %1641 = vrot.lane.b32.xlu0 %v1495, 4
      %v1642 = vpop.permute.xlu0 %1641
      %1643 = vrot.lane.b32.xlu0 %v1496, 4
      %v1644 = vpop.permute.xlu0 %1643
      %1645 = vrot.lane.b32.xlu0 %v1497, 4
      %v1646 = vpop.permute.xlu0 %1645
      %1647 = vrot.lane.b32.xlu0 %v1498, 4
      %v1648 = vpop.permute.xlu0 %1647
      %1649 = vrot.lane.b32.xlu0 %v1499, 4
      %v1650 = vpop.permute.xlu0 %1649
      %1651 = vrot.lane.b32.xlu0 %v1500, 4
      %v1652 = vpop.permute.xlu0 %1651
      %1653 = vrot.lane.b32.xlu0 %v1501, 4
      %v1654 = vpop.permute.xlu0 %1653
      %1655 = vrot.lane.b32.xlu0 %v1502, 4
      %v1656 = vpop.permute.xlu0 %1655
      %1657 = vrot.lane.b32.xlu0 %v1503, 4
      %v1658 = vpop.permute.xlu0 %1657
      %1659 = vrot.lane.b32.xlu0 %v1504, 4
      %v1660 = vpop.permute.xlu0 %1659
      %1661 = vrot.lane.b32.xlu0 %v1505, 4
      %v1662 = vpop.permute.xlu0 %1661
      %1663 = vrot.lane.b32.xlu0 %v1506, 4
      %v1664 = vpop.permute.xlu0 %1663
      %1665 = vrot.lane.b32.xlu0 %v1507, 4
      %v1666 = vpop.permute.xlu0 %1665
      %1667 = vrot.lane.b32.xlu0 %v1508, 4
      %v1668 = vpop.permute.xlu0 %1667
      %1669 = vrot.lane.b32.xlu0 %v1509, 4
      %v1670 = vpop.permute.xlu0 %1669
      %1671 = vrot.lane.b32.xlu0 %v1510, 4
      %v1672 = vpop.permute.xlu0 %1671
      %1705 = vrot.lane.b32.xlu0 %v1511, 8
      %v1706 = vpop.permute.xlu0 %1705
      %1707 = vrot.lane.b32.xlu0 %v1512, 8
      %v1708 = vpop.permute.xlu0 %1707
      %1709 = vrot.lane.b32.xlu0 %v1513, 8
      %v1710 = vpop.permute.xlu0 %1709
      %1711 = vrot.lane.b32.xlu0 %v1514, 8
      %v1712 = vpop.permute.xlu0 %1711
      %1713 = vrot.lane.b32.xlu0 %v1515, 8
      %v1714 = vpop.permute.xlu0 %1713
      %1715 = vrot.lane.b32.xlu0 %v1516, 8
      %v1716 = vpop.permute.xlu0 %1715
      %1717 = vrot.lane.b32.xlu0 %v1517, 8
      %v1718 = vpop.permute.xlu0 %1717
      %1719 = vrot.lane.b32.xlu0 %v1518, 8
      %v1720 = vpop.permute.xlu0 %1719
      %1721 = vrot.lane.b32.xlu0 %v1519, 8
      %v1722 = vpop.permute.xlu0 %1721
      %1723 = vrot.lane.b32.xlu0 %v1520, 8
      %v1724 = vpop.permute.xlu0 %1723
      %1725 = vrot.lane.b32.xlu0 %v1521, 8
      %v1726 = vpop.permute.xlu0 %1725
      %1727 = vrot.lane.b32.xlu0 %v1522, 8
      %v1728 = vpop.permute.xlu0 %1727
      %1729 = vrot.lane.b32.xlu0 %v1523, 8
      %v1730 = vpop.permute.xlu0 %1729
      %1731 = vrot.lane.b32.xlu0 %v1524, 8
      %v1732 = vpop.permute.xlu0 %1731
      %1733 = vrot.lane.b32.xlu0 %v1525, 8
      %v1734 = vpop.permute.xlu0 %1733
      %1735 = vrot.lane.b32.xlu0 %v1526, 8
      %v1736 = vpop.permute.xlu0 %1735
      %1769 = vrot.lane.b32.xlu0 %v1528, 12
      %v1770 = vpop.permute.xlu0 %1769
      %1771 = vrot.lane.b32.xlu0 %v1529, 12
      %v1772 = vpop.permute.xlu0 %1771
      %1773 = vrot.lane.b32.xlu0 %v1530, 12
      %v1774 = vpop.permute.xlu0 %1773
      %1775 = vrot.lane.b32.xlu0 %v1531, 12
      %v1776 = vpop.permute.xlu0 %1775
      %1777 = vrot.lane.b32.xlu0 %v1532, 12
      %v1778 = vpop.permute.xlu0 %1777
      %1779 = vrot.lane.b32.xlu0 %v1533, 12
      %v1780 = vpop.permute.xlu0 %1779
      %1781 = vrot.lane.b32.xlu0 %v1534, 12
      %v1782 = vpop.permute.xlu0 %1781
      %1783 = vrot.lane.b32.xlu0 %v1535, 12
      %v1784 = vpop.permute.xlu0 %1783
      %1785 = vrot.lane.b32.xlu0 %v1536, 12
      %v1786 = vpop.permute.xlu0 %1785
      %1787 = vrot.lane.b32.xlu0 %v1537, 12
      %v1788 = vpop.permute.xlu0 %1787
      %1789 = vrot.lane.b32.xlu0 %v1538, 12
      %v1790 = vpop.permute.xlu0 %1789
      %1791 = vrot.lane.b32.xlu0 %v1539, 12
      %v1792 = vpop.permute.xlu0 %1791
      %1793 = vrot.lane.b32.xlu0 %v1540, 12
      %v1794 = vpop.permute.xlu0 %1793
      %1795 = vrot.lane.b32.xlu0 %v1541, 12
      %v1796 = vpop.permute.xlu0 %1795
      %1797 = vrot.lane.b32.xlu0 %v1542, 12
      %v1798 = vpop.permute.xlu0 %1797
      %1799 = vrot.lane.b32.xlu0 %v1543, 12
      %v1800 = vpop.permute.xlu0 %1799
      %1833 = vrot.lane.b32.xlu0 %v1544, 16
      %v1834 = vpop.permute.xlu0 %1833
      %1835 = vrot.lane.b32.xlu0 %v1545, 16
      %v1836 = vpop.permute.xlu0 %1835
      %1837 = vrot.lane.b32.xlu0 %v1546, 16
      %v1838 = vpop.permute.xlu0 %1837
      %1839 = vrot.lane.b32.xlu0 %v1547, 16
      %v1840 = vpop.permute.xlu0 %1839
      %1841 = vrot.lane.b32.xlu0 %v1548, 16
      %v1842 = vpop.permute.xlu0 %1841
      %1843 = vrot.lane.b32.xlu0 %v1549, 16
      %v1844 = vpop.permute.xlu0 %1843
      %1845 = vrot.lane.b32.xlu0 %v1550, 16
      %v1846 = vpop.permute.xlu0 %1845
      %1847 = vrot.lane.b32.xlu0 %v1551, 16
      %v1848 = vpop.permute.xlu0 %1847
      %1849 = vrot.lane.b32.xlu0 %v1552, 16
      %v1850 = vpop.permute.xlu0 %1849
      %1851 = vrot.lane.b32.xlu0 %v1553, 16
      %v1852 = vpop.permute.xlu0 %1851
      %1853 = vrot.lane.b32.xlu0 %v1554, 16
      %v1854 = vpop.permute.xlu0 %1853
      %1855 = vrot.lane.b32.xlu0 %v1555, 16
      %v1856 = vpop.permute.xlu0 %1855
      %1857 = vrot.lane.b32.xlu0 %v1556, 16
      %v1858 = vpop.permute.xlu0 %1857
      %1859 = vrot.lane.b32.xlu0 %v1557, 16
      %v1860 = vpop.permute.xlu0 %1859
      %1861 = vrot.lane.b32.xlu0 %v1558, 16
      %v1862 = vpop.permute.xlu0 %1861
      %1863 = vrot.lane.b32.xlu0 %v1559, 16
      %v1864 = vpop.permute.xlu0 %1863
      %1897 = vrot.lane.b32.xlu0 %v1560, 20
      %v1898 = vpop.permute.xlu0 %1897
      %1899 = vrot.lane.b32.xlu0 %v1561, 20
      %v1900 = vpop.permute.xlu0 %1899
      %1901 = vrot.lane.b32.xlu0 %v1562, 20
      %v1902 = vpop.permute.xlu0 %1901
      %1903 = vrot.lane.b32.xlu0 %v1563, 20
      %v1904 = vpop.permute.xlu0 %1903
      %1905 = vrot.lane.b32.xlu0 %v1564, 20
      %v1906 = vpop.permute.xlu0 %1905
      %1907 = vrot.lane.b32.xlu0 %v1565, 20
      %v1908 = vpop.permute.xlu0 %1907
      %1909 = vrot.lane.b32.xlu0 %v1566, 20
      %v1910 = vpop.permute.xlu0 %1909
      %1911 = vrot.lane.b32.xlu0 %v1567, 20
      %v1912 = vpop.permute.xlu0 %1911
      %1913 = vrot.lane.b32.xlu0 %v1568, 20
      %v1914 = vpop.permute.xlu0 %1913
      %1915 = vrot.lane.b32.xlu0 %v1569, 20
      %v1916 = vpop.permute.xlu0 %1915
      %1917 = vrot.lane.b32.xlu0 %v1570, 20
      %v1918 = vpop.permute.xlu0 %1917
      %1919 = vrot.lane.b32.xlu0 %v1571, 20
      %v1920 = vpop.permute.xlu0 %1919
      %1921 = vrot.lane.b32.xlu0 %v1572, 20
      %v1922 = vpop.permute.xlu0 %1921
      %1923 = vrot.lane.b32.xlu0 %v1573, 20
      %v1924 = vpop.permute.xlu0 %1923
      %1925 = vrot.lane.b32.xlu0 %v1574, 20
      %v1926 = vpop.permute.xlu0 %1925
      %1927 = vrot.lane.b32.xlu0 %v1575, 20
      %v1928 = vpop.permute.xlu0 %1927
      %1961 = vrot.lane.b32.xlu0 %v1577, 24
      %v1962 = vpop.permute.xlu0 %1961
      %1963 = vrot.lane.b32.xlu0 %v1578, 24
      %v1964 = vpop.permute.xlu0 %1963
      %1965 = vrot.lane.b32.xlu0 %v1579, 24
      %v1966 = vpop.permute.xlu0 %1965
      %1967 = vrot.lane.b32.xlu0 %v1580, 24
      %v1968 = vpop.permute.xlu0 %1967
      %1969 = vrot.lane.b32.xlu0 %v1581, 24
      %v1970 = vpop.permute.xlu0 %1969
      %1971 = vrot.lane.b32.xlu0 %v1582, 24
      %v1972 = vpop.permute.xlu0 %1971
      %1973 = vrot.lane.b32.xlu0 %v1583, 24
      %v1974 = vpop.permute.xlu0 %1973
      %1975 = vrot.lane.b32.xlu0 %v1584, 24
      %v1976 = vpop.permute.xlu0 %1975
      %1977 = vrot.lane.b32.xlu0 %v1585, 24
      %v1978 = vpop.permute.xlu0 %1977
      %1979 = vrot.lane.b32.xlu0 %v1586, 24
      %v1980 = vpop.permute.xlu0 %1979
      %1981 = vrot.lane.b32.xlu0 %v1587, 24
      %v1982 = vpop.permute.xlu0 %1981
      %1983 = vrot.lane.b32.xlu0 %v1588, 24
      %v1984 = vpop.permute.xlu0 %1983
      %1985 = vrot.lane.b32.xlu0 %v1589, 24
      %v1986 = vpop.permute.xlu0 %1985
      %1987 = vrot.lane.b32.xlu0 %v1590, 24
      %v1988 = vpop.permute.xlu0 %1987
      %1989 = vrot.lane.b32.xlu0 %v1591, 24
      %v1990 = vpop.permute.xlu0 %1989
      %1991 = vrot.lane.b32.xlu0 %v1592, 24
      %v1992 = vpop.permute.xlu0 %1991
      %2025 = vrot.lane.b32.xlu0 %v1593, 28
      %v2026 = vpop.permute.xlu0 %2025
      %2027 = vrot.lane.b32.xlu0 %v1594, 28
      %v2028 = vpop.permute.xlu0 %2027
      %2029 = vrot.lane.b32.xlu0 %v1595, 28
      %v2030 = vpop.permute.xlu0 %2029
      %2031 = vrot.lane.b32.xlu0 %v1596, 28
      %v2032 = vpop.permute.xlu0 %2031
      %2033 = vrot.lane.b32.xlu0 %v1597, 28
      %v2034 = vpop.permute.xlu0 %2033
      %2035 = vrot.lane.b32.xlu0 %v1598, 28
      %v2036 = vpop.permute.xlu0 %2035
      %2037 = vrot.lane.b32.xlu0 %v1599, 28
      %v2038 = vpop.permute.xlu0 %2037
      %2039 = vrot.lane.b32.xlu0 %v1600, 28
      %v2040 = vpop.permute.xlu0 %2039
      %2041 = vrot.lane.b32.xlu0 %v1601, 28
      %v2042 = vpop.permute.xlu0 %2041
      %2043 = vrot.lane.b32.xlu0 %v1602, 28
      %v2044 = vpop.permute.xlu0 %2043
      %2045 = vrot.lane.b32.xlu0 %v1603, 28
      %v2046 = vpop.permute.xlu0 %2045
      %2047 = vrot.lane.b32.xlu0 %v1604, 28
      %v2048 = vpop.permute.xlu0 %2047
      %2049 = vrot.lane.b32.xlu0 %v1605, 28
      %v2050 = vpop.permute.xlu0 %2049
      %2051 = vrot.lane.b32.xlu0 %v1606, 28
      %v2052 = vpop.permute.xlu0 %2051
      %2053 = vrot.lane.b32.xlu0 %v1607, 28
      %v2054 = vpop.permute.xlu0 %2053
      %2055 = vrot.lane.b32.xlu0 %v1608, 28
      %v2056 = vpop.permute.xlu0 %2055
      %2089 = vrot.lane.b32.xlu0 %v1609, 32
      %v2090 = vpop.permute.xlu0 %2089
      %2091 = vrot.lane.b32.xlu0 %v1610, 32
      %v2092 = vpop.permute.xlu0 %2091
      %2093 = vrot.lane.b32.xlu0 %v1611, 32
      %v2094 = vpop.permute.xlu0 %2093
      %2095 = vrot.lane.b32.xlu0 %v1612, 32
      %v2096 = vpop.permute.xlu0 %2095
      %2097 = vrot.lane.b32.xlu0 %v1613, 32
      %v2098 = vpop.permute.xlu0 %2097
      %2099 = vrot.lane.b32.xlu0 %v1614, 32
      %v2100 = vpop.permute.xlu0 %2099
      %2101 = vrot.lane.b32.xlu0 %v1615, 32
      %v2102 = vpop.permute.xlu0 %2101
      %2103 = vrot.lane.b32.xlu0 %v1616, 32
      %v2104 = vpop.permute.xlu0 %2103
      %2105 = vrot.lane.b32.xlu0 %v1617, 32
      %v2106 = vpop.permute.xlu0 %2105
      %2107 = vrot.lane.b32.xlu0 %v1618, 32
      %v2108 = vpop.permute.xlu0 %2107
      %2109 = vrot.lane.b32.xlu0 %v1619, 32
      %v2110 = vpop.permute.xlu0 %2109
      %2111 = vrot.lane.b32.xlu0 %v1620, 32
      %v2112 = vpop.permute.xlu0 %2111
      %2113 = vrot.lane.b32.xlu0 %v1621, 32
      %v2114 = vpop.permute.xlu0 %2113
      %2115 = vrot.lane.b32.xlu0 %v1622, 32
      %v2116 = vpop.permute.xlu0 %2115
      %2117 = vrot.lane.b32.xlu0 %v1623, 32
      %v2118 = vpop.permute.xlu0 %2117
      %2119 = vrot.lane.b32.xlu0 %v1624, 32
      %v2120 = vpop.permute.xlu0 %2119
      %v2137 = vsel %vm225, %v1479, %v1642
      %v2138 = vsel %vm225, %v1480, %v1644
      %v2139 = vsel %vm225, %v1481, %v1646
      %v2140 = vsel %vm225, %v1482, %v1648
      %v2141 = vsel %vm225, %v1483, %v1650
      %v2142 = vsel %vm225, %v1484, %v1652
      %v2143 = vsel %vm225, %v1485, %v1654
      %v2144 = vsel %vm225, %v1486, %v1656
      %v2145 = vsel %vm225, %v1487, %v1658
      %v2146 = vsel %vm225, %v1488, %v1660
      %v2147 = vsel %vm225, %v1489, %v1662
      %v2148 = vsel %vm225, %v1490, %v1664
      %v2149 = vsel %vm225, %v1491, %v1666
      %v2150 = vsel %vm225, %v1492, %v1668
      %v2151 = vsel %vm225, %v1493, %v1670
      %v2152 = vsel %vm225, %v1494, %v1672
      %v2153 = vsel %vm1052, %v2137, %v1706
      %v2154 = vsel %vm1052, %v2138, %v1708
      %v2155 = vsel %vm1052, %v2139, %v1710
      %v2156 = vsel %vm1052, %v2140, %v1712
      %v2157 = vsel %vm1052, %v2141, %v1714
      %v2158 = vsel %vm1052, %v2142, %v1716
      %v2159 = vsel %vm1052, %v2143, %v1718
      %v2160 = vsel %vm1052, %v2144, %v1720
      %v2161 = vsel %vm1052, %v2145, %v1722
      %v2162 = vsel %vm1052, %v2146, %v1724
      %v2163 = vsel %vm1052, %v2147, %v1726
      %v2164 = vsel %vm1052, %v2148, %v1728
      %v2165 = vsel %vm1052, %v2149, %v1730
      %v2166 = vsel %vm1052, %v2150, %v1732
      %v2167 = vsel %vm1052, %v2151, %v1734
      %v2168 = vsel %vm1052, %v2152, %v1736
      %v2169 = vsel %vm1069, %v2153, %v1770
      %v2170 = vsel %vm1069, %v2154, %v1772
      %v2171 = vsel %vm1069, %v2155, %v1774
      %v2172 = vsel %vm1069, %v2156, %v1776
      %v2173 = vsel %vm1069, %v2157, %v1778
      %v2174 = vsel %vm1069, %v2158, %v1780
      %v2175 = vsel %vm1069, %v2159, %v1782
      %v2176 = vsel %vm1069, %v2160, %v1784
      %v2177 = vsel %vm1069, %v2161, %v1786
      %v2178 = vsel %vm1069, %v2162, %v1788
      %v2179 = vsel %vm1069, %v2163, %v1790
      %v2180 = vsel %vm1069, %v2164, %v1792
      %v2181 = vsel %vm1069, %v2165, %v1794
      %v2182 = vsel %vm1069, %v2166, %v1796
      %v2183 = vsel %vm1069, %v2167, %v1798
      %v2184 = vsel %vm1069, %v2168, %v1800
      %v2185 = vsel %vm1086, %v2169, %v1834
      %v2186 = vsel %vm1086, %v2170, %v1836
      %v2187 = vsel %vm1086, %v2171, %v1838
      %v2188 = vsel %vm1086, %v2172, %v1840
      %v2189 = vsel %vm1086, %v2173, %v1842
      %v2190 = vsel %vm1086, %v2174, %v1844
      %v2191 = vsel %vm1086, %v2175, %v1846
      %v2192 = vsel %vm1086, %v2176, %v1848
      %v2193 = vsel %vm1086, %v2177, %v1850
      %v2194 = vsel %vm1086, %v2178, %v1852
      %v2195 = vsel %vm1086, %v2179, %v1854
      %v2196 = vsel %vm1086, %v2180, %v1856
      %v2197 = vsel %vm1086, %v2181, %v1858
      %v2198 = vsel %vm1086, %v2182, %v1860
      %v2199 = vsel %vm1086, %v2183, %v1862
      %v2200 = vsel %vm1086, %v2184, %v1864
      %v2201 = vsel %vm1103, %v2185, %v1898
      %v2202 = vsel %vm1103, %v2186, %v1900
      %v2203 = vsel %vm1103, %v2187, %v1902
      %v2204 = vsel %vm1103, %v2188, %v1904
      %v2205 = vsel %vm1103, %v2189, %v1906
      %v2206 = vsel %vm1103, %v2190, %v1908
      %v2207 = vsel %vm1103, %v2191, %v1910
      %v2208 = vsel %vm1103, %v2192, %v1912
      %v2209 = vsel %vm1103, %v2193, %v1914
      %v2210 = vsel %vm1103, %v2194, %v1916
      %v2211 = vsel %vm1103, %v2195, %v1918
      %v2212 = vsel %vm1103, %v2196, %v1920
      %v2213 = vsel %vm1103, %v2197, %v1922
      %v2214 = vsel %vm1103, %v2198, %v1924
      %v2215 = vsel %vm1103, %v2199, %v1926
      %v2216 = vsel %vm1103, %v2200, %v1928
      %v2217 = vsel %vm1120, %v2201, %v1962
      %v2218 = vsel %vm1120, %v2202, %v1964
      %v2219 = vsel %vm1120, %v2203, %v1966
      %v2220 = vsel %vm1120, %v2204, %v1968
      %v2221 = vsel %vm1120, %v2205, %v1970
      %v2222 = vsel %vm1120, %v2206, %v1972
      %v2223 = vsel %vm1120, %v2207, %v1974
      %v2224 = vsel %vm1120, %v2208, %v1976
      %v2225 = vsel %vm1120, %v2209, %v1978
      %v2226 = vsel %vm1120, %v2210, %v1980
      %v2227 = vsel %vm1120, %v2211, %v1982
      %v2228 = vsel %vm1120, %v2212, %v1984
      %v2229 = vsel %vm1120, %v2213, %v1986
      %v2230 = vsel %vm1120, %v2214, %v1988
      %v2231 = vsel %vm1120, %v2215, %v1990
      %v2232 = vsel %vm1120, %v2216, %v1992
      %v2233 = vsel %vm1137, %v2217, %v2026
      %v2234 = vsel %vm1137, %v2218, %v2028
      %v2235 = vsel %vm1137, %v2219, %v2030
      %v2236 = vsel %vm1137, %v2220, %v2032
      %v2237 = vsel %vm1137, %v2221, %v2034
      %v2238 = vsel %vm1137, %v2222, %v2036
      %v2239 = vsel %vm1137, %v2223, %v2038
      %v2240 = vsel %vm1137, %v2224, %v2040
      %v2241 = vsel %vm1137, %v2225, %v2042
      %v2242 = vsel %vm1137, %v2226, %v2044
      %v2243 = vsel %vm1137, %v2227, %v2046
      %v2244 = vsel %vm1137, %v2228, %v2048
      %v2245 = vsel %vm1137, %v2229, %v2050
      %v2246 = vsel %vm1137, %v2230, %v2052
      %v2247 = vsel %vm1137, %v2231, %v2054
      %v2248 = vsel %vm1137, %v2232, %v2056
      %v2249 = vsel %vm1154, %v2233, %v2090
      %v2250 = vsel %vm1154, %v2234, %v2092
      %v2251 = vsel %vm1154, %v2235, %v2094
      %v2252 = vsel %vm1154, %v2236, %v2096
      %v2253 = vsel %vm1154, %v2237, %v2098
      %v2254 = vsel %vm1154, %v2238, %v2100
      %v2255 = vsel %vm1154, %v2239, %v2102
      %v2256 = vsel %vm1154, %v2240, %v2104
      %v2257 = vsel %vm1154, %v2241, %v2106
      %v2258 = vsel %vm1154, %v2242, %v2108
      %v2259 = vsel %vm1154, %v2243, %v2110
      %v2260 = vsel %vm1154, %v2244, %v2112
      %v2261 = vsel %vm1154, %v2245, %v2114
      %v2262 = vsel %vm1154, %v2246, %v2116
      %v2263 = vsel %vm1154, %v2247, %v2118
      %v2264 = vsel %vm1154, %v2248, %v2120
      %v2265 = vld [vmem:[%s1] sm:$0xff]
      %v2266 = vld [vmem:[%s1 + $0x8] sm:$0xff]
      %v2267 = vld [vmem:[%s1 + $0x10] sm:$0xff]
      %v2268 = vld [vmem:[%s1 + $0x18] sm:$0xff]
      %v2269 = vld [vmem:[%s1 + $0x20] sm:$0xf]
      %v2270 = vld [vmem:[%s2] sm:$0x1]
      %v2272 = vlaneseq
      %v2273 = vshrl.u32 %v2272, 7
      %v2274 = vsub.s32 0, %v2273
      %v2275 = vrot.slane %v2270, %v2274
      %v2278 = vsel %vm1183, %v2249, 0
      %v2281 = vsel %vm1183, %v2250, 0
      %v2284 = vsel %vm1183, %v2251, 0
      %v2287 = vsel %vm1183, %v2252, 0
      %v2290 = vsel %vm1183, %v2253, 0
      %v2293 = vsel %vm1183, %v2254, 0
      %v2296 = vsel %vm1183, %v2255, 0
      %v2299 = vsel %vm1183, %v2256, 0
      %v2302 = vsel %vm1183, %v2257, 0
      %v2305 = vsel %vm1183, %v2258, 0
      %v2308 = vsel %vm1183, %v2259, 0
      %v2311 = vsel %vm1183, %v2260, 0
      %v2314 = vsel %vm1183, %v2261, 0
      %v2317 = vsel %vm1183, %v2262, 0
      %v2320 = vsel %vm1183, %v2263, 0
      %v2323 = vsel %vm1183, %v2264, 0
      %v2326 = vsel %vm1232, %v2269, 0
      %2328 = vmatprep.subr.mxu0 0.0
      %2329 = vmatpush1.msra.mxu0 %v2265
      %2330 = vmatprep.subr.mxu0 0.0
      %2331 = vmatpush1.msra.mxu0 %v2266
      %2332 = vmatprep.subr.mxu0 0.0
      %2333 = vmatpush1.msra.mxu0 %v2267
      %2334 = vmatprep.subr.mxu0 0.0
      %2335 = vmatpush1.msra.mxu0 %v2268
      %2336 = vmatprep.subr.mxu0 0.0
      %2337 = vmatpush1.msra.mxu0 %v2326
      %2338 = vmatprep.subr.mxu0 0.0
      %2339 = vmatpush1.msra.mxu0 0.0
      %2340 = vmatprep.subr.mxu0 0.0
      %2341 = vmatpush1.msra.mxu0 0.0
      %2342 = vmatprep.subr.mxu0 0.0
      %2343 = vmatpush1.msra.mxu0 0.0
      %2344 = vmatprep.subr.mxu0 0.0
      %2345 = vmatpush1.msra.mxu0 0.0
      %2346 = vmatprep.subr.mxu0 0.0
      %2347 = vmatpush1.msra.mxu0 0.0
      %2348 = vmatprep.subr.mxu0 0.0
      %2349 = vmatpush1.msra.mxu0 0.0
      %2350 = vmatprep.subr.mxu0 0.0
      %2351 = vmatpush1.msra.mxu0 0.0
      %2352 = vmatprep.subr.mxu0 0.0
      %2353 = vmatpush1.msra.mxu0 0.0
      %2354 = vmatprep.subr.mxu0 0.0
      %2355 = vmatpush1.msra.mxu0 0.0
      %2356 = vmatprep.subr.mxu0 0.0
      %2357 = vmatpush1.msra.mxu0 0.0
      %2358 = vmatprep.subr.mxu0 0.0
      %2359 = vmatpush1.msra.mxu0 0.0
      %2360 = vmatprep.subr.mxu0 0.0
      %2361 = vmatpush1.msra.mxu0 0.0
      %2362 = vmatprep.subr.mxu0 0.0
      %2363 = vmatpush1.msra.mxu0 0.0
      %2364 = vmatprep.subr.mxu0 0.0
      %2365 = vmatpush1.msra.mxu0 0.0
      %2366 = vmatprep.subr.mxu0 0.0
      %2367 = vmatpush1.msra.mxu0 0.0
      %2368 = vmatprep.subr.mxu0 0.0
      %2369 = vmatpush1.msra.mxu0 0.0
      %2370 = vmatprep.subr.mxu0 0.0
      %2371 = vmatpush1.msra.mxu0 0.0
      %2372 = vmatprep.subr.mxu0 0.0
      %2373 = vmatpush1.msra.mxu0 0.0
      %2374 = vmatprep.subr.mxu0 0.0
      %2375 = vmatpush1.msra.mxu0 0.0
      %2376 = vmatprep.subr.mxu0 0.0
      %2377 = vmatpush1.msra.mxu0 0.0
      %2378 = vmatprep.subr.mxu0 0.0
      %2379 = vmatpush1.msra.mxu0 0.0
      %2380 = vmatprep.subr.mxu0 0.0
      %2381 = vmatpush1.msra.mxu0 0.0
      %2382 = vmatprep.subr.mxu0 0.0
      %2383 = vmatpush1.msra.mxu0 0.0
      %2384 = vmatprep.subr.mxu0 0.0
      %2385 = vmatpush1.msra.mxu0 0.0
      %2386 = vmatprep.subr.mxu0 0.0
      %2387 = vmatpush1.msra.mxu0 0.0
      %2388 = vmatprep.subr.mxu0 0.0
      %2389 = vmatpush1.msra.mxu0 0.0
      %2390 = vmatprep.subr.mxu0 0.0
      %2391 = vmatpush1.msra.mxu0 0.0
      %2392 = vmatprep.mubr.f32.mxu0 0.0
      %2393 = vmatmul.mubr.f32.gmra.mrb[0].mxu0 %v2278
      %v2394 = vpop.f32.mrb[0].mxu0
      %v2395 = vadd.f32 %v2275, %v2394
      %v2396 = vpop.f32.mrb[0].mxu0
      %2397 = vmatprep.mubr.f32.mxu0 0.0
      %2398 = vmatmul.mubr.f32.gmra.mrb[0].mxu0 %v2281
      %v2399 = vpop.f32.mrb[0].mxu0
      %v2400 = vadd.f32 %v2275, %v2399
      %v2401 = vpop.f32.mrb[0].mxu0
      %2402 = vmatprep.mubr.f32.mxu0 0.0
      %2403 = vmatmul.mubr.f32.gmra.mrb[0].mxu0 %v2284
      %v2404 = vpop.f32.mrb[0].mxu0
      %v2405 = vadd.f32 %v2275, %v2404
      %v2406 = vpop.f32.mrb[0].mxu0
      %2407 = vmatprep.mubr.f32.mxu0 0.0
      %2408 = vmatmul.mubr.f32.gmra.mrb[0].mxu0 %v2287
      %v2409 = vpop.f32.mrb[0].mxu0
      %v2410 = vadd.f32 %v2275, %v2409
      %v2411 = vpop.f32.mrb[0].mxu0
      %2412 = vmatprep.mubr.f32.mxu0 0.0
      %2413 = vmatmul.mubr.f32.gmra.mrb[0].mxu0 %v2290
      %v2414 = vpop.f32.mrb[0].mxu0
      %v2415 = vadd.f32 %v2275, %v2414
      %v2416 = vpop.f32.mrb[0].mxu0
      %2417 = vmatprep.mubr.f32.mxu0 0.0
      %2418 = vmatmul.mubr.f32.gmra.mrb[0].mxu0 %v2293
      %v2419 = vpop.f32.mrb[0].mxu0
      %v2420 = vadd.f32 %v2275, %v2419
      %v2421 = vpop.f32.mrb[0].mxu0
      %2422 = vmatprep.mubr.f32.mxu0 0.0
      %2423 = vmatmul.mubr.f32.gmra.mrb[0].mxu0 %v2296
      %v2424 = vpop.f32.mrb[0].mxu0
      %v2425 = vadd.f32 %v2275, %v2424
      %v2426 = vpop.f32.mrb[0].mxu0
      %2427 = vmatprep.mubr.f32.mxu0 0.0
      %2428 = vmatmul.mubr.f32.gmra.mrb[0].mxu0 %v2299
      %v2429 = vpop.f32.mrb[0].mxu0
      %v2430 = vadd.f32 %v2275, %v2429
      %v2431 = vpop.f32.mrb[0].mxu0
      %2432 = vmatprep.mubr.f32.mxu0 0.0
      %2433 = vmatmul.mubr.f32.gmra.mrb[0].mxu0 %v2302
      %v2434 = vpop.f32.mrb[0].mxu0
      %v2435 = vadd.f32 %v2275, %v2434
      %v2436 = vpop.f32.mrb[0].mxu0
      %2437 = vmatprep.mubr.f32.mxu0 0.0
      %2438 = vmatmul.mubr.f32.gmra.mrb[0].mxu0 %v2305
      %v2439 = vpop.f32.mrb[0].mxu0
      %v2440 = vadd.f32 %v2275, %v2439
      %v2441 = vpop.f32.mrb[0].mxu0
      %2442 = vmatprep.mubr.f32.mxu0 0.0
      %2443 = vmatmul.mubr.f32.gmra.mrb[0].mxu0 %v2308
      %v2444 = vpop.f32.mrb[0].mxu0
      %v2445 = vadd.f32 %v2275, %v2444
      %v2446 = vpop.f32.mrb[0].mxu0
      %2447 = vmatprep.mubr.f32.mxu0 0.0
      %2448 = vmatmul.mubr.f32.gmra.mrb[0].mxu0 %v2311
      %v2449 = vpop.f32.mrb[0].mxu0
      %v2450 = vadd.f32 %v2275, %v2449
      %v2451 = vpop.f32.mrb[0].mxu0
      %2452 = vmatprep.mubr.f32.mxu0 0.0
      %2453 = vmatmul.mubr.f32.gmra.mrb[0].mxu0 %v2314
      %v2454 = vpop.f32.mrb[0].mxu0
      %v2455 = vadd.f32 %v2275, %v2454
      %v2456 = vpop.f32.mrb[0].mxu0
      %2457 = vmatprep.mubr.f32.mxu0 0.0
      %2458 = vmatmul.mubr.f32.gmra.mrb[0].mxu0 %v2317
      %v2459 = vpop.f32.mrb[0].mxu0
      %v2460 = vadd.f32 %v2275, %v2459
      %v2461 = vpop.f32.mrb[0].mxu0
      %2462 = vmatprep.mubr.f32.mxu0 0.0
      %2463 = vmatmul.mubr.f32.gmra.mrb[0].mxu0 %v2320
      %v2464 = vpop.f32.mrb[0].mxu0
      %v2465 = vadd.f32 %v2275, %v2464
      %v2466 = vpop.f32.mrb[0].mxu0
      %2467 = vmatprep.mubr.f32.mxu0 0.0
      %2468 = vmatmul.mubr.f32.gmra.mrb[0].mxu0 %v2323
      %v2469 = vpop.f32.mrb[0].mxu0
      %v2470 = vadd.f32 %v2275, %v2469
      %v2471 = vpop.f32.mrb[0].mxu0
      %2472 = vdwg.mxu0
      %2489 = vrot.lane.b32.xlu0 %v2395, 124
      %v2490 = vpop.permute.xlu0 %2489
      %2491 = vrot.lane.b32.xlu0 %v2400, 124
      %v2492 = vpop.permute.xlu0 %2491
      %2493 = vrot.lane.b32.xlu0 %v2405, 124
      %v2494 = vpop.permute.xlu0 %2493
      %2495 = vrot.lane.b32.xlu0 %v2410, 124
      %v2496 = vpop.permute.xlu0 %2495
      %2497 = vrot.lane.b32.xlu0 %v2415, 124
      %v2498 = vpop.permute.xlu0 %2497
      %2499 = vrot.lane.b32.xlu0 %v2420, 124
      %v2500 = vpop.permute.xlu0 %2499
      %2501 = vrot.lane.b32.xlu0 %v2425, 124
      %v2502 = vpop.permute.xlu0 %2501
      %2503 = vrot.lane.b32.xlu0 %v2430, 124
      %v2504 = vpop.permute.xlu0 %2503
      %2505 = vrot.lane.b32.xlu0 %v2435, 124
      %v2506 = vpop.permute.xlu0 %2505
      %2507 = vrot.lane.b32.xlu0 %v2440, 124
      %v2508 = vpop.permute.xlu0 %2507
      %2509 = vrot.lane.b32.xlu0 %v2445, 124
      %v2510 = vpop.permute.xlu0 %2509
      %2511 = vrot.lane.b32.xlu0 %v2450, 124
      %v2512 = vpop.permute.xlu0 %2511
      %2513 = vrot.lane.b32.xlu0 %v2455, 124
      %v2514 = vpop.permute.xlu0 %2513
      %2515 = vrot.lane.b32.xlu0 %v2460, 124
      %v2516 = vpop.permute.xlu0 %2515
      %2517 = vrot.lane.b32.xlu0 %v2465, 124
      %v2518 = vpop.permute.xlu0 %2517
      %2519 = vrot.lane.b32.xlu0 %v2470, 124
      %v2520 = vpop.permute.xlu0 %2519
      %v2537 = vmax.f32 %v2395, %v2490
      %v2538 = vmax.f32 %v2400, %v2492
      %v2539 = vmax.f32 %v2405, %v2494
      %v2540 = vmax.f32 %v2410, %v2496
      %v2541 = vmax.f32 %v2415, %v2498
      %v2542 = vmax.f32 %v2420, %v2500
      %v2543 = vmax.f32 %v2425, %v2502
      %v2544 = vmax.f32 %v2430, %v2504
      %v2545 = vmax.f32 %v2435, %v2506
      %v2546 = vmax.f32 %v2440, %v2508
      %v2547 = vmax.f32 %v2445, %v2510
      %v2548 = vmax.f32 %v2450, %v2512
      %v2549 = vmax.f32 %v2455, %v2514
      %v2550 = vmax.f32 %v2460, %v2516
      %v2551 = vmax.f32 %v2465, %v2518
      %v2552 = vmax.f32 %v2470, %v2520
      %s2553 = scalar_lea.vmem [#allocation3], 216
      %2554 = vst.msk [vmem:[%s2553 + $0x1] sm:$0xff] %vm225, %v2537
      %2555 = vst.msk [vmem:[%s2553 + $0x9] sm:$0xff] %vm225, %v2538
      %2556 = vst.msk [vmem:[%s2553 + $0x19] sm:$0xff] %vm225, %v2539
      %2557 = vst.msk [vmem:[%s2553 + $0x21] sm:$0xff] %vm225, %v2540
      %2558 = vst.msk [vmem:[%s2553 + $0x31] sm:$0xff] %vm225, %v2541
      %2559 = vst.msk [vmem:[%s2553 + $0x39] sm:$0xff] %vm225, %v2542
      %2560 = vst.msk [vmem:[%s2553 + $0x49] sm:$0xff] %vm225, %v2543
      %2561 = vst.msk [vmem:[%s2553 + $0x51] sm:$0xff] %vm225, %v2544
      %2562 = vst.msk [vmem:[%s2553 + $0x61] sm:$0xff] %vm225, %v2545
      %2563 = vst.msk [vmem:[%s2553 + $0x69] sm:$0xff] %vm225, %v2546
      %2564 = vst.msk [vmem:[%s2553 + $0x79] sm:$0xff] %vm225, %v2547
      %2565 = vst.msk [vmem:[%s2553 + $0x81] sm:$0xff] %vm225, %v2548
      %2566 = vst.msk [vmem:[%s2553 + $0x91] sm:$0xff] %vm225, %v2549
      %2567 = vst.msk [vmem:[%s2553 + $0x99] sm:$0xff] %vm225, %v2550
      %2568 = vst.msk [vmem:[%s2553 + $0xa9] sm:$0xff] %vm225, %v2551
      %2569 = vst.msk [vmem:[%s2553 + $0xb1] sm:$0xff] %vm225, %v2552
      %v2570 = vld [vmem:[#allocation3] sm:$0xff]
      %v2571 = vld [vmem:[#allocation3 + $0x8] sm:$0xff]
      %v2572 = vld [vmem:[#allocation3 + $0x18] sm:$0xff]
      %v2573 = vld [vmem:[#allocation3 + $0x20] sm:$0xff]
      %v2574 = vld [vmem:[#allocation3 + $0x30] sm:$0xff]
      %v2575 = vld [vmem:[#allocation3 + $0x38] sm:$0xff]
      %v2576 = vld [vmem:[#allocation3 + $0x48] sm:$0xff]
      %v2577 = vld [vmem:[#allocation3 + $0x50] sm:$0xff]
      %v2578 = vld [vmem:[#allocation3 + $0x60] sm:$0xff]
      %v2579 = vld [vmem:[#allocation3 + $0x68] sm:$0xff]
      %v2580 = vld [vmem:[#allocation3 + $0x78] sm:$0xff]
      %v2581 = vld [vmem:[#allocation3 + $0x80] sm:$0xff]
      %v2582 = vld [vmem:[#allocation3 + $0x90] sm:$0xff]
      %v2583 = vld [vmem:[#allocation3 + $0x98] sm:$0xff]
      %v2584 = vld [vmem:[#allocation3 + $0xa8] sm:$0xff]
      %v2585 = vld [vmem:[#allocation3 + $0xb0] sm:$0xff]
      %v2586 = vld [vmem:[#allocation3 + $0x1] sm:$0xff]
      %v2587 = vld [vmem:[#allocation3 + $0x9] sm:$0xff]
      %v2588 = vld [vmem:[#allocation3 + $0x19] sm:$0xff]
      %v2589 = vld [vmem:[#allocation3 + $0x21] sm:$0xff]
      %v2590 = vld [vmem:[#allocation3 + $0x31] sm:$0xff]
      %v2591 = vld [vmem:[#allocation3 + $0x39] sm:$0xff]
      %v2592 = vld [vmem:[#allocation3 + $0x49] sm:$0xff]
      %v2593 = vld [vmem:[#allocation3 + $0x51] sm:$0xff]
      %v2594 = vld [vmem:[#allocation3 + $0x61] sm:$0xff]
      %v2595 = vld [vmem:[#allocation3 + $0x69] sm:$0xff]
      %v2596 = vld [vmem:[#allocation3 + $0x79] sm:$0xff]
      %v2597 = vld [vmem:[#allocation3 + $0x81] sm:$0xff]
      %v2598 = vld [vmem:[#allocation3 + $0x91] sm:$0xff]
      %v2599 = vld [vmem:[#allocation3 + $0x99] sm:$0xff]
      %v2600 = vld [vmem:[#allocation3 + $0xa9] sm:$0xff]
      %v2601 = vld [vmem:[#allocation3 + $0xb1] sm:$0xff]
      %v2602 = vld [vmem:[#allocation3 + $0x2] sm:$0xff]
      %v2603 = vld [vmem:[#allocation3 + $0xa] sm:$0xff]
      %v2604 = vld [vmem:[#allocation3 + $0x1a] sm:$0xff]
      %v2605 = vld [vmem:[#allocation3 + $0x22] sm:$0xff]
      %v2606 = vld [vmem:[#allocation3 + $0x32] sm:$0xff]
      %v2607 = vld [vmem:[#allocation3 + $0x3a] sm:$0xff]
      %v2608 = vld [vmem:[#allocation3 + $0x4a] sm:$0xff]
      %v2609 = vld [vmem:[#allocation3 + $0x52] sm:$0xff]
      %v2610 = vld [vmem:[#allocation3 + $0x62] sm:$0xff]
      %v2611 = vld [vmem:[#allocation3 + $0x6a] sm:$0xff]
      %v2612 = vld [vmem:[#allocation3 + $0x7a] sm:$0xff]
      %v2613 = vld [vmem:[#allocation3 + $0x82] sm:$0xff]
      %v2614 = vld [vmem:[#allocation3 + $0x92] sm:$0xff]
      %v2615 = vld [vmem:[#allocation3 + $0x9a] sm:$0xff]
      %v2616 = vld [vmem:[#allocation3 + $0xaa] sm:$0xff]
      %v2617 = vld [vmem:[#allocation3 + $0xb2] sm:$0xff]
      %v2618 = vld [vmem:[%s1461] sm:$0xff]
      %v2619 = vld [vmem:[%s1461 + $0x8] sm:$0xff]
      %v2620 = vld [vmem:[%s1461 + $0x18] sm:$0xff]
      %v2621 = vld [vmem:[%s1461 + $0x20] sm:$0xff]
      %v2622 = vld [vmem:[%s1461 + $0x30] sm:$0xff]
      %v2623 = vld [vmem:[%s1461 + $0x38] sm:$0xff]
      %v2624 = vld [vmem:[%s1461 + $0x48] sm:$0xff]
      %v2625 = vld [vmem:[%s1461 + $0x50] sm:$0xff]
      %v2626 = vld [vmem:[%s1461 + $0x60] sm:$0xff]
      %v2627 = vld [vmem:[%s1461 + $0x68] sm:$0xff]
      %v2628 = vld [vmem:[%s1461 + $0x78] sm:$0xff]
      %v2629 = vld [vmem:[%s1461 + $0x80] sm:$0xff]
      %v2630 = vld [vmem:[%s1461 + $0x90] sm:$0xff]
      %v2631 = vld [vmem:[%s1461 + $0x98] sm:$0xff]
      %v2632 = vld [vmem:[%s1461 + $0xa8] sm:$0xff]
      %v2633 = vld [vmem:[%s1461 + $0xb0] sm:$0xff]
      %v2634 = vld [vmem:[%s1461 + $0x1] sm:$0xff]
      %v2635 = vld [vmem:[%s1461 + $0x9] sm:$0xff]
      %v2636 = vld [vmem:[%s1461 + $0x19] sm:$0xff]
      %v2637 = vld [vmem:[%s1461 + $0x21] sm:$0xff]
      %v2638 = vld [vmem:[%s1461 + $0x31] sm:$0xff]
      %v2639 = vld [vmem:[%s1461 + $0x39] sm:$0xff]
      %v2640 = vld [vmem:[%s1461 + $0x49] sm:$0xff]
      %v2641 = vld [vmem:[%s1461 + $0x51] sm:$0xff]
      %v2642 = vld [vmem:[%s1461 + $0x61] sm:$0xff]
      %v2643 = vld [vmem:[%s1461 + $0x69] sm:$0xff]
      %v2644 = vld [vmem:[%s1461 + $0x79] sm:$0xff]
      %v2645 = vld [vmem:[%s1461 + $0x81] sm:$0xff]
      %v2646 = vld [vmem:[%s1461 + $0x91] sm:$0xff]
      %v2647 = vld [vmem:[%s1461 + $0x99] sm:$0xff]
      %v2648 = vld [vmem:[%s1461 + $0xa9] sm:$0xff]
      %v2649 = vld [vmem:[%s1461 + $0xb1] sm:$0xff]
      %v2650 = vld [vmem:[%s1461 + $0x2] sm:$0xff]
      %v2651 = vld [vmem:[%s1461 + $0xa] sm:$0xff]
      %v2652 = vld [vmem:[%s1461 + $0x1a] sm:$0xff]
      %v2653 = vld [vmem:[%s1461 + $0x22] sm:$0xff]
      %v2654 = vld [vmem:[%s1461 + $0x32] sm:$0xff]
      %v2655 = vld [vmem:[%s1461 + $0x3a] sm:$0xff]
      %v2656 = vld [vmem:[%s1461 + $0x4a] sm:$0xff]
      %v2657 = vld [vmem:[%s1461 + $0x52] sm:$0xff]
      %v2658 = vld [vmem:[%s1461 + $0x62] sm:$0xff]
      %v2659 = vld [vmem:[%s1461 + $0x6a] sm:$0xff]
      %v2660 = vld [vmem:[%s1461 + $0x7a] sm:$0xff]
      %v2661 = vld [vmem:[%s1461 + $0x82] sm:$0xff]
      %v2662 = vld [vmem:[%s1461 + $0x92] sm:$0xff]
      %v2663 = vld [vmem:[%s1461 + $0x9a] sm:$0xff]
      %v2664 = vld [vmem:[%s1461 + $0xaa] sm:$0xff]
      %v2665 = vld [vmem:[%s1461 + $0xb2] sm:$0xff]
      %s2666 = scalar_lea.vmem [#allocation3], 48
      %v2667 = vld [vmem:[%s2666] sm:$0xff]
      %v2668 = vld [vmem:[%s2666 + $0x8] sm:$0xff]
      %v2669 = vld [vmem:[%s2666 + $0x18] sm:$0xff]
      %v2670 = vld [vmem:[%s2666 + $0x20] sm:$0xff]
      %v2671 = vld [vmem:[%s2666 + $0x30] sm:$0xff]
      %v2672 = vld [vmem:[%s2666 + $0x38] sm:$0xff]
      %v2673 = vld [vmem:[%s2666 + $0x48] sm:$0xff]
      %v2674 = vld [vmem:[%s2666 + $0x50] sm:$0xff]
      %v2675 = vld [vmem:[%s2666 + $0x60] sm:$0xff]
      %v2676 = vld [vmem:[%s2666 + $0x68] sm:$0xff]
      %v2677 = vld [vmem:[%s2666 + $0x78] sm:$0xff]
      %v2678 = vld [vmem:[%s2666 + $0x80] sm:$0xff]
      %v2679 = vld [vmem:[%s2666 + $0x90] sm:$0xff]
      %v2680 = vld [vmem:[%s2666 + $0x98] sm:$0xff]
      %v2681 = vld [vmem:[%s2666 + $0xa8] sm:$0xff]
      %v2682 = vld [vmem:[%s2666 + $0xb0] sm:$0xff]
      %v2683 = vld [vmem:[%s2666 + $0x1] sm:$0xff]
      %v2684 = vld [vmem:[%s2666 + $0x9] sm:$0xff]
      %v2685 = vld [vmem:[%s2666 + $0x19] sm:$0xff]
      %v2686 = vld [vmem:[%s2666 + $0x21] sm:$0xff]
      %v2687 = vld [vmem:[%s2666 + $0x31] sm:$0xff]
      %v2688 = vld [vmem:[%s2666 + $0x39] sm:$0xff]
      %v2689 = vld [vmem:[%s2666 + $0x49] sm:$0xff]
      %v2690 = vld [vmem:[%s2666 + $0x51] sm:$0xff]
      %v2691 = vld [vmem:[%s2666 + $0x61] sm:$0xff]
      %v2692 = vld [vmem:[%s2666 + $0x69] sm:$0xff]
      %v2693 = vld [vmem:[%s2666 + $0x79] sm:$0xff]
      %v2694 = vld [vmem:[%s2666 + $0x81] sm:$0xff]
      %v2695 = vld [vmem:[%s2666 + $0x91] sm:$0xff]
      %v2696 = vld [vmem:[%s2666 + $0x99] sm:$0xff]
      %v2697 = vld [vmem:[%s2666 + $0xa9] sm:$0xff]
      %v2698 = vld [vmem:[%s2666 + $0xb1] sm:$0xff]
      %v2699 = vld [vmem:[%s2666 + $0x2] sm:$0xff]
      %v2700 = vld [vmem:[%s2666 + $0xa] sm:$0xff]
      %v2701 = vld [vmem:[%s2666 + $0x1a] sm:$0xff]
      %v2702 = vld [vmem:[%s2666 + $0x22] sm:$0xff]
      %v2703 = vld [vmem:[%s2666 + $0x32] sm:$0xff]
      %v2704 = vld [vmem:[%s2666 + $0x3a] sm:$0xff]
      %v2705 = vld [vmem:[%s2666 + $0x4a] sm:$0xff]
      %v2706 = vld [vmem:[%s2666 + $0x52] sm:$0xff]
      %v2707 = vld [vmem:[%s2666 + $0x62] sm:$0xff]
      %v2708 = vld [vmem:[%s2666 + $0x6a] sm:$0xff]
      %v2709 = vld [vmem:[%s2666 + $0x7a] sm:$0xff]
      %v2710 = vld [vmem:[%s2666 + $0x82] sm:$0xff]
      %v2711 = vld [vmem:[%s2666 + $0x92] sm:$0xff]
      %v2712 = vld [vmem:[%s2666 + $0x9a] sm:$0xff]
      %v2713 = vld [vmem:[%s2666 + $0xaa] sm:$0xff]
      %v2714 = vld [vmem:[%s2666 + $0xb2] sm:$0xff]
      %2731 = vrot.lane.b32.xlu0 %v2586, 4
      %v2732 = vpop.permute.xlu0 %2731
      %2733 = vrot.lane.b32.xlu0 %v2587, 4
      %v2734 = vpop.permute.xlu0 %2733
      %2735 = vrot.lane.b32.xlu0 %v2588, 4
      %v2736 = vpop.permute.xlu0 %2735
      %2737 = vrot.lane.b32.xlu0 %v2589, 4
      %v2738 = vpop.permute.xlu0 %2737
      %2739 = vrot.lane.b32.xlu0 %v2590, 4
      %v2740 = vpop.permute.xlu0 %2739
      %2741 = vrot.lane.b32.xlu0 %v2591, 4
      %v2742 = vpop.permute.xlu0 %2741
      %2743 = vrot.lane.b32.xlu0 %v2592, 4
      %v2744 = vpop.permute.xlu0 %2743
      %2745 = vrot.lane.b32.xlu0 %v2593, 4
      %v2746 = vpop.permute.xlu0 %2745
      %2747 = vrot.lane.b32.xlu0 %v2594, 4
      %v2748 = vpop.permute.xlu0 %2747
      %2749 = vrot.lane.b32.xlu0 %v2595, 4
      %v2750 = vpop.permute.xlu0 %2749
      %2751 = vrot.lane.b32.xlu0 %v2596, 4
      %v2752 = vpop.permute.xlu0 %2751
      %2753 = vrot.lane.b32.xlu0 %v2597, 4
      %v2754 = vpop.permute.xlu0 %2753
      %2755 = vrot.lane.b32.xlu0 %v2598, 4
      %v2756 = vpop.permute.xlu0 %2755
      %2757 = vrot.lane.b32.xlu0 %v2599, 4
      %v2758 = vpop.permute.xlu0 %2757
      %2759 = vrot.lane.b32.xlu0 %v2600, 4
      %v2760 = vpop.permute.xlu0 %2759
      %2761 = vrot.lane.b32.xlu0 %v2601, 4
      %v2762 = vpop.permute.xlu0 %2761
      %2795 = vrot.lane.b32.xlu0 %v2602, 8
      %v2796 = vpop.permute.xlu0 %2795
      %2797 = vrot.lane.b32.xlu0 %v2603, 8
      %v2798 = vpop.permute.xlu0 %2797
      %2799 = vrot.lane.b32.xlu0 %v2604, 8
      %v2800 = vpop.permute.xlu0 %2799
      %2801 = vrot.lane.b32.xlu0 %v2605, 8
      %v2802 = vpop.permute.xlu0 %2801
      %2803 = vrot.lane.b32.xlu0 %v2606, 8
      %v2804 = vpop.permute.xlu0 %2803
      %2805 = vrot.lane.b32.xlu0 %v2607, 8
      %v2806 = vpop.permute.xlu0 %2805
      %2807 = vrot.lane.b32.xlu0 %v2608, 8
      %v2808 = vpop.permute.xlu0 %2807
      %2809 = vrot.lane.b32.xlu0 %v2609, 8
      %v2810 = vpop.permute.xlu0 %2809
      %2811 = vrot.lane.b32.xlu0 %v2610, 8
      %v2812 = vpop.permute.xlu0 %2811
      %2813 = vrot.lane.b32.xlu0 %v2611, 8
      %v2814 = vpop.permute.xlu0 %2813
      %2815 = vrot.lane.b32.xlu0 %v2612, 8
      %v2816 = vpop.permute.xlu0 %2815
      %2817 = vrot.lane.b32.xlu0 %v2613, 8
      %v2818 = vpop.permute.xlu0 %2817
      %2819 = vrot.lane.b32.xlu0 %v2614, 8
      %v2820 = vpop.permute.xlu0 %2819
      %2821 = vrot.lane.b32.xlu0 %v2615, 8
      %v2822 = vpop.permute.xlu0 %2821
      %2823 = vrot.lane.b32.xlu0 %v2616, 8
      %v2824 = vpop.permute.xlu0 %2823
      %2825 = vrot.lane.b32.xlu0 %v2617, 8
      %v2826 = vpop.permute.xlu0 %2825
      %2859 = vrot.lane.b32.xlu0 %v2618, 12
      %v2860 = vpop.permute.xlu0 %2859
      %2861 = vrot.lane.b32.xlu0 %v2619, 12
      %v2862 = vpop.permute.xlu0 %2861
      %2863 = vrot.lane.b32.xlu0 %v2620, 12
      %v2864 = vpop.permute.xlu0 %2863
      %2865 = vrot.lane.b32.xlu0 %v2621, 12
      %v2866 = vpop.permute.xlu0 %2865
      %2867 = vrot.lane.b32.xlu0 %v2622, 12
      %v2868 = vpop.permute.xlu0 %2867
      %2869 = vrot.lane.b32.xlu0 %v2623, 12
      %v2870 = vpop.permute.xlu0 %2869
      %2871 = vrot.lane.b32.xlu0 %v2624, 12
      %v2872 = vpop.permute.xlu0 %2871
      %2873 = vrot.lane.b32.xlu0 %v2625, 12
      %v2874 = vpop.permute.xlu0 %2873
      %2875 = vrot.lane.b32.xlu0 %v2626, 12
      %v2876 = vpop.permute.xlu0 %2875
      %2877 = vrot.lane.b32.xlu0 %v2627, 12
      %v2878 = vpop.permute.xlu0 %2877
      %2879 = vrot.lane.b32.xlu0 %v2628, 12
      %v2880 = vpop.permute.xlu0 %2879
      %2881 = vrot.lane.b32.xlu0 %v2629, 12
      %v2882 = vpop.permute.xlu0 %2881
      %2883 = vrot.lane.b32.xlu0 %v2630, 12
      %v2884 = vpop.permute.xlu0 %2883
      %2885 = vrot.lane.b32.xlu0 %v2631, 12
      %v2886 = vpop.permute.xlu0 %2885
      %2887 = vrot.lane.b32.xlu0 %v2632, 12
      %v2888 = vpop.permute.xlu0 %2887
      %2889 = vrot.lane.b32.xlu0 %v2633, 12
      %v2890 = vpop.permute.xlu0 %2889
      %2923 = vrot.lane.b32.xlu0 %v2634, 16
      %v2924 = vpop.permute.xlu0 %2923
      %2925 = vrot.lane.b32.xlu0 %v2635, 16
      %v2926 = vpop.permute.xlu0 %2925
      %2927 = vrot.lane.b32.xlu0 %v2636, 16
      %v2928 = vpop.permute.xlu0 %2927
      %2929 = vrot.lane.b32.xlu0 %v2637, 16
      %v2930 = vpop.permute.xlu0 %2929
      %2931 = vrot.lane.b32.xlu0 %v2638, 16
      %v2932 = vpop.permute.xlu0 %2931
      %2933 = vrot.lane.b32.xlu0 %v2639, 16
      %v2934 = vpop.permute.xlu0 %2933
      %2935 = vrot.lane.b32.xlu0 %v2640, 16
      %v2936 = vpop.permute.xlu0 %2935
      %2937 = vrot.lane.b32.xlu0 %v2641, 16
      %v2938 = vpop.permute.xlu0 %2937
      %2939 = vrot.lane.b32.xlu0 %v2642, 16
      %v2940 = vpop.permute.xlu0 %2939
      %2941 = vrot.lane.b32.xlu0 %v2643, 16
      %v2942 = vpop.permute.xlu0 %2941
      %2943 = vrot.lane.b32.xlu0 %v2644, 16
      %v2944 = vpop.permute.xlu0 %2943
      %2945 = vrot.lane.b32.xlu0 %v2645, 16
      %v2946 = vpop.permute.xlu0 %2945
      %2947 = vrot.lane.b32.xlu0 %v2646, 16
      %v2948 = vpop.permute.xlu0 %2947
      %2949 = vrot.lane.b32.xlu0 %v2647, 16
      %v2950 = vpop.permute.xlu0 %2949
      %2951 = vrot.lane.b32.xlu0 %v2648, 16
      %v2952 = vpop.permute.xlu0 %2951
      %2953 = vrot.lane.b32.xlu0 %v2649, 16
      %v2954 = vpop.permute.xlu0 %2953
      %2987 = vrot.lane.b32.xlu0 %v2650, 20
      %v2988 = vpop.permute.xlu0 %2987
      %2989 = vrot.lane.b32.xlu0 %v2651, 20
      %v2990 = vpop.permute.xlu0 %2989
      %2991 = vrot.lane.b32.xlu0 %v2652, 20
      %v2992 = vpop.permute.xlu0 %2991
      %2993 = vrot.lane.b32.xlu0 %v2653, 20
      %v2994 = vpop.permute.xlu0 %2993
      %2995 = vrot.lane.b32.xlu0 %v2654, 20
      %v2996 = vpop.permute.xlu0 %2995
      %2997 = vrot.lane.b32.xlu0 %v2655, 20
      %v2998 = vpop.permute.xlu0 %2997
      %2999 = vrot.lane.b32.xlu0 %v2656, 20
      %v3000 = vpop.permute.xlu0 %2999
      %3001 = vrot.lane.b32.xlu0 %v2657, 20
      %v3002 = vpop.permute.xlu0 %3001
      %3003 = vrot.lane.b32.xlu0 %v2658, 20
      %v3004 = vpop.permute.xlu0 %3003
      %3005 = vrot.lane.b32.xlu0 %v2659, 20
      %v3006 = vpop.permute.xlu0 %3005
      %3007 = vrot.lane.b32.xlu0 %v2660, 20
      %v3008 = vpop.permute.xlu0 %3007
      %3009 = vrot.lane.b32.xlu0 %v2661, 20
      %v3010 = vpop.permute.xlu0 %3009
      %3011 = vrot.lane.b32.xlu0 %v2662, 20
      %v3012 = vpop.permute.xlu0 %3011
      %3013 = vrot.lane.b32.xlu0 %v2663, 20
      %v3014 = vpop.permute.xlu0 %3013
      %3015 = vrot.lane.b32.xlu0 %v2664, 20
      %v3016 = vpop.permute.xlu0 %3015
      %3017 = vrot.lane.b32.xlu0 %v2665, 20
      %v3018 = vpop.permute.xlu0 %3017
      %3051 = vrot.lane.b32.xlu0 %v2667, 24
      %v3052 = vpop.permute.xlu0 %3051
      %3053 = vrot.lane.b32.xlu0 %v2668, 24
      %v3054 = vpop.permute.xlu0 %3053
      %3055 = vrot.lane.b32.xlu0 %v2669, 24
      %v3056 = vpop.permute.xlu0 %3055
      %3057 = vrot.lane.b32.xlu0 %v2670, 24
      %v3058 = vpop.permute.xlu0 %3057
      %3059 = vrot.lane.b32.xlu0 %v2671, 24
      %v3060 = vpop.permute.xlu0 %3059
      %3061 = vrot.lane.b32.xlu0 %v2672, 24
      %v3062 = vpop.permute.xlu0 %3061
      %3063 = vrot.lane.b32.xlu0 %v2673, 24
      %v3064 = vpop.permute.xlu0 %3063
      %3065 = vrot.lane.b32.xlu0 %v2674, 24
      %v3066 = vpop.permute.xlu0 %3065
      %3067 = vrot.lane.b32.xlu0 %v2675, 24
      %v3068 = vpop.permute.xlu0 %3067
      %3069 = vrot.lane.b32.xlu0 %v2676, 24
      %v3070 = vpop.permute.xlu0 %3069
      %3071 = vrot.lane.b32.xlu0 %v2677, 24
      %v3072 = vpop.permute.xlu0 %3071
      %3073 = vrot.lane.b32.xlu0 %v2678, 24
      %v3074 = vpop.permute.xlu0 %3073
      %3075 = vrot.lane.b32.xlu0 %v2679, 24
      %v3076 = vpop.permute.xlu0 %3075
      %3077 = vrot.lane.b32.xlu0 %v2680, 24
      %v3078 = vpop.permute.xlu0 %3077
      %3079 = vrot.lane.b32.xlu0 %v2681, 24
      %v3080 = vpop.permute.xlu0 %3079
      %3081 = vrot.lane.b32.xlu0 %v2682, 24
      %v3082 = vpop.permute.xlu0 %3081
      %3115 = vrot.lane.b32.xlu0 %v2683, 28
      %v3116 = vpop.permute.xlu0 %3115
      %3117 = vrot.lane.b32.xlu0 %v2684, 28
      %v3118 = vpop.permute.xlu0 %3117
      %3119 = vrot.lane.b32.xlu0 %v2685, 28
      %v3120 = vpop.permute.xlu0 %3119
      %3121 = vrot.lane.b32.xlu0 %v2686, 28
      %v3122 = vpop.permute.xlu0 %3121
      %3123 = vrot.lane.b32.xlu0 %v2687, 28
      %v3124 = vpop.permute.xlu0 %3123
      %3125 = vrot.lane.b32.xlu0 %v2688, 28
      %v3126 = vpop.permute.xlu0 %3125
      %3127 = vrot.lane.b32.xlu0 %v2689, 28
      %v3128 = vpop.permute.xlu0 %3127
      %3129 = vrot.lane.b32.xlu0 %v2690, 28
      %v3130 = vpop.permute.xlu0 %3129
      %3131 = vrot.lane.b32.xlu0 %v2691, 28
      %v3132 = vpop.permute.xlu0 %3131
      %3133 = vrot.lane.b32.xlu0 %v2692, 28
      %v3134 = vpop.permute.xlu0 %3133
      %3135 = vrot.lane.b32.xlu0 %v2693, 28
      %v3136 = vpop.permute.xlu0 %3135
      %3137 = vrot.lane.b32.xlu0 %v2694, 28
      %v3138 = vpop.permute.xlu0 %3137
      %3139 = vrot.lane.b32.xlu0 %v2695, 28
      %v3140 = vpop.permute.xlu0 %3139
      %3141 = vrot.lane.b32.xlu0 %v2696, 28
      %v3142 = vpop.permute.xlu0 %3141
      %3143 = vrot.lane.b32.xlu0 %v2697, 28
      %v3144 = vpop.permute.xlu0 %3143
      %3145 = vrot.lane.b32.xlu0 %v2698, 28
      %v3146 = vpop.permute.xlu0 %3145
      %3179 = vrot.lane.b32.xlu0 %v2699, 32
      %v3180 = vpop.permute.xlu0 %3179
      %3181 = vrot.lane.b32.xlu0 %v2700, 32
      %v3182 = vpop.permute.xlu0 %3181
      %3183 = vrot.lane.b32.xlu0 %v2701, 32
      %v3184 = vpop.permute.xlu0 %3183
      %3185 = vrot.lane.b32.xlu0 %v2702, 32
      %v3186 = vpop.permute.xlu0 %3185
      %3187 = vrot.lane.b32.xlu0 %v2703, 32
      %v3188 = vpop.permute.xlu0 %3187
      %3189 = vrot.lane.b32.xlu0 %v2704, 32
      %v3190 = vpop.permute.xlu0 %3189
      %3191 = vrot.lane.b32.xlu0 %v2705, 32
      %v3192 = vpop.permute.xlu0 %3191
      %3193 = vrot.lane.b32.xlu0 %v2706, 32
      %v3194 = vpop.permute.xlu0 %3193
      %3195 = vrot.lane.b32.xlu0 %v2707, 32
      %v3196 = vpop.permute.xlu0 %3195
      %3197 = vrot.lane.b32.xlu0 %v2708, 32
      %v3198 = vpop.permute.xlu0 %3197
      %3199 = vrot.lane.b32.xlu0 %v2709, 32
      %v3200 = vpop.permute.xlu0 %3199
      %3201 = vrot.lane.b32.xlu0 %v2710, 32
      %v3202 = vpop.permute.xlu0 %3201
      %3203 = vrot.lane.b32.xlu0 %v2711, 32
      %v3204 = vpop.permute.xlu0 %3203
      %3205 = vrot.lane.b32.xlu0 %v2712, 32
      %v3206 = vpop.permute.xlu0 %3205
      %3207 = vrot.lane.b32.xlu0 %v2713, 32
      %v3208 = vpop.permute.xlu0 %3207
      %3209 = vrot.lane.b32.xlu0 %v2714, 32
      %v3210 = vpop.permute.xlu0 %3209
      %v3227 = vsel %vm225, %v2570, %v2732
      %v3228 = vsel %vm225, %v2571, %v2734
      %v3229 = vsel %vm225, %v2572, %v2736
      %v3230 = vsel %vm225, %v2573, %v2738
      %v3231 = vsel %vm225, %v2574, %v2740
      %v3232 = vsel %vm225, %v2575, %v2742
      %v3233 = vsel %vm225, %v2576, %v2744
      %v3234 = vsel %vm225, %v2577, %v2746
      %v3235 = vsel %vm225, %v2578, %v2748
      %v3236 = vsel %vm225, %v2579, %v2750
      %v3237 = vsel %vm225, %v2580, %v2752
      %v3238 = vsel %vm225, %v2581, %v2754
      %v3239 = vsel %vm225, %v2582, %v2756
      %v3240 = vsel %vm225, %v2583, %v2758
      %v3241 = vsel %vm225, %v2584, %v2760
      %v3242 = vsel %vm225, %v2585, %v2762
      %v3243 = vsel %vm1052, %v3227, %v2796
      %v3244 = vsel %vm1052, %v3228, %v2798
      %v3245 = vsel %vm1052, %v3229, %v2800
      %v3246 = vsel %vm1052, %v3230, %v2802
      %v3247 = vsel %vm1052, %v3231, %v2804
      %v3248 = vsel %vm1052, %v3232, %v2806
      %v3249 = vsel %vm1052, %v3233, %v2808
      %v3250 = vsel %vm1052, %v3234, %v2810
      %v3251 = vsel %vm1052, %v3235, %v2812
      %v3252 = vsel %vm1052, %v3236, %v2814
      %v3253 = vsel %vm1052, %v3237, %v2816
      %v3254 = vsel %vm1052, %v3238, %v2818
      %v3255 = vsel %vm1052, %v3239, %v2820
      %v3256 = vsel %vm1052, %v3240, %v2822
      %v3257 = vsel %vm1052, %v3241, %v2824
      %v3258 = vsel %vm1052, %v3242, %v2826
      %v3259 = vsel %vm1069, %v3243, %v2860
      %v3260 = vsel %vm1069, %v3244, %v2862
      %v3261 = vsel %vm1069, %v3245, %v2864
      %v3262 = vsel %vm1069, %v3246, %v2866
      %v3263 = vsel %vm1069, %v3247, %v2868
      %v3264 = vsel %vm1069, %v3248, %v2870
      %v3265 = vsel %vm1069, %v3249, %v2872
      %v3266 = vsel %vm1069, %v3250, %v2874
      %v3267 = vsel %vm1069, %v3251, %v2876
      %v3268 = vsel %vm1069, %v3252, %v2878
      %v3269 = vsel %vm1069, %v3253, %v2880
      %v3270 = vsel %vm1069, %v3254, %v2882
      %v3271 = vsel %vm1069, %v3255, %v2884
      %v3272 = vsel %vm1069, %v3256, %v2886
      %v3273 = vsel %vm1069, %v3257, %v2888
      %v3274 = vsel %vm1069, %v3258, %v2890
      %v3275 = vsel %vm1086, %v3259, %v2924
      %v3276 = vsel %vm1086, %v3260, %v2926
      %v3277 = vsel %vm1086, %v3261, %v2928
      %v3278 = vsel %vm1086, %v3262, %v2930
      %v3279 = vsel %vm1086, %v3263, %v2932
      %v3280 = vsel %vm1086, %v3264, %v2934
      %v3281 = vsel %vm1086, %v3265, %v2936
      %v3282 = vsel %vm1086, %v3266, %v2938
      %v3283 = vsel %vm1086, %v3267, %v2940
      %v3284 = vsel %vm1086, %v3268, %v2942
      %v3285 = vsel %vm1086, %v3269, %v2944
      %v3286 = vsel %vm1086, %v3270, %v2946
      %v3287 = vsel %vm1086, %v3271, %v2948
      %v3288 = vsel %vm1086, %v3272, %v2950
      %v3289 = vsel %vm1086, %v3273, %v2952
      %v3290 = vsel %vm1086, %v3274, %v2954
      %v3291 = vsel %vm1103, %v3275, %v2988
      %v3292 = vsel %vm1103, %v3276, %v2990
      %v3293 = vsel %vm1103, %v3277, %v2992
      %v3294 = vsel %vm1103, %v3278, %v2994
      %v3295 = vsel %vm1103, %v3279, %v2996
      %v3296 = vsel %vm1103, %v3280, %v2998
      %v3297 = vsel %vm1103, %v3281, %v3000
      %v3298 = vsel %vm1103, %v3282, %v3002
      %v3299 = vsel %vm1103, %v3283, %v3004
      %v3300 = vsel %vm1103, %v3284, %v3006
      %v3301 = vsel %vm1103, %v3285, %v3008
      %v3302 = vsel %vm1103, %v3286, %v3010
      %v3303 = vsel %vm1103, %v3287, %v3012
      %v3304 = vsel %vm1103, %v3288, %v3014
      %v3305 = vsel %vm1103, %v3289, %v3016
      %v3306 = vsel %vm1103, %v3290, %v3018
      %v3307 = vsel %vm1120, %v3291, %v3052
      %v3308 = vsel %vm1120, %v3292, %v3054
      %v3309 = vsel %vm1120, %v3293, %v3056
      %v3310 = vsel %vm1120, %v3294, %v3058
      %v3311 = vsel %vm1120, %v3295, %v3060
      %v3312 = vsel %vm1120, %v3296, %v3062
      %v3313 = vsel %vm1120, %v3297, %v3064
      %v3314 = vsel %vm1120, %v3298, %v3066
      %v3315 = vsel %vm1120, %v3299, %v3068
      %v3316 = vsel %vm1120, %v3300, %v3070
      %v3317 = vsel %vm1120, %v3301, %v3072
      %v3318 = vsel %vm1120, %v3302, %v3074
      %v3319 = vsel %vm1120, %v3303, %v3076
      %v3320 = vsel %vm1120, %v3304, %v3078
      %v3321 = vsel %vm1120, %v3305, %v3080
      %v3322 = vsel %vm1120, %v3306, %v3082
      %v3323 = vsel %vm1137, %v3307, %v3116
      %v3324 = vsel %vm1137, %v3308, %v3118
      %v3325 = vsel %vm1137, %v3309, %v3120
      %v3326 = vsel %vm1137, %v3310, %v3122
      %v3327 = vsel %vm1137, %v3311, %v3124
      %v3328 = vsel %vm1137, %v3312, %v3126
      %v3329 = vsel %vm1137, %v3313, %v3128
      %v3330 = vsel %vm1137, %v3314, %v3130
      %v3331 = vsel %vm1137, %v3315, %v3132
      %v3332 = vsel %vm1137, %v3316, %v3134
      %v3333 = vsel %vm1137, %v3317, %v3136
      %v3334 = vsel %vm1137, %v3318, %v3138
      %v3335 = vsel %vm1137, %v3319, %v3140
      %v3336 = vsel %vm1137, %v3320, %v3142
      %v3337 = vsel %vm1137, %v3321, %v3144
      %v3338 = vsel %vm1137, %v3322, %v3146
      %v3339 = vsel %vm1154, %v3323, %v3180
      %v3340 = vsel %vm1154, %v3324, %v3182
      %v3341 = vsel %vm1154, %v3325, %v3184
      %v3342 = vsel %vm1154, %v3326, %v3186
      %v3343 = vsel %vm1154, %v3327, %v3188
      %v3344 = vsel %vm1154, %v3328, %v3190
      %v3345 = vsel %vm1154, %v3329, %v3192
      %v3346 = vsel %vm1154, %v3330, %v3194
      %v3347 = vsel %vm1154, %v3331, %v3196
      %v3348 = vsel %vm1154, %v3332, %v3198
      %v3349 = vsel %vm1154, %v3333, %v3200
      %v3350 = vsel %vm1154, %v3334, %v3202
      %v3351 = vsel %vm1154, %v3335, %v3204
      %v3352 = vsel %vm1154, %v3336, %v3206
      %v3353 = vsel %vm1154, %v3337, %v3208
      %v3354 = vsel %vm1154, %v3338, %v3210
      %v3355 = vld [vmem:[%s3] sm:$0xff]
      %v3356 = vld [vmem:[%s3 + $0x8] sm:$0xff]
      %v3357 = vld [vmem:[%s3 + $0x10] sm:$0xff]
      %v3358 = vld [vmem:[%s3 + $0x18] sm:$0xff]
      %v3359 = vld [vmem:[%s3 + $0x20] sm:$0xf]
      %v3360 = vld [vmem:[%s4] sm:$0x1]
      %v3362 = vlaneseq
      %v3363 = vshrl.u32 %v3362, 7
      %v3364 = vsub.s32 0, %v3363
      %v3365 = vrot.slane %v3360, %v3364
      %v3368 = vsel %vm1183, %v3339, 0
      %v3371 = vsel %vm1183, %v3340, 0
      %v3374 = vsel %vm1183, %v3341, 0
      %v3377 = vsel %vm1183, %v3342, 0
      %v3380 = vsel %vm1183, %v3343, 0
      %v3383 = vsel %vm1183, %v3344, 0
      %v3386 = vsel %vm1183, %v3345, 0
      %v3389 = vsel %vm1183, %v3346, 0
      %v3392 = vsel %vm1183, %v3347, 0
      %v3395 = vsel %vm1183, %v3348, 0
      %v3398 = vsel %vm1183, %v3349, 0
      %v3401 = vsel %vm1183, %v3350, 0
      %v3404 = vsel %vm1183, %v3351, 0
      %v3407 = vsel %vm1183, %v3352, 0
      %v3410 = vsel %vm1183, %v3353, 0
      %v3413 = vsel %vm1183, %v3354, 0
      %v3416 = vsel %vm1232, %v3359, 0
      %3418 = vmatprep.subr.mxu0 0.0
      %3419 = vmatpush1.msra.mxu0 %v3355
      %3420 = vmatprep.subr.mxu0 0.0
      %3421 = vmatpush1.msra.mxu0 %v3356
      %3422 = vmatprep.subr.mxu0 0.0
      %3423 = vmatpush1.msra.mxu0 %v3357
      %3424 = vmatprep.subr.mxu0 0.0
      %3425 = vmatpush1.msra.mxu0 %v3358
      %3426 = vmatprep.subr.mxu0 0.0
      %3427 = vmatpush1.msra.mxu0 %v3416
      %3428 = vmatprep.subr.mxu0 0.0
      %3429 = vmatpush1.msra.mxu0 0.0
      %3430 = vmatprep.subr.mxu0 0.0
      %3431 = vmatpush1.msra.mxu0 0.0
      %3432 = vmatprep.subr.mxu0 0.0
      %3433 = vmatpush1.msra.mxu0 0.0
      %3434 = vmatprep.subr.mxu0 0.0
      %3435 = vmatpush1.msra.mxu0 0.0
      %3436 = vmatprep.subr.mxu0 0.0
      %3437 = vmatpush1.msra.mxu0 0.0
      %3438 = vmatprep.subr.mxu0 0.0
      %3439 = vmatpush1.msra.mxu0 0.0
      %3440 = vmatprep.subr.mxu0 0.0
      %3441 = vmatpush1.msra.mxu0 0.0
      %3442 = vmatprep.subr.mxu0 0.0
      %3443 = vmatpush1.msra.mxu0 0.0
      %3444 = vmatprep.subr.mxu0 0.0
      %3445 = vmatpush1.msra.mxu0 0.0
      %3446 = vmatprep.subr.mxu0 0.0
      %3447 = vmatpush1.msra.mxu0 0.0
      %3448 = vmatprep.subr.mxu0 0.0
      %3449 = vmatpush1.msra.mxu0 0.0
      %3450 = vmatprep.subr.mxu0 0.0
      %3451 = vmatpush1.msra.mxu0 0.0
      %3452 = vmatprep.subr.mxu0 0.0
      %3453 = vmatpush1.msra.mxu0 0.0
      %3454 = vmatprep.subr.mxu0 0.0
      %3455 = vmatpush1.msra.mxu0 0.0
      %3456 = vmatprep.subr.mxu0 0.0
      %3457 = vmatpush1.msra.mxu0 0.0
      %3458 = vmatprep.subr.mxu0 0.0
      %3459 = vmatpush1.msra.mxu0 0.0
      %3460 = vmatprep.subr.mxu0 0.0
      %3461 = vmatpush1.msra.mxu0 0.0
      %3462 = vmatprep.subr.mxu0 0.0
      %3463 = vmatpush1.msra.mxu0 0.0
      %3464 = vmatprep.subr.mxu0 0.0
      %3465 = vmatpush1.msra.mxu0 0.0
      %3466 = vmatprep.subr.mxu0 0.0
      %3467 = vmatpush1.msra.mxu0 0.0
      %3468 = vmatprep.subr.mxu0 0.0
      %3469 = vmatpush1.msra.mxu0 0.0
      %3470 = vmatprep.subr.mxu0 0.0
      %3471 = vmatpush1.msra.mxu0 0.0
      %3472 = vmatprep.subr.mxu0 0.0
      %3473 = vmatpush1.msra.mxu0 0.0
      %3474 = vmatprep.subr.mxu0 0.0
      %3475 = vmatpush1.msra.mxu0 0.0
      %3476 = vmatprep.subr.mxu0 0.0
      %3477 = vmatpush1.msra.mxu0 0.0
      %3478 = vmatprep.subr.mxu0 0.0
      %3479 = vmatpush1.msra.mxu0 0.0
      %3480 = vmatprep.subr.mxu0 0.0
      %3481 = vmatpush1.msra.mxu0 0.0
      %3482 = vmatprep.mubr.f32.mxu0 0.0
      %3483 = vmatmul.mubr.f32.gmra.mrb[0].mxu0 %v3368
      %v3484 = vpop.f32.mrb[0].mxu0
      %v3485 = vadd.f32 %v3365, %v3484
      %v3486 = vpop.f32.mrb[0].mxu0
      %3487 = vmatprep.mubr.f32.mxu0 0.0
      %3488 = vmatmul.mubr.f32.gmra.mrb[0].mxu0 %v3371
      %v3489 = vpop.f32.mrb[0].mxu0
      %v3490 = vadd.f32 %v3365, %v3489
      %v3491 = vpop.f32.mrb[0].mxu0
      %3492 = vmatprep.mubr.f32.mxu0 0.0
      %3493 = vmatmul.mubr.f32.gmra.mrb[0].mxu0 %v3374
      %v3494 = vpop.f32.mrb[0].mxu0
      %v3495 = vadd.f32 %v3365, %v3494
      %v3496 = vpop.f32.mrb[0].mxu0
      %3497 = vmatprep.mubr.f32.mxu0 0.0
      %3498 = vmatmul.mubr.f32.gmra.mrb[0].mxu0 %v3377
      %v3499 = vpop.f32.mrb[0].mxu0
      %v3500 = vadd.f32 %v3365, %v3499
      %v3501 = vpop.f32.mrb[0].mxu0
      %3502 = vmatprep.mubr.f32.mxu0 0.0
      %3503 = vmatmul.mubr.f32.gmra.mrb[0].mxu0 %v3380
      %v3504 = vpop.f32.mrb[0].mxu0
      %v3505 = vadd.f32 %v3365, %v3504
      %v3506 = vpop.f32.mrb[0].mxu0
      %3507 = vmatprep.mubr.f32.mxu0 0.0
      %3508 = vmatmul.mubr.f32.gmra.mrb[0].mxu0 %v3383
      %v3509 = vpop.f32.mrb[0].mxu0
      %v3510 = vadd.f32 %v3365, %v3509
      %v3511 = vpop.f32.mrb[0].mxu0
      %3512 = vmatprep.mubr.f32.mxu0 0.0
      %3513 = vmatmul.mubr.f32.gmra.mrb[0].mxu0 %v3386
      %v3514 = vpop.f32.mrb[0].mxu0
      %v3515 = vadd.f32 %v3365, %v3514
      %v3516 = vpop.f32.mrb[0].mxu0
      %3517 = vmatprep.mubr.f32.mxu0 0.0
      %3518 = vmatmul.mubr.f32.gmra.mrb[0].mxu0 %v3389
      %v3519 = vpop.f32.mrb[0].mxu0
      %v3520 = vadd.f32 %v3365, %v3519
      %v3521 = vpop.f32.mrb[0].mxu0
      %3522 = vmatprep.mubr.f32.mxu0 0.0
      %3523 = vmatmul.mubr.f32.gmra.mrb[0].mxu0 %v3392
      %v3524 = vpop.f32.mrb[0].mxu0
      %v3525 = vadd.f32 %v3365, %v3524
      %v3526 = vpop.f32.mrb[0].mxu0
      %3527 = vmatprep.mubr.f32.mxu0 0.0
      %3528 = vmatmul.mubr.f32.gmra.mrb[0].mxu0 %v3395
      %v3529 = vpop.f32.mrb[0].mxu0
      %v3530 = vadd.f32 %v3365, %v3529
      %v3531 = vpop.f32.mrb[0].mxu0
      %3532 = vmatprep.mubr.f32.mxu0 0.0
      %3533 = vmatmul.mubr.f32.gmra.mrb[0].mxu0 %v3398
      %v3534 = vpop.f32.mrb[0].mxu0
      %v3535 = vadd.f32 %v3365, %v3534
      %v3536 = vpop.f32.mrb[0].mxu0
      %3537 = vmatprep.mubr.f32.mxu0 0.0
      %3538 = vmatmul.mubr.f32.gmra.mrb[0].mxu0 %v3401
      %v3539 = vpop.f32.mrb[0].mxu0
      %v3540 = vadd.f32 %v3365, %v3539
      %v3541 = vpop.f32.mrb[0].mxu0
      %3542 = vmatprep.mubr.f32.mxu0 0.0
      %3543 = vmatmul.mubr.f32.gmra.mrb[0].mxu0 %v3404
      %v3544 = vpop.f32.mrb[0].mxu0
      %v3545 = vadd.f32 %v3365, %v3544
      %v3546 = vpop.f32.mrb[0].mxu0
      %3547 = vmatprep.mubr.f32.mxu0 0.0
      %3548 = vmatmul.mubr.f32.gmra.mrb[0].mxu0 %v3407
      %v3549 = vpop.f32.mrb[0].mxu0
      %v3550 = vadd.f32 %v3365, %v3549
      %v3551 = vpop.f32.mrb[0].mxu0
      %3552 = vmatprep.mubr.f32.mxu0 0.0
      %3553 = vmatmul.mubr.f32.gmra.mrb[0].mxu0 %v3410
      %v3554 = vpop.f32.mrb[0].mxu0
      %v3555 = vadd.f32 %v3365, %v3554
      %v3556 = vpop.f32.mrb[0].mxu0
      %3557 = vmatprep.mubr.f32.mxu0 0.0
      %3558 = vmatmul.mubr.f32.gmra.mrb[0].mxu0 %v3413
      %v3559 = vpop.f32.mrb[0].mxu0
      %v3560 = vadd.f32 %v3365, %v3559
      %v3561 = vpop.f32.mrb[0].mxu0
      %3562 = vdwg.mxu0
      %3579 = vrot.lane.b32.xlu0 %v3485, 124
      %v3580 = vpop.permute.xlu0 %3579
      %3581 = vrot.lane.b32.xlu0 %v3490, 124
      %v3582 = vpop.permute.xlu0 %3581
      %3583 = vrot.lane.b32.xlu0 %v3495, 124
      %v3584 = vpop.permute.xlu0 %3583
      %3585 = vrot.lane.b32.xlu0 %v3500, 124
      %v3586 = vpop.permute.xlu0 %3585
      %3587 = vrot.lane.b32.xlu0 %v3505, 124
      %v3588 = vpop.permute.xlu0 %3587
      %3589 = vrot.lane.b32.xlu0 %v3510, 124
      %v3590 = vpop.permute.xlu0 %3589
      %3591 = vrot.lane.b32.xlu0 %v3515, 124
      %v3592 = vpop.permute.xlu0 %3591
      %3593 = vrot.lane.b32.xlu0 %v3520, 124
      %v3594 = vpop.permute.xlu0 %3593
      %3595 = vrot.lane.b32.xlu0 %v3525, 124
      %v3596 = vpop.permute.xlu0 %3595
      %3597 = vrot.lane.b32.xlu0 %v3530, 124
      %v3598 = vpop.permute.xlu0 %3597
      %3599 = vrot.lane.b32.xlu0 %v3535, 124
      %v3600 = vpop.permute.xlu0 %3599
      %3601 = vrot.lane.b32.xlu0 %v3540, 124
      %v3602 = vpop.permute.xlu0 %3601
      %3603 = vrot.lane.b32.xlu0 %v3545, 124
      %v3604 = vpop.permute.xlu0 %3603
      %3605 = vrot.lane.b32.xlu0 %v3550, 124
      %v3606 = vpop.permute.xlu0 %3605
      %3607 = vrot.lane.b32.xlu0 %v3555, 124
      %v3608 = vpop.permute.xlu0 %3607
      %3609 = vrot.lane.b32.xlu0 %v3560, 124
      %v3610 = vpop.permute.xlu0 %3609
      %v3627 = vmax.f32 %v3485, %v3580
      %v3628 = vmax.f32 %v3490, %v3582
      %v3629 = vmax.f32 %v3495, %v3584
      %v3630 = vmax.f32 %v3500, %v3586
      %v3631 = vmax.f32 %v3505, %v3588
      %v3632 = vmax.f32 %v3510, %v3590
      %v3633 = vmax.f32 %v3515, %v3592
      %v3634 = vmax.f32 %v3520, %v3594
      %v3635 = vmax.f32 %v3525, %v3596
      %v3636 = vmax.f32 %v3530, %v3598
      %v3637 = vmax.f32 %v3535, %v3600
      %v3638 = vmax.f32 %v3540, %v3602
      %v3639 = vmax.f32 %v3545, %v3604
      %v3640 = vmax.f32 %v3550, %v3606
      %v3641 = vmax.f32 %v3555, %v3608
      %v3642 = vmax.f32 %v3560, %v3610
      %v3643 = vld [vmem:[%s219] sm:$0xff]
      %v3644 = vld [vmem:[%s219 + $0x8] sm:$0xff]
      %v3645 = vld [vmem:[%s219 + $0x10] sm:$0xff]
      %v3646 = vld [vmem:[%s219 + $0x18] sm:$0xff]
      %v3647 = vld [vmem:[%s219 + $0x20] sm:$0xff]
      %v3648 = vld [vmem:[%s219 + $0x28] sm:$0xff]
      %v3649 = vld [vmem:[%s219 + $0x30] sm:$0xff]
      %v3650 = vld [vmem:[%s219 + $0x38] sm:$0xff]
      %v3651 = vld [vmem:[%s219 + $0x40] sm:$0xff]
      %v3652 = vld [vmem:[%s219 + $0x48] sm:$0xff]
      %v3653 = vld [vmem:[%s219 + $0x50] sm:$0xff]
      %v3654 = vld [vmem:[%s219 + $0x58] sm:$0xff]
      %v3655 = vld [vmem:[%s219 + $0x60] sm:$0xff]
      %v3656 = vld [vmem:[%s219 + $0x68] sm:$0xff]
      %v3657 = vld [vmem:[%s219 + $0x70] sm:$0xff]
      %v3658 = vld [vmem:[%s219 + $0x78] sm:$0xff]
      %v3659 = vadd.f32 %v3627, %v3643
      %v3660 = vadd.f32 %v3628, %v3644
      %v3661 = vadd.f32 %v3629, %v3645
      %v3662 = vadd.f32 %v3630, %v3646
      %v3663 = vadd.f32 %v3631, %v3647
      %v3664 = vadd.f32 %v3632, %v3648
      %v3665 = vadd.f32 %v3633, %v3649
      %v3666 = vadd.f32 %v3634, %v3650
      %v3667 = vadd.f32 %v3635, %v3651
      %v3668 = vadd.f32 %v3636, %v3652
      %v3669 = vadd.f32 %v3637, %v3653
      %v3670 = vadd.f32 %v3638, %v3654
      %v3671 = vadd.f32 %v3639, %v3655
      %v3672 = vadd.f32 %v3640, %v3656
      %v3673 = vadd.f32 %v3641, %v3657
      %v3674 = vadd.f32 %v3642, %v3658
      %3675 = vst.msk [vmem:[%s224] sm:$0xff] %vm225, %v3659
      %3676 = vst.msk [vmem:[%s224 + $0x8] sm:$0xff] %vm225, %v3660
      %3677 = vst.msk [vmem:[%s224 + $0x10] sm:$0xff] %vm225, %v3661
      %3678 = vst.msk [vmem:[%s224 + $0x18] sm:$0xff] %vm225, %v3662
      %3679 = vst.msk [vmem:[%s224 + $0x20] sm:$0xff] %vm225, %v3663
      %3680 = vst.msk [vmem:[%s224 + $0x28] sm:$0xff] %vm225, %v3664
      %3681 = vst.msk [vmem:[%s224 + $0x30] sm:$0xff] %vm225, %v3665
      %3682 = vst.msk [vmem:[%s224 + $0x38] sm:$0xff] %vm225, %v3666
      %3683 = vst.msk [vmem:[%s224 + $0x40] sm:$0xff] %vm225, %v3667
      %3684 = vst.msk [vmem:[%s224 + $0x48] sm:$0xff] %vm225, %v3668
      %3685 = vst.msk [vmem:[%s224 + $0x50] sm:$0xff] %vm225, %v3669
      %3686 = vst.msk [vmem:[%s224 + $0x58] sm:$0xff] %vm225, %v3670
      %3687 = vst.msk [vmem:[%s224 + $0x60] sm:$0xff] %vm225, %v3671
      %3688 = vst.msk [vmem:[%s224 + $0x68] sm:$0xff] %vm225, %v3672
      %3689 = vst.msk [vmem:[%s224 + $0x70] sm:$0xff] %vm225, %v3673
      %3690 = vst.msk [vmem:[%s224 + $0x78] sm:$0xff] %vm225, %v3674
      %s3691 = scalar_lea.vmem [#allocation3], 192
      %v3692 = vld [vmem:[%s3691] sm:$0xff]
      %v3693 = vld [vmem:[%s3691 + $0x8] sm:$0xff]
      %v3694 = vld [vmem:[%s3691 + $0x18] sm:$0xff]
      %v3695 = vld [vmem:[%s3691 + $0x20] sm:$0xff]
      %v3696 = vld [vmem:[%s3691 + $0x30] sm:$0xff]
      %v3697 = vld [vmem:[%s3691 + $0x38] sm:$0xff]
      %v3698 = vld [vmem:[%s3691 + $0x48] sm:$0xff]
      %v3699 = vld [vmem:[%s3691 + $0x50] sm:$0xff]
      %v3700 = vld [vmem:[%s3691 + $0x60] sm:$0xff]
      %v3701 = vld [vmem:[%s3691 + $0x68] sm:$0xff]
      %v3702 = vld [vmem:[%s3691 + $0x78] sm:$0xff]
      %v3703 = vld [vmem:[%s3691 + $0x80] sm:$0xff]
      %v3704 = vld [vmem:[%s3691 + $0x90] sm:$0xff]
      %v3705 = vld [vmem:[%s3691 + $0x98] sm:$0xff]
      %v3706 = vld [vmem:[%s3691 + $0xa8] sm:$0xff]
      %v3707 = vld [vmem:[%s3691 + $0xb0] sm:$0xff]
      %v3708 = vld [vmem:[%s3691 + $0x1] sm:$0xff]
      %v3709 = vld [vmem:[%s3691 + $0x9] sm:$0xff]
      %v3710 = vld [vmem:[%s3691 + $0x19] sm:$0xff]
      %v3711 = vld [vmem:[%s3691 + $0x21] sm:$0xff]
      %v3712 = vld [vmem:[%s3691 + $0x31] sm:$0xff]
      %v3713 = vld [vmem:[%s3691 + $0x39] sm:$0xff]
      %v3714 = vld [vmem:[%s3691 + $0x49] sm:$0xff]
      %v3715 = vld [vmem:[%s3691 + $0x51] sm:$0xff]
      %v3716 = vld [vmem:[%s3691 + $0x61] sm:$0xff]
      %v3717 = vld [vmem:[%s3691 + $0x69] sm:$0xff]
      %v3718 = vld [vmem:[%s3691 + $0x79] sm:$0xff]
      %v3719 = vld [vmem:[%s3691 + $0x81] sm:$0xff]
      %v3720 = vld [vmem:[%s3691 + $0x91] sm:$0xff]
      %v3721 = vld [vmem:[%s3691 + $0x99] sm:$0xff]
      %v3722 = vld [vmem:[%s3691 + $0xa9] sm:$0xff]
      %v3723 = vld [vmem:[%s3691 + $0xb1] sm:$0xff]
      %v3724 = vld [vmem:[%s3691 + $0x2] sm:$0xff]
      %v3725 = vld [vmem:[%s3691 + $0xa] sm:$0xff]
      %v3726 = vld [vmem:[%s3691 + $0x1a] sm:$0xff]
      %v3727 = vld [vmem:[%s3691 + $0x22] sm:$0xff]
      %v3728 = vld [vmem:[%s3691 + $0x32] sm:$0xff]
      %v3729 = vld [vmem:[%s3691 + $0x3a] sm:$0xff]
      %v3730 = vld [vmem:[%s3691 + $0x4a] sm:$0xff]
      %v3731 = vld [vmem:[%s3691 + $0x52] sm:$0xff]
      %v3732 = vld [vmem:[%s3691 + $0x62] sm:$0xff]
      %v3733 = vld [vmem:[%s3691 + $0x6a] sm:$0xff]
      %v3734 = vld [vmem:[%s3691 + $0x7a] sm:$0xff]
      %v3735 = vld [vmem:[%s3691 + $0x82] sm:$0xff]
      %v3736 = vld [vmem:[%s3691 + $0x92] sm:$0xff]
      %v3737 = vld [vmem:[%s3691 + $0x9a] sm:$0xff]
      %v3738 = vld [vmem:[%s3691 + $0xaa] sm:$0xff]
      %v3739 = vld [vmem:[%s3691 + $0xb2] sm:$0xff]
      %v3740 = vld [vmem:[%s2553] sm:$0xff]
      %v3741 = vld [vmem:[%s2553 + $0x8] sm:$0xff]
      %v3742 = vld [vmem:[%s2553 + $0x18] sm:$0xff]
      %v3743 = vld [vmem:[%s2553 + $0x20] sm:$0xff]
      %v3744 = vld [vmem:[%s2553 + $0x30] sm:$0xff]
      %v3745 = vld [vmem:[%s2553 + $0x38] sm:$0xff]
      %v3746 = vld [vmem:[%s2553 + $0x48] sm:$0xff]
      %v3747 = vld [vmem:[%s2553 + $0x50] sm:$0xff]
      %v3748 = vld [vmem:[%s2553 + $0x60] sm:$0xff]
      %v3749 = vld [vmem:[%s2553 + $0x68] sm:$0xff]
      %v3750 = vld [vmem:[%s2553 + $0x78] sm:$0xff]
      %v3751 = vld [vmem:[%s2553 + $0x80] sm:$0xff]
      %v3752 = vld [vmem:[%s2553 + $0x90] sm:$0xff]
      %v3753 = vld [vmem:[%s2553 + $0x98] sm:$0xff]
      %v3754 = vld [vmem:[%s2553 + $0xa8] sm:$0xff]
      %v3755 = vld [vmem:[%s2553 + $0xb0] sm:$0xff]
      %v3756 = vld [vmem:[%s2553 + $0x1] sm:$0xff]
      %v3757 = vld [vmem:[%s2553 + $0x9] sm:$0xff]
      %v3758 = vld [vmem:[%s2553 + $0x19] sm:$0xff]
      %v3759 = vld [vmem:[%s2553 + $0x21] sm:$0xff]
      %v3760 = vld [vmem:[%s2553 + $0x31] sm:$0xff]
      %v3761 = vld [vmem:[%s2553 + $0x39] sm:$0xff]
      %v3762 = vld [vmem:[%s2553 + $0x49] sm:$0xff]
      %v3763 = vld [vmem:[%s2553 + $0x51] sm:$0xff]
      %v3764 = vld [vmem:[%s2553 + $0x61] sm:$0xff]
      %v3765 = vld [vmem:[%s2553 + $0x69] sm:$0xff]
      %v3766 = vld [vmem:[%s2553 + $0x79] sm:$0xff]
      %v3767 = vld [vmem:[%s2553 + $0x81] sm:$0xff]
      %v3768 = vld [vmem:[%s2553 + $0x91] sm:$0xff]
      %v3769 = vld [vmem:[%s2553 + $0x99] sm:$0xff]
      %v3770 = vld [vmem:[%s2553 + $0xa9] sm:$0xff]
      %v3771 = vld [vmem:[%s2553 + $0xb1] sm:$0xff]
      %v3772 = vld [vmem:[%s2553 + $0x2] sm:$0xff]
      %v3773 = vld [vmem:[%s2553 + $0xa] sm:$0xff]
      %v3774 = vld [vmem:[%s2553 + $0x1a] sm:$0xff]
      %v3775 = vld [vmem:[%s2553 + $0x22] sm:$0xff]
      %v3776 = vld [vmem:[%s2553 + $0x32] sm:$0xff]
      %v3777 = vld [vmem:[%s2553 + $0x3a] sm:$0xff]
      %v3778 = vld [vmem:[%s2553 + $0x4a] sm:$0xff]
      %v3779 = vld [vmem:[%s2553 + $0x52] sm:$0xff]
      %v3780 = vld [vmem:[%s2553 + $0x62] sm:$0xff]
      %v3781 = vld [vmem:[%s2553 + $0x6a] sm:$0xff]
      %v3782 = vld [vmem:[%s2553 + $0x7a] sm:$0xff]
      %v3783 = vld [vmem:[%s2553 + $0x82] sm:$0xff]
      %v3784 = vld [vmem:[%s2553 + $0x92] sm:$0xff]
      %v3785 = vld [vmem:[%s2553 + $0x9a] sm:$0xff]
      %v3786 = vld [vmem:[%s2553 + $0xaa] sm:$0xff]
      %v3787 = vld [vmem:[%s2553 + $0xb2] sm:$0xff]
      %s3788 = scalar_lea.vmem [#allocation3], 240
      %v3789 = vld [vmem:[%s3788] sm:$0xff]
      %v3790 = vld [vmem:[%s3788 + $0x8] sm:$0xff]
      %v3791 = vld [vmem:[%s3788 + $0x18] sm:$0xff]
      %v3792 = vld [vmem:[%s3788 + $0x20] sm:$0xff]
      %v3793 = vld [vmem:[%s3788 + $0x30] sm:$0xff]
      %v3794 = vld [vmem:[%s3788 + $0x38] sm:$0xff]
      %v3795 = vld [vmem:[%s3788 + $0x48] sm:$0xff]
      %v3796 = vld [vmem:[%s3788 + $0x50] sm:$0xff]
      %v3797 = vld [vmem:[%s3788 + $0x60] sm:$0xff]
      %v3798 = vld [vmem:[%s3788 + $0x68] sm:$0xff]
      %v3799 = vld [vmem:[%s3788 + $0x78] sm:$0xff]
      %v3800 = vld [vmem:[%s3788 + $0x80] sm:$0xff]
      %v3801 = vld [vmem:[%s3788 + $0x90] sm:$0xff]
      %v3802 = vld [vmem:[%s3788 + $0x98] sm:$0xff]
      %v3803 = vld [vmem:[%s3788 + $0xa8] sm:$0xff]
      %v3804 = vld [vmem:[%s3788 + $0xb0] sm:$0xff]
      %v3805 = vld [vmem:[%s3788 + $0x1] sm:$0xff]
      %v3806 = vld [vmem:[%s3788 + $0x9] sm:$0xff]
      %v3807 = vld [vmem:[%s3788 + $0x19] sm:$0xff]
      %v3808 = vld [vmem:[%s3788 + $0x21] sm:$0xff]
      %v3809 = vld [vmem:[%s3788 + $0x31] sm:$0xff]
      %v3810 = vld [vmem:[%s3788 + $0x39] sm:$0xff]
      %v3811 = vld [vmem:[%s3788 + $0x49] sm:$0xff]
      %v3812 = vld [vmem:[%s3788 + $0x51] sm:$0xff]
      %v3813 = vld [vmem:[%s3788 + $0x61] sm:$0xff]
      %v3814 = vld [vmem:[%s3788 + $0x69] sm:$0xff]
      %v3815 = vld [vmem:[%s3788 + $0x79] sm:$0xff]
      %v3816 = vld [vmem:[%s3788 + $0x81] sm:$0xff]
      %v3817 = vld [vmem:[%s3788 + $0x91] sm:$0xff]
      %v3818 = vld [vmem:[%s3788 + $0x99] sm:$0xff]
      %v3819 = vld [vmem:[%s3788 + $0xa9] sm:$0xff]
      %v3820 = vld [vmem:[%s3788 + $0xb1] sm:$0xff]
      %v3821 = vld [vmem:[%s3788 + $0x2] sm:$0xff]
      %v3822 = vld [vmem:[%s3788 + $0xa] sm:$0xff]
      %v3823 = vld [vmem:[%s3788 + $0x1a] sm:$0xff]
      %v3824 = vld [vmem:[%s3788 + $0x22] sm:$0xff]
      %v3825 = vld [vmem:[%s3788 + $0x32] sm:$0xff]
      %v3826 = vld [vmem:[%s3788 + $0x3a] sm:$0xff]
      %v3827 = vld [vmem:[%s3788 + $0x4a] sm:$0xff]
      %v3828 = vld [vmem:[%s3788 + $0x52] sm:$0xff]
      %v3829 = vld [vmem:[%s3788 + $0x62] sm:$0xff]
      %v3830 = vld [vmem:[%s3788 + $0x6a] sm:$0xff]
      %v3831 = vld [vmem:[%s3788 + $0x7a] sm:$0xff]
      %v3832 = vld [vmem:[%s3788 + $0x82] sm:$0xff]
      %v3833 = vld [vmem:[%s3788 + $0x92] sm:$0xff]
      %v3834 = vld [vmem:[%s3788 + $0x9a] sm:$0xff]
      %v3835 = vld [vmem:[%s3788 + $0xaa] sm:$0xff]
      %v3836 = vld [vmem:[%s3788 + $0xb2] sm:$0xff]
      %3853 = vrot.lane.b32.xlu0 %v3708, 4
      %v3854 = vpop.permute.xlu0 %3853
      %3855 = vrot.lane.b32.xlu0 %v3709, 4
      %v3856 = vpop.permute.xlu0 %3855
      %3857 = vrot.lane.b32.xlu0 %v3710, 4
      %v3858 = vpop.permute.xlu0 %3857
      %3859 = vrot.lane.b32.xlu0 %v3711, 4
      %v3860 = vpop.permute.xlu0 %3859
      %3861 = vrot.lane.b32.xlu0 %v3712, 4
      %v3862 = vpop.permute.xlu0 %3861
      %3863 = vrot.lane.b32.xlu0 %v3713, 4
      %v3864 = vpop.permute.xlu0 %3863
      %3865 = vrot.lane.b32.xlu0 %v3714, 4
      %v3866 = vpop.permute.xlu0 %3865
      %3867 = vrot.lane.b32.xlu0 %v3715, 4
      %v3868 = vpop.permute.xlu0 %3867
      %3869 = vrot.lane.b32.xlu0 %v3716, 4
      %v3870 = vpop.permute.xlu0 %3869
      %3871 = vrot.lane.b32.xlu0 %v3717, 4
      %v3872 = vpop.permute.xlu0 %3871
      %3873 = vrot.lane.b32.xlu0 %v3718, 4
      %v3874 = vpop.permute.xlu0 %3873
      %3875 = vrot.lane.b32.xlu0 %v3719, 4
      %v3876 = vpop.permute.xlu0 %3875
      %3877 = vrot.lane.b32.xlu0 %v3720, 4
      %v3878 = vpop.permute.xlu0 %3877
      %3879 = vrot.lane.b32.xlu0 %v3721, 4
      %v3880 = vpop.permute.xlu0 %3879
      %3881 = vrot.lane.b32.xlu0 %v3722, 4
      %v3882 = vpop.permute.xlu0 %3881
      %3883 = vrot.lane.b32.xlu0 %v3723, 4
      %v3884 = vpop.permute.xlu0 %3883
      %3917 = vrot.lane.b32.xlu0 %v3724, 8
      %v3918 = vpop.permute.xlu0 %3917
      %3919 = vrot.lane.b32.xlu0 %v3725, 8
      %v3920 = vpop.permute.xlu0 %3919
      %3921 = vrot.lane.b32.xlu0 %v3726, 8
      %v3922 = vpop.permute.xlu0 %3921
      %3923 = vrot.lane.b32.xlu0 %v3727, 8
      %v3924 = vpop.permute.xlu0 %3923
      %3925 = vrot.lane.b32.xlu0 %v3728, 8
      %v3926 = vpop.permute.xlu0 %3925
      %3927 = vrot.lane.b32.xlu0 %v3729, 8
      %v3928 = vpop.permute.xlu0 %3927
      %3929 = vrot.lane.b32.xlu0 %v3730, 8
      %v3930 = vpop.permute.xlu0 %3929
      %3931 = vrot.lane.b32.xlu0 %v3731, 8
      %v3932 = vpop.permute.xlu0 %3931
      %3933 = vrot.lane.b32.xlu0 %v3732, 8
      %v3934 = vpop.permute.xlu0 %3933
      %3935 = vrot.lane.b32.xlu0 %v3733, 8
      %v3936 = vpop.permute.xlu0 %3935
      %3937 = vrot.lane.b32.xlu0 %v3734, 8
      %v3938 = vpop.permute.xlu0 %3937
      %3939 = vrot.lane.b32.xlu0 %v3735, 8
      %v3940 = vpop.permute.xlu0 %3939
      %3941 = vrot.lane.b32.xlu0 %v3736, 8
      %v3942 = vpop.permute.xlu0 %3941
      %3943 = vrot.lane.b32.xlu0 %v3737, 8
      %v3944 = vpop.permute.xlu0 %3943
      %3945 = vrot.lane.b32.xlu0 %v3738, 8
      %v3946 = vpop.permute.xlu0 %3945
      %3947 = vrot.lane.b32.xlu0 %v3739, 8
      %v3948 = vpop.permute.xlu0 %3947
      %3981 = vrot.lane.b32.xlu0 %v3740, 12
      %v3982 = vpop.permute.xlu0 %3981
      %3983 = vrot.lane.b32.xlu0 %v3741, 12
      %v3984 = vpop.permute.xlu0 %3983
      %3985 = vrot.lane.b32.xlu0 %v3742, 12
      %v3986 = vpop.permute.xlu0 %3985
      %3987 = vrot.lane.b32.xlu0 %v3743, 12
      %v3988 = vpop.permute.xlu0 %3987
      %3989 = vrot.lane.b32.xlu0 %v3744, 12
      %v3990 = vpop.permute.xlu0 %3989
      %3991 = vrot.lane.b32.xlu0 %v3745, 12
      %v3992 = vpop.permute.xlu0 %3991
      %3993 = vrot.lane.b32.xlu0 %v3746, 12
      %v3994 = vpop.permute.xlu0 %3993
      %3995 = vrot.lane.b32.xlu0 %v3747, 12
      %v3996 = vpop.permute.xlu0 %3995
      %3997 = vrot.lane.b32.xlu0 %v3748, 12
      %v3998 = vpop.permute.xlu0 %3997
      %3999 = vrot.lane.b32.xlu0 %v3749, 12
      %v4000 = vpop.permute.xlu0 %3999
      %4001 = vrot.lane.b32.xlu0 %v3750, 12
      %v4002 = vpop.permute.xlu0 %4001
      %4003 = vrot.lane.b32.xlu0 %v3751, 12
      %v4004 = vpop.permute.xlu0 %4003
      %4005 = vrot.lane.b32.xlu0 %v3752, 12
      %v4006 = vpop.permute.xlu0 %4005
      %4007 = vrot.lane.b32.xlu0 %v3753, 12
      %v4008 = vpop.permute.xlu0 %4007
      %4009 = vrot.lane.b32.xlu0 %v3754, 12
      %v4010 = vpop.permute.xlu0 %4009
      %4011 = vrot.lane.b32.xlu0 %v3755, 12
      %v4012 = vpop.permute.xlu0 %4011
      %4045 = vrot.lane.b32.xlu0 %v3756, 16
      %v4046 = vpop.permute.xlu0 %4045
      %4047 = vrot.lane.b32.xlu0 %v3757, 16
      %v4048 = vpop.permute.xlu0 %4047
      %4049 = vrot.lane.b32.xlu0 %v3758, 16
      %v4050 = vpop.permute.xlu0 %4049
      %4051 = vrot.lane.b32.xlu0 %v3759, 16
      %v4052 = vpop.permute.xlu0 %4051
      %4053 = vrot.lane.b32.xlu0 %v3760, 16
      %v4054 = vpop.permute.xlu0 %4053
      %4055 = vrot.lane.b32.xlu0 %v3761, 16
      %v4056 = vpop.permute.xlu0 %4055
      %4057 = vrot.lane.b32.xlu0 %v3762, 16
      %v4058 = vpop.permute.xlu0 %4057
      %4059 = vrot.lane.b32.xlu0 %v3763, 16
      %v4060 = vpop.permute.xlu0 %4059
      %4061 = vrot.lane.b32.xlu0 %v3764, 16
      %v4062 = vpop.permute.xlu0 %4061
      %4063 = vrot.lane.b32.xlu0 %v3765, 16
      %v4064 = vpop.permute.xlu0 %4063
      %4065 = vrot.lane.b32.xlu0 %v3766, 16
      %v4066 = vpop.permute.xlu0 %4065
      %4067 = vrot.lane.b32.xlu0 %v3767, 16
      %v4068 = vpop.permute.xlu0 %4067
      %4069 = vrot.lane.b32.xlu0 %v3768, 16
      %v4070 = vpop.permute.xlu0 %4069
      %4071 = vrot.lane.b32.xlu0 %v3769, 16
      %v4072 = vpop.permute.xlu0 %4071
      %4073 = vrot.lane.b32.xlu0 %v3770, 16
      %v4074 = vpop.permute.xlu0 %4073
      %4075 = vrot.lane.b32.xlu0 %v3771, 16
      %v4076 = vpop.permute.xlu0 %4075
      %4109 = vrot.lane.b32.xlu0 %v3772, 20
      %v4110 = vpop.permute.xlu0 %4109
      %4111 = vrot.lane.b32.xlu0 %v3773, 20
      %v4112 = vpop.permute.xlu0 %4111
      %4113 = vrot.lane.b32.xlu0 %v3774, 20
      %v4114 = vpop.permute.xlu0 %4113
      %4115 = vrot.lane.b32.xlu0 %v3775, 20
      %v4116 = vpop.permute.xlu0 %4115
      %4117 = vrot.lane.b32.xlu0 %v3776, 20
      %v4118 = vpop.permute.xlu0 %4117
      %4119 = vrot.lane.b32.xlu0 %v3777, 20
      %v4120 = vpop.permute.xlu0 %4119
      %4121 = vrot.lane.b32.xlu0 %v3778, 20
      %v4122 = vpop.permute.xlu0 %4121
      %4123 = vrot.lane.b32.xlu0 %v3779, 20
      %v4124 = vpop.permute.xlu0 %4123
      %4125 = vrot.lane.b32.xlu0 %v3780, 20
      %v4126 = vpop.permute.xlu0 %4125
      %4127 = vrot.lane.b32.xlu0 %v3781, 20
      %v4128 = vpop.permute.xlu0 %4127
      %4129 = vrot.lane.b32.xlu0 %v3782, 20
      %v4130 = vpop.permute.xlu0 %4129
      %4131 = vrot.lane.b32.xlu0 %v3783, 20
      %v4132 = vpop.permute.xlu0 %4131
      %4133 = vrot.lane.b32.xlu0 %v3784, 20
      %v4134 = vpop.permute.xlu0 %4133
      %4135 = vrot.lane.b32.xlu0 %v3785, 20
      %v4136 = vpop.permute.xlu0 %4135
      %4137 = vrot.lane.b32.xlu0 %v3786, 20
      %v4138 = vpop.permute.xlu0 %4137
      %4139 = vrot.lane.b32.xlu0 %v3787, 20
      %v4140 = vpop.permute.xlu0 %4139
      %4173 = vrot.lane.b32.xlu0 %v3789, 24
      %v4174 = vpop.permute.xlu0 %4173
      %4175 = vrot.lane.b32.xlu0 %v3790, 24
      %v4176 = vpop.permute.xlu0 %4175
      %4177 = vrot.lane.b32.xlu0 %v3791, 24
      %v4178 = vpop.permute.xlu0 %4177
      %4179 = vrot.lane.b32.xlu0 %v3792, 24
      %v4180 = vpop.permute.xlu0 %4179
      %4181 = vrot.lane.b32.xlu0 %v3793, 24
      %v4182 = vpop.permute.xlu0 %4181
      %4183 = vrot.lane.b32.xlu0 %v3794, 24
      %v4184 = vpop.permute.xlu0 %4183
      %4185 = vrot.lane.b32.xlu0 %v3795, 24
      %v4186 = vpop.permute.xlu0 %4185
      %4187 = vrot.lane.b32.xlu0 %v3796, 24
      %v4188 = vpop.permute.xlu0 %4187
      %4189 = vrot.lane.b32.xlu0 %v3797, 24
      %v4190 = vpop.permute.xlu0 %4189
      %4191 = vrot.lane.b32.xlu0 %v3798, 24
      %v4192 = vpop.permute.xlu0 %4191
      %4193 = vrot.lane.b32.xlu0 %v3799, 24
      %v4194 = vpop.permute.xlu0 %4193
      %4195 = vrot.lane.b32.xlu0 %v3800, 24
      %v4196 = vpop.permute.xlu0 %4195
      %4197 = vrot.lane.b32.xlu0 %v3801, 24
      %v4198 = vpop.permute.xlu0 %4197
      %4199 = vrot.lane.b32.xlu0 %v3802, 24
      %v4200 = vpop.permute.xlu0 %4199
      %4201 = vrot.lane.b32.xlu0 %v3803, 24
      %v4202 = vpop.permute.xlu0 %4201
      %4203 = vrot.lane.b32.xlu0 %v3804, 24
      %v4204 = vpop.permute.xlu0 %4203
      %4237 = vrot.lane.b32.xlu0 %v3805, 28
      %v4238 = vpop.permute.xlu0 %4237
      %4239 = vrot.lane.b32.xlu0 %v3806, 28
      %v4240 = vpop.permute.xlu0 %4239
      %4241 = vrot.lane.b32.xlu0 %v3807, 28
      %v4242 = vpop.permute.xlu0 %4241
      %4243 = vrot.lane.b32.xlu0 %v3808, 28
      %v4244 = vpop.permute.xlu0 %4243
      %4245 = vrot.lane.b32.xlu0 %v3809, 28
      %v4246 = vpop.permute.xlu0 %4245
      %4247 = vrot.lane.b32.xlu0 %v3810, 28
      %v4248 = vpop.permute.xlu0 %4247
      %4249 = vrot.lane.b32.xlu0 %v3811, 28
      %v4250 = vpop.permute.xlu0 %4249
      %4251 = vrot.lane.b32.xlu0 %v3812, 28
      %v4252 = vpop.permute.xlu0 %4251
      %4253 = vrot.lane.b32.xlu0 %v3813, 28
      %v4254 = vpop.permute.xlu0 %4253
      %4255 = vrot.lane.b32.xlu0 %v3814, 28
      %v4256 = vpop.permute.xlu0 %4255
      %4257 = vrot.lane.b32.xlu0 %v3815, 28
      %v4258 = vpop.permute.xlu0 %4257
      %4259 = vrot.lane.b32.xlu0 %v3816, 28
      %v4260 = vpop.permute.xlu0 %4259
      %4261 = vrot.lane.b32.xlu0 %v3817, 28
      %v4262 = vpop.permute.xlu0 %4261
      %4263 = vrot.lane.b32.xlu0 %v3818, 28
      %v4264 = vpop.permute.xlu0 %4263
      %4265 = vrot.lane.b32.xlu0 %v3819, 28
      %v4266 = vpop.permute.xlu0 %4265
      %4267 = vrot.lane.b32.xlu0 %v3820, 28
      %v4268 = vpop.permute.xlu0 %4267
      %4301 = vrot.lane.b32.xlu0 %v3821, 32
      %v4302 = vpop.permute.xlu0 %4301
      %4303 = vrot.lane.b32.xlu0 %v3822, 32
      %v4304 = vpop.permute.xlu0 %4303
      %4305 = vrot.lane.b32.xlu0 %v3823, 32
      %v4306 = vpop.permute.xlu0 %4305
      %4307 = vrot.lane.b32.xlu0 %v3824, 32
      %v4308 = vpop.permute.xlu0 %4307
      %4309 = vrot.lane.b32.xlu0 %v3825, 32
      %v4310 = vpop.permute.xlu0 %4309
      %4311 = vrot.lane.b32.xlu0 %v3826, 32
      %v4312 = vpop.permute.xlu0 %4311
      %4313 = vrot.lane.b32.xlu0 %v3827, 32
      %v4314 = vpop.permute.xlu0 %4313
      %4315 = vrot.lane.b32.xlu0 %v3828, 32
      %v4316 = vpop.permute.xlu0 %4315
      %4317 = vrot.lane.b32.xlu0 %v3829, 32
      %v4318 = vpop.permute.xlu0 %4317
      %4319 = vrot.lane.b32.xlu0 %v3830, 32
      %v4320 = vpop.permute.xlu0 %4319
      %4321 = vrot.lane.b32.xlu0 %v3831, 32
      %v4322 = vpop.permute.xlu0 %4321
      %4323 = vrot.lane.b32.xlu0 %v3832, 32
      %v4324 = vpop.permute.xlu0 %4323
      %4325 = vrot.lane.b32.xlu0 %v3833, 32
      %v4326 = vpop.permute.xlu0 %4325
      %4327 = vrot.lane.b32.xlu0 %v3834, 32
      %v4328 = vpop.permute.xlu0 %4327
      %4329 = vrot.lane.b32.xlu0 %v3835, 32
      %v4330 = vpop.permute.xlu0 %4329
      %4331 = vrot.lane.b32.xlu0 %v3836, 32
      %v4332 = vpop.permute.xlu0 %4331
      %v4349 = vsel %vm225, %v3692, %v3854
      %v4350 = vsel %vm225, %v3693, %v3856
      %v4351 = vsel %vm225, %v3694, %v3858
      %v4352 = vsel %vm225, %v3695, %v3860
      %v4353 = vsel %vm225, %v3696, %v3862
      %v4354 = vsel %vm225, %v3697, %v3864
      %v4355 = vsel %vm225, %v3698, %v3866
      %v4356 = vsel %vm225, %v3699, %v3868
      %v4357 = vsel %vm225, %v3700, %v3870
      %v4358 = vsel %vm225, %v3701, %v3872
      %v4359 = vsel %vm225, %v3702, %v3874
      %v4360 = vsel %vm225, %v3703, %v3876
      %v4361 = vsel %vm225, %v3704, %v3878
      %v4362 = vsel %vm225, %v3705, %v3880
      %v4363 = vsel %vm225, %v3706, %v3882
      %v4364 = vsel %vm225, %v3707, %v3884
      %v4365 = vsel %vm1052, %v4349, %v3918
      %v4366 = vsel %vm1052, %v4350, %v3920
      %v4367 = vsel %vm1052, %v4351, %v3922
      %v4368 = vsel %vm1052, %v4352, %v3924
      %v4369 = vsel %vm1052, %v4353, %v3926
      %v4370 = vsel %vm1052, %v4354, %v3928
      %v4371 = vsel %vm1052, %v4355, %v3930
      %v4372 = vsel %vm1052, %v4356, %v3932
      %v4373 = vsel %vm1052, %v4357, %v3934
      %v4374 = vsel %vm1052, %v4358, %v3936
      %v4375 = vsel %vm1052, %v4359, %v3938
      %v4376 = vsel %vm1052, %v4360, %v3940
      %v4377 = vsel %vm1052, %v4361, %v3942
      %v4378 = vsel %vm1052, %v4362, %v3944
      %v4379 = vsel %vm1052, %v4363, %v3946
      %v4380 = vsel %vm1052, %v4364, %v3948
      %v4381 = vsel %vm1069, %v4365, %v3982
      %v4382 = vsel %vm1069, %v4366, %v3984
      %v4383 = vsel %vm1069, %v4367, %v3986
      %v4384 = vsel %vm1069, %v4368, %v3988
      %v4385 = vsel %vm1069, %v4369, %v3990
      %v4386 = vsel %vm1069, %v4370, %v3992
      %v4387 = vsel %vm1069, %v4371, %v3994
      %v4388 = vsel %vm1069, %v4372, %v3996
      %v4389 = vsel %vm1069, %v4373, %v3998
      %v4390 = vsel %vm1069, %v4374, %v4000
      %v4391 = vsel %vm1069, %v4375, %v4002
      %v4392 = vsel %vm1069, %v4376, %v4004
      %v4393 = vsel %vm1069, %v4377, %v4006
      %v4394 = vsel %vm1069, %v4378, %v4008
      %v4395 = vsel %vm1069, %v4379, %v4010
      %v4396 = vsel %vm1069, %v4380, %v4012
      %v4397 = vsel %vm1086, %v4381, %v4046
      %v4398 = vsel %vm1086, %v4382, %v4048
      %v4399 = vsel %vm1086, %v4383, %v4050
      %v4400 = vsel %vm1086, %v4384, %v4052
      %v4401 = vsel %vm1086, %v4385, %v4054
      %v4402 = vsel %vm1086, %v4386, %v4056
      %v4403 = vsel %vm1086, %v4387, %v4058
      %v4404 = vsel %vm1086, %v4388, %v4060
      %v4405 = vsel %vm1086, %v4389, %v4062
      %v4406 = vsel %vm1086, %v4390, %v4064
      %v4407 = vsel %vm1086, %v4391, %v4066
      %v4408 = vsel %vm1086, %v4392, %v4068
      %v4409 = vsel %vm1086, %v4393, %v4070
      %v4410 = vsel %vm1086, %v4394, %v4072
      %v4411 = vsel %vm1086, %v4395, %v4074
      %v4412 = vsel %vm1086, %v4396, %v4076
      %v4413 = vsel %vm1103, %v4397, %v4110
      %v4414 = vsel %vm1103, %v4398, %v4112
      %v4415 = vsel %vm1103, %v4399, %v4114
      %v4416 = vsel %vm1103, %v4400, %v4116
      %v4417 = vsel %vm1103, %v4401, %v4118
      %v4418 = vsel %vm1103, %v4402, %v4120
      %v4419 = vsel %vm1103, %v4403, %v4122
      %v4420 = vsel %vm1103, %v4404, %v4124
      %v4421 = vsel %vm1103, %v4405, %v4126
      %v4422 = vsel %vm1103, %v4406, %v4128
      %v4423 = vsel %vm1103, %v4407, %v4130
      %v4424 = vsel %vm1103, %v4408, %v4132
      %v4425 = vsel %vm1103, %v4409, %v4134
      %v4426 = vsel %vm1103, %v4410, %v4136
      %v4427 = vsel %vm1103, %v4411, %v4138
      %v4428 = vsel %vm1103, %v4412, %v4140
      %v4429 = vsel %vm1120, %v4413, %v4174
      %v4430 = vsel %vm1120, %v4414, %v4176
      %v4431 = vsel %vm1120, %v4415, %v4178
      %v4432 = vsel %vm1120, %v4416, %v4180
      %v4433 = vsel %vm1120, %v4417, %v4182
      %v4434 = vsel %vm1120, %v4418, %v4184
      %v4435 = vsel %vm1120, %v4419, %v4186
      %v4436 = vsel %vm1120, %v4420, %v4188
      %v4437 = vsel %vm1120, %v4421, %v4190
      %v4438 = vsel %vm1120, %v4422, %v4192
      %v4439 = vsel %vm1120, %v4423, %v4194
      %v4440 = vsel %vm1120, %v4424, %v4196
      %v4441 = vsel %vm1120, %v4425, %v4198
      %v4442 = vsel %vm1120, %v4426, %v4200
      %v4443 = vsel %vm1120, %v4427, %v4202
      %v4444 = vsel %vm1120, %v4428, %v4204
      %v4445 = vsel %vm1137, %v4429, %v4238
      %v4446 = vsel %vm1137, %v4430, %v4240
      %v4447 = vsel %vm1137, %v4431, %v4242
      %v4448 = vsel %vm1137, %v4432, %v4244
      %v4449 = vsel %vm1137, %v4433, %v4246
      %v4450 = vsel %vm1137, %v4434, %v4248
      %v4451 = vsel %vm1137, %v4435, %v4250
      %v4452 = vsel %vm1137, %v4436, %v4252
      %v4453 = vsel %vm1137, %v4437, %v4254
      %v4454 = vsel %vm1137, %v4438, %v4256
      %v4455 = vsel %vm1137, %v4439, %v4258
      %v4456 = vsel %vm1137, %v4440, %v4260
      %v4457 = vsel %vm1137, %v4441, %v4262
      %v4458 = vsel %vm1137, %v4442, %v4264
      %v4459 = vsel %vm1137, %v4443, %v4266
      %v4460 = vsel %vm1137, %v4444, %v4268
      %v4461 = vsel %vm1154, %v4445, %v4302
      %v4462 = vsel %vm1154, %v4446, %v4304
      %v4463 = vsel %vm1154, %v4447, %v4306
      %v4464 = vsel %vm1154, %v4448, %v4308
      %v4465 = vsel %vm1154, %v4449, %v4310
      %v4466 = vsel %vm1154, %v4450, %v4312
      %v4467 = vsel %vm1154, %v4451, %v4314
      %v4468 = vsel %vm1154, %v4452, %v4316
      %v4469 = vsel %vm1154, %v4453, %v4318
      %v4470 = vsel %vm1154, %v4454, %v4320
      %v4471 = vsel %vm1154, %v4455, %v4322
      %v4472 = vsel %vm1154, %v4456, %v4324
      %v4473 = vsel %vm1154, %v4457, %v4326
      %v4474 = vsel %vm1154, %v4458, %v4328
      %v4475 = vsel %vm1154, %v4459, %v4330
      %v4476 = vsel %vm1154, %v4460, %v4332
      %v4477 = vld [vmem:[%s3] sm:$0xff]
      %v4478 = vld [vmem:[%s3 + $0x8] sm:$0xff]
      %v4479 = vld [vmem:[%s3 + $0x10] sm:$0xff]
      %v4480 = vld [vmem:[%s3 + $0x18] sm:$0xff]
      %v4481 = vld [vmem:[%s3 + $0x20] sm:$0xf]
      %v4482 = vld [vmem:[%s4] sm:$0x1]
      %v4484 = vlaneseq
      %v4485 = vshrl.u32 %v4484, 7
      %v4486 = vsub.s32 0, %v4485
      %v4487 = vrot.slane %v4482, %v4486
      %v4490 = vsel %vm1183, %v4461, 0
      %v4493 = vsel %vm1183, %v4462, 0
      %v4496 = vsel %vm1183, %v4463, 0
      %v4499 = vsel %vm1183, %v4464, 0
      %v4502 = vsel %vm1183, %v4465, 0
      %v4505 = vsel %vm1183, %v4466, 0
      %v4508 = vsel %vm1183, %v4467, 0
      %v4511 = vsel %vm1183, %v4468, 0
      %v4514 = vsel %vm1183, %v4469, 0
      %v4517 = vsel %vm1183, %v4470, 0
      %v4520 = vsel %vm1183, %v4471, 0
      %v4523 = vsel %vm1183, %v4472, 0
      %v4526 = vsel %vm1183, %v4473, 0
      %v4529 = vsel %vm1183, %v4474, 0
      %v4532 = vsel %vm1183, %v4475, 0
      %v4535 = vsel %vm1183, %v4476, 0
      %v4538 = vsel %vm1232, %v4481, 0
      %4540 = vmatprep.subr.mxu0 0.0
      %4541 = vmatpush1.msra.mxu0 %v4477
      %4542 = vmatprep.subr.mxu0 0.0
      %4543 = vmatpush1.msra.mxu0 %v4478
      %4544 = vmatprep.subr.mxu0 0.0
      %4545 = vmatpush1.msra.mxu0 %v4479
      %4546 = vmatprep.subr.mxu0 0.0
      %4547 = vmatpush1.msra.mxu0 %v4480
      %4548 = vmatprep.subr.mxu0 0.0
      %4549 = vmatpush1.msra.mxu0 %v4538
      %4550 = vmatprep.subr.mxu0 0.0
      %4551 = vmatpush1.msra.mxu0 0.0
      %4552 = vmatprep.subr.mxu0 0.0
      %4553 = vmatpush1.msra.mxu0 0.0
      %4554 = vmatprep.subr.mxu0 0.0
      %4555 = vmatpush1.msra.mxu0 0.0
      %4556 = vmatprep.subr.mxu0 0.0
      %4557 = vmatpush1.msra.mxu0 0.0
      %4558 = vmatprep.subr.mxu0 0.0
      %4559 = vmatpush1.msra.mxu0 0.0
      %4560 = vmatprep.subr.mxu0 0.0
      %4561 = vmatpush1.msra.mxu0 0.0
      %4562 = vmatprep.subr.mxu0 0.0
      %4563 = vmatpush1.msra.mxu0 0.0
      %4564 = vmatprep.subr.mxu0 0.0
      %4565 = vmatpush1.msra.mxu0 0.0
      %4566 = vmatprep.subr.mxu0 0.0
      %4567 = vmatpush1.msra.mxu0 0.0
      %4568 = vmatprep.subr.mxu0 0.0
      %4569 = vmatpush1.msra.mxu0 0.0
      %4570 = vmatprep.subr.mxu0 0.0
      %4571 = vmatpush1.msra.mxu0 0.0
      %4572 = vmatprep.subr.mxu0 0.0
      %4573 = vmatpush1.msra.mxu0 0.0
      %4574 = vmatprep.subr.mxu0 0.0
      %4575 = vmatpush1.msra.mxu0 0.0
      %4576 = vmatprep.subr.mxu0 0.0
      %4577 = vmatpush1.msra.mxu0 0.0
      %4578 = vmatprep.subr.mxu0 0.0
      %4579 = vmatpush1.msra.mxu0 0.0
      %4580 = vmatprep.subr.mxu0 0.0
      %4581 = vmatpush1.msra.mxu0 0.0
      %4582 = vmatprep.subr.mxu0 0.0
      %4583 = vmatpush1.msra.mxu0 0.0
      %4584 = vmatprep.subr.mxu0 0.0
      %4585 = vmatpush1.msra.mxu0 0.0
      %4586 = vmatprep.subr.mxu0 0.0
      %4587 = vmatpush1.msra.mxu0 0.0
      %4588 = vmatprep.subr.mxu0 0.0
      %4589 = vmatpush1.msra.mxu0 0.0
      %4590 = vmatprep.subr.mxu0 0.0
      %4591 = vmatpush1.msra.mxu0 0.0
      %4592 = vmatprep.subr.mxu0 0.0
      %4593 = vmatpush1.msra.mxu0 0.0
      %4594 = vmatprep.subr.mxu0 0.0
      %4595 = vmatpush1.msra.mxu0 0.0
      %4596 = vmatprep.subr.mxu0 0.0
      %4597 = vmatpush1.msra.mxu0 0.0
      %4598 = vmatprep.subr.mxu0 0.0
      %4599 = vmatpush1.msra.mxu0 0.0
      %4600 = vmatprep.subr.mxu0 0.0
      %4601 = vmatpush1.msra.mxu0 0.0
      %4602 = vmatprep.subr.mxu0 0.0
      %4603 = vmatpush1.msra.mxu0 0.0
      %4604 = vmatprep.mubr.f32.mxu0 0.0
      %4605 = vmatmul.mubr.f32.gmra.mrb[0].mxu0 %v4490
      %v4606 = vpop.f32.mrb[0].mxu0
      %v4607 = vadd.f32 %v4487, %v4606
      %v4608 = vpop.f32.mrb[0].mxu0
      %4609 = vmatprep.mubr.f32.mxu0 0.0
      %4610 = vmatmul.mubr.f32.gmra.mrb[0].mxu0 %v4493
      %v4611 = vpop.f32.mrb[0].mxu0
      %v4612 = vadd.f32 %v4487, %v4611
      %v4613 = vpop.f32.mrb[0].mxu0
      %4614 = vmatprep.mubr.f32.mxu0 0.0
      %4615 = vmatmul.mubr.f32.gmra.mrb[0].mxu0 %v4496
      %v4616 = vpop.f32.mrb[0].mxu0
      %v4617 = vadd.f32 %v4487, %v4616
      %v4618 = vpop.f32.mrb[0].mxu0
      %4619 = vmatprep.mubr.f32.mxu0 0.0
      %4620 = vmatmul.mubr.f32.gmra.mrb[0].mxu0 %v4499
      %v4621 = vpop.f32.mrb[0].mxu0
      %v4622 = vadd.f32 %v4487, %v4621
      %v4623 = vpop.f32.mrb[0].mxu0
      %4624 = vmatprep.mubr.f32.mxu0 0.0
      %4625 = vmatmul.mubr.f32.gmra.mrb[0].mxu0 %v4502
      %v4626 = vpop.f32.mrb[0].mxu0
      %v4627 = vadd.f32 %v4487, %v4626
      %v4628 = vpop.f32.mrb[0].mxu0
      %4629 = vmatprep.mubr.f32.mxu0 0.0
      %4630 = vmatmul.mubr.f32.gmra.mrb[0].mxu0 %v4505
      %v4631 = vpop.f32.mrb[0].mxu0
      %v4632 = vadd.f32 %v4487, %v4631
      %v4633 = vpop.f32.mrb[0].mxu0
      %4634 = vmatprep.mubr.f32.mxu0 0.0
      %4635 = vmatmul.mubr.f32.gmra.mrb[0].mxu0 %v4508
      %v4636 = vpop.f32.mrb[0].mxu0
      %v4637 = vadd.f32 %v4487, %v4636
      %v4638 = vpop.f32.mrb[0].mxu0
      %4639 = vmatprep.mubr.f32.mxu0 0.0
      %4640 = vmatmul.mubr.f32.gmra.mrb[0].mxu0 %v4511
      %v4641 = vpop.f32.mrb[0].mxu0
      %v4642 = vadd.f32 %v4487, %v4641
      %v4643 = vpop.f32.mrb[0].mxu0
      %4644 = vmatprep.mubr.f32.mxu0 0.0
      %4645 = vmatmul.mubr.f32.gmra.mrb[0].mxu0 %v4514
      %v4646 = vpop.f32.mrb[0].mxu0
      %v4647 = vadd.f32 %v4487, %v4646
      %v4648 = vpop.f32.mrb[0].mxu0
      %4649 = vmatprep.mubr.f32.mxu0 0.0
      %4650 = vmatmul.mubr.f32.gmra.mrb[0].mxu0 %v4517
      %v4651 = vpop.f32.mrb[0].mxu0
      %v4652 = vadd.f32 %v4487, %v4651
      %v4653 = vpop.f32.mrb[0].mxu0
      %4654 = vmatprep.mubr.f32.mxu0 0.0
      %4655 = vmatmul.mubr.f32.gmra.mrb[0].mxu0 %v4520
      %v4656 = vpop.f32.mrb[0].mxu0
      %v4657 = vadd.f32 %v4487, %v4656
      %v4658 = vpop.f32.mrb[0].mxu0
      %4659 = vmatprep.mubr.f32.mxu0 0.0
      %4660 = vmatmul.mubr.f32.gmra.mrb[0].mxu0 %v4523
      %v4661 = vpop.f32.mrb[0].mxu0
      %v4662 = vadd.f32 %v4487, %v4661
      %v4663 = vpop.f32.mrb[0].mxu0
      %4664 = vmatprep.mubr.f32.mxu0 0.0
      %4665 = vmatmul.mubr.f32.gmra.mrb[0].mxu0 %v4526
      %v4666 = vpop.f32.mrb[0].mxu0
      %v4667 = vadd.f32 %v4487, %v4666
      %v4668 = vpop.f32.mrb[0].mxu0
      %4669 = vmatprep.mubr.f32.mxu0 0.0
      %4670 = vmatmul.mubr.f32.gmra.mrb[0].mxu0 %v4529
      %v4671 = vpop.f32.mrb[0].mxu0
      %v4672 = vadd.f32 %v4487, %v4671
      %v4673 = vpop.f32.mrb[0].mxu0
      %4674 = vmatprep.mubr.f32.mxu0 0.0
      %4675 = vmatmul.mubr.f32.gmra.mrb[0].mxu0 %v4532
      %v4676 = vpop.f32.mrb[0].mxu0
      %v4677 = vadd.f32 %v4487, %v4676
      %v4678 = vpop.f32.mrb[0].mxu0
      %4679 = vmatprep.mubr.f32.mxu0 0.0
      %4680 = vmatmul.mubr.f32.gmra.mrb[0].mxu0 %v4535
      %v4681 = vpop.f32.mrb[0].mxu0
      %v4682 = vadd.f32 %v4487, %v4681
      %v4683 = vpop.f32.mrb[0].mxu0
      %4684 = vdwg.mxu0
      %4701 = vrot.lane.b32.xlu0 %v4607, 124
      %v4702 = vpop.permute.xlu0 %4701
      %4703 = vrot.lane.b32.xlu0 %v4612, 124
      %v4704 = vpop.permute.xlu0 %4703
      %4705 = vrot.lane.b32.xlu0 %v4617, 124
      %v4706 = vpop.permute.xlu0 %4705
      %4707 = vrot.lane.b32.xlu0 %v4622, 124
      %v4708 = vpop.permute.xlu0 %4707
      %4709 = vrot.lane.b32.xlu0 %v4627, 124
      %v4710 = vpop.permute.xlu0 %4709
      %4711 = vrot.lane.b32.xlu0 %v4632, 124
      %v4712 = vpop.permute.xlu0 %4711
      %4713 = vrot.lane.b32.xlu0 %v4637, 124
      %v4714 = vpop.permute.xlu0 %4713
      %4715 = vrot.lane.b32.xlu0 %v4642, 124
      %v4716 = vpop.permute.xlu0 %4715
      %4717 = vrot.lane.b32.xlu0 %v4647, 124
      %v4718 = vpop.permute.xlu0 %4717
      %4719 = vrot.lane.b32.xlu0 %v4652, 124
      %v4720 = vpop.permute.xlu0 %4719
      %4721 = vrot.lane.b32.xlu0 %v4657, 124
      %v4722 = vpop.permute.xlu0 %4721
      %4723 = vrot.lane.b32.xlu0 %v4662, 124
      %v4724 = vpop.permute.xlu0 %4723
      %4725 = vrot.lane.b32.xlu0 %v4667, 124
      %v4726 = vpop.permute.xlu0 %4725
      %4727 = vrot.lane.b32.xlu0 %v4672, 124
      %v4728 = vpop.permute.xlu0 %4727
      %4729 = vrot.lane.b32.xlu0 %v4677, 124
      %v4730 = vpop.permute.xlu0 %4729
      %4731 = vrot.lane.b32.xlu0 %v4682, 124
      %v4732 = vpop.permute.xlu0 %4731
      %v4749 = vmax.f32 %v4607, %v4702
      %v4750 = vmax.f32 %v4612, %v4704
      %v4751 = vmax.f32 %v4617, %v4706
      %v4752 = vmax.f32 %v4622, %v4708
      %v4753 = vmax.f32 %v4627, %v4710
      %v4754 = vmax.f32 %v4632, %v4712
      %v4755 = vmax.f32 %v4637, %v4714
      %v4756 = vmax.f32 %v4642, %v4716
      %v4757 = vmax.f32 %v4647, %v4718
      %v4758 = vmax.f32 %v4652, %v4720
      %v4759 = vmax.f32 %v4657, %v4722
      %v4760 = vmax.f32 %v4662, %v4724
      %v4761 = vmax.f32 %v4667, %v4726
      %v4762 = vmax.f32 %v4672, %v4728
      %v4763 = vmax.f32 %v4677, %v4730
      %v4764 = vmax.f32 %v4682, %v4732
      %s4765 = scalar_lea.vmem %s219, 128
      %v4766 = vld [vmem:[%s4765] sm:$0xff]
      %v4767 = vld [vmem:[%s4765 + $0x8] sm:$0xff]
      %v4768 = vld [vmem:[%s4765 + $0x10] sm:$0xff]
      %v4769 = vld [vmem:[%s4765 + $0x18] sm:$0xff]
      %v4770 = vld [vmem:[%s4765 + $0x20] sm:$0xff]
      %v4771 = vld [vmem:[%s4765 + $0x28] sm:$0xff]
      %v4772 = vld [vmem:[%s4765 + $0x30] sm:$0xff]
      %v4773 = vld [vmem:[%s4765 + $0x38] sm:$0xff]
      %v4774 = vld [vmem:[%s4765 + $0x40] sm:$0xff]
      %v4775 = vld [vmem:[%s4765 + $0x48] sm:$0xff]
      %v4776 = vld [vmem:[%s4765 + $0x50] sm:$0xff]
      %v4777 = vld [vmem:[%s4765 + $0x58] sm:$0xff]
      %v4778 = vld [vmem:[%s4765 + $0x60] sm:$0xff]
      %v4779 = vld [vmem:[%s4765 + $0x68] sm:$0xff]
      %v4780 = vld [vmem:[%s4765 + $0x70] sm:$0xff]
      %v4781 = vld [vmem:[%s4765 + $0x78] sm:$0xff]
      %v4782 = vadd.f32 %v4749, %v4766
      %v4783 = vadd.f32 %v4750, %v4767
      %v4784 = vadd.f32 %v4751, %v4768
      %v4785 = vadd.f32 %v4752, %v4769
      %v4786 = vadd.f32 %v4753, %v4770
      %v4787 = vadd.f32 %v4754, %v4771
      %v4788 = vadd.f32 %v4755, %v4772
      %v4789 = vadd.f32 %v4756, %v4773
      %v4790 = vadd.f32 %v4757, %v4774
      %v4791 = vadd.f32 %v4758, %v4775
      %v4792 = vadd.f32 %v4759, %v4776
      %v4793 = vadd.f32 %v4760, %v4777
      %v4794 = vadd.f32 %v4761, %v4778
      %v4795 = vadd.f32 %v4762, %v4779
      %v4796 = vadd.f32 %v4763, %v4780
      %v4797 = vadd.f32 %v4764, %v4781
      %4798 = vst.msk [vmem:[%s224 + $0x80] sm:$0xff] %vm225, %v4782
      %4799 = vst.msk [vmem:[%s224 + $0x88] sm:$0xff] %vm225, %v4783
      %4800 = vst.msk [vmem:[%s224 + $0x90] sm:$0xff] %vm225, %v4784
      %4801 = vst.msk [vmem:[%s224 + $0x98] sm:$0xff] %vm225, %v4785
      %4802 = vst.msk [vmem:[%s224 + $0xa0] sm:$0xff] %vm225, %v4786
      %4803 = vst.msk [vmem:[%s224 + $0xa8] sm:$0xff] %vm225, %v4787
      %4804 = vst.msk [vmem:[%s224 + $0xb0] sm:$0xff] %vm225, %v4788
      %4805 = vst.msk [vmem:[%s224 + $0xb8] sm:$0xff] %vm225, %v4789
      %4806 = vst.msk [vmem:[%s224 + $0xc0] sm:$0xff] %vm225, %v4790
      %4807 = vst.msk [vmem:[%s224 + $0xc8] sm:$0xff] %vm225, %v4791
      %4808 = vst.msk [vmem:[%s224 + $0xd0] sm:$0xff] %vm225, %v4792
      %4809 = vst.msk [vmem:[%s224 + $0xd8] sm:$0xff] %vm225, %v4793
      %4810 = vst.msk [vmem:[%s224 + $0xe0] sm:$0xff] %vm225, %v4794
      %4811 = vst.msk [vmem:[%s224 + $0xe8] sm:$0xff] %vm225, %v4795
      %4812 = vst.msk [vmem:[%s224 + $0xf0] sm:$0xff] %vm225, %v4796
      %4813 = vst.msk [vmem:[%s224 + $0xf8] sm:$0xff] %vm225, %v4797
      %p4814 = scmp.lt.s32.totalorder %s16, 1
      %s4815 = scalar_select %p4814, %s16, 1
      %s4816 = smul.addr %s4815, 32
      %s4817 = smul.addr %s4816, 8
      %s4818 = scalar_lea.vmem %s5, %s4817
      // Predicated region
      $region41: #{tpu_custom_call.1} parent=39 // pred_check
        %p4819 = pneg %p144
      $region42: #{tpu_custom_call.1} parent=39 // pred_check_branch
        %4821 = sbr.rel (%p4819) target = $region44
      $region43: #{tpu_custom_call.1} parent=39 // pred_region
        _
      $region44: #{tpu_custom_call.1} parent=39 // pred_fallthru
        _
    $region40: #{tpu_custom_call.1} parent=5 // pred_fallthru
      _
    %p4822 = scmp.le.s32.totalorder 2, %s11
    // Predicated region
    $region45: #{tpu_custom_call.1} parent=5 // pred_check
      %p4823 = pneg %p4822
    $region46: #{tpu_custom_call.1} parent=5 // pred_check_branch
      %4825 = sbr.rel (%p4823) target = $region48
    $region47: #{tpu_custom_call.1} parent=5 // pred_region
      %s4826 = ssub.s32 %s11, 2
      // Predicated region
      $region49: #{tpu_custom_call.1} parent=47 // pred_check
        %p4827 = pneg %p150
      $region50: #{tpu_custom_call.1} parent=47 // pred_check_branch
        %4829 = sbr.rel (%p4827) target = $region52
      $region51: #{tpu_custom_call.1} parent=47 // pred_region
        %p4830 = scmp.lt.s32.totalorder %s17, 1
        %s4831 = scalar_select %p4830, %s17, 1
        %s4832 = smul.addr %s4831, 32
        %s4833 = smul.addr %s4832, 8
        %s4834 = scalar_lea.vmem %s5, %s4833
      $region52: #{tpu_custom_call.1} parent=47 // pred_fallthru
        _
    $region48: #{tpu_custom_call.1} parent=5 // pred_fallthru
      _
  $region6: #{tpu_custom_call.1} parent=0 // loop_footer
    %s15 = sadd.s32 1, %s11
  $region7: #{tpu_custom_call.1} parent=0 // loop_footer_branch
    %10 = sbr.rel target = $region3
  $region8: #{tpu_custom_call.1} parent=0 // loop_exit
    _

// kernel: tpu_custom_call.1
$region0: #{tpu_custom_call.1}
  #allocation0 [shape = 'u32[]', space=smem, size = 0x4, offset = 0x4, fixed_abs, tag = 'smem constant byte address 0x4 - core index']
  #allocation1 [shape = 'u32[144,128]{1,0:T(1,128)}', space=vmem, size = 0x12000, scoped, tag = 'internal scratch']
  #allocation2 [shape = 'f32[18,18,4]{2,1,0:T(8,128)}', space=vmem, size = 0x36000, scoped, tag = 'scratch operand']
  #allocation3 [shape = 'f32[18,18,4]{2,1,0:T(8,128)}', space=vmem, size = 0x36000, scoped, tag = 'scratch operand']
  %s0 = inlined_call_operand.vmem [shape: f32[2,16,16,4], index: 0, kind: input, shape index: {}]
  %s1 = inlined_call_operand.vmem [shape: f32[36,8], index: 1, kind: input, shape index: {}]
  %s2 = inlined_call_operand.vmem [shape: f32[1,8], index: 2, kind: input, shape index: {}]
  %s3 = inlined_call_operand.vmem [shape: f32[36,8], index: 3, kind: input, shape index: {}]
  %s4 = inlined_call_operand.vmem [shape: f32[1,8], index: 4, kind: input, shape index: {}]
  %s5 = inlined_call_operand.vmem [shape: f32[2,256,4], index: 5, kind: output, shape index: {}]
  %s6 = sld [smem:[#allocation0]]
  $region53: #{tpu_custom_call.1} parent=0
    _
  %s8 = ssub.s32 1, %s6
  %s9 = scalar_select 0, %s8, %s6
  loop: start=0, step=1, limit=4
  $region2: #{tpu_custom_call.1} parent=0 // loop_pre_header
    _
  $region3: #{tpu_custom_call.1} parent=0 // loop_header
    %s11 = sphi 0, %s15
    %p12 = scmp.ge.s32.totalorder %s11, 4
    %s21 = sphi 0, %s23
    %s24 = sphi 0, %s21
    %s25 = sphi 0, %s24
    %s41 = sphi 0, %s25
    %s45 = sphi 0, %s45
    %s47 = sphi 0, %s45
    %s48 = sphi 0, %s47
    %s62 = sphi 0, %s48
    %s66 = sphi 0, %s66
    %s68 = sphi 0, %s66
    %s69 = sphi 0, %s68
    %s83 = sphi 0, %s69
    %s87 = sphi 0, %s87
    %s89 = sphi 0, %s87
    %s90 = sphi 0, %s89
    %s104 = sphi 0, %s90
    %s108 = sphi 0, %s108
    %s110 = sphi 0, %s108
    %s111 = sphi 0, %s110
    %s125 = sphi 0, %s111
    %s131 = sphi 0, %s133
    %s134 = sphi 0, %s131
    %s135 = sphi 0, %s134
    %s151 = sphi 0, %s135
  $region4: #{tpu_custom_call.1} parent=0 // loop_header_branch
    %14 = sbr.rel (%p12) target = $region8
  $region5: #{tpu_custom_call.1} parent=0 // loop_body
    %s16 = ssub.s32 %s11, 1
    %s17 = ssub.s32 %s11, 2
    %s18 = sadd.s32 %s11, 1
    %s19 = ssub.s32 %s11, %s18
    %p20 = scmp.eq.s32.totalorder %s19, 0
    %s22 = sadd.s32 %s21, 1
    %s23 = scalar_select %p20, %s21, %s22
    %p26 = pneg %p20
    %p27 = scmp.eq.s32.totalorder %s11, 1
    %p28 = por %p26, %p27
    %p29 = scmp.ne.s32.totalorder %s21, %s24
    %p30 = scmp.eq.s32.totalorder %s11, 0
    %p31 = por %p29, %p30
    %p32 = scmp.ne.s32.totalorder %s21, %s24
    %p33 = scmp.eq.s32.totalorder %s16, 1
    %p34 = por %p32, %p33
    %p35 = scmp.ne.s32.totalorder %s24, %s25
    %p36 = scmp.eq.s32.totalorder %s16, 0
    %p37 = por %p35, %p36
    %p38 = scmp.ne.s32.totalorder %s24, %s25
    %p39 = scmp.eq.s32.totalorder %s17, 1
    %p40 = por %p38, %p39
    %p42 = scmp.ne.s32.totalorder %s25, %s41
    %p43 = scmp.eq.s32.totalorder %s17, 0
    %p44 = por %p42, %p43
    %s46 = sadd.s32 %s45, 1
    %p49 = scmp.eq.s32.totalorder %s11, 1
    %p50 = scmp.ne.s32.totalorder %s45, %s47
    %p51 = scmp.eq.s32.totalorder %s11, 0
    %p52 = por %p50, %p51
    %p53 = scmp.ne.s32.totalorder %s45, %s47
    %p54 = scmp.eq.s32.totalorder %s16, 1
    %p55 = por %p53, %p54
    %p56 = scmp.ne.s32.totalorder %s47, %s48
    %p57 = scmp.eq.s32.totalorder %s16, 0
    %p58 = por %p56, %p57
    %p59 = scmp.ne.s32.totalorder %s47, %s48
    %p60 = scmp.eq.s32.totalorder %s17, 1
    %p61 = por %p59, %p60
    %p63 = scmp.ne.s32.totalorder %s48, %s62
    %p64 = scmp.eq.s32.totalorder %s17, 0
    %p65 = por %p63, %p64
    %s67 = sadd.s32 %s66, 1
    %p70 = scmp.eq.s32.totalorder %s11, 1
    %p71 = scmp.ne.s32.totalorder %s66, %s68
    %p72 = scmp.eq.s32.totalorder %s11, 0
    %p73 = por %p71, %p72
    %p74 = scmp.ne.s32.totalorder %s66, %s68
    %p75 = scmp.eq.s32.totalorder %s16, 1
    %p76 = por %p74, %p75
    %p77 = scmp.ne.s32.totalorder %s68, %s69
    %p78 = scmp.eq.s32.totalorder %s16, 0
    %p79 = por %p77, %p78
    %p80 = scmp.ne.s32.totalorder %s68, %s69
    %p81 = scmp.eq.s32.totalorder %s17, 1
    %p82 = por %p80, %p81
    %p84 = scmp.ne.s32.totalorder %s69, %s83
    %p85 = scmp.eq.s32.totalorder %s17, 0
    %p86 = por %p84, %p85
    %s88 = sadd.s32 %s87, 1
    %p91 = scmp.eq.s32.totalorder %s11, 1
    %p92 = scmp.ne.s32.totalorder %s87, %s89
    %p93 = scmp.eq.s32.totalorder %s11, 0
    %p94 = por %p92, %p93
    %p95 = scmp.ne.s32.totalorder %s87, %s89
    %p96 = scmp.eq.s32.totalorder %s16, 1
    %p97 = por %p95, %p96
    %p98 = scmp.ne.s32.totalorder %s89, %s90
    %p99 = scmp.eq.s32.totalorder %s16, 0
    %p100 = por %p98, %p99
    %p101 = scmp.ne.s32.totalorder %s89, %s90
    %p102 = scmp.eq.s32.totalorder %s17, 1
    %p103 = por %p101, %p102
    %p105 = scmp.ne.s32.totalorder %s90, %s104
    %p106 = scmp.eq.s32.totalorder %s17, 0
    %p107 = por %p105, %p106
    %s109 = sadd.s32 %s108, 1
    %p112 = scmp.eq.s32.totalorder %s11, 1
    %p113 = scmp.ne.s32.totalorder %s108, %s110
    %p114 = scmp.eq.s32.totalorder %s11, 0
    %p115 = por %p113, %p114
    %p116 = scmp.ne.s32.totalorder %s108, %s110
    %p117 = scmp.eq.s32.totalorder %s16, 1
    %p118 = por %p116, %p117
    %p119 = scmp.ne.s32.totalorder %s110, %s111
    %p120 = scmp.eq.s32.totalorder %s16, 0
    %p121 = por %p119, %p120
    %p122 = scmp.ne.s32.totalorder %s110, %s111
    %p123 = scmp.eq.s32.totalorder %s17, 1
    %p124 = por %p122, %p123
    %p126 = scmp.ne.s32.totalorder %s111, %s125
    %p127 = scmp.eq.s32.totalorder %s17, 0
    %p128 = por %p126, %p127
    %s129 = ssub.s32 %s11, %s18
    %p130 = scmp.eq.s32.totalorder %s129, 0
    %s132 = sadd.s32 %s131, 1
    %s133 = scalar_select %p130, %s131, %s132
    %p136 = pneg %p130
    %p137 = scmp.eq.s32.totalorder %s11, 1
    %p138 = por %p136, %p137
    %p139 = scmp.ne.s32.totalorder %s131, %s134
    %p140 = scmp.eq.s32.totalorder %s11, 0
    %p141 = por %p139, %p140
    %p142 = scmp.ne.s32.totalorder %s131, %s134
    %p143 = scmp.eq.s32.totalorder %s16, 1
    %p144 = por %p142, %p143
    %p145 = scmp.ne.s32.totalorder %s134, %s135
    %p146 = scmp.eq.s32.totalorder %s16, 0
    %p147 = por %p145, %p146
    %p148 = scmp.ne.s32.totalorder %s134, %s135
    %p149 = scmp.eq.s32.totalorder %s17, 1
    %p150 = por %p148, %p149
    %p152 = scmp.ne.s32.totalorder %s135, %s151
    %p153 = scmp.eq.s32.totalorder %s17, 0
    %p154 = por %p152, %p153
    %p155 = scmp.le.s32.totalorder 1, %s11
    %p156 = scmp.lt.s32.totalorder %s11, 3
    %p157 = pnand %p155, %p156
    %p158 = pneg %p157
    // Predicated region
    $region9: #{tpu_custom_call.1} parent=5 // pred_check
      _
    $region10: #{tpu_custom_call.1} parent=5 // pred_check_branch
      %160 = sbr.rel (%p157) target = $region12
    $region11: #{tpu_custom_call.1} parent=5 // pred_region
      %s161 = ssub.s32 %s11, 1
      // Predicated region
      $region13: #{tpu_custom_call.1} parent=11 // pred_check
        %p162 = pneg %p58
      $region14: #{tpu_custom_call.1} parent=11 // pred_check_branch
        %164 = sbr.rel (%p162) target = $region16
      $region15: #{tpu_custom_call.1} parent=11 // pred_region
        _
      $region16: #{tpu_custom_call.1} parent=11 // pred_fallthru
        _
      // Predicated region
      $region17: #{tpu_custom_call.1} parent=11 // pred_check
        %p165 = pneg %p79
      $region18: #{tpu_custom_call.1} parent=11 // pred_check_branch
        %167 = sbr.rel (%p165) target = $region20
      $region19: #{tpu_custom_call.1} parent=11 // pred_region
        _
      $region20: #{tpu_custom_call.1} parent=11 // pred_fallthru
        _
      // Predicated region
      $region21: #{tpu_custom_call.1} parent=11 // pred_check
        %p168 = pneg %p100
      $region22: #{tpu_custom_call.1} parent=11 // pred_check_branch
        %170 = sbr.rel (%p168) target = $region24
      $region23: #{tpu_custom_call.1} parent=11 // pred_region
        _
      $region24: #{tpu_custom_call.1} parent=11 // pred_fallthru
        _
      // Predicated region
      $region25: #{tpu_custom_call.1} parent=11 // pred_check
        %p171 = pneg %p121
      $region26: #{tpu_custom_call.1} parent=11 // pred_check_branch
        %173 = sbr.rel (%p171) target = $region28
      $region27: #{tpu_custom_call.1} parent=11 // pred_region
        _
      $region28: #{tpu_custom_call.1} parent=11 // pred_fallthru
        _
    $region12: #{tpu_custom_call.1} parent=5 // pred_fallthru
      _
    %p174 = scmp.lt.s32.totalorder %s11, 2
    // Predicated region
    $region29: #{tpu_custom_call.1} parent=5 // pred_check
      %p175 = pneg %p174
    $region30: #{tpu_custom_call.1} parent=5 // pred_check_branch
      %177 = sbr.rel (%p175) target = $region32
    $region31: #{tpu_custom_call.1} parent=5 // pred_region
      // Predicated region
      $region33: #{tpu_custom_call.1} parent=31 // pred_check
        %p178 = pneg %p31
      $region34: #{tpu_custom_call.1} parent=31 // pred_check_branch
        %180 = sbr.rel (%p178) target = $region36
      $region35: #{tpu_custom_call.1} parent=31 // pred_region
        %p181 = scmp.lt.s32.totalorder %s11, 1
        %s182 = scalar_select %p181, %s11, 1
        %s183 = smul.addr %s182, 32
        %s184 = smul.addr %s183, 8
        %s185 = scalar_lea.vmem %s0, %s184
      $region36: #{tpu_custom_call.1} parent=31 // pred_fallthru
        _
    $region32: #{tpu_custom_call.1} parent=5 // pred_fallthru
      _
    %p186 = scmp.le.s32.totalorder 1, %s11
    %p187 = scmp.lt.s32.totalorder %s11, 3
    %p188 = pnand %p186, %p187
    %p189 = pneg %p188
    // Predicated region
    $region37: #{tpu_custom_call.1} parent=5 // pred_check
      _
    $region38: #{tpu_custom_call.1} parent=5 // pred_check_branch
      %191 = sbr.rel (%p188) target = $region40
    $region39: #{tpu_custom_call.1} parent=5 // pred_region
      %s192 = ssub.s32 %s11, 1
      %p193 = scmp.lt.s32.totalorder %s16, 1
      %s194 = scalar_select %p193, %s16, 1
      %s195 = smul.addr %s194, 32
      %s196 = smul.addr %s195, 8
      %s197 = scalar_lea.vmem %s0, %s196
      %p198 = pneg %p37
      %p199 = pneg %p34
      %p200 = pneg %p58
      %p201 = pneg %p55
      %p202 = pneg %p79
      %p203 = pneg %p76
      %p204 = pneg %p100
      %p205 = pneg %p97
      %p206 = pneg %p121
      %p207 = pneg %p118
      %p208 = pneg %p147
      %p209 = pneg %p144
      %p210 = scmp.lt.s32.totalorder %s16, 1
      %s211 = scalar_select %p210, %s16, 1
      %s212 = smul.addr %s211, 32
      %s213 = smul.addr %s212, 8
      %s214 = scalar_lea.vmem %s5, %s213
      %p215 = scmp.lt.s32.totalorder %s16, 1
      %s216 = scalar_select %p215, %s16, 1
      %s217 = smul.addr %s216, 32
      %s218 = smul.addr %s217, 8
      %s219 = scalar_lea.vmem %s0, %s218
      %p220 = scmp.lt.s32.totalorder %s16, 1
      %s221 = scalar_select %p220, %s16, 1
      %s222 = smul.addr %s221, 32
      %s223 = smul.addr %s222, 8
      %s224 = scalar_lea.vmem %s5, %s223
      %vm225 = vcmask 31744
      %226 = vst.msk [vmem:[#allocation2] sm:$0xff] %vm225, 0.0
      %227 = vst.msk [vmem:[#allocation2 + $0x8] sm:$0xff] %vm225, 0.0
      %vm228 = vcmask 25600
      %229 = vst.msk [vmem:[#allocation2 + $0x10] sm:$0x3] %vm228, 0.0
      %s230 = scalar_lea.vmem [#allocation2], 408
      %231 = vst.msk [vmem:[%s230] sm:$0xff] %vm225, 0.0
      %232 = vst.msk [vmem:[%s230 + $0x8] sm:$0xff] %vm225, 0.0
      %233 = vst.msk [vmem:[%s230 + $0x10] sm:$0x3] %vm228, 0.0
      %vm234 = vcmask 24576
      %235 = vst.msk [vmem:[#allocation2] sm:$0x1] %vm234, 0.0
      %236 = vst.msk [vmem:[#allocation2 + $0x18] sm:$0x1] %vm234, 0.0
      %237 = vst.msk [vmem:[#allocation2 + $0x30] sm:$0x1] %vm234, 0.0
      %238 = vst.msk [vmem:[#allocation2 + $0x48] sm:$0x1] %vm234, 0.0
      %239 = vst.msk [vmem:[#allocation2 + $0x60] sm:$0x1] %vm234, 0.0
      %240 = vst.msk [vmem:[#allocation2 + $0x78] sm:$0x1] %vm234, 0.0
      %241 = vst.msk [vmem:[#allocation2 + $0x90] sm:$0x1] %vm234, 0.0
      %242 = vst.msk [vmem:[#allocation2 + $0xa8] sm:$0x1] %vm234, 0.0
      %243 = vst.msk [vmem:[#allocation2 + $0xc0] sm:$0x1] %vm234, 0.0
      %244 = vst.msk [vmem:[#allocation2 + $0xd8] sm:$0x1] %vm234, 0.0
      %245 = vst.msk [vmem:[#allocation2 + $0xf0] sm:$0x1] %vm234, 0.0
      %246 = vst.msk [vmem:[#allocation2 + $0x108] sm:$0x1] %vm234, 0.0
      %247 = vst.msk [vmem:[#allocation2 + $0x120] sm:$0x1] %vm234, 0.0
      %248 = vst.msk [vmem:[#allocation2 + $0x138] sm:$0x1] %vm234, 0.0
      %249 = vst.msk [vmem:[#allocation2 + $0x150] sm:$0x1] %vm234, 0.0
      %250 = vst.msk [vmem:[#allocation2 + $0x168] sm:$0x1] %vm234, 0.0
      %251 = vst.msk [vmem:[#allocation2 + $0x180] sm:$0x1] %vm234, 0.0
      %252 = vst.msk [vmem:[#allocation2 + $0x198] sm:$0x1] %vm234, 0.0
      %253 = vst.msk [vmem:[#allocation2 + $0x11] sm:$0x1] %vm234, 0.0
      %254 = vst.msk [vmem:[#allocation2 + $0x29] sm:$0x1] %vm234, 0.0
      %255 = vst.msk [vmem:[#allocation2 + $0x41] sm:$0x1] %vm234, 0.0
      %256 = vst.msk [vmem:[#allocation2 + $0x59] sm:$0x1] %vm234, 0.0
      %257 = vst.msk [vmem:[#allocation2 + $0x71] sm:$0x1] %vm234, 0.0
      %258 = vst.msk [vmem:[#allocation2 + $0x89] sm:$0x1] %vm234, 0.0
      %259 = vst.msk [vmem:[#allocation2 + $0xa1] sm:$0x1] %vm234, 0.0
      %260 = vst.msk [vmem:[#allocation2 + $0xb9] sm:$0x1] %vm234, 0.0
      %261 = vst.msk [vmem:[#allocation2 + $0xd1] sm:$0x1] %vm234, 0.0
      %262 = vst.msk [vmem:[#allocation2 + $0xe9] sm:$0x1] %vm234, 0.0
      %263 = vst.msk [vmem:[#allocation2 + $0x101] sm:$0x1] %vm234, 0.0
      %264 = vst.msk [vmem:[#allocation2 + $0x119] sm:$0x1] %vm234, 0.0
      %265 = vst.msk [vmem:[#allocation2 + $0x131] sm:$0x1] %vm234, 0.0
      %266 = vst.msk [vmem:[#allocation2 + $0x149] sm:$0x1] %vm234, 0.0
      %267 = vst.msk [vmem:[#allocation2 + $0x161] sm:$0x1] %vm234, 0.0
      %268 = vst.msk [vmem:[#allocation2 + $0x179] sm:$0x1] %vm234, 0.0
      %269 = vst.msk [vmem:[#allocation2 + $0x191] sm:$0x1] %vm234, 0.0
      %270 = vst.msk [vmem:[#allocation2 + $0x1a9] sm:$0x1] %vm234, 0.0
      %271 = vst.msk [vmem:[#allocation3] sm:$0xff] %vm225, 0.0
      %272 = vst.msk [vmem:[#allocation3 + $0x8] sm:$0xff] %vm225, 0.0
      %273 = vst.msk [vmem:[#allocation3 + $0x10] sm:$0x3] %vm228, 0.0
      %s274 = scalar_lea.vmem [#allocation3], 408
      %275 = vst.msk [vmem:[%s274] sm:$0xff] %vm225, 0.0
      %276 = vst.msk [vmem:[%s274 + $0x8] sm:$0xff] %vm225, 0.0
      %277 = vst.msk [vmem:[%s274 + $0x10] sm:$0x3] %vm228, 0.0
      %278 = vst.msk [vmem:[#allocation3] sm:$0x1] %vm234, 0.0
      %279 = vst.msk [vmem:[#allocation3 + $0x18] sm:$0x1] %vm234, 0.0
      %280 = vst.msk [vmem:[#allocation3 + $0x30] sm:$0x1] %vm234, 0.0
      %281 = vst.msk [vmem:[#allocation3 + $0x48] sm:$0x1] %vm234, 0.0
      %282 = vst.msk [vmem:[#allocation3 + $0x60] sm:$0x1] %vm234, 0.0
      %283 = vst.msk [vmem:[#allocation3 + $0x78] sm:$0x1] %vm234, 0.0
      %284 = vst.msk [vmem:[#allocation3 + $0x90] sm:$0x1] %vm234, 0.0
      %285 = vst.msk [vmem:[#allocation3 + $0xa8] sm:$0x1] %vm234, 0.0
      %286 = vst.msk [vmem:[#allocation3 + $0xc0] sm:$0x1] %vm234, 0.0
      %287 = vst.msk [vmem:[#allocation3 + $0xd8] sm:$0x1] %vm234, 0.0
      %288 = vst.msk [vmem:[#allocation3 + $0xf0] sm:$0x1] %vm234, 0.0
      %289 = vst.msk [vmem:[#allocation3 + $0x108] sm:$0x1] %vm234, 0.0
      %290 = vst.msk [vmem:[#allocation3 + $0x120] sm:$0x1] %vm234, 0.0
      %291 = vst.msk [vmem:[#allocation3 + $0x138] sm:$0x1] %vm234, 0.0
      %292 = vst.msk [vmem:[#allocation3 + $0x150] sm:$0x1] %vm234, 0.0
      %293 = vst.msk [vmem:[#allocation3 + $0x168] sm:$0x1] %vm234, 0.0
      %294 = vst.msk [vmem:[#allocation3 + $0x180] sm:$0x1] %vm234, 0.0
      %295 = vst.msk [vmem:[#allocation3 + $0x198] sm:$0x1] %vm234, 0.0
      %296 = vst.msk [vmem:[#allocation3 + $0x11] sm:$0x1] %vm234, 0.0
      %297 = vst.msk [vmem:[#allocation3 + $0x29] sm:$0x1] %vm234, 0.0
      %298 = vst.msk [vmem:[#allocation3 + $0x41] sm:$0x1] %vm234, 0.0
      %299 = vst.msk [vmem:[#allocation3 + $0x59] sm:$0x1] %vm234, 0.0
      %300 = vst.msk [vmem:[#allocation3 + $0x71] sm:$0x1] %vm234, 0.0
      %301 = vst.msk [vmem:[#allocation3 + $0x89] sm:$0x1] %vm234, 0.0
      %302 = vst.msk [vmem:[#allocation3 + $0xa1] sm:$0x1] %vm234, 0.0
      %303 = vst.msk [vmem:[#allocation3 + $0xb9] sm:$0x1] %vm234, 0.0
      %304 = vst.msk [vmem:[#allocation3 + $0xd1] sm:$0x1] %vm234, 0.0
      %305 = vst.msk [vmem:[#allocation3 + $0xe9] sm:$0x1] %vm234, 0.0
      %306 = vst.msk [vmem:[#allocation3 + $0x101] sm:$0x1] %vm234, 0.0
      %307 = vst.msk [vmem:[#allocation3 + $0x119] sm:$0x1] %vm234, 0.0
      %308 = vst.msk [vmem:[#allocation3 + $0x131] sm:$0x1] %vm234, 0.0
      %309 = vst.msk [vmem:[#allocation3 + $0x149] sm:$0x1] %vm234, 0.0
      %310 = vst.msk [vmem:[#allocation3 + $0x161] sm:$0x1] %vm234, 0.0
      %311 = vst.msk [vmem:[#allocation3 + $0x179] sm:$0x1] %vm234, 0.0
      %312 = vst.msk [vmem:[#allocation3 + $0x191] sm:$0x1] %vm234, 0.0
      %313 = vst.msk [vmem:[#allocation3 + $0x1a9] sm:$0x1] %vm234, 0.0
      %v314 = vld [vmem:[%s219] sm:$0xff]
      %v315 = vld [vmem:[%s219 + $0x8] sm:$0xff]
      %v316 = vld [vmem:[%s219 + $0x10] sm:$0xff]
      %v317 = vld [vmem:[%s219 + $0x18] sm:$0xff]
      %v318 = vld [vmem:[%s219 + $0x20] sm:$0xff]
      %v319 = vld [vmem:[%s219 + $0x28] sm:$0xff]
      %v320 = vld [vmem:[%s219 + $0x30] sm:$0xff]
      %v321 = vld [vmem:[%s219 + $0x38] sm:$0xff]
      %v322 = vld [vmem:[%s219 + $0x40] sm:$0xff]
      %v323 = vld [vmem:[%s219 + $0x48] sm:$0xff]
      %v324 = vld [vmem:[%s219 + $0x50] sm:$0xff]
      %v325 = vld [vmem:[%s219 + $0x58] sm:$0xff]
      %v326 = vld [vmem:[%s219 + $0x60] sm:$0xff]
      %v327 = vld [vmem:[%s219 + $0x68] sm:$0xff]
      %v328 = vld [vmem:[%s219 + $0x70] sm:$0xff]
      %v329 = vld [vmem:[%s219 + $0x78] sm:$0xff]
      %v330 = vld [vmem:[%s219 + $0x80] sm:$0xff]
      %v331 = vld [vmem:[%s219 + $0x88] sm:$0xff]
      %v332 = vld [vmem:[%s219 + $0x90] sm:$0xff]
      %v333 = vld [vmem:[%s219 + $0x98] sm:$0xff]
      %v334 = vld [vmem:[%s219 + $0xa0] sm:$0xff]
      %v335 = vld [vmem:[%s219 + $0xa8] sm:$0xff]
      %v336 = vld [vmem:[%s219 + $0xb0] sm:$0xff]
      %v337 = vld [vmem:[%s219 + $0xb8] sm:$0xff]
      %v338 = vld [vmem:[%s219 + $0xc0] sm:$0xff]
      %v339 = vld [vmem:[%s219 + $0xc8] sm:$0xff]
      %v340 = vld [vmem:[%s219 + $0xd0] sm:$0xff]
      %v341 = vld [vmem:[%s219 + $0xd8] sm:$0xff]
      %v342 = vld [vmem:[%s219 + $0xe0] sm:$0xff]
      %v343 = vld [vmem:[%s219 + $0xe8] sm:$0xff]
      %v344 = vld [vmem:[%s219 + $0xf0] sm:$0xff]
      %v345 = vld [vmem:[%s219 + $0xf8] sm:$0xff]
      %s346 = scalar_lea.vmem [#allocation2], 24
      %347 = vst.msk [vmem:[%s346 + $0x1] sm:$0xff] %vm225, %v314
      %348 = vst.msk [vmem:[%s346 + $0x9] sm:$0xff] %vm225, %v315
      %349 = vst.msk [vmem:[%s346 + $0x19] sm:$0xff] %vm225, %v316
      %350 = vst.msk [vmem:[%s346 + $0x21] sm:$0xff] %vm225, %v317
      %351 = vst.msk [vmem:[%s346 + $0x31] sm:$0xff] %vm225, %v318
      %352 = vst.msk [vmem:[%s346 + $0x39] sm:$0xff] %vm225, %v319
      %353 = vst.msk [vmem:[%s346 + $0x49] sm:$0xff] %vm225, %v320
      %354 = vst.msk [vmem:[%s346 + $0x51] sm:$0xff] %vm225, %v321
      %355 = vst.msk [vmem:[%s346 + $0x61] sm:$0xff] %vm225, %v322
      %356 = vst.msk [vmem:[%s346 + $0x69] sm:$0xff] %vm225, %v323
      %357 = vst.msk [vmem:[%s346 + $0x79] sm:$0xff] %vm225, %v324
      %358 = vst.msk [vmem:[%s346 + $0x81] sm:$0xff] %vm225, %v325
      %359 = vst.msk [vmem:[%s346 + $0x91] sm:$0xff] %vm225, %v326
      %360 = vst.msk [vmem:[%s346 + $0x99] sm:$0xff] %vm225, %v327
      %361 = vst.msk [vmem:[%s346 + $0xa9] sm:$0xff] %vm225, %v328
      %362 = vst.msk [vmem:[%s346 + $0xb1] sm:$0xff] %vm225, %v329
      %363 = vst.msk [vmem:[%s346 + $0xc1] sm:$0xff] %vm225, %v330
      %364 = vst.msk [vmem:[%s346 + $0xc9] sm:$0xff] %vm225, %v331
      %365 = vst.msk [vmem:[%s346 + $0xd9] sm:$0xff] %vm225, %v332
      %366 = vst.msk [vmem:[%s346 + $0xe1] sm:$0xff] %vm225, %v333
      %367 = vst.msk [vmem:[%s346 + $0xf1] sm:$0xff] %vm225, %v334
      %368 = vst.msk [vmem:[%s346 + $0xf9] sm:$0xff] %vm225, %v335
      %369 = vst.msk [vmem:[%s346 + $0x109] sm:$0xff] %vm225, %v336
      %370 = vst.msk [vmem:[%s346 + $0x111] sm:$0xff] %vm225, %v337
      %371 = vst.msk [vmem:[%s346 + $0x121] sm:$0xff] %vm225, %v338
      %372 = vst.msk [vmem:[%s346 + $0x129] sm:$0xff] %vm225, %v339
      %373 = vst.msk [vmem:[%s346 + $0x139] sm:$0xff] %vm225, %v340
      %374 = vst.msk [vmem:[%s346 + $0x141] sm:$0xff] %vm225, %v341
      %375 = vst.msk [vmem:[%s346 + $0x151] sm:$0xff] %vm225, %v342
      %376 = vst.msk [vmem:[%s346 + $0x159] sm:$0xff] %vm225, %v343
      %377 = vst.msk [vmem:[%s346 + $0x169] sm:$0xff] %vm225, %v344
      %378 = vst.msk [vmem:[%s346 + $0x171] sm:$0xff] %vm225, %v345
      %v379 = vld [vmem:[#allocation2] sm:$0xff]
      %v380 = vld [vmem:[#allocation2 + $0x8] sm:$0xff]
      %v381 = vld [vmem:[#allocation2 + $0x18] sm:$0xff]
      %v382 = vld [vmem:[#allocation2 + $0x20] sm:$0xff]
      %v383 = vld [vmem:[#allocation2 + $0x30] sm:$0xff]
      %v384 = vld [vmem:[#allocation2 + $0x38] sm:$0xff]
      %v385 = vld [vmem:[#allocation2 + $0x48] sm:$0xff]
      %v386 = vld [vmem:[#allocation2 + $0x50] sm:$0xff]
      %v387 = vld [vmem:[#allocation2 + $0x60] sm:$0xff]
      %v388 = vld [vmem:[#allocation2 + $0x68] sm:$0xff]
      %v389 = vld [vmem:[#allocation2 + $0x78] sm:$0xff]
      %v390 = vld [vmem:[#allocation2 + $0x80] sm:$0xff]
      %v391 = vld [vmem:[#allocation2 + $0x90] sm:$0xff]
      %v392 = vld [vmem:[#allocation2 + $0x98] sm:$0xff]
      %v393 = vld [vmem:[#allocation2 + $0xa8] sm:$0xff]
      %v394 = vld [vmem:[#allocation2 + $0xb0] sm:$0xff]
      %v395 = vld [vmem:[#allocation2 + $0x1] sm:$0xff]
      %v396 = vld [vmem:[#allocation2 + $0x9] sm:$0xff]
      %v397 = vld [vmem:[#allocation2 + $0x19] sm:$0xff]
      %v398 = vld [vmem:[#allocation2 + $0x21] sm:$0xff]
      %v399 = vld [vmem:[#allocation2 + $0x31] sm:$0xff]
      %v400 = vld [vmem:[#allocation2 + $0x39] sm:$0xff]
      %v401 = vld [vmem:[#allocation2 + $0x49] sm:$0xff]
      %v402 = vld [vmem:[#allocation2 + $0x51] sm:$0xff]
      %v403 = vld [vmem:[#allocation2 + $0x61] sm:$0xff]
      %v404 = vld [vmem:[#allocation2 + $0x69] sm:$0xff]
      %v405 = vld [vmem:[#allocation2 + $0x79] sm:$0xff]
      %v406 = vld [vmem:[#allocation2 + $0x81] sm:$0xff]
      %v407 = vld [vmem:[#allocation2 + $0x91] sm:$0xff]
      %v408 = vld [vmem:[#allocation2 + $0x99] sm:$0xff]
      %v409 = vld [vmem:[#allocation2 + $0xa9] sm:$0xff]
      %v410 = vld [vmem:[#allocation2 + $0xb1] sm:$0xff]
      %v411 = vld [vmem:[#allocation2 + $0x2] sm:$0xff]
      %v412 = vld [vmem:[#allocation2 + $0xa] sm:$0xff]
      %v413 = vld [vmem:[#allocation2 + $0x1a] sm:$0xff]
      %v414 = vld [vmem:[#allocation2 + $0x22] sm:$0xff]
      %v415 = vld [vmem:[#allocation2 + $0x32] sm:$0xff]
      %v416 = vld [vmem:[#allocation2 + $0x3a] sm:$0xff]
      %v417 = vld [vmem:[#allocation2 + $0x4a] sm:$0xff]
      %v418 = vld [vmem:[#allocation2 + $0x52] sm:$0xff]
      %v419 = vld [vmem:[#allocation2 + $0x62] sm:$0xff]
      %v420 = vld [vmem:[#allocation2 + $0x6a] sm:$0xff]
      %v421 = vld [vmem:[#allocation2 + $0x7a] sm:$0xff]
      %v422 = vld [vmem:[#allocation2 + $0x82] sm:$0xff]
      %v423 = vld [vmem:[#allocation2 + $0x92] sm:$0xff]
      %v424 = vld [vmem:[#allocation2 + $0x9a] sm:$0xff]
      %v425 = vld [vmem:[#allocation2 + $0xaa] sm:$0xff]
      %v426 = vld [vmem:[#allocation2 + $0xb2] sm:$0xff]
      %v427 = vld [vmem:[%s346] sm:$0xff]
      %v428 = vld [vmem:[%s346 + $0x8] sm:$0xff]
      %v429 = vld [vmem:[%s346 + $0x18] sm:$0xff]
      %v430 = vld [vmem:[%s346 + $0x20] sm:$0xff]
      %v431 = vld [vmem:[%s346 + $0x30] sm:$0xff]
      %v432 = vld [vmem:[%s346 + $0x38] sm:$0xff]
      %v433 = vld [vmem:[%s346 + $0x48] sm:$0xff]
      %v434 = vld [vmem:[%s346 + $0x50] sm:$0xff]
      %v435 = vld [vmem:[%s346 + $0x60] sm:$0xff]
      %v436 = vld [vmem:[%s346 + $0x68] sm:$0xff]
      %v437 = vld [vmem:[%s346 + $0x78] sm:$0xff]
      %v438 = vld [vmem:[%s346 + $0x80] sm:$0xff]
      %v439 = vld [vmem:[%s346 + $0x90] sm:$0xff]
      %v440 = vld [vmem:[%s346 + $0x98] sm:$0xff]
      %v441 = vld [vmem:[%s346 + $0xa8] sm:$0xff]
      %v442 = vld [vmem:[%s346 + $0xb0] sm:$0xff]
      %v443 = vld [vmem:[%s346 + $0x1] sm:$0xff]
      %v444 = vld [vmem:[%s346 + $0x9] sm:$0xff]
      %v445 = vld [vmem:[%s346 + $0x19] sm:$0xff]
      %v446 = vld [vmem:[%s346 + $0x21] sm:$0xff]
      %v447 = vld [vmem:[%s346 + $0x31] sm:$0xff]
      %v448 = vld [vmem:[%s346 + $0x39] sm:$0xff]
      %v449 = vld [vmem:[%s346 + $0x49] sm:$0xff]
      %v450 = vld [vmem:[%s346 + $0x51] sm:$0xff]
      %v451 = vld [vmem:[%s346 + $0x61] sm:$0xff]
      %v452 = vld [vmem:[%s346 + $0x69] sm:$0xff]
      %v453 = vld [vmem:[%s346 + $0x79] sm:$0xff]
      %v454 = vld [vmem:[%s346 + $0x81] sm:$0xff]
      %v455 = vld [vmem:[%s346 + $0x91] sm:$0xff]
      %v456 = vld [vmem:[%s346 + $0x99] sm:$0xff]
      %v457 = vld [vmem:[%s346 + $0xa9] sm:$0xff]
      %v458 = vld [vmem:[%s346 + $0xb1] sm:$0xff]
      %v459 = vld [vmem:[%s346 + $0x2] sm:$0xff]
      %v460 = vld [vmem:[%s346 + $0xa] sm:$0xff]
      %v461 = vld [vmem:[%s346 + $0x1a] sm:$0xff]
      %v462 = vld [vmem:[%s346 + $0x22] sm:$0xff]
      %v463 = vld [vmem:[%s346 + $0x32] sm:$0xff]
      %v464 = vld [vmem:[%s346 + $0x3a] sm:$0xff]
      %v465 = vld [vmem:[%s346 + $0x4a] sm:$0xff]
      %v466 = vld [vmem:[%s346 + $0x52] sm:$0xff]
      %v467 = vld [vmem:[%s346 + $0x62] sm:$0xff]
      %v468 = vld [vmem:[%s346 + $0x6a] sm:$0xff]
      %v469 = vld [vmem:[%s346 + $0x7a] sm:$0xff]
      %v470 = vld [vmem:[%s346 + $0x82] sm:$0xff]
      %v471 = vld [vmem:[%s346 + $0x92] sm:$0xff]
      %v472 = vld [vmem:[%s346 + $0x9a] sm:$0xff]
      %v473 = vld [vmem:[%s346 + $0xaa] sm:$0xff]
      %v474 = vld [vmem:[%s346 + $0xb2] sm:$0xff]
      %s475 = scalar_lea.vmem [#allocation2], 48
      %v476 = vld [vmem:[%s475] sm:$0xff]
      %v477 = vld [vmem:[%s475 + $0x8] sm:$0xff]
      %v478 = vld [vmem:[%s475 + $0x18] sm:$0xff]
      %v479 = vld [vmem:[%s475 + $0x20] sm:$0xff]
      %v480 = vld [vmem:[%s475 + $0x30] sm:$0xff]
      %v481 = vld [vmem:[%s475 + $0x38] sm:$0xff]
      %v482 = vld [vmem:[%s475 + $0x48] sm:$0xff]
      %v483 = vld [vmem:[%s475 + $0x50] sm:$0xff]
      %v484 = vld [vmem:[%s475 + $0x60] sm:$0xff]
      %v485 = vld [vmem:[%s475 + $0x68] sm:$0xff]
      %v486 = vld [vmem:[%s475 + $0x78] sm:$0xff]
      %v487 = vld [vmem:[%s475 + $0x80] sm:$0xff]
      %v488 = vld [vmem:[%s475 + $0x90] sm:$0xff]
      %v489 = vld [vmem:[%s475 + $0x98] sm:$0xff]
      %v490 = vld [vmem:[%s475 + $0xa8] sm:$0xff]
      %v491 = vld [vmem:[%s475 + $0xb0] sm:$0xff]
      %v492 = vld [vmem:[%s475 + $0x1] sm:$0xff]
      %v493 = vld [vmem:[%s475 + $0x9] sm:$0xff]
      %v494 = vld [vmem:[%s475 + $0x19] sm:$0xff]
      %v495 = vld [vmem:[%s475 + $0x21] sm:$0xff]
      %v496 = vld [vmem:[%s475 + $0x31] sm:$0xff]
      %v497 = vld [vmem:[%s475 + $0x39] sm:$0xff]
      %v498 = vld [vmem:[%s475 + $0x49] sm:$0xff]
      %v499 = vld [vmem:[%s475 + $0x51] sm:$0xff]
      %v500 = vld [vmem:[%s475 + $0x61] sm:$0xff]
      %v501 = vld [vmem:[%s475 + $0x69] sm:$0xff]
      %v502 = vld [vmem:[%s475 + $0x79] sm:$0xff]
      %v503 = vld [vmem:[%s475 + $0x81] sm:$0xff]
      %v504 = vld [vmem:[%s475 + $0x91] sm:$0xff]
      %v505 = vld [vmem:[%s475 + $0x99] sm:$0xff]
      %v506 = vld [vmem:[%s475 + $0xa9] sm:$0xff]
      %v507 = vld [vmem:[%s475 + $0xb1] sm:$0xff]
      %v508 = vld [vmem:[%s475 + $0x2] sm:$0xff]
      %v509 = vld [vmem:[%s475 + $0xa] sm:$0xff]
      %v510 = vld [vmem:[%s475 + $0x1a] sm:$0xff]
      %v511 = vld [vmem:[%s475 + $0x22] sm:$0xff]
      %v512 = vld [vmem:[%s475 + $0x32] sm:$0xff]
      %v513 = vld [vmem:[%s475 + $0x3a] sm:$0xff]
      %v514 = vld [vmem:[%s475 + $0x4a] sm:$0xff]
      %v515 = vld [vmem:[%s475 + $0x52] sm:$0xff]
      %v516 = vld [vmem:[%s475 + $0x62] sm:$0xff]
      %v517 = vld [vmem:[%s475 + $0x6a] sm:$0xff]
      %v518 = vld [vmem:[%s475 + $0x7a] sm:$0xff]
      %v519 = vld [vmem:[%s475 + $0x82] sm:$0xff]
      %v520 = vld [vmem:[%s475 + $0x92] sm:$0xff]
      %v521 = vld [vmem:[%s475 + $0x9a] sm:$0xff]
      %v522 = vld [vmem:[%s475 + $0xaa] sm:$0xff]
      %v523 = vld [vmem:[%s475 + $0xb2] sm:$0xff]
      %540 = vrot.lane.b32.xlu0 %v395, 4
      %v541 = vpop.permute.xlu0 %540
      %542 = vrot.lane.b32.xlu0 %v396, 4
      %v543 = vpop.permute.xlu0 %542
      %544 = vrot.lane.b32.xlu0 %v397, 4
      %v545 = vpop.permute.xlu0 %544
      %546 = vrot.lane.b32.xlu0 %v398, 4
      %v547 = vpop.permute.xlu0 %546
      %548 = vrot.lane.b32.xlu0 %v399, 4
      %v549 = vpop.permute.xlu0 %548
      %550 = vrot.lane.b32.xlu0 %v400, 4
      %v551 = vpop.permute.xlu0 %550
      %552 = vrot.lane.b32.xlu0 %v401, 4
      %v553 = vpop.permute.xlu0 %552
      %554 = vrot.lane.b32.xlu0 %v402, 4
      %v555 = vpop.permute.xlu0 %554
      %556 = vrot.lane.b32.xlu0 %v403, 4
      %v557 = vpop.permute.xlu0 %556
      %558 = vrot.lane.b32.xlu0 %v404, 4
      %v559 = vpop.permute.xlu0 %558
      %560 = vrot.lane.b32.xlu0 %v405, 4
      %v561 = vpop.permute.xlu0 %560
      %562 = vrot.lane.b32.xlu0 %v406, 4
      %v563 = vpop.permute.xlu0 %562
      %564 = vrot.lane.b32.xlu0 %v407, 4
      %v565 = vpop.permute.xlu0 %564
      %566 = vrot.lane.b32.xlu0 %v408, 4
      %v567 = vpop.permute.xlu0 %566
      %568 = vrot.lane.b32.xlu0 %v409, 4
      %v569 = vpop.permute.xlu0 %568
      %570 = vrot.lane.b32.xlu0 %v410, 4
      %v571 = vpop.permute.xlu0 %570
      %604 = vrot.lane.b32.xlu0 %v411, 8
      %v605 = vpop.permute.xlu0 %604
      %606 = vrot.lane.b32.xlu0 %v412, 8
      %v607 = vpop.permute.xlu0 %606
      %608 = vrot.lane.b32.xlu0 %v413, 8
      %v609 = vpop.permute.xlu0 %608
      %610 = vrot.lane.b32.xlu0 %v414, 8
      %v611 = vpop.permute.xlu0 %610
      %612 = vrot.lane.b32.xlu0 %v415, 8
      %v613 = vpop.permute.xlu0 %612
      %614 = vrot.lane.b32.xlu0 %v416, 8
      %v615 = vpop.permute.xlu0 %614
      %616 = vrot.lane.b32.xlu0 %v417, 8
      %v617 = vpop.permute.xlu0 %616
      %618 = vrot.lane.b32.xlu0 %v418, 8
      %v619 = vpop.permute.xlu0 %618
      %620 = vrot.lane.b32.xlu0 %v419, 8
      %v621 = vpop.permute.xlu0 %620
      %622 = vrot.lane.b32.xlu0 %v420, 8
      %v623 = vpop.permute.xlu0 %622
      %624 = vrot.lane.b32.xlu0 %v421, 8
      %v625 = vpop.permute.xlu0 %624
      %626 = vrot.lane.b32.xlu0 %v422, 8
      %v627 = vpop.permute.xlu0 %626
      %628 = vrot.lane.b32.xlu0 %v423, 8
      %v629 = vpop.permute.xlu0 %628
      %630 = vrot.lane.b32.xlu0 %v424, 8
      %v631 = vpop.permute.xlu0 %630
      %632 = vrot.lane.b32.xlu0 %v425, 8
      %v633 = vpop.permute.xlu0 %632
      %634 = vrot.lane.b32.xlu0 %v426, 8
      %v635 = vpop.permute.xlu0 %634
      %668 = vrot.lane.b32.xlu0 %v427, 12
      %v669 = vpop.permute.xlu0 %668
      %670 = vrot.lane.b32.xlu0 %v428, 12
      %v671 = vpop.permute.xlu0 %670
      %672 = vrot.lane.b32.xlu0 %v429, 12
      %v673 = vpop.permute.xlu0 %672
      %674 = vrot.lane.b32.xlu0 %v430, 12
      %v675 = vpop.permute.xlu0 %674
      %676 = vrot.lane.b32.xlu0 %v431, 12
      %v677 = vpop.permute.xlu0 %676
      %678 = vrot.lane.b32.xlu0 %v432, 12
      %v679 = vpop.permute.xlu0 %678
      %680 = vrot.lane.b32.xlu0 %v433, 12
      %v681 = vpop.permute.xlu0 %680
      %682 = vrot.lane.b32.xlu0 %v434, 12
      %v683 = vpop.permute.xlu0 %682
      %684 = vrot.lane.b32.xlu0 %v435, 12
      %v685 = vpop.permute.xlu0 %684
      %686 = vrot.lane.b32.xlu0 %v436, 12
      %v687 = vpop.permute.xlu0 %686
      %688 = vrot.lane.b32.xlu0 %v437, 12
      %v689 = vpop.permute.xlu0 %688
      %690 = vrot.lane.b32.xlu0 %v438, 12
      %v691 = vpop.permute.xlu0 %690
      %692 = vrot.lane.b32.xlu0 %v439, 12
      %v693 = vpop.permute.xlu0 %692
      %694 = vrot.lane.b32.xlu0 %v440, 12
      %v695 = vpop.permute.xlu0 %694
      %696 = vrot.lane.b32.xlu0 %v441, 12
      %v697 = vpop.permute.xlu0 %696
      %698 = vrot.lane.b32.xlu0 %v442, 12
      %v699 = vpop.permute.xlu0 %698
      %732 = vrot.lane.b32.xlu0 %v443, 16
      %v733 = vpop.permute.xlu0 %732
      %734 = vrot.lane.b32.xlu0 %v444, 16
      %v735 = vpop.permute.xlu0 %734
      %736 = vrot.lane.b32.xlu0 %v445, 16
      %v737 = vpop.permute.xlu0 %736
      %738 = vrot.lane.b32.xlu0 %v446, 16
      %v739 = vpop.permute.xlu0 %738
      %740 = vrot.lane.b32.xlu0 %v447, 16
      %v741 = vpop.permute.xlu0 %740
      %742 = vrot.lane.b32.xlu0 %v448, 16
      %v743 = vpop.permute.xlu0 %742
      %744 = vrot.lane.b32.xlu0 %v449, 16
      %v745 = vpop.permute.xlu0 %744
      %746 = vrot.lane.b32.xlu0 %v450, 16
      %v747 = vpop.permute.xlu0 %746
      %748 = vrot.lane.b32.xlu0 %v451, 16
      %v749 = vpop.permute.xlu0 %748
      %750 = vrot.lane.b32.xlu0 %v452, 16
      %v751 = vpop.permute.xlu0 %750
      %752 = vrot.lane.b32.xlu0 %v453, 16
      %v753 = vpop.permute.xlu0 %752
      %754 = vrot.lane.b32.xlu0 %v454, 16
      %v755 = vpop.permute.xlu0 %754
      %756 = vrot.lane.b32.xlu0 %v455, 16
      %v757 = vpop.permute.xlu0 %756
      %758 = vrot.lane.b32.xlu0 %v456, 16
      %v759 = vpop.permute.xlu0 %758
      %760 = vrot.lane.b32.xlu0 %v457, 16
      %v761 = vpop.permute.xlu0 %760
      %762 = vrot.lane.b32.xlu0 %v458, 16
      %v763 = vpop.permute.xlu0 %762
      %796 = vrot.lane.b32.xlu0 %v459, 20
      %v797 = vpop.permute.xlu0 %796
      %798 = vrot.lane.b32.xlu0 %v460, 20
      %v799 = vpop.permute.xlu0 %798
      %800 = vrot.lane.b32.xlu0 %v461, 20
      %v801 = vpop.permute.xlu0 %800
      %802 = vrot.lane.b32.xlu0 %v462, 20
      %v803 = vpop.permute.xlu0 %802
      %804 = vrot.lane.b32.xlu0 %v463, 20
      %v805 = vpop.permute.xlu0 %804
      %806 = vrot.lane.b32.xlu0 %v464, 20
      %v807 = vpop.permute.xlu0 %806
      %808 = vrot.lane.b32.xlu0 %v465, 20
      %v809 = vpop.permute.xlu0 %808
      %810 = vrot.lane.b32.xlu0 %v466, 20
      %v811 = vpop.permute.xlu0 %810
      %812 = vrot.lane.b32.xlu0 %v467, 20
      %v813 = vpop.permute.xlu0 %812
      %814 = vrot.lane.b32.xlu0 %v468, 20
      %v815 = vpop.permute.xlu0 %814
      %816 = vrot.lane.b32.xlu0 %v469, 20
      %v817 = vpop.permute.xlu0 %816
      %818 = vrot.lane.b32.xlu0 %v470, 20
      %v819 = vpop.permute.xlu0 %818
      %820 = vrot.lane.b32.xlu0 %v471, 20
      %v821 = vpop.permute.xlu0 %820
      %822 = vrot.lane.b32.xlu0 %v472, 20
      %v823 = vpop.permute.xlu0 %822
      %824 = vrot.lane.b32.xlu0 %v473, 20
      %v825 = vpop.permute.xlu0 %824
      %826 = vrot.lane.b32.xlu0 %v474, 20
      %v827 = vpop.permute.xlu0 %826
      %860 = vrot.lane.b32.xlu0 %v476, 24
      %v861 = vpop.permute.xlu0 %860
      %862 = vrot.lane.b32.xlu0 %v477, 24
      %v863 = vpop.permute.xlu0 %862
      %864 = vrot.lane.b32.xlu0 %v478, 24
      %v865 = vpop.permute.xlu0 %864
      %866 = vrot.lane.b32.xlu0 %v479, 24
      %v867 = vpop.permute.xlu0 %866
      %868 = vrot.lane.b32.xlu0 %v480, 24
      %v869 = vpop.permute.xlu0 %868
      %870 = vrot.lane.b32.xlu0 %v481, 24
      %v871 = vpop.permute.xlu0 %870
      %872 = vrot.lane.b32.xlu0 %v482, 24
      %v873 = vpop.permute.xlu0 %872
      %874 = vrot.lane.b32.xlu0 %v483, 24
      %v875 = vpop.permute.xlu0 %874
      %876 = vrot.lane.b32.xlu0 %v484, 24
      %v877 = vpop.permute.xlu0 %876
      %878 = vrot.lane.b32.xlu0 %v485, 24
      %v879 = vpop.permute.xlu0 %878
      %880 = vrot.lane.b32.xlu0 %v486, 24
      %v881 = vpop.permute.xlu0 %880
      %882 = vrot.lane.b32.xlu0 %v487, 24
      %v883 = vpop.permute.xlu0 %882
      %884 = vrot.lane.b32.xlu0 %v488, 24
      %v885 = vpop.permute.xlu0 %884
      %886 = vrot.lane.b32.xlu0 %v489, 24
      %v887 = vpop.permute.xlu0 %886
      %888 = vrot.lane.b32.xlu0 %v490, 24
      %v889 = vpop.permute.xlu0 %888
      %890 = vrot.lane.b32.xlu0 %v491, 24
      %v891 = vpop.permute.xlu0 %890
      %924 = vrot.lane.b32.xlu0 %v492, 28
      %v925 = vpop.permute.xlu0 %924
      %926 = vrot.lane.b32.xlu0 %v493, 28
      %v927 = vpop.permute.xlu0 %926
      %928 = vrot.lane.b32.xlu0 %v494, 28
      %v929 = vpop.permute.xlu0 %928
      %930 = vrot.lane.b32.xlu0 %v495, 28
      %v931 = vpop.permute.xlu0 %930
      %932 = vrot.lane.b32.xlu0 %v496, 28
      %v933 = vpop.permute.xlu0 %932
      %934 = vrot.lane.b32.xlu0 %v497, 28
      %v935 = vpop.permute.xlu0 %934
      %936 = vrot.lane.b32.xlu0 %v498, 28
      %v937 = vpop.permute.xlu0 %936
      %938 = vrot.lane.b32.xlu0 %v499, 28
      %v939 = vpop.permute.xlu0 %938
      %940 = vrot.lane.b32.xlu0 %v500, 28
      %v941 = vpop.permute.xlu0 %940
      %942 = vrot.lane.b32.xlu0 %v501, 28
      %v943 = vpop.permute.xlu0 %942
      %944 = vrot.lane.b32.xlu0 %v502, 28
      %v945 = vpop.permute.xlu0 %944
      %946 = vrot.lane.b32.xlu0 %v503, 28
      %v947 = vpop.permute.xlu0 %946
      %948 = vrot.lane.b32.xlu0 %v504, 28
      %v949 = vpop.permute.xlu0 %948
      %950 = vrot.lane.b32.xlu0 %v505, 28
      %v951 = vpop.permute.xlu0 %950
      %952 = vrot.lane.b32.xlu0 %v506, 28
      %v953 = vpop.permute.xlu0 %952
      %954 = vrot.lane.b32.xlu0 %v507, 28
      %v955 = vpop.permute.xlu0 %954
      %988 = vrot.lane.b32.xlu0 %v508, 32
      %v989 = vpop.permute.xlu0 %988
      %990 = vrot.lane.b32.xlu0 %v509, 32
      %v991 = vpop.permute.xlu0 %990
      %992 = vrot.lane.b32.xlu0 %v510, 32
      %v993 = vpop.permute.xlu0 %992
      %994 = vrot.lane.b32.xlu0 %v511, 32
      %v995 = vpop.permute.xlu0 %994
      %996 = vrot.lane.b32.xlu0 %v512, 32
      %v997 = vpop.permute.xlu0 %996
      %998 = vrot.lane.b32.xlu0 %v513, 32
      %v999 = vpop.permute.xlu0 %998
      %1000 = vrot.lane.b32.xlu0 %v514, 32
      %v1001 = vpop.permute.xlu0 %1000
      %1002 = vrot.lane.b32.xlu0 %v515, 32
      %v1003 = vpop.permute.xlu0 %1002
      %1004 = vrot.lane.b32.xlu0 %v516, 32
      %v1005 = vpop.permute.xlu0 %1004
      %1006 = vrot.lane.b32.xlu0 %v517, 32
      %v1007 = vpop.permute.xlu0 %1006
      %1008 = vrot.lane.b32.xlu0 %v518, 32
      %v1009 = vpop.permute.xlu0 %1008
      %1010 = vrot.lane.b32.xlu0 %v519, 32
      %v1011 = vpop.permute.xlu0 %1010
      %1012 = vrot.lane.b32.xlu0 %v520, 32
      %v1013 = vpop.permute.xlu0 %1012
      %1014 = vrot.lane.b32.xlu0 %v521, 32
      %v1015 = vpop.permute.xlu0 %1014
      %1016 = vrot.lane.b32.xlu0 %v522, 32
      %v1017 = vpop.permute.xlu0 %1016
      %1018 = vrot.lane.b32.xlu0 %v523, 32
      %v1019 = vpop.permute.xlu0 %1018
      %v1036 = vsel %vm225, %v379, %v541
      %v1037 = vsel %vm225, %v380, %v543
      %v1038 = vsel %vm225, %v381, %v545
      %v1039 = vsel %vm225, %v382, %v547
      %v1040 = vsel %vm225, %v383, %v549
      %v1041 = vsel %vm225, %v384, %v551
      %v1042 = vsel %vm225, %v385, %v553
      %v1043 = vsel %vm225, %v386, %v555
      %v1044 = vsel %vm225, %v387, %v557
      %v1045 = vsel %vm225, %v388, %v559
      %v1046 = vsel %vm225, %v389, %v561
      %v1047 = vsel %vm225, %v390, %v563
      %v1048 = vsel %vm225, %v391, %v565
      %v1049 = vsel %vm225, %v392, %v567
      %v1050 = vsel %vm225, %v393, %v569
      %v1051 = vsel %vm225, %v394, %v571
      %vm1052 = vcmask 64512
      %v1053 = vsel %vm1052, %v1036, %v605
      %v1054 = vsel %vm1052, %v1037, %v607
      %v1055 = vsel %vm1052, %v1038, %v609
      %v1056 = vsel %vm1052, %v1039, %v611
      %v1057 = vsel %vm1052, %v1040, %v613
      %v1058 = vsel %vm1052, %v1041, %v615
      %v1059 = vsel %vm1052, %v1042, %v617
      %v1060 = vsel %vm1052, %v1043, %v619
      %v1061 = vsel %vm1052, %v1044, %v621
      %v1062 = vsel %vm1052, %v1045, %v623
      %v1063 = vsel %vm1052, %v1046, %v625
      %v1064 = vsel %vm1052, %v1047, %v627
      %v1065 = vsel %vm1052, %v1048, %v629
      %v1066 = vsel %vm1052, %v1049, %v631
      %v1067 = vsel %vm1052, %v1050, %v633
      %v1068 = vsel %vm1052, %v1051, %v635
      %vm1069 = vcmask 97280
      %v1070 = vsel %vm1069, %v1053, %v669
      %v1071 = vsel %vm1069, %v1054, %v671
      %v1072 = vsel %vm1069, %v1055, %v673
      %v1073 = vsel %vm1069, %v1056, %v675
      %v1074 = vsel %vm1069, %v1057, %v677
      %v1075 = vsel %vm1069, %v1058, %v679
      %v1076 = vsel %vm1069, %v1059, %v681
      %v1077 = vsel %vm1069, %v1060, %v683
      %v1078 = vsel %vm1069, %v1061, %v685
      %v1079 = vsel %vm1069, %v1062, %v687
      %v1080 = vsel %vm1069, %v1063, %v689
      %v1081 = vsel %vm1069, %v1064, %v691
      %v1082 = vsel %vm1069, %v1065, %v693
      %v1083 = vsel %vm1069, %v1066, %v695
      %v1084 = vsel %vm1069, %v1067, %v697
      %v1085 = vsel %vm1069, %v1068, %v699
      %vm1086 = vcmask 130048
      %v1087 = vsel %vm1086, %v1070, %v733
      %v1088 = vsel %vm1086, %v1071, %v735
      %v1089 = vsel %vm1086, %v1072, %v737
      %v1090 = vsel %vm1086, %v1073, %v739
      %v1091 = vsel %vm1086, %v1074, %v741
      %v1092 = vsel %vm1086, %v1075, %v743
      %v1093 = vsel %vm1086, %v1076, %v745
      %v1094 = vsel %vm1086, %v1077, %v747
      %v1095 = vsel %vm1086, %v1078, %v749
      %v1096 = vsel %vm1086, %v1079, %v751
      %v1097 = vsel %vm1086, %v1080, %v753
      %v1098 = vsel %vm1086, %v1081, %v755
      %v1099 = vsel %vm1086, %v1082, %v757
      %v1100 = vsel %vm1086, %v1083, %v759
      %v1101 = vsel %vm1086, %v1084, %v761
      %v1102 = vsel %vm1086, %v1085, %v763
      %vm1103 = vcmask 162816
      %v1104 = vsel %vm1103, %v1087, %v797
      %v1105 = vsel %vm1103, %v1088, %v799
      %v1106 = vsel %vm1103, %v1089, %v801
      %v1107 = vsel %vm1103, %v1090, %v803
      %v1108 = vsel %vm1103, %v1091, %v805
      %v1109 = vsel %vm1103, %v1092, %v807
      %v1110 = vsel %vm1103, %v1093, %v809
      %v1111 = vsel %vm1103, %v1094, %v811
      %v1112 = vsel %vm1103, %v1095, %v813
      %v1113 = vsel %vm1103, %v1096, %v815
      %v1114 = vsel %vm1103, %v1097, %v817
      %v1115 = vsel %vm1103, %v1098, %v819
      %v1116 = vsel %vm1103, %v1099, %v821
      %v1117 = vsel %vm1103, %v1100, %v823
      %v1118 = vsel %vm1103, %v1101, %v825
      %v1119 = vsel %vm1103, %v1102, %v827
      %vm1120 = vcmask 195584
      %v1121 = vsel %vm1120, %v1104, %v861
      %v1122 = vsel %vm1120, %v1105, %v863
      %v1123 = vsel %vm1120, %v1106, %v865
      %v1124 = vsel %vm1120, %v1107, %v867
      %v1125 = vsel %vm1120, %v1108, %v869
      %v1126 = vsel %vm1120, %v1109, %v871
      %v1127 = vsel %vm1120, %v1110, %v873
      %v1128 = vsel %vm1120, %v1111, %v875
      %v1129 = vsel %vm1120, %v1112, %v877
      %v1130 = vsel %vm1120, %v1113, %v879
      %v1131 = vsel %vm1120, %v1114, %v881
      %v1132 = vsel %vm1120, %v1115, %v883
      %v1133 = vsel %vm1120, %v1116, %v885
      %v1134 = vsel %vm1120, %v1117, %v887
      %v1135 = vsel %vm1120, %v1118, %v889
      %v1136 = vsel %vm1120, %v1119, %v891
      %vm1137 = vcmask 228352
      %v1138 = vsel %vm1137, %v1121, %v925
      %v1139 = vsel %vm1137, %v1122, %v927
      %v1140 = vsel %vm1137, %v1123, %v929
      %v1141 = vsel %vm1137, %v1124, %v931
      %v1142 = vsel %vm1137, %v1125, %v933
      %v1143 = vsel %vm1137, %v1126, %v935
      %v1144 = vsel %vm1137, %v1127, %v937
      %v1145 = vsel %vm1137, %v1128, %v939
      %v1146 = vsel %vm1137, %v1129, %v941
      %v1147 = vsel %vm1137, %v1130, %v943
      %v1148 = vsel %vm1137, %v1131, %v945
      %v1149 = vsel %vm1137, %v1132, %v947
      %v1150 = vsel %vm1137, %v1133, %v949
      %v1151 = vsel %vm1137, %v1134, %v951
      %v1152 = vsel %vm1137, %v1135, %v953
      %v1153 = vsel %vm1137, %v1136, %v955
      %vm1154 = vcmask 261120
      %v1155 = vsel %vm1154, %v1138, %v989
      %v1156 = vsel %vm1154, %v1139, %v991
      %v1157 = vsel %vm1154, %v1140, %v993
      %v1158 = vsel %vm1154, %v1141, %v995
      %v1159 = vsel %vm1154, %v1142, %v997
      %v1160 = vsel %vm1154, %v1143, %v999
      %v1161 = vsel %vm1154, %v1144, %v1001
      %v1162 = vsel %vm1154, %v1145, %v1003
      %v1163 = vsel %vm1154, %v1146, %v1005
      %v1164 = vsel %vm1154, %v1147, %v1007
      %v1165 = vsel %vm1154, %v1148, %v1009
      %v1166 = vsel %vm1154, %v1149, %v1011
      %v1167 = vsel %vm1154, %v1150, %v1013
      %v1168 = vsel %vm1154, %v1151, %v1015
      %v1169 = vsel %vm1154, %v1152, %v1017
      %v1170 = vsel %vm1154, %v1153, %v1019
      %v1171 = vld [vmem:[%s1] sm:$0xff]
      %v1172 = vld [vmem:[%s1 + $0x8] sm:$0xff]
      %v1173 = vld [vmem:[%s1 + $0x10] sm:$0xff]
      %v1174 = vld [vmem:[%s1 + $0x18] sm:$0xff]
      %v1175 = vld [vmem:[%s1 + $0x20] sm:$0xf]
      %v1176 = vld [vmem:[%s2] sm:$0x1]
      %v1178 = vlaneseq
      %v1179 = vshrl.u32 %v1178, 7
      %v1180 = vsub.s32 0, %v1179
      %v1181 = vrot.slane %v1176, %v1180
      %vm1183 = vcmask 293888
      %v1185 = vsel %vm1183, %v1155, 0
      %v1188 = vsel %vm1183, %v1156, 0
      %v1191 = vsel %vm1183, %v1157, 0
      %v1194 = vsel %vm1183, %v1158, 0
      %v1197 = vsel %vm1183, %v1159, 0
      %v1200 = vsel %vm1183, %v1160, 0
      %v1203 = vsel %vm1183, %v1161, 0
      %v1206 = vsel %vm1183, %v1162, 0
      %v1209 = vsel %vm1183, %v1163, 0
      %v1212 = vsel %vm1183, %v1164, 0
      %v1215 = vsel %vm1183, %v1165, 0
      %v1218 = vsel %vm1183, %v1166, 0
      %v1221 = vsel %vm1183, %v1167, 0
      %v1224 = vsel %vm1183, %v1168, 0
      %v1227 = vsel %vm1183, %v1169, 0
      %v1230 = vsel %vm1183, %v1170, 0
      %vm1232 = vcmask 1043456
      %v1234 = vsel %vm1232, %v1175, 0
      %1236 = vmatprep.subr.mxu0 0.0
      %1237 = vmatpush1.msra.mxu0 %v1171
      %1238 = vmatprep.subr.mxu0 0.0
      %1239 = vmatpush1.msra.mxu0 %v1172
      %1240 = vmatprep.subr.mxu0 0.0
      %1241 = vmatpush1.msra.mxu0 %v1173
      %1242 = vmatprep.subr.mxu0 0.0
      %1243 = vmatpush1.msra.mxu0 %v1174
      %1244 = vmatprep.subr.mxu0 0.0
      %1245 = vmatpush1.msra.mxu0 %v1234
      %1246 = vmatprep.subr.mxu0 0.0
      %1247 = vmatpush1.msra.mxu0 0.0
      %1248 = vmatprep.subr.mxu0 0.0
      %1249 = vmatpush1.msra.mxu0 0.0
      %1250 = vmatprep.subr.mxu0 0.0
      %1251 = vmatpush1.msra.mxu0 0.0
      %1252 = vmatprep.subr.mxu0 0.0
      %1253 = vmatpush1.msra.mxu0 0.0
      %1254 = vmatprep.subr.mxu0 0.0
      %1255 = vmatpush1.msra.mxu0 0.0
      %1256 = vmatprep.subr.mxu0 0.0
      %1257 = vmatpush1.msra.mxu0 0.0
      %1258 = vmatprep.subr.mxu0 0.0
      %1259 = vmatpush1.msra.mxu0 0.0
      %1260 = vmatprep.subr.mxu0 0.0
      %1261 = vmatpush1.msra.mxu0 0.0
      %1262 = vmatprep.subr.mxu0 0.0
      %1263 = vmatpush1.msra.mxu0 0.0
      %1264 = vmatprep.subr.mxu0 0.0
      %1265 = vmatpush1.msra.mxu0 0.0
      %1266 = vmatprep.subr.mxu0 0.0
      %1267 = vmatpush1.msra.mxu0 0.0
      %1268 = vmatprep.subr.mxu0 0.0
      %1269 = vmatpush1.msra.mxu0 0.0
      %1270 = vmatprep.subr.mxu0 0.0
      %1271 = vmatpush1.msra.mxu0 0.0
      %1272 = vmatprep.subr.mxu0 0.0
      %1273 = vmatpush1.msra.mxu0 0.0
      %1274 = vmatprep.subr.mxu0 0.0
      %1275 = vmatpush1.msra.mxu0 0.0
      %1276 = vmatprep.subr.mxu0 0.0
      %1277 = vmatpush1.msra.mxu0 0.0
      %1278 = vmatprep.subr.mxu0 0.0
      %1279 = vmatpush1.msra.mxu0 0.0
      %1280 = vmatprep.subr.mxu0 0.0
      %1281 = vmatpush1.msra.mxu0 0.0
      %1282 = vmatprep.subr.mxu0 0.0
      %1283 = vmatpush1.msra.mxu0 0.0
      %1284 = vmatprep.subr.mxu0 0.0
      %1285 = vmatpush1.msra.mxu0 0.0
      %1286 = vmatprep.subr.mxu0 0.0
      %1287 = vmatpush1.msra.mxu0 0.0
      %1288 = vmatprep.subr.mxu0 0.0
      %1289 = vmatpush1.msra.mxu0 0.0
      %1290 = vmatprep.subr.mxu0 0.0
      %1291 = vmatpush1.msra.mxu0 0.0
      %1292 = vmatprep.subr.mxu0 0.0
      %1293 = vmatpush1.msra.mxu0 0.0
      %1294 = vmatprep.subr.mxu0 0.0
      %1295 = vmatpush1.msra.mxu0 0.0
      %1296 = vmatprep.subr.mxu0 0.0
      %1297 = vmatpush1.msra.mxu0 0.0
      %1298 = vmatprep.subr.mxu0 0.0
      %1299 = vmatpush1.msra.mxu0 0.0
      %1300 = vmatprep.mubr.f32.mxu0 0.0
      %1301 = vmatmul.mubr.f32.gmra.mrb[0].mxu0 %v1185
      %v1302 = vpop.f32.mrb[0].mxu0
      %v1303 = vadd.f32 %v1181, %v1302
      %v1304 = vpop.f32.mrb[0].mxu0
      %1305 = vmatprep.mubr.f32.mxu0 0.0
      %1306 = vmatmul.mubr.f32.gmra.mrb[0].mxu0 %v1188
      %v1307 = vpop.f32.mrb[0].mxu0
      %v1308 = vadd.f32 %v1181, %v1307
      %v1309 = vpop.f32.mrb[0].mxu0
      %1310 = vmatprep.mubr.f32.mxu0 0.0
      %1311 = vmatmul.mubr.f32.gmra.mrb[0].mxu0 %v1191
      %v1312 = vpop.f32.mrb[0].mxu0
      %v1313 = vadd.f32 %v1181, %v1312
      %v1314 = vpop.f32.mrb[0].mxu0
      %1315 = vmatprep.mubr.f32.mxu0 0.0
      %1316 = vmatmul.mubr.f32.gmra.mrb[0].mxu0 %v1194
      %v1317 = vpop.f32.mrb[0].mxu0
      %v1318 = vadd.f32 %v1181, %v1317
      %v1319 = vpop.f32.mrb[0].mxu0
      %1320 = vmatprep.mubr.f32.mxu0 0.0
      %1321 = vmatmul.mubr.f32.gmra.mrb[0].mxu0 %v1197
      %v1322 = vpop.f32.mrb[0].mxu0
      %v1323 = vadd.f32 %v1181, %v1322
      %v1324 = vpop.f32.mrb[0].mxu0
      %1325 = vmatprep.mubr.f32.mxu0 0.0
      %1326 = vmatmul.mubr.f32.gmra.mrb[0].mxu0 %v1200
      %v1327 = vpop.f32.mrb[0].mxu0
      %v1328 = vadd.f32 %v1181, %v1327
      %v1329 = vpop.f32.mrb[0].mxu0
      %1330 = vmatprep.mubr.f32.mxu0 0.0
      %1331 = vmatmul.mubr.f32.gmra.mrb[0].mxu0 %v1203
      %v1332 = vpop.f32.mrb[0].mxu0
      %v1333 = vadd.f32 %v1181, %v1332
      %v1334 = vpop.f32.mrb[0].mxu0
      %1335 = vmatprep.mubr.f32.mxu0 0.0
      %1336 = vmatmul.mubr.f32.gmra.mrb[0].mxu0 %v1206
      %v1337 = vpop.f32.mrb[0].mxu0
      %v1338 = vadd.f32 %v1181, %v1337
      %v1339 = vpop.f32.mrb[0].mxu0
      %1340 = vmatprep.mubr.f32.mxu0 0.0
      %1341 = vmatmul.mubr.f32.gmra.mrb[0].mxu0 %v1209
      %v1342 = vpop.f32.mrb[0].mxu0
      %v1343 = vadd.f32 %v1181, %v1342
      %v1344 = vpop.f32.mrb[0].mxu0
      %1345 = vmatprep.mubr.f32.mxu0 0.0
      %1346 = vmatmul.mubr.f32.gmra.mrb[0].mxu0 %v1212
      %v1347 = vpop.f32.mrb[0].mxu0
      %v1348 = vadd.f32 %v1181, %v1347
      %v1349 = vpop.f32.mrb[0].mxu0
      %1350 = vmatprep.mubr.f32.mxu0 0.0
      %1351 = vmatmul.mubr.f32.gmra.mrb[0].mxu0 %v1215
      %v1352 = vpop.f32.mrb[0].mxu0
      %v1353 = vadd.f32 %v1181, %v1352
      %v1354 = vpop.f32.mrb[0].mxu0
      %1355 = vmatprep.mubr.f32.mxu0 0.0
      %1356 = vmatmul.mubr.f32.gmra.mrb[0].mxu0 %v1218
      %v1357 = vpop.f32.mrb[0].mxu0
      %v1358 = vadd.f32 %v1181, %v1357
      %v1359 = vpop.f32.mrb[0].mxu0
      %1360 = vmatprep.mubr.f32.mxu0 0.0
      %1361 = vmatmul.mubr.f32.gmra.mrb[0].mxu0 %v1221
      %v1362 = vpop.f32.mrb[0].mxu0
      %v1363 = vadd.f32 %v1181, %v1362
      %v1364 = vpop.f32.mrb[0].mxu0
      %1365 = vmatprep.mubr.f32.mxu0 0.0
      %1366 = vmatmul.mubr.f32.gmra.mrb[0].mxu0 %v1224
      %v1367 = vpop.f32.mrb[0].mxu0
      %v1368 = vadd.f32 %v1181, %v1367
      %v1369 = vpop.f32.mrb[0].mxu0
      %1370 = vmatprep.mubr.f32.mxu0 0.0
      %1371 = vmatmul.mubr.f32.gmra.mrb[0].mxu0 %v1227
      %v1372 = vpop.f32.mrb[0].mxu0
      %v1373 = vadd.f32 %v1181, %v1372
      %v1374 = vpop.f32.mrb[0].mxu0
      %1375 = vmatprep.mubr.f32.mxu0 0.0
      %1376 = vmatmul.mubr.f32.gmra.mrb[0].mxu0 %v1230
      %v1377 = vpop.f32.mrb[0].mxu0
      %v1378 = vadd.f32 %v1181, %v1377
      %v1379 = vpop.f32.mrb[0].mxu0
      %1380 = vdwg.mxu0
      %1397 = vrot.lane.b32.xlu0 %v1303, 124
      %v1398 = vpop.permute.xlu0 %1397
      %1399 = vrot.lane.b32.xlu0 %v1308, 124
      %v1400 = vpop.permute.xlu0 %1399
      %1401 = vrot.lane.b32.xlu0 %v1313, 124
      %v1402 = vpop.permute.xlu0 %1401
      %1403 = vrot.lane.b32.xlu0 %v1318, 124
      %v1404 = vpop.permute.xlu0 %1403
      %1405 = vrot.lane.b32.xlu0 %v1323, 124
      %v1406 = vpop.permute.xlu0 %1405
      %1407 = vrot.lane.b32.xlu0 %v1328, 124
      %v1408 = vpop.permute.xlu0 %1407
      %1409 = vrot.lane.b32.xlu0 %v1333, 124
      %v1410 = vpop.permute.xlu0 %1409
      %1411 = vrot.lane.b32.xlu0 %v1338, 124
      %v1412 = vpop.permute.xlu0 %1411
      %1413 = vrot.lane.b32.xlu0 %v1343, 124
      %v1414 = vpop.permute.xlu0 %1413
      %1415 = vrot.lane.b32.xlu0 %v1348, 124
      %v1416 = vpop.permute.xlu0 %1415
      %1417 = vrot.lane.b32.xlu0 %v1353, 124
      %v1418 = vpop.permute.xlu0 %1417
      %1419 = vrot.lane.b32.xlu0 %v1358, 124
      %v1420 = vpop.permute.xlu0 %1419
      %1421 = vrot.lane.b32.xlu0 %v1363, 124
      %v1422 = vpop.permute.xlu0 %1421
      %1423 = vrot.lane.b32.xlu0 %v1368, 124
      %v1424 = vpop.permute.xlu0 %1423
      %1425 = vrot.lane.b32.xlu0 %v1373, 124
      %v1426 = vpop.permute.xlu0 %1425
      %1427 = vrot.lane.b32.xlu0 %v1378, 124
      %v1428 = vpop.permute.xlu0 %1427
      %v1445 = vmax.f32 %v1303, %v1398
      %v1446 = vmax.f32 %v1308, %v1400
      %v1447 = vmax.f32 %v1313, %v1402
      %v1448 = vmax.f32 %v1318, %v1404
      %v1449 = vmax.f32 %v1323, %v1406
      %v1450 = vmax.f32 %v1328, %v1408
      %v1451 = vmax.f32 %v1333, %v1410
      %v1452 = vmax.f32 %v1338, %v1412
      %v1453 = vmax.f32 %v1343, %v1414
      %v1454 = vmax.f32 %v1348, %v1416
      %v1455 = vmax.f32 %v1353, %v1418
      %v1456 = vmax.f32 %v1358, %v1420
      %v1457 = vmax.f32 %v1363, %v1422
      %v1458 = vmax.f32 %v1368, %v1424
      %v1459 = vmax.f32 %v1373, %v1426
      %v1460 = vmax.f32 %v1378, %v1428
      %s1461 = scalar_lea.vmem [#allocation3], 24
      %1462 = vst.msk [vmem:[%s1461 + $0x1] sm:$0xff] %vm225, %v1445
      %1463 = vst.msk [vmem:[%s1461 + $0x9] sm:$0xff] %vm225, %v1446
      %1464 = vst.msk [vmem:[%s1461 + $0x19] sm:$0xff] %vm225, %v1447
      %1465 = vst.msk [vmem:[%s1461 + $0x21] sm:$0xff] %vm225, %v1448
      %1466 = vst.msk [vmem:[%s1461 + $0x31] sm:$0xff] %vm225, %v1449
      %1467 = vst.msk [vmem:[%s1461 + $0x39] sm:$0xff] %vm225, %v1450
      %1468 = vst.msk [vmem:[%s1461 + $0x49] sm:$0xff] %vm225, %v1451
      %1469 = vst.msk [vmem:[%s1461 + $0x51] sm:$0xff] %vm225, %v1452
      %1470 = vst.msk [vmem:[%s1461 + $0x61] sm:$0xff] %vm225, %v1453
      %1471 = vst.msk [vmem:[%s1461 + $0x69] sm:$0xff] %vm225, %v1454
      %1472 = vst.msk [vmem:[%s1461 + $0x79] sm:$0xff] %vm225, %v1455
      %1473 = vst.msk [vmem:[%s1461 + $0x81] sm:$0xff] %vm225, %v1456
      %1474 = vst.msk [vmem:[%s1461 + $0x91] sm:$0xff] %vm225, %v1457
      %1475 = vst.msk [vmem:[%s1461 + $0x99] sm:$0xff] %vm225, %v1458
      %1476 = vst.msk [vmem:[%s1461 + $0xa9] sm:$0xff] %vm225, %v1459
      %1477 = vst.msk [vmem:[%s1461 + $0xb1] sm:$0xff] %vm225, %v1460
      %s1478 = scalar_lea.vmem [#allocation2], 192
      %v1479 = vld [vmem:[%s1478] sm:$0xff]
      %v1480 = vld [vmem:[%s1478 + $0x8] sm:$0xff]
      %v1481 = vld [vmem:[%s1478 + $0x18] sm:$0xff]
      %v1482 = vld [vmem:[%s1478 + $0x20] sm:$0xff]
      %v1483 = vld [vmem:[%s1478 + $0x30] sm:$0xff]
      %v1484 = vld [vmem:[%s1478 + $0x38] sm:$0xff]
      %v1485 = vld [vmem:[%s1478 + $0x48] sm:$0xff]
      %v1486 = vld [vmem:[%s1478 + $0x50] sm:$0xff]
      %v1487 = vld [vmem:[%s1478 + $0x60] sm:$0xff]
      %v1488 = vld [vmem:[%s1478 + $0x68] sm:$0xff]
      %v1489 = vld [vmem:[%s1478 + $0x78] sm:$0xff]
      %v1490 = vld [vmem:[%s1478 + $0x80] sm:$0xff]
      %v1491 = vld [vmem:[%s1478 + $0x90] sm:$0xff]
      %v1492 = vld [vmem:[%s1478 + $0x98] sm:$0xff]
      %v1493 = vld [vmem:[%s1478 + $0xa8] sm:$0xff]
      %v1494 = vld [vmem:[%s1478 + $0xb0] sm:$0xff]
      %v1495 = vld [vmem:[%s1478 + $0x1] sm:$0xff]
      %v1496 = vld [vmem:[%s1478 + $0x9] sm:$0xff]
      %v1497 = vld [vmem:[%s1478 + $0x19] sm:$0xff]
      %v1498 = vld [vmem:[%s1478 + $0x21] sm:$0xff]
      %v1499 = vld [vmem:[%s1478 + $0x31] sm:$0xff]
      %v1500 = vld [vmem:[%s1478 + $0x39] sm:$0xff]
      %v1501 = vld [vmem:[%s1478 + $0x49] sm:$0xff]
      %v1502 = vld [vmem:[%s1478 + $0x51] sm:$0xff]
      %v1503 = vld [vmem:[%s1478 + $0x61] sm:$0xff]
      %v1504 = vld [vmem:[%s1478 + $0x69] sm:$0xff]
      %v1505 = vld [vmem:[%s1478 + $0x79] sm:$0xff]
      %v1506 = vld [vmem:[%s1478 + $0x81] sm:$0xff]
      %v1507 = vld [vmem:[%s1478 + $0x91] sm:$0xff]
      %v1508 = vld [vmem:[%s1478 + $0x99] sm:$0xff]
      %v1509 = vld [vmem:[%s1478 + $0xa9] sm:$0xff]
      %v1510 = vld [vmem:[%s1478 + $0xb1] sm:$0xff]
      %v1511 = vld [vmem:[%s1478 + $0x2] sm:$0xff]
      %v1512 = vld [vmem:[%s1478 + $0xa] sm:$0xff]
      %v1513 = vld [vmem:[%s1478 + $0x1a] sm:$0xff]
      %v1514 = vld [vmem:[%s1478 + $0x22] sm:$0xff]
      %v1515 = vld [vmem:[%s1478 + $0x32] sm:$0xff]
      %v1516 = vld [vmem:[%s1478 + $0x3a] sm:$0xff]
      %v1517 = vld [vmem:[%s1478 + $0x4a] sm:$0xff]
      %v1518 = vld [vmem:[%s1478 + $0x52] sm:$0xff]
      %v1519 = vld [vmem:[%s1478 + $0x62] sm:$0xff]
      %v1520 = vld [vmem:[%s1478 + $0x6a] sm:$0xff]
      %v1521 = vld [vmem:[%s1478 + $0x7a] sm:$0xff]
      %v1522 = vld [vmem:[%s1478 + $0x82] sm:$0xff]
      %v1523 = vld [vmem:[%s1478 + $0x92] sm:$0xff]
      %v1524 = vld [vmem:[%s1478 + $0x9a] sm:$0xff]
      %v1525 = vld [vmem:[%s1478 + $0xaa] sm:$0xff]
      %v1526 = vld [vmem:[%s1478 + $0xb2] sm:$0xff]
      %s1527 = scalar_lea.vmem [#allocation2], 216
      %v1528 = vld [vmem:[%s1527] sm:$0xff]
      %v1529 = vld [vmem:[%s1527 + $0x8] sm:$0xff]
      %v1530 = vld [vmem:[%s1527 + $0x18] sm:$0xff]
      %v1531 = vld [vmem:[%s1527 + $0x20] sm:$0xff]
      %v1532 = vld [vmem:[%s1527 + $0x30] sm:$0xff]
      %v1533 = vld [vmem:[%s1527 + $0x38] sm:$0xff]
      %v1534 = vld [vmem:[%s1527 + $0x48] sm:$0xff]
      %v1535 = vld [vmem:[%s1527 + $0x50] sm:$0xff]
      %v1536 = vld [vmem:[%s1527 + $0x60] sm:$0xff]
      %v1537 = vld [vmem:[%s1527 + $0x68] sm:$0xff]
      %v1538 = vld [vmem:[%s1527 + $0x78] sm:$0xff]
      %v1539 = vld [vmem:[%s1527 + $0x80] sm:$0xff]
      %v1540 = vld [vmem:[%s1527 + $0x90] sm:$0xff]
      %v1541 = vld [vmem:[%s1527 + $0x98] sm:$0xff]
      %v1542 = vld [vmem:[%s1527 + $0xa8] sm:$0xff]
      %v1543 = vld [vmem:[%s1527 + $0xb0] sm:$0xff]
      %v1544 = vld [vmem:[%s1527 + $0x1] sm:$0xff]
      %v1545 = vld [vmem:[%s1527 + $0x9] sm:$0xff]
      %v1546 = vld [vmem:[%s1527 + $0x19] sm:$0xff]
      %v1547 = vld [vmem:[%s1527 + $0x21] sm:$0xff]
      %v1548 = vld [vmem:[%s1527 + $0x31] sm:$0xff]
      %v1549 = vld [vmem:[%s1527 + $0x39] sm:$0xff]
      %v1550 = vld [vmem:[%s1527 + $0x49] sm:$0xff]
      %v1551 = vld [vmem:[%s1527 + $0x51] sm:$0xff]
      %v1552 = vld [vmem:[%s1527 + $0x61] sm:$0xff]
      %v1553 = vld [vmem:[%s1527 + $0x69] sm:$0xff]
      %v1554 = vld [vmem:[%s1527 + $0x79] sm:$0xff]
      %v1555 = vld [vmem:[%s1527 + $0x81] sm:$0xff]
      %v1556 = vld [vmem:[%s1527 + $0x91] sm:$0xff]
      %v1557 = vld [vmem:[%s1527 + $0x99] sm:$0xff]
      %v1558 = vld [vmem:[%s1527 + $0xa9] sm:$0xff]
      %v1559 = vld [vmem:[%s1527 + $0xb1] sm:$0xff]
      %v1560 = vld [vmem:[%s1527 + $0x2] sm:$0xff]
      %v1561 = vld [vmem:[%s1527 + $0xa] sm:$0xff]
      %v1562 = vld [vmem:[%s1527 + $0x1a] sm:$0xff]
      %v1563 = vld [vmem:[%s1527 + $0x22] sm:$0xff]
      %v1564 = vld [vmem:[%s1527 + $0x32] sm:$0xff]
      %v1565 = vld [vmem:[%s1527 + $0x3a] sm:$0xff]
      %v1566 = vld [vmem:[%s1527 + $0x4a] sm:$0xff]
      %v1567 = vld [vmem:[%s1527 + $0x52] sm:$0xff]
      %v1568 = vld [vmem:[%s1527 + $0x62] sm:$0xff]
      %v1569 = vld [vmem:[%s1527 + $0x6a] sm:$0xff]
      %v1570 = vld [vmem:[%s1527 + $0x7a] sm:$0xff]
      %v1571 = vld [vmem:[%s1527 + $0x82] sm:$0xff]
      %v1572 = vld [vmem:[%s1527 + $0x92] sm:$0xff]
      %v1573 = vld [vmem:[%s1527 + $0x9a] sm:$0xff]
      %v1574 = vld [vmem:[%s1527 + $0xaa] sm:$0xff]
      %v1575 = vld [vmem:[%s1527 + $0xb2] sm:$0xff]
      %s1576 = scalar_lea.vmem [#allocation2], 240
      %v1577 = vld [vmem:[%s1576] sm:$0xff]
      %v1578 = vld [vmem:[%s1576 + $0x8] sm:$0xff]
      %v1579 = vld [vmem:[%s1576 + $0x18] sm:$0xff]
      %v1580 = vld [vmem:[%s1576 + $0x20] sm:$0xff]
      %v1581 = vld [vmem:[%s1576 + $0x30] sm:$0xff]
      %v1582 = vld [vmem:[%s1576 + $0x38] sm:$0xff]
      %v1583 = vld [vmem:[%s1576 + $0x48] sm:$0xff]
      %v1584 = vld [vmem:[%s1576 + $0x50] sm:$0xff]
      %v1585 = vld [vmem:[%s1576 + $0x60] sm:$0xff]
      %v1586 = vld [vmem:[%s1576 + $0x68] sm:$0xff]
      %v1587 = vld [vmem:[%s1576 + $0x78] sm:$0xff]
      %v1588 = vld [vmem:[%s1576 + $0x80] sm:$0xff]
      %v1589 = vld [vmem:[%s1576 + $0x90] sm:$0xff]
      %v1590 = vld [vmem:[%s1576 + $0x98] sm:$0xff]
      %v1591 = vld [vmem:[%s1576 + $0xa8] sm:$0xff]
      %v1592 = vld [vmem:[%s1576 + $0xb0] sm:$0xff]
      %v1593 = vld [vmem:[%s1576 + $0x1] sm:$0xff]
      %v1594 = vld [vmem:[%s1576 + $0x9] sm:$0xff]
      %v1595 = vld [vmem:[%s1576 + $0x19] sm:$0xff]
      %v1596 = vld [vmem:[%s1576 + $0x21] sm:$0xff]
      %v1597 = vld [vmem:[%s1576 + $0x31] sm:$0xff]
      %v1598 = vld [vmem:[%s1576 + $0x39] sm:$0xff]
      %v1599 = vld [vmem:[%s1576 + $0x49] sm:$0xff]
      %v1600 = vld [vmem:[%s1576 + $0x51] sm:$0xff]
      %v1601 = vld [vmem:[%s1576 + $0x61] sm:$0xff]
      %v1602 = vld [vmem:[%s1576 + $0x69] sm:$0xff]
      %v1603 = vld [vmem:[%s1576 + $0x79] sm:$0xff]
      %v1604 = vld [vmem:[%s1576 + $0x81] sm:$0xff]
      %v1605 = vld [vmem:[%s1576 + $0x91] sm:$0xff]
      %v1606 = vld [vmem:[%s1576 + $0x99] sm:$0xff]
      %v1607 = vld [vmem:[%s1576 + $0xa9] sm:$0xff]
      %v1608 = vld [vmem:[%s1576 + $0xb1] sm:$0xff]
      %v1609 = vld [vmem:[%s1576 + $0x2] sm:$0xff]
      %v1610 = vld [vmem:[%s1576 + $0xa] sm:$0xff]
      %v1611 = vld [vmem:[%s1576 + $0x1a] sm:$0xff]
      %v1612 = vld [vmem:[%s1576 + $0x22] sm:$0xff]
      %v1613 = vld [vmem:[%s1576 + $0x32] sm:$0xff]
      %v1614 = vld [vmem:[%s1576 + $0x3a] sm:$0xff]
      %v1615 = vld [vmem:[%s1576 + $0x4a] sm:$0xff]
      %v1616 = vld [vmem:[%s1576 + $0x52] sm:$0xff]
      %v1617 = vld [vmem:[%s1576 + $0x62] sm:$0xff]
      %v1618 = vld [vmem:[%s1576 + $0x6a] sm:$0xff]
      %v1619 = vld [vmem:[%s1576 + $0x7a] sm:$0xff]
      %v1620 = vld [vmem:[%s1576 + $0x82] sm:$0xff]
      %v1621 = vld [vmem:[%s1576 + $0x92] sm:$0xff]
      %v1622 = vld [vmem:[%s1576 + $0x9a] sm:$0xff]
      %v1623 = vld [vmem:[%s1576 + $0xaa] sm:$0xff]
      %v1624 = vld [vmem:[%s1576 + $0xb2] sm:$0xff]
      %1641 = vrot.lane.b32.xlu0 %v1495, 4
      %v1642 = vpop.permute.xlu0 %1641
      %1643 = vrot.lane.b32.xlu0 %v1496, 4
      %v1644 = vpop.permute.xlu0 %1643
      %1645 = vrot.lane.b32.xlu0 %v1497, 4
      %v1646 = vpop.permute.xlu0 %1645
      %1647 = vrot.lane.b32.xlu0 %v1498, 4
      %v1648 = vpop.permute.xlu0 %1647
      %1649 = vrot.lane.b32.xlu0 %v1499, 4
      %v1650 = vpop.permute.xlu0 %1649
      %1651 = vrot.lane.b32.xlu0 %v1500, 4
      %v1652 = vpop.permute.xlu0 %1651
      %1653 = vrot.lane.b32.xlu0 %v1501, 4
      %v1654 = vpop.permute.xlu0 %1653
      %1655 = vrot.lane.b32.xlu0 %v1502, 4
      %v1656 = vpop.permute.xlu0 %1655
      %1657 = vrot.lane.b32.xlu0 %v1503, 4
      %v1658 = vpop.permute.xlu0 %1657
      %1659 = vrot.lane.b32.xlu0 %v1504, 4
      %v1660 = vpop.permute.xlu0 %1659
      %1661 = vrot.lane.b32.xlu0 %v1505, 4
      %v1662 = vpop.permute.xlu0 %1661
      %1663 = vrot.lane.b32.xlu0 %v1506, 4
      %v1664 = vpop.permute.xlu0 %1663
      %1665 = vrot.lane.b32.xlu0 %v1507, 4
      %v1666 = vpop.permute.xlu0 %1665
      %1667 = vrot.lane.b32.xlu0 %v1508, 4
      %v1668 = vpop.permute.xlu0 %1667
      %1669 = vrot.lane.b32.xlu0 %v1509, 4
      %v1670 = vpop.permute.xlu0 %1669
      %1671 = vrot.lane.b32.xlu0 %v1510, 4
      %v1672 = vpop.permute.xlu0 %1671
      %1705 = vrot.lane.b32.xlu0 %v1511, 8
      %v1706 = vpop.permute.xlu0 %1705
      %1707 = vrot.lane.b32.xlu0 %v1512, 8
      %v1708 = vpop.permute.xlu0 %1707
      %1709 = vrot.lane.b32.xlu0 %v1513, 8
      %v1710 = vpop.permute.xlu0 %1709
      %1711 = vrot.lane.b32.xlu0 %v1514, 8
      %v1712 = vpop.permute.xlu0 %1711
      %1713 = vrot.lane.b32.xlu0 %v1515, 8
      %v1714 = vpop.permute.xlu0 %1713
      %1715 = vrot.lane.b32.xlu0 %v1516, 8
      %v1716 = vpop.permute.xlu0 %1715
      %1717 = vrot.lane.b32.xlu0 %v1517, 8
      %v1718 = vpop.permute.xlu0 %1717
      %1719 = vrot.lane.b32.xlu0 %v1518, 8
      %v1720 = vpop.permute.xlu0 %1719
      %1721 = vrot.lane.b32.xlu0 %v1519, 8
      %v1722 = vpop.permute.xlu0 %1721
      %1723 = vrot.lane.b32.xlu0 %v1520, 8
      %v1724 = vpop.permute.xlu0 %1723
      %1725 = vrot.lane.b32.xlu0 %v1521, 8
      %v1726 = vpop.permute.xlu0 %1725
      %1727 = vrot.lane.b32.xlu0 %v1522, 8
      %v1728 = vpop.permute.xlu0 %1727
      %1729 = vrot.lane.b32.xlu0 %v1523, 8
      %v1730 = vpop.permute.xlu0 %1729
      %1731 = vrot.lane.b32.xlu0 %v1524, 8
      %v1732 = vpop.permute.xlu0 %1731
      %1733 = vrot.lane.b32.xlu0 %v1525, 8
      %v1734 = vpop.permute.xlu0 %1733
      %1735 = vrot.lane.b32.xlu0 %v1526, 8
      %v1736 = vpop.permute.xlu0 %1735
      %1769 = vrot.lane.b32.xlu0 %v1528, 12
      %v1770 = vpop.permute.xlu0 %1769
      %1771 = vrot.lane.b32.xlu0 %v1529, 12
      %v1772 = vpop.permute.xlu0 %1771
      %1773 = vrot.lane.b32.xlu0 %v1530, 12
      %v1774 = vpop.permute.xlu0 %1773
      %1775 = vrot.lane.b32.xlu0 %v1531, 12
      %v1776 = vpop.permute.xlu0 %1775
      %1777 = vrot.lane.b32.xlu0 %v1532, 12
      %v1778 = vpop.permute.xlu0 %1777
      %1779 = vrot.lane.b32.xlu0 %v1533, 12
      %v1780 = vpop.permute.xlu0 %1779
      %1781 = vrot.lane.b32.xlu0 %v1534, 12
      %v1782 = vpop.permute.xlu0 %1781
      %1783 = vrot.lane.b32.xlu0 %v1535, 12
      %v1784 = vpop.permute.xlu0 %1783
      %1785 = vrot.lane.b32.xlu0 %v1536, 12
      %v1786 = vpop.permute.xlu0 %1785
      %1787 = vrot.lane.b32.xlu0 %v1537, 12
      %v1788 = vpop.permute.xlu0 %1787
      %1789 = vrot.lane.b32.xlu0 %v1538, 12
      %v1790 = vpop.permute.xlu0 %1789
      %1791 = vrot.lane.b32.xlu0 %v1539, 12
      %v1792 = vpop.permute.xlu0 %1791
      %1793 = vrot.lane.b32.xlu0 %v1540, 12
      %v1794 = vpop.permute.xlu0 %1793
      %1795 = vrot.lane.b32.xlu0 %v1541, 12
      %v1796 = vpop.permute.xlu0 %1795
      %1797 = vrot.lane.b32.xlu0 %v1542, 12
      %v1798 = vpop.permute.xlu0 %1797
      %1799 = vrot.lane.b32.xlu0 %v1543, 12
      %v1800 = vpop.permute.xlu0 %1799
      %1833 = vrot.lane.b32.xlu0 %v1544, 16
      %v1834 = vpop.permute.xlu0 %1833
      %1835 = vrot.lane.b32.xlu0 %v1545, 16
      %v1836 = vpop.permute.xlu0 %1835
      %1837 = vrot.lane.b32.xlu0 %v1546, 16
      %v1838 = vpop.permute.xlu0 %1837
      %1839 = vrot.lane.b32.xlu0 %v1547, 16
      %v1840 = vpop.permute.xlu0 %1839
      %1841 = vrot.lane.b32.xlu0 %v1548, 16
      %v1842 = vpop.permute.xlu0 %1841
      %1843 = vrot.lane.b32.xlu0 %v1549, 16
      %v1844 = vpop.permute.xlu0 %1843
      %1845 = vrot.lane.b32.xlu0 %v1550, 16
      %v1846 = vpop.permute.xlu0 %1845
      %1847 = vrot.lane.b32.xlu0 %v1551, 16
      %v1848 = vpop.permute.xlu0 %1847
      %1849 = vrot.lane.b32.xlu0 %v1552, 16
      %v1850 = vpop.permute.xlu0 %1849
      %1851 = vrot.lane.b32.xlu0 %v1553, 16
      %v1852 = vpop.permute.xlu0 %1851
      %1853 = vrot.lane.b32.xlu0 %v1554, 16
      %v1854 = vpop.permute.xlu0 %1853
      %1855 = vrot.lane.b32.xlu0 %v1555, 16
      %v1856 = vpop.permute.xlu0 %1855
      %1857 = vrot.lane.b32.xlu0 %v1556, 16
      %v1858 = vpop.permute.xlu0 %1857
      %1859 = vrot.lane.b32.xlu0 %v1557, 16
      %v1860 = vpop.permute.xlu0 %1859
      %1861 = vrot.lane.b32.xlu0 %v1558, 16
      %v1862 = vpop.permute.xlu0 %1861
      %1863 = vrot.lane.b32.xlu0 %v1559, 16
      %v1864 = vpop.permute.xlu0 %1863
      %1897 = vrot.lane.b32.xlu0 %v1560, 20
      %v1898 = vpop.permute.xlu0 %1897
      %1899 = vrot.lane.b32.xlu0 %v1561, 20
      %v1900 = vpop.permute.xlu0 %1899
      %1901 = vrot.lane.b32.xlu0 %v1562, 20
      %v1902 = vpop.permute.xlu0 %1901
      %1903 = vrot.lane.b32.xlu0 %v1563, 20
      %v1904 = vpop.permute.xlu0 %1903
      %1905 = vrot.lane.b32.xlu0 %v1564, 20
      %v1906 = vpop.permute.xlu0 %1905
      %1907 = vrot.lane.b32.xlu0 %v1565, 20
      %v1908 = vpop.permute.xlu0 %1907
      %1909 = vrot.lane.b32.xlu0 %v1566, 20
      %v1910 = vpop.permute.xlu0 %1909
      %1911 = vrot.lane.b32.xlu0 %v1567, 20
      %v1912 = vpop.permute.xlu0 %1911
      %1913 = vrot.lane.b32.xlu0 %v1568, 20
      %v1914 = vpop.permute.xlu0 %1913
      %1915 = vrot.lane.b32.xlu0 %v1569, 20
      %v1916 = vpop.permute.xlu0 %1915
      %1917 = vrot.lane.b32.xlu0 %v1570, 20
      %v1918 = vpop.permute.xlu0 %1917
      %1919 = vrot.lane.b32.xlu0 %v1571, 20
      %v1920 = vpop.permute.xlu0 %1919
      %1921 = vrot.lane.b32.xlu0 %v1572, 20
      %v1922 = vpop.permute.xlu0 %1921
      %1923 = vrot.lane.b32.xlu0 %v1573, 20
      %v1924 = vpop.permute.xlu0 %1923
      %1925 = vrot.lane.b32.xlu0 %v1574, 20
      %v1926 = vpop.permute.xlu0 %1925
      %1927 = vrot.lane.b32.xlu0 %v1575, 20
      %v1928 = vpop.permute.xlu0 %1927
      %1961 = vrot.lane.b32.xlu0 %v1577, 24
      %v1962 = vpop.permute.xlu0 %1961
      %1963 = vrot.lane.b32.xlu0 %v1578, 24
      %v1964 = vpop.permute.xlu0 %1963
      %1965 = vrot.lane.b32.xlu0 %v1579, 24
      %v1966 = vpop.permute.xlu0 %1965
      %1967 = vrot.lane.b32.xlu0 %v1580, 24
      %v1968 = vpop.permute.xlu0 %1967
      %1969 = vrot.lane.b32.xlu0 %v1581, 24
      %v1970 = vpop.permute.xlu0 %1969
      %1971 = vrot.lane.b32.xlu0 %v1582, 24
      %v1972 = vpop.permute.xlu0 %1971
      %1973 = vrot.lane.b32.xlu0 %v1583, 24
      %v1974 = vpop.permute.xlu0 %1973
      %1975 = vrot.lane.b32.xlu0 %v1584, 24
      %v1976 = vpop.permute.xlu0 %1975
      %1977 = vrot.lane.b32.xlu0 %v1585, 24
      %v1978 = vpop.permute.xlu0 %1977
      %1979 = vrot.lane.b32.xlu0 %v1586, 24
      %v1980 = vpop.permute.xlu0 %1979
      %1981 = vrot.lane.b32.xlu0 %v1587, 24
      %v1982 = vpop.permute.xlu0 %1981
      %1983 = vrot.lane.b32.xlu0 %v1588, 24
      %v1984 = vpop.permute.xlu0 %1983
      %1985 = vrot.lane.b32.xlu0 %v1589, 24
      %v1986 = vpop.permute.xlu0 %1985
      %1987 = vrot.lane.b32.xlu0 %v1590, 24
      %v1988 = vpop.permute.xlu0 %1987
      %1989 = vrot.lane.b32.xlu0 %v1591, 24
      %v1990 = vpop.permute.xlu0 %1989
      %1991 = vrot.lane.b32.xlu0 %v1592, 24
      %v1992 = vpop.permute.xlu0 %1991
      %2025 = vrot.lane.b32.xlu0 %v1593, 28
      %v2026 = vpop.permute.xlu0 %2025
      %2027 = vrot.lane.b32.xlu0 %v1594, 28
      %v2028 = vpop.permute.xlu0 %2027
      %2029 = vrot.lane.b32.xlu0 %v1595, 28
      %v2030 = vpop.permute.xlu0 %2029
      %2031 = vrot.lane.b32.xlu0 %v1596, 28
      %v2032 = vpop.permute.xlu0 %2031
      %2033 = vrot.lane.b32.xlu0 %v1597, 28
      %v2034 = vpop.permute.xlu0 %2033
      %2035 = vrot.lane.b32.xlu0 %v1598, 28
      %v2036 = vpop.permute.xlu0 %2035
      %2037 = vrot.lane.b32.xlu0 %v1599, 28
      %v2038 = vpop.permute.xlu0 %2037
      %2039 = vrot.lane.b32.xlu0 %v1600, 28
      %v2040 = vpop.permute.xlu0 %2039
      %2041 = vrot.lane.b32.xlu0 %v1601, 28
      %v2042 = vpop.permute.xlu0 %2041
      %2043 = vrot.lane.b32.xlu0 %v1602, 28
      %v2044 = vpop.permute.xlu0 %2043
      %2045 = vrot.lane.b32.xlu0 %v1603, 28
      %v2046 = vpop.permute.xlu0 %2045
      %2047 = vrot.lane.b32.xlu0 %v1604, 28
      %v2048 = vpop.permute.xlu0 %2047
      %2049 = vrot.lane.b32.xlu0 %v1605, 28
      %v2050 = vpop.permute.xlu0 %2049
      %2051 = vrot.lane.b32.xlu0 %v1606, 28
      %v2052 = vpop.permute.xlu0 %2051
      %2053 = vrot.lane.b32.xlu0 %v1607, 28
      %v2054 = vpop.permute.xlu0 %2053
      %2055 = vrot.lane.b32.xlu0 %v1608, 28
      %v2056 = vpop.permute.xlu0 %2055
      %2089 = vrot.lane.b32.xlu0 %v1609, 32
      %v2090 = vpop.permute.xlu0 %2089
      %2091 = vrot.lane.b32.xlu0 %v1610, 32
      %v2092 = vpop.permute.xlu0 %2091
      %2093 = vrot.lane.b32.xlu0 %v1611, 32
      %v2094 = vpop.permute.xlu0 %2093
      %2095 = vrot.lane.b32.xlu0 %v1612, 32
      %v2096 = vpop.permute.xlu0 %2095
      %2097 = vrot.lane.b32.xlu0 %v1613, 32
      %v2098 = vpop.permute.xlu0 %2097
      %2099 = vrot.lane.b32.xlu0 %v1614, 32
      %v2100 = vpop.permute.xlu0 %2099
      %2101 = vrot.lane.b32.xlu0 %v1615, 32
      %v2102 = vpop.permute.xlu0 %2101
      %2103 = vrot.lane.b32.xlu0 %v1616, 32
      %v2104 = vpop.permute.xlu0 %2103
      %2105 = vrot.lane.b32.xlu0 %v1617, 32
      %v2106 = vpop.permute.xlu0 %2105
      %2107 = vrot.lane.b32.xlu0 %v1618, 32
      %v2108 = vpop.permute.xlu0 %2107
      %2109 = vrot.lane.b32.xlu0 %v1619, 32
      %v2110 = vpop.permute.xlu0 %2109
      %2111 = vrot.lane.b32.xlu0 %v1620, 32
      %v2112 = vpop.permute.xlu0 %2111
      %2113 = vrot.lane.b32.xlu0 %v1621, 32
      %v2114 = vpop.permute.xlu0 %2113
      %2115 = vrot.lane.b32.xlu0 %v1622, 32
      %v2116 = vpop.permute.xlu0 %2115
      %2117 = vrot.lane.b32.xlu0 %v1623, 32
      %v2118 = vpop.permute.xlu0 %2117
      %2119 = vrot.lane.b32.xlu0 %v1624, 32
      %v2120 = vpop.permute.xlu0 %2119
      %v2137 = vsel %vm225, %v1479, %v1642
      %v2138 = vsel %vm225, %v1480, %v1644
      %v2139 = vsel %vm225, %v1481, %v1646
      %v2140 = vsel %vm225, %v1482, %v1648
      %v2141 = vsel %vm225, %v1483, %v1650
      %v2142 = vsel %vm225, %v1484, %v1652
      %v2143 = vsel %vm225, %v1485, %v1654
      %v2144 = vsel %vm225, %v1486, %v1656
      %v2145 = vsel %vm225, %v1487, %v1658
      %v2146 = vsel %vm225, %v1488, %v1660
      %v2147 = vsel %vm225, %v1489, %v1662
      %v2148 = vsel %vm225, %v1490, %v1664
      %v2149 = vsel %vm225, %v1491, %v1666
      %v2150 = vsel %vm225, %v1492, %v1668
      %v2151 = vsel %vm225, %v1493, %v1670
      %v2152 = vsel %vm225, %v1494, %v1672
      %v2153 = vsel %vm1052, %v2137, %v1706
      %v2154 = vsel %vm1052, %v2138, %v1708
      %v2155 = vsel %vm1052, %v2139, %v1710
      %v2156 = vsel %vm1052, %v2140, %v1712
      %v2157 = vsel %vm1052, %v2141, %v1714
      %v2158 = vsel %vm1052, %v2142, %v1716
      %v2159 = vsel %vm1052, %v2143, %v1718
      %v2160 = vsel %vm1052, %v2144, %v1720
      %v2161 = vsel %vm1052, %v2145, %v1722
      %v2162 = vsel %vm1052, %v2146, %v1724
      %v2163 = vsel %vm1052, %v2147, %v1726
      %v2164 = vsel %vm1052, %v2148, %v1728
      %v2165 = vsel %vm1052, %v2149, %v1730
      %v2166 = vsel %vm1052, %v2150, %v1732
      %v2167 = vsel %vm1052, %v2151, %v1734
      %v2168 = vsel %vm1052, %v2152, %v1736
      %v2169 = vsel %vm1069, %v2153, %v1770
      %v2170 = vsel %vm1069, %v2154, %v1772
      %v2171 = vsel %vm1069, %v2155, %v1774
      %v2172 = vsel %vm1069, %v2156, %v1776
      %v2173 = vsel %vm1069, %v2157, %v1778
      %v2174 = vsel %vm1069, %v2158, %v1780
      %v2175 = vsel %vm1069, %v2159, %v1782
      %v2176 = vsel %vm1069, %v2160, %v1784
      %v2177 = vsel %vm1069, %v2161, %v1786
      %v2178 = vsel %vm1069, %v2162, %v1788
      %v2179 = vsel %vm1069, %v2163, %v1790
      %v2180 = vsel %vm1069, %v2164, %v1792
      %v2181 = vsel %vm1069, %v2165, %v1794
      %v2182 = vsel %vm1069, %v2166, %v1796
      %v2183 = vsel %vm1069, %v2167, %v1798
      %v2184 = vsel %vm1069, %v2168, %v1800
      %v2185 = vsel %vm1086, %v2169, %v1834
      %v2186 = vsel %vm1086, %v2170, %v1836
      %v2187 = vsel %vm1086, %v2171, %v1838
      %v2188 = vsel %vm1086, %v2172, %v1840
      %v2189 = vsel %vm1086, %v2173, %v1842
      %v2190 = vsel %vm1086, %v2174, %v1844
      %v2191 = vsel %vm1086, %v2175, %v1846
      %v2192 = vsel %vm1086, %v2176, %v1848
      %v2193 = vsel %vm1086, %v2177, %v1850
      %v2194 = vsel %vm1086, %v2178, %v1852
      %v2195 = vsel %vm1086, %v2179, %v1854
      %v2196 = vsel %vm1086, %v2180, %v1856
      %v2197 = vsel %vm1086, %v2181, %v1858
      %v2198 = vsel %vm1086, %v2182, %v1860
      %v2199 = vsel %vm1086, %v2183, %v1862
      %v2200 = vsel %vm1086, %v2184, %v1864
      %v2201 = vsel %vm1103, %v2185, %v1898
      %v2202 = vsel %vm1103, %v2186, %v1900
      %v2203 = vsel %vm1103, %v2187, %v1902
      %v2204 = vsel %vm1103, %v2188, %v1904
      %v2205 = vsel %vm1103, %v2189, %v1906
      %v2206 = vsel %vm1103, %v2190, %v1908
      %v2207 = vsel %vm1103, %v2191, %v1910
      %v2208 = vsel %vm1103, %v2192, %v1912
      %v2209 = vsel %vm1103, %v2193, %v1914
      %v2210 = vsel %vm1103, %v2194, %v1916
      %v2211 = vsel %vm1103, %v2195, %v1918
      %v2212 = vsel %vm1103, %v2196, %v1920
      %v2213 = vsel %vm1103, %v2197, %v1922
      %v2214 = vsel %vm1103, %v2198, %v1924
      %v2215 = vsel %vm1103, %v2199, %v1926
      %v2216 = vsel %vm1103, %v2200, %v1928
      %v2217 = vsel %vm1120, %v2201, %v1962
      %v2218 = vsel %vm1120, %v2202, %v1964
      %v2219 = vsel %vm1120, %v2203, %v1966
      %v2220 = vsel %vm1120, %v2204, %v1968
      %v2221 = vsel %vm1120, %v2205, %v1970
      %v2222 = vsel %vm1120, %v2206, %v1972
      %v2223 = vsel %vm1120, %v2207, %v1974
      %v2224 = vsel %vm1120, %v2208, %v1976
      %v2225 = vsel %vm1120, %v2209, %v1978
      %v2226 = vsel %vm1120, %v2210, %v1980
      %v2227 = vsel %vm1120, %v2211, %v1982
      %v2228 = vsel %vm1120, %v2212, %v1984
      %v2229 = vsel %vm1120, %v2213, %v1986
      %v2230 = vsel %vm1120, %v2214, %v1988
      %v2231 = vsel %vm1120, %v2215, %v1990
      %v2232 = vsel %vm1120, %v2216, %v1992
      %v2233 = vsel %vm1137, %v2217, %v2026
      %v2234 = vsel %vm1137, %v2218, %v2028
      %v2235 = vsel %vm1137, %v2219, %v2030
      %v2236 = vsel %vm1137, %v2220, %v2032
      %v2237 = vsel %vm1137, %v2221, %v2034
      %v2238 = vsel %vm1137, %v2222, %v2036
      %v2239 = vsel %vm1137, %v2223, %v2038
      %v2240 = vsel %vm1137, %v2224, %v2040
      %v2241 = vsel %vm1137, %v2225, %v2042
      %v2242 = vsel %vm1137, %v2226, %v2044
      %v2243 = vsel %vm1137, %v2227, %v2046
      %v2244 = vsel %vm1137, %v2228, %v2048
      %v2245 = vsel %vm1137, %v2229, %v2050
      %v2246 = vsel %vm1137, %v2230, %v2052
      %v2247 = vsel %vm1137, %v2231, %v2054
      %v2248 = vsel %vm1137, %v2232, %v2056
      %v2249 = vsel %vm1154, %v2233, %v2090
      %v2250 = vsel %vm1154, %v2234, %v2092
      %v2251 = vsel %vm1154, %v2235, %v2094
      %v2252 = vsel %vm1154, %v2236, %v2096
      %v2253 = vsel %vm1154, %v2237, %v2098
      %v2254 = vsel %vm1154, %v2238, %v2100
      %v2255 = vsel %vm1154, %v2239, %v2102
      %v2256 = vsel %vm1154, %v2240, %v2104
      %v2257 = vsel %vm1154, %v2241, %v2106
      %v2258 = vsel %vm1154, %v2242, %v2108
      %v2259 = vsel %vm1154, %v2243, %v2110
      %v2260 = vsel %vm1154, %v2244, %v2112
      %v2261 = vsel %vm1154, %v2245, %v2114
      %v2262 = vsel %vm1154, %v2246, %v2116
      %v2263 = vsel %vm1154, %v2247, %v2118
      %v2264 = vsel %vm1154, %v2248, %v2120
      %v2265 = vld [vmem:[%s1] sm:$0xff]
      %v2266 = vld [vmem:[%s1 + $0x8] sm:$0xff]
      %v2267 = vld [vmem:[%s1 + $0x10] sm:$0xff]
      %v2268 = vld [vmem:[%s1 + $0x18] sm:$0xff]
      %v2269 = vld [vmem:[%s1 + $0x20] sm:$0xf]
      %v2270 = vld [vmem:[%s2] sm:$0x1]
      %v2272 = vlaneseq
      %v2273 = vshrl.u32 %v2272, 7
      %v2274 = vsub.s32 0, %v2273
      %v2275 = vrot.slane %v2270, %v2274
      %v2278 = vsel %vm1183, %v2249, 0
      %v2281 = vsel %vm1183, %v2250, 0
      %v2284 = vsel %vm1183, %v2251, 0
      %v2287 = vsel %vm1183, %v2252, 0
      %v2290 = vsel %vm1183, %v2253, 0
      %v2293 = vsel %vm1183, %v2254, 0
      %v2296 = vsel %vm1183, %v2255, 0
      %v2299 = vsel %vm1183, %v2256, 0
      %v2302 = vsel %vm1183, %v2257, 0
      %v2305 = vsel %vm1183, %v2258, 0
      %v2308 = vsel %vm1183, %v2259, 0
      %v2311 = vsel %vm1183, %v2260, 0
      %v2314 = vsel %vm1183, %v2261, 0
      %v2317 = vsel %vm1183, %v2262, 0
      %v2320 = vsel %vm1183, %v2263, 0
      %v2323 = vsel %vm1183, %v2264, 0
      %v2326 = vsel %vm1232, %v2269, 0
      %2328 = vmatprep.subr.mxu0 0.0
      %2329 = vmatpush1.msra.mxu0 %v2265
      %2330 = vmatprep.subr.mxu0 0.0
      %2331 = vmatpush1.msra.mxu0 %v2266
      %2332 = vmatprep.subr.mxu0 0.0
      %2333 = vmatpush1.msra.mxu0 %v2267
      %2334 = vmatprep.subr.mxu0 0.0
      %2335 = vmatpush1.msra.mxu0 %v2268
      %2336 = vmatprep.subr.mxu0 0.0
      %2337 = vmatpush1.msra.mxu0 %v2326
      %2338 = vmatprep.subr.mxu0 0.0
      %2339 = vmatpush1.msra.mxu0 0.0
      %2340 = vmatprep.subr.mxu0 0.0
      %2341 = vmatpush1.msra.mxu0 0.0
      %2342 = vmatprep.subr.mxu0 0.0
      %2343 = vmatpush1.msra.mxu0 0.0
      %2344 = vmatprep.subr.mxu0 0.0
      %2345 = vmatpush1.msra.mxu0 0.0
      %2346 = vmatprep.subr.mxu0 0.0
      %2347 = vmatpush1.msra.mxu0 0.0
      %2348 = vmatprep.subr.mxu0 0.0
      %2349 = vmatpush1.msra.mxu0 0.0
      %2350 = vmatprep.subr.mxu0 0.0
      %2351 = vmatpush1.msra.mxu0 0.0
      %2352 = vmatprep.subr.mxu0 0.0
      %2353 = vmatpush1.msra.mxu0 0.0
      %2354 = vmatprep.subr.mxu0 0.0
      %2355 = vmatpush1.msra.mxu0 0.0
      %2356 = vmatprep.subr.mxu0 0.0
      %2357 = vmatpush1.msra.mxu0 0.0
      %2358 = vmatprep.subr.mxu0 0.0
      %2359 = vmatpush1.msra.mxu0 0.0
      %2360 = vmatprep.subr.mxu0 0.0
      %2361 = vmatpush1.msra.mxu0 0.0
      %2362 = vmatprep.subr.mxu0 0.0
      %2363 = vmatpush1.msra.mxu0 0.0
      %2364 = vmatprep.subr.mxu0 0.0
      %2365 = vmatpush1.msra.mxu0 0.0
      %2366 = vmatprep.subr.mxu0 0.0
      %2367 = vmatpush1.msra.mxu0 0.0
      %2368 = vmatprep.subr.mxu0 0.0
      %2369 = vmatpush1.msra.mxu0 0.0
      %2370 = vmatprep.subr.mxu0 0.0
      %2371 = vmatpush1.msra.mxu0 0.0
      %2372 = vmatprep.subr.mxu0 0.0
      %2373 = vmatpush1.msra.mxu0 0.0
      %2374 = vmatprep.subr.mxu0 0.0
      %2375 = vmatpush1.msra.mxu0 0.0
      %2376 = vmatprep.subr.mxu0 0.0
      %2377 = vmatpush1.msra.mxu0 0.0
      %2378 = vmatprep.subr.mxu0 0.0
      %2379 = vmatpush1.msra.mxu0 0.0
      %2380 = vmatprep.subr.mxu0 0.0
      %2381 = vmatpush1.msra.mxu0 0.0
      %2382 = vmatprep.subr.mxu0 0.0
      %2383 = vmatpush1.msra.mxu0 0.0
      %2384 = vmatprep.subr.mxu0 0.0
      %2385 = vmatpush1.msra.mxu0 0.0
      %2386 = vmatprep.subr.mxu0 0.0
      %2387 = vmatpush1.msra.mxu0 0.0
      %2388 = vmatprep.subr.mxu0 0.0
      %2389 = vmatpush1.msra.mxu0 0.0
      %2390 = vmatprep.subr.mxu0 0.0
      %2391 = vmatpush1.msra.mxu0 0.0
      %2392 = vmatprep.mubr.f32.mxu0 0.0
      %2393 = vmatmul.mubr.f32.gmra.mrb[0].mxu0 %v2278
      %v2394 = vpop.f32.mrb[0].mxu0
      %v2395 = vadd.f32 %v2275, %v2394
      %v2396 = vpop.f32.mrb[0].mxu0
      %2397 = vmatprep.mubr.f32.mxu0 0.0
      %2398 = vmatmul.mubr.f32.gmra.mrb[0].mxu0 %v2281
      %v2399 = vpop.f32.mrb[0].mxu0
      %v2400 = vadd.f32 %v2275, %v2399
      %v2401 = vpop.f32.mrb[0].mxu0
      %2402 = vmatprep.mubr.f32.mxu0 0.0
      %2403 = vmatmul.mubr.f32.gmra.mrb[0].mxu0 %v2284
      %v2404 = vpop.f32.mrb[0].mxu0
      %v2405 = vadd.f32 %v2275, %v2404
      %v2406 = vpop.f32.mrb[0].mxu0
      %2407 = vmatprep.mubr.f32.mxu0 0.0
      %2408 = vmatmul.mubr.f32.gmra.mrb[0].mxu0 %v2287
      %v2409 = vpop.f32.mrb[0].mxu0
      %v2410 = vadd.f32 %v2275, %v2409
      %v2411 = vpop.f32.mrb[0].mxu0
      %2412 = vmatprep.mubr.f32.mxu0 0.0
      %2413 = vmatmul.mubr.f32.gmra.mrb[0].mxu0 %v2290
      %v2414 = vpop.f32.mrb[0].mxu0
      %v2415 = vadd.f32 %v2275, %v2414
      %v2416 = vpop.f32.mrb[0].mxu0
      %2417 = vmatprep.mubr.f32.mxu0 0.0
      %2418 = vmatmul.mubr.f32.gmra.mrb[0].mxu0 %v2293
      %v2419 = vpop.f32.mrb[0].mxu0
      %v2420 = vadd.f32 %v2275, %v2419
      %v2421 = vpop.f32.mrb[0].mxu0
      %2422 = vmatprep.mubr.f32.mxu0 0.0
      %2423 = vmatmul.mubr.f32.gmra.mrb[0].mxu0 %v2296
      %v2424 = vpop.f32.mrb[0].mxu0
      %v2425 = vadd.f32 %v2275, %v2424
      %v2426 = vpop.f32.mrb[0].mxu0
      %2427 = vmatprep.mubr.f32.mxu0 0.0
      %2428 = vmatmul.mubr.f32.gmra.mrb[0].mxu0 %v2299
      %v2429 = vpop.f32.mrb[0].mxu0
      %v2430 = vadd.f32 %v2275, %v2429
      %v2431 = vpop.f32.mrb[0].mxu0
      %2432 = vmatprep.mubr.f32.mxu0 0.0
      %2433 = vmatmul.mubr.f32.gmra.mrb[0].mxu0 %v2302
      %v2434 = vpop.f32.mrb[0].mxu0
      %v2435 = vadd.f32 %v2275, %v2434
      %v2436 = vpop.f32.mrb[0].mxu0
      %2437 = vmatprep.mubr.f32.mxu0 0.0
      %2438 = vmatmul.mubr.f32.gmra.mrb[0].mxu0 %v2305
      %v2439 = vpop.f32.mrb[0].mxu0
      %v2440 = vadd.f32 %v2275, %v2439
      %v2441 = vpop.f32.mrb[0].mxu0
      %2442 = vmatprep.mubr.f32.mxu0 0.0
      %2443 = vmatmul.mubr.f32.gmra.mrb[0].mxu0 %v2308
      %v2444 = vpop.f32.mrb[0].mxu0
      %v2445 = vadd.f32 %v2275, %v2444
      %v2446 = vpop.f32.mrb[0].mxu0
      %2447 = vmatprep.mubr.f32.mxu0 0.0
      %2448 = vmatmul.mubr.f32.gmra.mrb[0].mxu0 %v2311
      %v2449 = vpop.f32.mrb[0].mxu0
      %v2450 = vadd.f32 %v2275, %v2449
      %v2451 = vpop.f32.mrb[0].mxu0
      %2452 = vmatprep.mubr.f32.mxu0 0.0
      %2453 = vmatmul.mubr.f32.gmra.mrb[0].mxu0 %v2314
      %v2454 = vpop.f32.mrb[0].mxu0
      %v2455 = vadd.f32 %v2275, %v2454
      %v2456 = vpop.f32.mrb[0].mxu0
      %2457 = vmatprep.mubr.f32.mxu0 0.0
      %2458 = vmatmul.mubr.f32.gmra.mrb[0].mxu0 %v2317
      %v2459 = vpop.f32.mrb[0].mxu0
      %v2460 = vadd.f32 %v2275, %v2459
      %v2461 = vpop.f32.mrb[0].mxu0
      %2462 = vmatprep.mubr.f32.mxu0 0.0
      %2463 = vmatmul.mubr.f32.gmra.mrb[0].mxu0 %v2320
      %v2464 = vpop.f32.mrb[0].mxu0
      %v2465 = vadd.f32 %v2275, %v2464
      %v2466 = vpop.f32.mrb[0].mxu0
      %2467 = vmatprep.mubr.f32.mxu0 0.0
      %2468 = vmatmul.mubr.f32.gmra.mrb[0].mxu0 %v2323
      %v2469 = vpop.f32.mrb[0].mxu0
      %v2470 = vadd.f32 %v2275, %v2469
      %v2471 = vpop.f32.mrb[0].mxu0
      %2472 = vdwg.mxu0
      %2489 = vrot.lane.b32.xlu0 %v2395, 124
      %v2490 = vpop.permute.xlu0 %2489
      %2491 = vrot.lane.b32.xlu0 %v2400, 124
      %v2492 = vpop.permute.xlu0 %2491
      %2493 = vrot.lane.b32.xlu0 %v2405, 124
      %v2494 = vpop.permute.xlu0 %2493
      %2495 = vrot.lane.b32.xlu0 %v2410, 124
      %v2496 = vpop.permute.xlu0 %2495
      %2497 = vrot.lane.b32.xlu0 %v2415, 124
      %v2498 = vpop.permute.xlu0 %2497
      %2499 = vrot.lane.b32.xlu0 %v2420, 124
      %v2500 = vpop.permute.xlu0 %2499
      %2501 = vrot.lane.b32.xlu0 %v2425, 124
      %v2502 = vpop.permute.xlu0 %2501
      %2503 = vrot.lane.b32.xlu0 %v2430, 124
      %v2504 = vpop.permute.xlu0 %2503
      %2505 = vrot.lane.b32.xlu0 %v2435, 124
      %v2506 = vpop.permute.xlu0 %2505
      %2507 = vrot.lane.b32.xlu0 %v2440, 124
      %v2508 = vpop.permute.xlu0 %2507
      %2509 = vrot.lane.b32.xlu0 %v2445, 124
      %v2510 = vpop.permute.xlu0 %2509
      %2511 = vrot.lane.b32.xlu0 %v2450, 124
      %v2512 = vpop.permute.xlu0 %2511
      %2513 = vrot.lane.b32.xlu0 %v2455, 124
      %v2514 = vpop.permute.xlu0 %2513
      %2515 = vrot.lane.b32.xlu0 %v2460, 124
      %v2516 = vpop.permute.xlu0 %2515
      %2517 = vrot.lane.b32.xlu0 %v2465, 124
      %v2518 = vpop.permute.xlu0 %2517
      %2519 = vrot.lane.b32.xlu0 %v2470, 124
      %v2520 = vpop.permute.xlu0 %2519
      %v2537 = vmax.f32 %v2395, %v2490
      %v2538 = vmax.f32 %v2400, %v2492
      %v2539 = vmax.f32 %v2405, %v2494
      %v2540 = vmax.f32 %v2410, %v2496
      %v2541 = vmax.f32 %v2415, %v2498
      %v2542 = vmax.f32 %v2420, %v2500
      %v2543 = vmax.f32 %v2425, %v2502
      %v2544 = vmax.f32 %v2430, %v2504
      %v2545 = vmax.f32 %v2435, %v2506
      %v2546 = vmax.f32 %v2440, %v2508
      %v2547 = vmax.f32 %v2445, %v2510
      %v2548 = vmax.f32 %v2450, %v2512
      %v2549 = vmax.f32 %v2455, %v2514
      %v2550 = vmax.f32 %v2460, %v2516
      %v2551 = vmax.f32 %v2465, %v2518
      %v2552 = vmax.f32 %v2470, %v2520
      %s2553 = scalar_lea.vmem [#allocation3], 216
      %2554 = vst.msk [vmem:[%s2553 + $0x1] sm:$0xff] %vm225, %v2537
      %2555 = vst.msk [vmem:[%s2553 + $0x9] sm:$0xff] %vm225, %v2538
      %2556 = vst.msk [vmem:[%s2553 + $0x19] sm:$0xff] %vm225, %v2539
      %2557 = vst.msk [vmem:[%s2553 + $0x21] sm:$0xff] %vm225, %v2540
      %2558 = vst.msk [vmem:[%s2553 + $0x31] sm:$0xff] %vm225, %v2541
      %2559 = vst.msk [vmem:[%s2553 + $0x39] sm:$0xff] %vm225, %v2542
      %2560 = vst.msk [vmem:[%s2553 + $0x49] sm:$0xff] %vm225, %v2543
      %2561 = vst.msk [vmem:[%s2553 + $0x51] sm:$0xff] %vm225, %v2544
      %2562 = vst.msk [vmem:[%s2553 + $0x61] sm:$0xff] %vm225, %v2545
      %2563 = vst.msk [vmem:[%s2553 + $0x69] sm:$0xff] %vm225, %v2546
      %2564 = vst.msk [vmem:[%s2553 + $0x79] sm:$0xff] %vm225, %v2547
      %2565 = vst.msk [vmem:[%s2553 + $0x81] sm:$0xff] %vm225, %v2548
      %2566 = vst.msk [vmem:[%s2553 + $0x91] sm:$0xff] %vm225, %v2549
      %2567 = vst.msk [vmem:[%s2553 + $0x99] sm:$0xff] %vm225, %v2550
      %2568 = vst.msk [vmem:[%s2553 + $0xa9] sm:$0xff] %vm225, %v2551
      %2569 = vst.msk [vmem:[%s2553 + $0xb1] sm:$0xff] %vm225, %v2552
      %v2570 = vld [vmem:[#allocation3] sm:$0xff]
      %v2571 = vld [vmem:[#allocation3 + $0x8] sm:$0xff]
      %v2572 = vld [vmem:[#allocation3 + $0x18] sm:$0xff]
      %v2573 = vld [vmem:[#allocation3 + $0x20] sm:$0xff]
      %v2574 = vld [vmem:[#allocation3 + $0x30] sm:$0xff]
      %v2575 = vld [vmem:[#allocation3 + $0x38] sm:$0xff]
      %v2576 = vld [vmem:[#allocation3 + $0x48] sm:$0xff]
      %v2577 = vld [vmem:[#allocation3 + $0x50] sm:$0xff]
      %v2578 = vld [vmem:[#allocation3 + $0x60] sm:$0xff]
      %v2579 = vld [vmem:[#allocation3 + $0x68] sm:$0xff]
      %v2580 = vld [vmem:[#allocation3 + $0x78] sm:$0xff]
      %v2581 = vld [vmem:[#allocation3 + $0x80] sm:$0xff]
      %v2582 = vld [vmem:[#allocation3 + $0x90] sm:$0xff]
      %v2583 = vld [vmem:[#allocation3 + $0x98] sm:$0xff]
      %v2584 = vld [vmem:[#allocation3 + $0xa8] sm:$0xff]
      %v2585 = vld [vmem:[#allocation3 + $0xb0] sm:$0xff]
      %v2586 = vld [vmem:[#allocation3 + $0x1] sm:$0xff]
      %v2587 = vld [vmem:[#allocation3 + $0x9] sm:$0xff]
      %v2588 = vld [vmem:[#allocation3 + $0x19] sm:$0xff]
      %v2589 = vld [vmem:[#allocation3 + $0x21] sm:$0xff]
      %v2590 = vld [vmem:[#allocation3 + $0x31] sm:$0xff]
      %v2591 = vld [vmem:[#allocation3 + $0x39] sm:$0xff]
      %v2592 = vld [vmem:[#allocation3 + $0x49] sm:$0xff]
      %v2593 = vld [vmem:[#allocation3 + $0x51] sm:$0xff]
      %v2594 = vld [vmem:[#allocation3 + $0x61] sm:$0xff]
      %v2595 = vld [vmem:[#allocation3 + $0x69] sm:$0xff]
      %v2596 = vld [vmem:[#allocation3 + $0x79] sm:$0xff]
      %v2597 = vld [vmem:[#allocation3 + $0x81] sm:$0xff]
      %v2598 = vld [vmem:[#allocation3 + $0x91] sm:$0xff]
      %v2599 = vld [vmem:[#allocation3 + $0x99] sm:$0xff]
      %v2600 = vld [vmem:[#allocation3 + $0xa9] sm:$0xff]
      %v2601 = vld [vmem:[#allocation3 + $0xb1] sm:$0xff]
      %v2602 = vld [vmem:[#allocation3 + $0x2] sm:$0xff]
      %v2603 = vld [vmem:[#allocation3 + $0xa] sm:$0xff]
      %v2604 = vld [vmem:[#allocation3 + $0x1a] sm:$0xff]
      %v2605 = vld [vmem:[#allocation3 + $0x22] sm:$0xff]
      %v2606 = vld [vmem:[#allocation3 + $0x32] sm:$0xff]
      %v2607 = vld [vmem:[#allocation3 + $0x3a] sm:$0xff]
      %v2608 = vld [vmem:[#allocation3 + $0x4a] sm:$0xff]
      %v2609 = vld [vmem:[#allocation3 + $0x52] sm:$0xff]
      %v2610 = vld [vmem:[#allocation3 + $0x62] sm:$0xff]
      %v2611 = vld [vmem:[#allocation3 + $0x6a] sm:$0xff]
      %v2612 = vld [vmem:[#allocation3 + $0x7a] sm:$0xff]
      %v2613 = vld [vmem:[#allocation3 + $0x82] sm:$0xff]
      %v2614 = vld [vmem:[#allocation3 + $0x92] sm:$0xff]
      %v2615 = vld [vmem:[#allocation3 + $0x9a] sm:$0xff]
      %v2616 = vld [vmem:[#allocation3 + $0xaa] sm:$0xff]
      %v2617 = vld [vmem:[#allocation3 + $0xb2] sm:$0xff]
      %v2618 = vld [vmem:[%s1461] sm:$0xff]
      %v2619 = vld [vmem:[%s1461 + $0x8] sm:$0xff]
      %v2620 = vld [vmem:[%s1461 + $0x18] sm:$0xff]
      %v2621 = vld [vmem:[%s1461 + $0x20] sm:$0xff]
      %v2622 = vld [vmem:[%s1461 + $0x30] sm:$0xff]
      %v2623 = vld [vmem:[%s1461 + $0x38] sm:$0xff]
      %v2624 = vld [vmem:[%s1461 + $0x48] sm:$0xff]
      %v2625 = vld [vmem:[%s1461 + $0x50] sm:$0xff]
      %v2626 = vld [vmem:[%s1461 + $0x60] sm:$0xff]
      %v2627 = vld [vmem:[%s1461 + $0x68] sm:$0xff]
      %v2628 = vld [vmem:[%s1461 + $0x78] sm:$0xff]
      %v2629 = vld [vmem:[%s1461 + $0x80] sm:$0xff]
      %v2630 = vld [vmem:[%s1461 + $0x90] sm:$0xff]
      %v2631 = vld [vmem:[%s1461 + $0x98] sm:$0xff]
      %v2632 = vld [vmem:[%s1461 + $0xa8] sm:$0xff]
      %v2633 = vld [vmem:[%s1461 + $0xb0] sm:$0xff]
      %v2634 = vld [vmem:[%s1461 + $0x1] sm:$0xff]
      %v2635 = vld [vmem:[%s1461 + $0x9] sm:$0xff]
      %v2636 = vld [vmem:[%s1461 + $0x19] sm:$0xff]
      %v2637 = vld [vmem:[%s1461 + $0x21] sm:$0xff]
      %v2638 = vld [vmem:[%s1461 + $0x31] sm:$0xff]
      %v2639 = vld [vmem:[%s1461 + $0x39] sm:$0xff]
      %v2640 = vld [vmem:[%s1461 + $0x49] sm:$0xff]
      %v2641 = vld [vmem:[%s1461 + $0x51] sm:$0xff]
      %v2642 = vld [vmem:[%s1461 + $0x61] sm:$0xff]
      %v2643 = vld [vmem:[%s1461 + $0x69] sm:$0xff]
      %v2644 = vld [vmem:[%s1461 + $0x79] sm:$0xff]
      %v2645 = vld [vmem:[%s1461 + $0x81] sm:$0xff]
      %v2646 = vld [vmem:[%s1461 + $0x91] sm:$0xff]
      %v2647 = vld [vmem:[%s1461 + $0x99] sm:$0xff]
      %v2648 = vld [vmem:[%s1461 + $0xa9] sm:$0xff]
      %v2649 = vld [vmem:[%s1461 + $0xb1] sm:$0xff]
      %v2650 = vld [vmem:[%s1461 + $0x2] sm:$0xff]
      %v2651 = vld [vmem:[%s1461 + $0xa] sm:$0xff]
      %v2652 = vld [vmem:[%s1461 + $0x1a] sm:$0xff]
      %v2653 = vld [vmem:[%s1461 + $0x22] sm:$0xff]
      %v2654 = vld [vmem:[%s1461 + $0x32] sm:$0xff]
      %v2655 = vld [vmem:[%s1461 + $0x3a] sm:$0xff]
      %v2656 = vld [vmem:[%s1461 + $0x4a] sm:$0xff]
      %v2657 = vld [vmem:[%s1461 + $0x52] sm:$0xff]
      %v2658 = vld [vmem:[%s1461 + $0x62] sm:$0xff]
      %v2659 = vld [vmem:[%s1461 + $0x6a] sm:$0xff]
      %v2660 = vld [vmem:[%s1461 + $0x7a] sm:$0xff]
      %v2661 = vld [vmem:[%s1461 + $0x82] sm:$0xff]
      %v2662 = vld [vmem:[%s1461 + $0x92] sm:$0xff]
      %v2663 = vld [vmem:[%s1461 + $0x9a] sm:$0xff]
      %v2664 = vld [vmem:[%s1461 + $0xaa] sm:$0xff]
      %v2665 = vld [vmem:[%s1461 + $0xb2] sm:$0xff]
      %s2666 = scalar_lea.vmem [#allocation3], 48
      %v2667 = vld [vmem:[%s2666] sm:$0xff]
      %v2668 = vld [vmem:[%s2666 + $0x8] sm:$0xff]
      %v2669 = vld [vmem:[%s2666 + $0x18] sm:$0xff]
      %v2670 = vld [vmem:[%s2666 + $0x20] sm:$0xff]
      %v2671 = vld [vmem:[%s2666 + $0x30] sm:$0xff]
      %v2672 = vld [vmem:[%s2666 + $0x38] sm:$0xff]
      %v2673 = vld [vmem:[%s2666 + $0x48] sm:$0xff]
      %v2674 = vld [vmem:[%s2666 + $0x50] sm:$0xff]
      %v2675 = vld [vmem:[%s2666 + $0x60] sm:$0xff]
      %v2676 = vld [vmem:[%s2666 + $0x68] sm:$0xff]
      %v2677 = vld [vmem:[%s2666 + $0x78] sm:$0xff]
      %v2678 = vld [vmem:[%s2666 + $0x80] sm:$0xff]
      %v2679 = vld [vmem:[%s2666 + $0x90] sm:$0xff]
      %v2680 = vld [vmem:[%s2666 + $0x98] sm:$0xff]
      %v2681 = vld [vmem:[%s2666 + $0xa8] sm:$0xff]
      %v2682 = vld [vmem:[%s2666 + $0xb0] sm:$0xff]
      %v2683 = vld [vmem:[%s2666 + $0x1] sm:$0xff]
      %v2684 = vld [vmem:[%s2666 + $0x9] sm:$0xff]
      %v2685 = vld [vmem:[%s2666 + $0x19] sm:$0xff]
      %v2686 = vld [vmem:[%s2666 + $0x21] sm:$0xff]
      %v2687 = vld [vmem:[%s2666 + $0x31] sm:$0xff]
      %v2688 = vld [vmem:[%s2666 + $0x39] sm:$0xff]
      %v2689 = vld [vmem:[%s2666 + $0x49] sm:$0xff]
      %v2690 = vld [vmem:[%s2666 + $0x51] sm:$0xff]
      %v2691 = vld [vmem:[%s2666 + $0x61] sm:$0xff]
      %v2692 = vld [vmem:[%s2666 + $0x69] sm:$0xff]
      %v2693 = vld [vmem:[%s2666 + $0x79] sm:$0xff]
      %v2694 = vld [vmem:[%s2666 + $0x81] sm:$0xff]
      %v2695 = vld [vmem:[%s2666 + $0x91] sm:$0xff]
      %v2696 = vld [vmem:[%s2666 + $0x99] sm:$0xff]
      %v2697 = vld [vmem:[%s2666 + $0xa9] sm:$0xff]
      %v2698 = vld [vmem:[%s2666 + $0xb1] sm:$0xff]
      %v2699 = vld [vmem:[%s2666 + $0x2] sm:$0xff]
      %v2700 = vld [vmem:[%s2666 + $0xa] sm:$0xff]
      %v2701 = vld [vmem:[%s2666 + $0x1a] sm:$0xff]
      %v2702 = vld [vmem:[%s2666 + $0x22] sm:$0xff]
      %v2703 = vld [vmem:[%s2666 + $0x32] sm:$0xff]
      %v2704 = vld [vmem:[%s2666 + $0x3a] sm:$0xff]
      %v2705 = vld [vmem:[%s2666 + $0x4a] sm:$0xff]
      %v2706 = vld [vmem:[%s2666 + $0x52] sm:$0xff]
      %v2707 = vld [vmem:[%s2666 + $0x62] sm:$0xff]
      %v2708 = vld [vmem:[%s2666 + $0x6a] sm:$0xff]
      %v2709 = vld [vmem:[%s2666 + $0x7a] sm:$0xff]
      %v2710 = vld [vmem:[%s2666 + $0x82] sm:$0xff]
      %v2711 = vld [vmem:[%s2666 + $0x92] sm:$0xff]
      %v2712 = vld [vmem:[%s2666 + $0x9a] sm:$0xff]
      %v2713 = vld [vmem:[%s2666 + $0xaa] sm:$0xff]
      %v2714 = vld [vmem:[%s2666 + $0xb2] sm:$0xff]
      %2731 = vrot.lane.b32.xlu0 %v2586, 4
      %v2732 = vpop.permute.xlu0 %2731
      %2733 = vrot.lane.b32.xlu0 %v2587, 4
      %v2734 = vpop.permute.xlu0 %2733
      %2735 = vrot.lane.b32.xlu0 %v2588, 4
      %v2736 = vpop.permute.xlu0 %2735
      %2737 = vrot.lane.b32.xlu0 %v2589, 4
      %v2738 = vpop.permute.xlu0 %2737
      %2739 = vrot.lane.b32.xlu0 %v2590, 4
      %v2740 = vpop.permute.xlu0 %2739
      %2741 = vrot.lane.b32.xlu0 %v2591, 4
      %v2742 = vpop.permute.xlu0 %2741
      %2743 = vrot.lane.b32.xlu0 %v2592, 4
      %v2744 = vpop.permute.xlu0 %2743
      %2745 = vrot.lane.b32.xlu0 %v2593, 4
      %v2746 = vpop.permute.xlu0 %2745
      %2747 = vrot.lane.b32.xlu0 %v2594, 4
      %v2748 = vpop.permute.xlu0 %2747
      %2749 = vrot.lane.b32.xlu0 %v2595, 4
      %v2750 = vpop.permute.xlu0 %2749
      %2751 = vrot.lane.b32.xlu0 %v2596, 4
      %v2752 = vpop.permute.xlu0 %2751
      %2753 = vrot.lane.b32.xlu0 %v2597, 4
      %v2754 = vpop.permute.xlu0 %2753
      %2755 = vrot.lane.b32.xlu0 %v2598, 4
      %v2756 = vpop.permute.xlu0 %2755
      %2757 = vrot.lane.b32.xlu0 %v2599, 4
      %v2758 = vpop.permute.xlu0 %2757
      %2759 = vrot.lane.b32.xlu0 %v2600, 4
      %v2760 = vpop.permute.xlu0 %2759
      %2761 = vrot.lane.b32.xlu0 %v2601, 4
      %v2762 = vpop.permute.xlu0 %2761
      %2795 = vrot.lane.b32.xlu0 %v2602, 8
      %v2796 = vpop.permute.xlu0 %2795
      %2797 = vrot.lane.b32.xlu0 %v2603, 8
      %v2798 = vpop.permute.xlu0 %2797
      %2799 = vrot.lane.b32.xlu0 %v2604, 8
      %v2800 = vpop.permute.xlu0 %2799
      %2801 = vrot.lane.b32.xlu0 %v2605, 8
      %v2802 = vpop.permute.xlu0 %2801
      %2803 = vrot.lane.b32.xlu0 %v2606, 8
      %v2804 = vpop.permute.xlu0 %2803
      %2805 = vrot.lane.b32.xlu0 %v2607, 8
      %v2806 = vpop.permute.xlu0 %2805
      %2807 = vrot.lane.b32.xlu0 %v2608, 8
      %v2808 = vpop.permute.xlu0 %2807
      %2809 = vrot.lane.b32.xlu0 %v2609, 8
      %v2810 = vpop.permute.xlu0 %2809
      %2811 = vrot.lane.b32.xlu0 %v2610, 8
      %v2812 = vpop.permute.xlu0 %2811
      %2813 = vrot.lane.b32.xlu0 %v2611, 8
      %v2814 = vpop.permute.xlu0 %2813
      %2815 = vrot.lane.b32.xlu0 %v2612, 8
      %v2816 = vpop.permute.xlu0 %2815
      %2817 = vrot.lane.b32.xlu0 %v2613, 8
      %v2818 = vpop.permute.xlu0 %2817
      %2819 = vrot.lane.b32.xlu0 %v2614, 8
      %v2820 = vpop.permute.xlu0 %2819
      %2821 = vrot.lane.b32.xlu0 %v2615, 8
      %v2822 = vpop.permute.xlu0 %2821
      %2823 = vrot.lane.b32.xlu0 %v2616, 8
      %v2824 = vpop.permute.xlu0 %2823
      %2825 = vrot.lane.b32.xlu0 %v2617, 8
      %v2826 = vpop.permute.xlu0 %2825
      %2859 = vrot.lane.b32.xlu0 %v2618, 12
      %v2860 = vpop.permute.xlu0 %2859
      %2861 = vrot.lane.b32.xlu0 %v2619, 12
      %v2862 = vpop.permute.xlu0 %2861
      %2863 = vrot.lane.b32.xlu0 %v2620, 12
      %v2864 = vpop.permute.xlu0 %2863
      %2865 = vrot.lane.b32.xlu0 %v2621, 12
      %v2866 = vpop.permute.xlu0 %2865
      %2867 = vrot.lane.b32.xlu0 %v2622, 12
      %v2868 = vpop.permute.xlu0 %2867
      %2869 = vrot.lane.b32.xlu0 %v2623, 12
      %v2870 = vpop.permute.xlu0 %2869
      %2871 = vrot.lane.b32.xlu0 %v2624, 12
      %v2872 = vpop.permute.xlu0 %2871
      %2873 = vrot.lane.b32.xlu0 %v2625, 12
      %v2874 = vpop.permute.xlu0 %2873
      %2875 = vrot.lane.b32.xlu0 %v2626, 12
      %v2876 = vpop.permute.xlu0 %2875
      %2877 = vrot.lane.b32.xlu0 %v2627, 12
      %v2878 = vpop.permute.xlu0 %2877
      %2879 = vrot.lane.b32.xlu0 %v2628, 12
      %v2880 = vpop.permute.xlu0 %2879
      %2881 = vrot.lane.b32.xlu0 %v2629, 12
      %v2882 = vpop.permute.xlu0 %2881
      %2883 = vrot.lane.b32.xlu0 %v2630, 12
      %v2884 = vpop.permute.xlu0 %2883
      %2885 = vrot.lane.b32.xlu0 %v2631, 12
      %v2886 = vpop.permute.xlu0 %2885
      %2887 = vrot.lane.b32.xlu0 %v2632, 12
      %v2888 = vpop.permute.xlu0 %2887
      %2889 = vrot.lane.b32.xlu0 %v2633, 12
      %v2890 = vpop.permute.xlu0 %2889
      %2923 = vrot.lane.b32.xlu0 %v2634, 16
      %v2924 = vpop.permute.xlu0 %2923
      %2925 = vrot.lane.b32.xlu0 %v2635, 16
      %v2926 = vpop.permute.xlu0 %2925
      %2927 = vrot.lane.b32.xlu0 %v2636, 16
      %v2928 = vpop.permute.xlu0 %2927
      %2929 = vrot.lane.b32.xlu0 %v2637, 16
      %v2930 = vpop.permute.xlu0 %2929
      %2931 = vrot.lane.b32.xlu0 %v2638, 16
      %v2932 = vpop.permute.xlu0 %2931
      %2933 = vrot.lane.b32.xlu0 %v2639, 16
      %v2934 = vpop.permute.xlu0 %2933
      %2935 = vrot.lane.b32.xlu0 %v2640, 16
      %v2936 = vpop.permute.xlu0 %2935
      %2937 = vrot.lane.b32.xlu0 %v2641, 16
      %v2938 = vpop.permute.xlu0 %2937
      %2939 = vrot.lane.b32.xlu0 %v2642, 16
      %v2940 = vpop.permute.xlu0 %2939
      %2941 = vrot.lane.b32.xlu0 %v2643, 16
      %v2942 = vpop.permute.xlu0 %2941
      %2943 = vrot.lane.b32.xlu0 %v2644, 16
      %v2944 = vpop.permute.xlu0 %2943
      %2945 = vrot.lane.b32.xlu0 %v2645, 16
      %v2946 = vpop.permute.xlu0 %2945
      %2947 = vrot.lane.b32.xlu0 %v2646, 16
      %v2948 = vpop.permute.xlu0 %2947
      %2949 = vrot.lane.b32.xlu0 %v2647, 16
      %v2950 = vpop.permute.xlu0 %2949
      %2951 = vrot.lane.b32.xlu0 %v2648, 16
      %v2952 = vpop.permute.xlu0 %2951
      %2953 = vrot.lane.b32.xlu0 %v2649, 16
      %v2954 = vpop.permute.xlu0 %2953
      %2987 = vrot.lane.b32.xlu0 %v2650, 20
      %v2988 = vpop.permute.xlu0 %2987
      %2989 = vrot.lane.b32.xlu0 %v2651, 20
      %v2990 = vpop.permute.xlu0 %2989
      %2991 = vrot.lane.b32.xlu0 %v2652, 20
      %v2992 = vpop.permute.xlu0 %2991
      %2993 = vrot.lane.b32.xlu0 %v2653, 20
      %v2994 = vpop.permute.xlu0 %2993
      %2995 = vrot.lane.b32.xlu0 %v2654, 20
      %v2996 = vpop.permute.xlu0 %2995
      %2997 = vrot.lane.b32.xlu0 %v2655, 20
      %v2998 = vpop.permute.xlu0 %2997
      %2999 = vrot.lane.b32.xlu0 %v2656, 20
      %v3000 = vpop.permute.xlu0 %2999
      %3001 = vrot.lane.b32.xlu0 %v2657, 20
      %v3002 = vpop.permute.xlu0 %3001
      %3003 = vrot.lane.b32.xlu0 %v2658, 20
      %v3004 = vpop.permute.xlu0 %3003
      %3005 = vrot.lane.b32.xlu0 %v2659, 20
      %v3006 = vpop.permute.xlu0 %3005
      %3007 = vrot.lane.b32.xlu0 %v2660, 20
      %v3008 = vpop.permute.xlu0 %3007
      %3009 = vrot.lane.b32.xlu0 %v2661, 20
      %v3010 = vpop.permute.xlu0 %3009
      %3011 = vrot.lane.b32.xlu0 %v2662, 20
      %v3012 = vpop.permute.xlu0 %3011
      %3013 = vrot.lane.b32.xlu0 %v2663, 20
      %v3014 = vpop.permute.xlu0 %3013
      %3015 = vrot.lane.b32.xlu0 %v2664, 20
      %v3016 = vpop.permute.xlu0 %3015
      %3017 = vrot.lane.b32.xlu0 %v2665, 20
      %v3018 = vpop.permute.xlu0 %3017
      %3051 = vrot.lane.b32.xlu0 %v2667, 24
      %v3052 = vpop.permute.xlu0 %3051
      %3053 = vrot.lane.b32.xlu0 %v2668, 24
      %v3054 = vpop.permute.xlu0 %3053
      %3055 = vrot.lane.b32.xlu0 %v2669, 24
      %v3056 = vpop.permute.xlu0 %3055
      %3057 = vrot.lane.b32.xlu0 %v2670, 24
      %v3058 = vpop.permute.xlu0 %3057
      %3059 = vrot.lane.b32.xlu0 %v2671, 24
      %v3060 = vpop.permute.xlu0 %3059
      %3061 = vrot.lane.b32.xlu0 %v2672, 24
      %v3062 = vpop.permute.xlu0 %3061
      %3063 = vrot.lane.b32.xlu0 %v2673, 24
      %v3064 = vpop.permute.xlu0 %3063
      %3065 = vrot.lane.b32.xlu0 %v2674, 24
      %v3066 = vpop.permute.xlu0 %3065
      %3067 = vrot.lane.b32.xlu0 %v2675, 24
      %v3068 = vpop.permute.xlu0 %3067
      %3069 = vrot.lane.b32.xlu0 %v2676, 24
      %v3070 = vpop.permute.xlu0 %3069
      %3071 = vrot.lane.b32.xlu0 %v2677, 24
      %v3072 = vpop.permute.xlu0 %3071
      %3073 = vrot.lane.b32.xlu0 %v2678, 24
      %v3074 = vpop.permute.xlu0 %3073
      %3075 = vrot.lane.b32.xlu0 %v2679, 24
      %v3076 = vpop.permute.xlu0 %3075
      %3077 = vrot.lane.b32.xlu0 %v2680, 24
      %v3078 = vpop.permute.xlu0 %3077
      %3079 = vrot.lane.b32.xlu0 %v2681, 24
      %v3080 = vpop.permute.xlu0 %3079
      %3081 = vrot.lane.b32.xlu0 %v2682, 24
      %v3082 = vpop.permute.xlu0 %3081
      %3115 = vrot.lane.b32.xlu0 %v2683, 28
      %v3116 = vpop.permute.xlu0 %3115
      %3117 = vrot.lane.b32.xlu0 %v2684, 28
      %v3118 = vpop.permute.xlu0 %3117
      %3119 = vrot.lane.b32.xlu0 %v2685, 28
      %v3120 = vpop.permute.xlu0 %3119
      %3121 = vrot.lane.b32.xlu0 %v2686, 28
      %v3122 = vpop.permute.xlu0 %3121
      %3123 = vrot.lane.b32.xlu0 %v2687, 28
      %v3124 = vpop.permute.xlu0 %3123
      %3125 = vrot.lane.b32.xlu0 %v2688, 28
      %v3126 = vpop.permute.xlu0 %3125
      %3127 = vrot.lane.b32.xlu0 %v2689, 28
      %v3128 = vpop.permute.xlu0 %3127
      %3129 = vrot.lane.b32.xlu0 %v2690, 28
      %v3130 = vpop.permute.xlu0 %3129
      %3131 = vrot.lane.b32.xlu0 %v2691, 28
      %v3132 = vpop.permute.xlu0 %3131
      %3133 = vrot.lane.b32.xlu0 %v2692, 28
      %v3134 = vpop.permute.xlu0 %3133
      %3135 = vrot.lane.b32.xlu0 %v2693, 28
      %v3136 = vpop.permute.xlu0 %3135
      %3137 = vrot.lane.b32.xlu0 %v2694, 28
      %v3138 = vpop.permute.xlu0 %3137
      %3139 = vrot.lane.b32.xlu0 %v2695, 28
      %v3140 = vpop.permute.xlu0 %3139
      %3141 = vrot.lane.b32.xlu0 %v2696, 28
      %v3142 = vpop.permute.xlu0 %3141
      %3143 = vrot.lane.b32.xlu0 %v2697, 28
      %v3144 = vpop.permute.xlu0 %3143
      %3145 = vrot.lane.b32.xlu0 %v2698, 28
      %v3146 = vpop.permute.xlu0 %3145
      %3179 = vrot.lane.b32.xlu0 %v2699, 32
      %v3180 = vpop.permute.xlu0 %3179
      %3181 = vrot.lane.b32.xlu0 %v2700, 32
      %v3182 = vpop.permute.xlu0 %3181
      %3183 = vrot.lane.b32.xlu0 %v2701, 32
      %v3184 = vpop.permute.xlu0 %3183
      %3185 = vrot.lane.b32.xlu0 %v2702, 32
      %v3186 = vpop.permute.xlu0 %3185
      %3187 = vrot.lane.b32.xlu0 %v2703, 32
      %v3188 = vpop.permute.xlu0 %3187
      %3189 = vrot.lane.b32.xlu0 %v2704, 32
      %v3190 = vpop.permute.xlu0 %3189
      %3191 = vrot.lane.b32.xlu0 %v2705, 32
      %v3192 = vpop.permute.xlu0 %3191
      %3193 = vrot.lane.b32.xlu0 %v2706, 32
      %v3194 = vpop.permute.xlu0 %3193
      %3195 = vrot.lane.b32.xlu0 %v2707, 32
      %v3196 = vpop.permute.xlu0 %3195
      %3197 = vrot.lane.b32.xlu0 %v2708, 32
      %v3198 = vpop.permute.xlu0 %3197
      %3199 = vrot.lane.b32.xlu0 %v2709, 32
      %v3200 = vpop.permute.xlu0 %3199
      %3201 = vrot.lane.b32.xlu0 %v2710, 32
      %v3202 = vpop.permute.xlu0 %3201
      %3203 = vrot.lane.b32.xlu0 %v2711, 32
      %v3204 = vpop.permute.xlu0 %3203
      %3205 = vrot.lane.b32.xlu0 %v2712, 32
      %v3206 = vpop.permute.xlu0 %3205
      %3207 = vrot.lane.b32.xlu0 %v2713, 32
      %v3208 = vpop.permute.xlu0 %3207
      %3209 = vrot.lane.b32.xlu0 %v2714, 32
      %v3210 = vpop.permute.xlu0 %3209
      %v3227 = vsel %vm225, %v2570, %v2732
      %v3228 = vsel %vm225, %v2571, %v2734
      %v3229 = vsel %vm225, %v2572, %v2736
      %v3230 = vsel %vm225, %v2573, %v2738
      %v3231 = vsel %vm225, %v2574, %v2740
      %v3232 = vsel %vm225, %v2575, %v2742
      %v3233 = vsel %vm225, %v2576, %v2744
      %v3234 = vsel %vm225, %v2577, %v2746
      %v3235 = vsel %vm225, %v2578, %v2748
      %v3236 = vsel %vm225, %v2579, %v2750
      %v3237 = vsel %vm225, %v2580, %v2752
      %v3238 = vsel %vm225, %v2581, %v2754
      %v3239 = vsel %vm225, %v2582, %v2756
      %v3240 = vsel %vm225, %v2583, %v2758
      %v3241 = vsel %vm225, %v2584, %v2760
      %v3242 = vsel %vm225, %v2585, %v2762
      %v3243 = vsel %vm1052, %v3227, %v2796
      %v3244 = vsel %vm1052, %v3228, %v2798
      %v3245 = vsel %vm1052, %v3229, %v2800
      %v3246 = vsel %vm1052, %v3230, %v2802
      %v3247 = vsel %vm1052, %v3231, %v2804
      %v3248 = vsel %vm1052, %v3232, %v2806
      %v3249 = vsel %vm1052, %v3233, %v2808
      %v3250 = vsel %vm1052, %v3234, %v2810
      %v3251 = vsel %vm1052, %v3235, %v2812
      %v3252 = vsel %vm1052, %v3236, %v2814
      %v3253 = vsel %vm1052, %v3237, %v2816
      %v3254 = vsel %vm1052, %v3238, %v2818
      %v3255 = vsel %vm1052, %v3239, %v2820
      %v3256 = vsel %vm1052, %v3240, %v2822
      %v3257 = vsel %vm1052, %v3241, %v2824
      %v3258 = vsel %vm1052, %v3242, %v2826
      %v3259 = vsel %vm1069, %v3243, %v2860
      %v3260 = vsel %vm1069, %v3244, %v2862
      %v3261 = vsel %vm1069, %v3245, %v2864
      %v3262 = vsel %vm1069, %v3246, %v2866
      %v3263 = vsel %vm1069, %v3247, %v2868
      %v3264 = vsel %vm1069, %v3248, %v2870
      %v3265 = vsel %vm1069, %v3249, %v2872
      %v3266 = vsel %vm1069, %v3250, %v2874
      %v3267 = vsel %vm1069, %v3251, %v2876
      %v3268 = vsel %vm1069, %v3252, %v2878
      %v3269 = vsel %vm1069, %v3253, %v2880
      %v3270 = vsel %vm1069, %v3254, %v2882
      %v3271 = vsel %vm1069, %v3255, %v2884
      %v3272 = vsel %vm1069, %v3256, %v2886
      %v3273 = vsel %vm1069, %v3257, %v2888
      %v3274 = vsel %vm1069, %v3258, %v2890
      %v3275 = vsel %vm1086, %v3259, %v2924
      %v3276 = vsel %vm1086, %v3260, %v2926
      %v3277 = vsel %vm1086, %v3261, %v2928
      %v3278 = vsel %vm1086, %v3262, %v2930
      %v3279 = vsel %vm1086, %v3263, %v2932
      %v3280 = vsel %vm1086, %v3264, %v2934
      %v3281 = vsel %vm1086, %v3265, %v2936
      %v3282 = vsel %vm1086, %v3266, %v2938
      %v3283 = vsel %vm1086, %v3267, %v2940
      %v3284 = vsel %vm1086, %v3268, %v2942
      %v3285 = vsel %vm1086, %v3269, %v2944
      %v3286 = vsel %vm1086, %v3270, %v2946
      %v3287 = vsel %vm1086, %v3271, %v2948
      %v3288 = vsel %vm1086, %v3272, %v2950
      %v3289 = vsel %vm1086, %v3273, %v2952
      %v3290 = vsel %vm1086, %v3274, %v2954
      %v3291 = vsel %vm1103, %v3275, %v2988
      %v3292 = vsel %vm1103, %v3276, %v2990
      %v3293 = vsel %vm1103, %v3277, %v2992
      %v3294 = vsel %vm1103, %v3278, %v2994
      %v3295 = vsel %vm1103, %v3279, %v2996
      %v3296 = vsel %vm1103, %v3280, %v2998
      %v3297 = vsel %vm1103, %v3281, %v3000
      %v3298 = vsel %vm1103, %v3282, %v3002
      %v3299 = vsel %vm1103, %v3283, %v3004
      %v3300 = vsel %vm1103, %v3284, %v3006
      %v3301 = vsel %vm1103, %v3285, %v3008
      %v3302 = vsel %vm1103, %v3286, %v3010
      %v3303 = vsel %vm1103, %v3287, %v3012
      %v3304 = vsel %vm1103, %v3288, %v3014
      %v3305 = vsel %vm1103, %v3289, %v3016
      %v3306 = vsel %vm1103, %v3290, %v3018
      %v3307 = vsel %vm1120, %v3291, %v3052
      %v3308 = vsel %vm1120, %v3292, %v3054
      %v3309 = vsel %vm1120, %v3293, %v3056
      %v3310 = vsel %vm1120, %v3294, %v3058
      %v3311 = vsel %vm1120, %v3295, %v3060
      %v3312 = vsel %vm1120, %v3296, %v3062
      %v3313 = vsel %vm1120, %v3297, %v3064
      %v3314 = vsel %vm1120, %v3298, %v3066
      %v3315 = vsel %vm1120, %v3299, %v3068
      %v3316 = vsel %vm1120, %v3300, %v3070
      %v3317 = vsel %vm1120, %v3301, %v3072
      %v3318 = vsel %vm1120, %v3302, %v3074
      %v3319 = vsel %vm1120, %v3303, %v3076
      %v3320 = vsel %vm1120, %v3304, %v3078
      %v3321 = vsel %vm1120, %v3305, %v3080
      %v3322 = vsel %vm1120, %v3306, %v3082
      %v3323 = vsel %vm1137, %v3307, %v3116
      %v3324 = vsel %vm1137, %v3308, %v3118
      %v3325 = vsel %vm1137, %v3309, %v3120
      %v3326 = vsel %vm1137, %v3310, %v3122
      %v3327 = vsel %vm1137, %v3311, %v3124
      %v3328 = vsel %vm1137, %v3312, %v3126
      %v3329 = vsel %vm1137, %v3313, %v3128
      %v3330 = vsel %vm1137, %v3314, %v3130
      %v3331 = vsel %vm1137, %v3315, %v3132
      %v3332 = vsel %vm1137, %v3316, %v3134
      %v3333 = vsel %vm1137, %v3317, %v3136
      %v3334 = vsel %vm1137, %v3318, %v3138
      %v3335 = vsel %vm1137, %v3319, %v3140
      %v3336 = vsel %vm1137, %v3320, %v3142
      %v3337 = vsel %vm1137, %v3321, %v3144
      %v3338 = vsel %vm1137, %v3322, %v3146
      %v3339 = vsel %vm1154, %v3323, %v3180
      %v3340 = vsel %vm1154, %v3324, %v3182
      %v3341 = vsel %vm1154, %v3325, %v3184
      %v3342 = vsel %vm1154, %v3326, %v3186
      %v3343 = vsel %vm1154, %v3327, %v3188
      %v3344 = vsel %vm1154, %v3328, %v3190
      %v3345 = vsel %vm1154, %v3329, %v3192
      %v3346 = vsel %vm1154, %v3330, %v3194
      %v3347 = vsel %vm1154, %v3331, %v3196
      %v3348 = vsel %vm1154, %v3332, %v3198
      %v3349 = vsel %vm1154, %v3333, %v3200
      %v3350 = vsel %vm1154, %v3334, %v3202
      %v3351 = vsel %vm1154, %v3335, %v3204
      %v3352 = vsel %vm1154, %v3336, %v3206
      %v3353 = vsel %vm1154, %v3337, %v3208
      %v3354 = vsel %vm1154, %v3338, %v3210
      %v3355 = vld [vmem:[%s3] sm:$0xff]
      %v3356 = vld [vmem:[%s3 + $0x8] sm:$0xff]
      %v3357 = vld [vmem:[%s3 + $0x10] sm:$0xff]
      %v3358 = vld [vmem:[%s3 + $0x18] sm:$0xff]
      %v3359 = vld [vmem:[%s3 + $0x20] sm:$0xf]
      %v3360 = vld [vmem:[%s4] sm:$0x1]
      %v3362 = vlaneseq
      %v3363 = vshrl.u32 %v3362, 7
      %v3364 = vsub.s32 0, %v3363
      %v3365 = vrot.slane %v3360, %v3364
      %v3368 = vsel %vm1183, %v3339, 0
      %v3371 = vsel %vm1183, %v3340, 0
      %v3374 = vsel %vm1183, %v3341, 0
      %v3377 = vsel %vm1183, %v3342, 0
      %v3380 = vsel %vm1183, %v3343, 0
      %v3383 = vsel %vm1183, %v3344, 0
      %v3386 = vsel %vm1183, %v3345, 0
      %v3389 = vsel %vm1183, %v3346, 0
      %v3392 = vsel %vm1183, %v3347, 0
      %v3395 = vsel %vm1183, %v3348, 0
      %v3398 = vsel %vm1183, %v3349, 0
      %v3401 = vsel %vm1183, %v3350, 0
      %v3404 = vsel %vm1183, %v3351, 0
      %v3407 = vsel %vm1183, %v3352, 0
      %v3410 = vsel %vm1183, %v3353, 0
      %v3413 = vsel %vm1183, %v3354, 0
      %v3416 = vsel %vm1232, %v3359, 0
      %3418 = vmatprep.subr.mxu0 0.0
      %3419 = vmatpush1.msra.mxu0 %v3355
      %3420 = vmatprep.subr.mxu0 0.0
      %3421 = vmatpush1.msra.mxu0 %v3356
      %3422 = vmatprep.subr.mxu0 0.0
      %3423 = vmatpush1.msra.mxu0 %v3357
      %3424 = vmatprep.subr.mxu0 0.0
      %3425 = vmatpush1.msra.mxu0 %v3358
      %3426 = vmatprep.subr.mxu0 0.0
      %3427 = vmatpush1.msra.mxu0 %v3416
      %3428 = vmatprep.subr.mxu0 0.0
      %3429 = vmatpush1.msra.mxu0 0.0
      %3430 = vmatprep.subr.mxu0 0.0
      %3431 = vmatpush1.msra.mxu0 0.0
      %3432 = vmatprep.subr.mxu0 0.0
      %3433 = vmatpush1.msra.mxu0 0.0
      %3434 = vmatprep.subr.mxu0 0.0
      %3435 = vmatpush1.msra.mxu0 0.0
      %3436 = vmatprep.subr.mxu0 0.0
      %3437 = vmatpush1.msra.mxu0 0.0
      %3438 = vmatprep.subr.mxu0 0.0
      %3439 = vmatpush1.msra.mxu0 0.0
      %3440 = vmatprep.subr.mxu0 0.0
      %3441 = vmatpush1.msra.mxu0 0.0
      %3442 = vmatprep.subr.mxu0 0.0
      %3443 = vmatpush1.msra.mxu0 0.0
      %3444 = vmatprep.subr.mxu0 0.0
      %3445 = vmatpush1.msra.mxu0 0.0
      %3446 = vmatprep.subr.mxu0 0.0
      %3447 = vmatpush1.msra.mxu0 0.0
      %3448 = vmatprep.subr.mxu0 0.0
      %3449 = vmatpush1.msra.mxu0 0.0
      %3450 = vmatprep.subr.mxu0 0.0
      %3451 = vmatpush1.msra.mxu0 0.0
      %3452 = vmatprep.subr.mxu0 0.0
      %3453 = vmatpush1.msra.mxu0 0.0
      %3454 = vmatprep.subr.mxu0 0.0
      %3455 = vmatpush1.msra.mxu0 0.0
      %3456 = vmatprep.subr.mxu0 0.0
      %3457 = vmatpush1.msra.mxu0 0.0
      %3458 = vmatprep.subr.mxu0 0.0
      %3459 = vmatpush1.msra.mxu0 0.0
      %3460 = vmatprep.subr.mxu0 0.0
      %3461 = vmatpush1.msra.mxu0 0.0
      %3462 = vmatprep.subr.mxu0 0.0
      %3463 = vmatpush1.msra.mxu0 0.0
      %3464 = vmatprep.subr.mxu0 0.0
      %3465 = vmatpush1.msra.mxu0 0.0
      %3466 = vmatprep.subr.mxu0 0.0
      %3467 = vmatpush1.msra.mxu0 0.0
      %3468 = vmatprep.subr.mxu0 0.0
      %3469 = vmatpush1.msra.mxu0 0.0
      %3470 = vmatprep.subr.mxu0 0.0
      %3471 = vmatpush1.msra.mxu0 0.0
      %3472 = vmatprep.subr.mxu0 0.0
      %3473 = vmatpush1.msra.mxu0 0.0
      %3474 = vmatprep.subr.mxu0 0.0
      %3475 = vmatpush1.msra.mxu0 0.0
      %3476 = vmatprep.subr.mxu0 0.0
      %3477 = vmatpush1.msra.mxu0 0.0
      %3478 = vmatprep.subr.mxu0 0.0
      %3479 = vmatpush1.msra.mxu0 0.0
      %3480 = vmatprep.subr.mxu0 0.0
      %3481 = vmatpush1.msra.mxu0 0.0
      %3482 = vmatprep.mubr.f32.mxu0 0.0
      %3483 = vmatmul.mubr.f32.gmra.mrb[0].mxu0 %v3368
      %v3484 = vpop.f32.mrb[0].mxu0
      %v3485 = vadd.f32 %v3365, %v3484
      %v3486 = vpop.f32.mrb[0].mxu0
      %3487 = vmatprep.mubr.f32.mxu0 0.0
      %3488 = vmatmul.mubr.f32.gmra.mrb[0].mxu0 %v3371
      %v3489 = vpop.f32.mrb[0].mxu0
      %v3490 = vadd.f32 %v3365, %v3489
      %v3491 = vpop.f32.mrb[0].mxu0
      %3492 = vmatprep.mubr.f32.mxu0 0.0
      %3493 = vmatmul.mubr.f32.gmra.mrb[0].mxu0 %v3374
      %v3494 = vpop.f32.mrb[0].mxu0
      %v3495 = vadd.f32 %v3365, %v3494
      %v3496 = vpop.f32.mrb[0].mxu0
      %3497 = vmatprep.mubr.f32.mxu0 0.0
      %3498 = vmatmul.mubr.f32.gmra.mrb[0].mxu0 %v3377
      %v3499 = vpop.f32.mrb[0].mxu0
      %v3500 = vadd.f32 %v3365, %v3499
      %v3501 = vpop.f32.mrb[0].mxu0
      %3502 = vmatprep.mubr.f32.mxu0 0.0
      %3503 = vmatmul.mubr.f32.gmra.mrb[0].mxu0 %v3380
      %v3504 = vpop.f32.mrb[0].mxu0
      %v3505 = vadd.f32 %v3365, %v3504
      %v3506 = vpop.f32.mrb[0].mxu0
      %3507 = vmatprep.mubr.f32.mxu0 0.0
      %3508 = vmatmul.mubr.f32.gmra.mrb[0].mxu0 %v3383
      %v3509 = vpop.f32.mrb[0].mxu0
      %v3510 = vadd.f32 %v3365, %v3509
      %v3511 = vpop.f32.mrb[0].mxu0
      %3512 = vmatprep.mubr.f32.mxu0 0.0
      %3513 = vmatmul.mubr.f32.gmra.mrb[0].mxu0 %v3386
      %v3514 = vpop.f32.mrb[0].mxu0
      %v3515 = vadd.f32 %v3365, %v3514
      %v3516 = vpop.f32.mrb[0].mxu0
      %3517 = vmatprep.mubr.f32.mxu0 0.0
      %3518 = vmatmul.mubr.f32.gmra.mrb[0].mxu0 %v3389
      %v3519 = vpop.f32.mrb[0].mxu0
      %v3520 = vadd.f32 %v3365, %v3519
      %v3521 = vpop.f32.mrb[0].mxu0
      %3522 = vmatprep.mubr.f32.mxu0 0.0
      %3523 = vmatmul.mubr.f32.gmra.mrb[0].mxu0 %v3392
      %v3524 = vpop.f32.mrb[0].mxu0
      %v3525 = vadd.f32 %v3365, %v3524
      %v3526 = vpop.f32.mrb[0].mxu0
      %3527 = vmatprep.mubr.f32.mxu0 0.0
      %3528 = vmatmul.mubr.f32.gmra.mrb[0].mxu0 %v3395
      %v3529 = vpop.f32.mrb[0].mxu0
      %v3530 = vadd.f32 %v3365, %v3529
      %v3531 = vpop.f32.mrb[0].mxu0
      %3532 = vmatprep.mubr.f32.mxu0 0.0
      %3533 = vmatmul.mubr.f32.gmra.mrb[0].mxu0 %v3398
      %v3534 = vpop.f32.mrb[0].mxu0
      %v3535 = vadd.f32 %v3365, %v3534
      %v3536 = vpop.f32.mrb[0].mxu0
      %3537 = vmatprep.mubr.f32.mxu0 0.0
      %3538 = vmatmul.mubr.f32.gmra.mrb[0].mxu0 %v3401
      %v3539 = vpop.f32.mrb[0].mxu0
      %v3540 = vadd.f32 %v3365, %v3539
      %v3541 = vpop.f32.mrb[0].mxu0
      %3542 = vmatprep.mubr.f32.mxu0 0.0
      %3543 = vmatmul.mubr.f32.gmra.mrb[0].mxu0 %v3404
      %v3544 = vpop.f32.mrb[0].mxu0
      %v3545 = vadd.f32 %v3365, %v3544
      %v3546 = vpop.f32.mrb[0].mxu0
      %3547 = vmatprep.mubr.f32.mxu0 0.0
      %3548 = vmatmul.mubr.f32.gmra.mrb[0].mxu0 %v3407
      %v3549 = vpop.f32.mrb[0].mxu0
      %v3550 = vadd.f32 %v3365, %v3549
      %v3551 = vpop.f32.mrb[0].mxu0
      %3552 = vmatprep.mubr.f32.mxu0 0.0
      %3553 = vmatmul.mubr.f32.gmra.mrb[0].mxu0 %v3410
      %v3554 = vpop.f32.mrb[0].mxu0
      %v3555 = vadd.f32 %v3365, %v3554
      %v3556 = vpop.f32.mrb[0].mxu0
      %3557 = vmatprep.mubr.f32.mxu0 0.0
      %3558 = vmatmul.mubr.f32.gmra.mrb[0].mxu0 %v3413
      %v3559 = vpop.f32.mrb[0].mxu0
      %v3560 = vadd.f32 %v3365, %v3559
      %v3561 = vpop.f32.mrb[0].mxu0
      %3562 = vdwg.mxu0
      %3579 = vrot.lane.b32.xlu0 %v3485, 124
      %v3580 = vpop.permute.xlu0 %3579
      %3581 = vrot.lane.b32.xlu0 %v3490, 124
      %v3582 = vpop.permute.xlu0 %3581
      %3583 = vrot.lane.b32.xlu0 %v3495, 124
      %v3584 = vpop.permute.xlu0 %3583
      %3585 = vrot.lane.b32.xlu0 %v3500, 124
      %v3586 = vpop.permute.xlu0 %3585
      %3587 = vrot.lane.b32.xlu0 %v3505, 124
      %v3588 = vpop.permute.xlu0 %3587
      %3589 = vrot.lane.b32.xlu0 %v3510, 124
      %v3590 = vpop.permute.xlu0 %3589
      %3591 = vrot.lane.b32.xlu0 %v3515, 124
      %v3592 = vpop.permute.xlu0 %3591
      %3593 = vrot.lane.b32.xlu0 %v3520, 124
      %v3594 = vpop.permute.xlu0 %3593
      %3595 = vrot.lane.b32.xlu0 %v3525, 124
      %v3596 = vpop.permute.xlu0 %3595
      %3597 = vrot.lane.b32.xlu0 %v3530, 124
      %v3598 = vpop.permute.xlu0 %3597
      %3599 = vrot.lane.b32.xlu0 %v3535, 124
      %v3600 = vpop.permute.xlu0 %3599
      %3601 = vrot.lane.b32.xlu0 %v3540, 124
      %v3602 = vpop.permute.xlu0 %3601
      %3603 = vrot.lane.b32.xlu0 %v3545, 124
      %v3604 = vpop.permute.xlu0 %3603
      %3605 = vrot.lane.b32.xlu0 %v3550, 124
      %v3606 = vpop.permute.xlu0 %3605
      %3607 = vrot.lane.b32.xlu0 %v3555, 124
      %v3608 = vpop.permute.xlu0 %3607
      %3609 = vrot.lane.b32.xlu0 %v3560, 124
      %v3610 = vpop.permute.xlu0 %3609
      %v3627 = vmax.f32 %v3485, %v3580
      %v3628 = vmax.f32 %v3490, %v3582
      %v3629 = vmax.f32 %v3495, %v3584
      %v3630 = vmax.f32 %v3500, %v3586
      %v3631 = vmax.f32 %v3505, %v3588
      %v3632 = vmax.f32 %v3510, %v3590
      %v3633 = vmax.f32 %v3515, %v3592
      %v3634 = vmax.f32 %v3520, %v3594
      %v3635 = vmax.f32 %v3525, %v3596
      %v3636 = vmax.f32 %v3530, %v3598
      %v3637 = vmax.f32 %v3535, %v3600
      %v3638 = vmax.f32 %v3540, %v3602
      %v3639 = vmax.f32 %v3545, %v3604
      %v3640 = vmax.f32 %v3550, %v3606
      %v3641 = vmax.f32 %v3555, %v3608
      %v3642 = vmax.f32 %v3560, %v3610
      %v3643 = vld [vmem:[%s219] sm:$0xff]
      %v3644 = vld [vmem:[%s219 + $0x8] sm:$0xff]
      %v3645 = vld [vmem:[%s219 + $0x10] sm:$0xff]
      %v3646 = vld [vmem:[%s219 + $0x18] sm:$0xff]
      %v3647 = vld [vmem:[%s219 + $0x20] sm:$0xff]
      %v3648 = vld [vmem:[%s219 + $0x28] sm:$0xff]
      %v3649 = vld [vmem:[%s219 + $0x30] sm:$0xff]
      %v3650 = vld [vmem:[%s219 + $0x38] sm:$0xff]
      %v3651 = vld [vmem:[%s219 + $0x40] sm:$0xff]
      %v3652 = vld [vmem:[%s219 + $0x48] sm:$0xff]
      %v3653 = vld [vmem:[%s219 + $0x50] sm:$0xff]
      %v3654 = vld [vmem:[%s219 + $0x58] sm:$0xff]
      %v3655 = vld [vmem:[%s219 + $0x60] sm:$0xff]
      %v3656 = vld [vmem:[%s219 + $0x68] sm:$0xff]
      %v3657 = vld [vmem:[%s219 + $0x70] sm:$0xff]
      %v3658 = vld [vmem:[%s219 + $0x78] sm:$0xff]
      %v3659 = vadd.f32 %v3627, %v3643
      %v3660 = vadd.f32 %v3628, %v3644
      %v3661 = vadd.f32 %v3629, %v3645
      %v3662 = vadd.f32 %v3630, %v3646
      %v3663 = vadd.f32 %v3631, %v3647
      %v3664 = vadd.f32 %v3632, %v3648
      %v3665 = vadd.f32 %v3633, %v3649
      %v3666 = vadd.f32 %v3634, %v3650
      %v3667 = vadd.f32 %v3635, %v3651
      %v3668 = vadd.f32 %v3636, %v3652
      %v3669 = vadd.f32 %v3637, %v3653
      %v3670 = vadd.f32 %v3638, %v3654
      %v3671 = vadd.f32 %v3639, %v3655
      %v3672 = vadd.f32 %v3640, %v3656
      %v3673 = vadd.f32 %v3641, %v3657
      %v3674 = vadd.f32 %v3642, %v3658
      %3675 = vst.msk [vmem:[%s224] sm:$0xff] %vm225, %v3659
      %3676 = vst.msk [vmem:[%s224 + $0x8] sm:$0xff] %vm225, %v3660
      %3677 = vst.msk [vmem:[%s224 + $0x10] sm:$0xff] %vm225, %v3661
      %3678 = vst.msk [vmem:[%s224 + $0x18] sm:$0xff] %vm225, %v3662
      %3679 = vst.msk [vmem:[%s224 + $0x20] sm:$0xff] %vm225, %v3663
      %3680 = vst.msk [vmem:[%s224 + $0x28] sm:$0xff] %vm225, %v3664
      %3681 = vst.msk [vmem:[%s224 + $0x30] sm:$0xff] %vm225, %v3665
      %3682 = vst.msk [vmem:[%s224 + $0x38] sm:$0xff] %vm225, %v3666
      %3683 = vst.msk [vmem:[%s224 + $0x40] sm:$0xff] %vm225, %v3667
      %3684 = vst.msk [vmem:[%s224 + $0x48] sm:$0xff] %vm225, %v3668
      %3685 = vst.msk [vmem:[%s224 + $0x50] sm:$0xff] %vm225, %v3669
      %3686 = vst.msk [vmem:[%s224 + $0x58] sm:$0xff] %vm225, %v3670
      %3687 = vst.msk [vmem:[%s224 + $0x60] sm:$0xff] %vm225, %v3671
      %3688 = vst.msk [vmem:[%s224 + $0x68] sm:$0xff] %vm225, %v3672
      %3689 = vst.msk [vmem:[%s224 + $0x70] sm:$0xff] %vm225, %v3673
      %3690 = vst.msk [vmem:[%s224 + $0x78] sm:$0xff] %vm225, %v3674
      %s3691 = scalar_lea.vmem [#allocation3], 192
      %v3692 = vld [vmem:[%s3691] sm:$0xff]
      %v3693 = vld [vmem:[%s3691 + $0x8] sm:$0xff]
      %v3694 = vld [vmem:[%s3691 + $0x18] sm:$0xff]
      %v3695 = vld [vmem:[%s3691 + $0x20] sm:$0xff]
      %v3696 = vld [vmem:[%s3691 + $0x30] sm:$0xff]
      %v3697 = vld [vmem:[%s3691 + $0x38] sm:$0xff]
      %v3698 = vld [vmem:[%s3691 + $0x48] sm:$0xff]
      %v3699 = vld [vmem:[%s3691 + $0x50] sm:$0xff]
      %v3700 = vld [vmem:[%s3691 + $0x60] sm:$0xff]
      %v3701 = vld [vmem:[%s3691 + $0x68] sm:$0xff]
      %v3702 = vld [vmem:[%s3691 + $0x78] sm:$0xff]
      %v3703 = vld [vmem:[%s3691 + $0x80] sm:$0xff]
      %v3704 = vld [vmem:[%s3691 + $0x90] sm:$0xff]
      %v3705 = vld [vmem:[%s3691 + $0x98] sm:$0xff]
      %v3706 = vld [vmem:[%s3691 + $0xa8] sm:$0xff]
      %v3707 = vld [vmem:[%s3691 + $0xb0] sm:$0xff]
      %v3708 = vld [vmem:[%s3691 + $0x1] sm:$0xff]
      %v3709 = vld [vmem:[%s3691 + $0x9] sm:$0xff]
      %v3710 = vld [vmem:[%s3691 + $0x19] sm:$0xff]
      %v3711 = vld [vmem:[%s3691 + $0x21] sm:$0xff]
      %v3712 = vld [vmem:[%s3691 + $0x31] sm:$0xff]
      %v3713 = vld [vmem:[%s3691 + $0x39] sm:$0xff]
      %v3714 = vld [vmem:[%s3691 + $0x49] sm:$0xff]
      %v3715 = vld [vmem:[%s3691 + $0x51] sm:$0xff]
      %v3716 = vld [vmem:[%s3691 + $0x61] sm:$0xff]
      %v3717 = vld [vmem:[%s3691 + $0x69] sm:$0xff]
      %v3718 = vld [vmem:[%s3691 + $0x79] sm:$0xff]
      %v3719 = vld [vmem:[%s3691 + $0x81] sm:$0xff]
      %v3720 = vld [vmem:[%s3691 + $0x91] sm:$0xff]
      %v3721 = vld [vmem:[%s3691 + $0x99] sm:$0xff]
      %v3722 = vld [vmem:[%s3691 + $0xa9] sm:$0xff]
      %v3723 = vld [vmem:[%s3691 + $0xb1] sm:$0xff]
      %v3724 = vld [vmem:[%s3691 + $0x2] sm:$0xff]
      %v3725 = vld [vmem:[%s3691 + $0xa] sm:$0xff]
      %v3726 = vld [vmem:[%s3691 + $0x1a] sm:$0xff]
      %v3727 = vld [vmem:[%s3691 + $0x22] sm:$0xff]
      %v3728 = vld [vmem:[%s3691 + $0x32] sm:$0xff]
      %v3729 = vld [vmem:[%s3691 + $0x3a] sm:$0xff]
      %v3730 = vld [vmem:[%s3691 + $0x4a] sm:$0xff]
      %v3731 = vld [vmem:[%s3691 + $0x52] sm:$0xff]
      %v3732 = vld [vmem:[%s3691 + $0x62] sm:$0xff]
      %v3733 = vld [vmem:[%s3691 + $0x6a] sm:$0xff]
      %v3734 = vld [vmem:[%s3691 + $0x7a] sm:$0xff]
      %v3735 = vld [vmem:[%s3691 + $0x82] sm:$0xff]
      %v3736 = vld [vmem:[%s3691 + $0x92] sm:$0xff]
      %v3737 = vld [vmem:[%s3691 + $0x9a] sm:$0xff]
      %v3738 = vld [vmem:[%s3691 + $0xaa] sm:$0xff]
      %v3739 = vld [vmem:[%s3691 + $0xb2] sm:$0xff]
      %v3740 = vld [vmem:[%s2553] sm:$0xff]
      %v3741 = vld [vmem:[%s2553 + $0x8] sm:$0xff]
      %v3742 = vld [vmem:[%s2553 + $0x18] sm:$0xff]
      %v3743 = vld [vmem:[%s2553 + $0x20] sm:$0xff]
      %v3744 = vld [vmem:[%s2553 + $0x30] sm:$0xff]
      %v3745 = vld [vmem:[%s2553 + $0x38] sm:$0xff]
      %v3746 = vld [vmem:[%s2553 + $0x48] sm:$0xff]
      %v3747 = vld [vmem:[%s2553 + $0x50] sm:$0xff]
      %v3748 = vld [vmem:[%s2553 + $0x60] sm:$0xff]
      %v3749 = vld [vmem:[%s2553 + $0x68] sm:$0xff]
      %v3750 = vld [vmem:[%s2553 + $0x78] sm:$0xff]
      %v3751 = vld [vmem:[%s2553 + $0x80] sm:$0xff]
      %v3752 = vld [vmem:[%s2553 + $0x90] sm:$0xff]
      %v3753 = vld [vmem:[%s2553 + $0x98] sm:$0xff]
      %v3754 = vld [vmem:[%s2553 + $0xa8] sm:$0xff]
      %v3755 = vld [vmem:[%s2553 + $0xb0] sm:$0xff]
      %v3756 = vld [vmem:[%s2553 + $0x1] sm:$0xff]
      %v3757 = vld [vmem:[%s2553 + $0x9] sm:$0xff]
      %v3758 = vld [vmem:[%s2553 + $0x19] sm:$0xff]
      %v3759 = vld [vmem:[%s2553 + $0x21] sm:$0xff]
      %v3760 = vld [vmem:[%s2553 + $0x31] sm:$0xff]
      %v3761 = vld [vmem:[%s2553 + $0x39] sm:$0xff]
      %v3762 = vld [vmem:[%s2553 + $0x49] sm:$0xff]
      %v3763 = vld [vmem:[%s2553 + $0x51] sm:$0xff]
      %v3764 = vld [vmem:[%s2553 + $0x61] sm:$0xff]
      %v3765 = vld [vmem:[%s2553 + $0x69] sm:$0xff]
      %v3766 = vld [vmem:[%s2553 + $0x79] sm:$0xff]
      %v3767 = vld [vmem:[%s2553 + $0x81] sm:$0xff]
      %v3768 = vld [vmem:[%s2553 + $0x91] sm:$0xff]
      %v3769 = vld [vmem:[%s2553 + $0x99] sm:$0xff]
      %v3770 = vld [vmem:[%s2553 + $0xa9] sm:$0xff]
      %v3771 = vld [vmem:[%s2553 + $0xb1] sm:$0xff]
      %v3772 = vld [vmem:[%s2553 + $0x2] sm:$0xff]
      %v3773 = vld [vmem:[%s2553 + $0xa] sm:$0xff]
      %v3774 = vld [vmem:[%s2553 + $0x1a] sm:$0xff]
      %v3775 = vld [vmem:[%s2553 + $0x22] sm:$0xff]
      %v3776 = vld [vmem:[%s2553 + $0x32] sm:$0xff]
      %v3777 = vld [vmem:[%s2553 + $0x3a] sm:$0xff]
      %v3778 = vld [vmem:[%s2553 + $0x4a] sm:$0xff]
      %v3779 = vld [vmem:[%s2553 + $0x52] sm:$0xff]
      %v3780 = vld [vmem:[%s2553 + $0x62] sm:$0xff]
      %v3781 = vld [vmem:[%s2553 + $0x6a] sm:$0xff]
      %v3782 = vld [vmem:[%s2553 + $0x7a] sm:$0xff]
      %v3783 = vld [vmem:[%s2553 + $0x82] sm:$0xff]
      %v3784 = vld [vmem:[%s2553 + $0x92] sm:$0xff]
      %v3785 = vld [vmem:[%s2553 + $0x9a] sm:$0xff]
      %v3786 = vld [vmem:[%s2553 + $0xaa] sm:$0xff]
      %v3787 = vld [vmem:[%s2553 + $0xb2] sm:$0xff]
      %s3788 = scalar_lea.vmem [#allocation3], 240
      %v3789 = vld [vmem:[%s3788] sm:$0xff]
      %v3790 = vld [vmem:[%s3788 + $0x8] sm:$0xff]
      %v3791 = vld [vmem:[%s3788 + $0x18] sm:$0xff]
      %v3792 = vld [vmem:[%s3788 + $0x20] sm:$0xff]
      %v3793 = vld [vmem:[%s3788 + $0x30] sm:$0xff]
      %v3794 = vld [vmem:[%s3788 + $0x38] sm:$0xff]
      %v3795 = vld [vmem:[%s3788 + $0x48] sm:$0xff]
      %v3796 = vld [vmem:[%s3788 + $0x50] sm:$0xff]
      %v3797 = vld [vmem:[%s3788 + $0x60] sm:$0xff]
      %v3798 = vld [vmem:[%s3788 + $0x68] sm:$0xff]
      %v3799 = vld [vmem:[%s3788 + $0x78] sm:$0xff]
      %v3800 = vld [vmem:[%s3788 + $0x80] sm:$0xff]
      %v3801 = vld [vmem:[%s3788 + $0x90] sm:$0xff]
      %v3802 = vld [vmem:[%s3788 + $0x98] sm:$0xff]
      %v3803 = vld [vmem:[%s3788 + $0xa8] sm:$0xff]
      %v3804 = vld [vmem:[%s3788 + $0xb0] sm:$0xff]
      %v3805 = vld [vmem:[%s3788 + $0x1] sm:$0xff]
      %v3806 = vld [vmem:[%s3788 + $0x9] sm:$0xff]
      %v3807 = vld [vmem:[%s3788 + $0x19] sm:$0xff]
      %v3808 = vld [vmem:[%s3788 + $0x21] sm:$0xff]
      %v3809 = vld [vmem:[%s3788 + $0x31] sm:$0xff]
      %v3810 = vld [vmem:[%s3788 + $0x39] sm:$0xff]
      %v3811 = vld [vmem:[%s3788 + $0x49] sm:$0xff]
      %v3812 = vld [vmem:[%s3788 + $0x51] sm:$0xff]
      %v3813 = vld [vmem:[%s3788 + $0x61] sm:$0xff]
      %v3814 = vld [vmem:[%s3788 + $0x69] sm:$0xff]
      %v3815 = vld [vmem:[%s3788 + $0x79] sm:$0xff]
      %v3816 = vld [vmem:[%s3788 + $0x81] sm:$0xff]
      %v3817 = vld [vmem:[%s3788 + $0x91] sm:$0xff]
      %v3818 = vld [vmem:[%s3788 + $0x99] sm:$0xff]
      %v3819 = vld [vmem:[%s3788 + $0xa9] sm:$0xff]
      %v3820 = vld [vmem:[%s3788 + $0xb1] sm:$0xff]
      %v3821 = vld [vmem:[%s3788 + $0x2] sm:$0xff]
      %v3822 = vld [vmem:[%s3788 + $0xa] sm:$0xff]
      %v3823 = vld [vmem:[%s3788 + $0x1a] sm:$0xff]
      %v3824 = vld [vmem:[%s3788 + $0x22] sm:$0xff]
      %v3825 = vld [vmem:[%s3788 + $0x32] sm:$0xff]
      %v3826 = vld [vmem:[%s3788 + $0x3a] sm:$0xff]
      %v3827 = vld [vmem:[%s3788 + $0x4a] sm:$0xff]
      %v3828 = vld [vmem:[%s3788 + $0x52] sm:$0xff]
      %v3829 = vld [vmem:[%s3788 + $0x62] sm:$0xff]
      %v3830 = vld [vmem:[%s3788 + $0x6a] sm:$0xff]
      %v3831 = vld [vmem:[%s3788 + $0x7a] sm:$0xff]
      %v3832 = vld [vmem:[%s3788 + $0x82] sm:$0xff]
      %v3833 = vld [vmem:[%s3788 + $0x92] sm:$0xff]
      %v3834 = vld [vmem:[%s3788 + $0x9a] sm:$0xff]
      %v3835 = vld [vmem:[%s3788 + $0xaa] sm:$0xff]
      %v3836 = vld [vmem:[%s3788 + $0xb2] sm:$0xff]
      %3853 = vrot.lane.b32.xlu0 %v3708, 4
      %v3854 = vpop.permute.xlu0 %3853
      %3855 = vrot.lane.b32.xlu0 %v3709, 4
      %v3856 = vpop.permute.xlu0 %3855
      %3857 = vrot.lane.b32.xlu0 %v3710, 4
      %v3858 = vpop.permute.xlu0 %3857
      %3859 = vrot.lane.b32.xlu0 %v3711, 4
      %v3860 = vpop.permute.xlu0 %3859
      %3861 = vrot.lane.b32.xlu0 %v3712, 4
      %v3862 = vpop.permute.xlu0 %3861
      %3863 = vrot.lane.b32.xlu0 %v3713, 4
      %v3864 = vpop.permute.xlu0 %3863
      %3865 = vrot.lane.b32.xlu0 %v3714, 4
      %v3866 = vpop.permute.xlu0 %3865
      %3867 = vrot.lane.b32.xlu0 %v3715, 4
      %v3868 = vpop.permute.xlu0 %3867
      %3869 = vrot.lane.b32.xlu0 %v3716, 4
      %v3870 = vpop.permute.xlu0 %3869
      %3871 = vrot.lane.b32.xlu0 %v3717, 4
      %v3872 = vpop.permute.xlu0 %3871
      %3873 = vrot.lane.b32.xlu0 %v3718, 4
      %v3874 = vpop.permute.xlu0 %3873
      %3875 = vrot.lane.b32.xlu0 %v3719, 4
      %v3876 = vpop.permute.xlu0 %3875
      %3877 = vrot.lane.b32.xlu0 %v3720, 4
      %v3878 = vpop.permute.xlu0 %3877
      %3879 = vrot.lane.b32.xlu0 %v3721, 4
      %v3880 = vpop.permute.xlu0 %3879
      %3881 = vrot.lane.b32.xlu0 %v3722, 4
      %v3882 = vpop.permute.xlu0 %3881
      %3883 = vrot.lane.b32.xlu0 %v3723, 4
      %v3884 = vpop.permute.xlu0 %3883
      %3917 = vrot.lane.b32.xlu0 %v3724, 8
      %v3918 = vpop.permute.xlu0 %3917
      %3919 = vrot.lane.b32.xlu0 %v3725, 8
      %v3920 = vpop.permute.xlu0 %3919
      %3921 = vrot.lane.b32.xlu0 %v3726, 8
      %v3922 = vpop.permute.xlu0 %3921
      %3923 = vrot.lane.b32.xlu0 %v3727, 8
      %v3924 = vpop.permute.xlu0 %3923
      %3925 = vrot.lane.b32.xlu0 %v3728, 8
      %v3926 = vpop.permute.xlu0 %3925
      %3927 = vrot.lane.b32.xlu0 %v3729, 8
      %v3928 = vpop.permute.xlu0 %3927
      %3929 = vrot.lane.b32.xlu0 %v3730, 8
      %v3930 = vpop.permute.xlu0 %3929
      %3931 = vrot.lane.b32.xlu0 %v3731, 8
      %v3932 = vpop.permute.xlu0 %3931
      %3933 = vrot.lane.b32.xlu0 %v3732, 8
      %v3934 = vpop.permute.xlu0 %3933
      %3935 = vrot.lane.b32.xlu0 %v3733, 8
      %v3936 = vpop.permute.xlu0 %3935
      %3937 = vrot.lane.b32.xlu0 %v3734, 8
      %v3938 = vpop.permute.xlu0 %3937
      %3939 = vrot.lane.b32.xlu0 %v3735, 8
      %v3940 = vpop.permute.xlu0 %3939
      %3941 = vrot.lane.b32.xlu0 %v3736, 8
      %v3942 = vpop.permute.xlu0 %3941
      %3943 = vrot.lane.b32.xlu0 %v3737, 8
      %v3944 = vpop.permute.xlu0 %3943
      %3945 = vrot.lane.b32.xlu0 %v3738, 8
      %v3946 = vpop.permute.xlu0 %3945
      %3947 = vrot.lane.b32.xlu0 %v3739, 8
      %v3948 = vpop.permute.xlu0 %3947
      %3981 = vrot.lane.b32.xlu0 %v3740, 12
      %v3982 = vpop.permute.xlu0 %3981
      %3983 = vrot.lane.b32.xlu0 %v3741, 12
      %v3984 = vpop.permute.xlu0 %3983
      %3985 = vrot.lane.b32.xlu0 %v3742, 12
      %v3986 = vpop.permute.xlu0 %3985
      %3987 = vrot.lane.b32.xlu0 %v3743, 12
      %v3988 = vpop.permute.xlu0 %3987
      %3989 = vrot.lane.b32.xlu0 %v3744, 12
      %v3990 = vpop.permute.xlu0 %3989
      %3991 = vrot.lane.b32.xlu0 %v3745, 12
      %v3992 = vpop.permute.xlu0 %3991
      %3993 = vrot.lane.b32.xlu0 %v3746, 12
      %v3994 = vpop.permute.xlu0 %3993
      %3995 = vrot.lane.b32.xlu0 %v3747, 12
      %v3996 = vpop.permute.xlu0 %3995
      %3997 = vrot.lane.b32.xlu0 %v3748, 12
      %v3998 = vpop.permute.xlu0 %3997
      %3999 = vrot.lane.b32.xlu0 %v3749, 12
      %v4000 = vpop.permute.xlu0 %3999
      %4001 = vrot.lane.b32.xlu0 %v3750, 12
      %v4002 = vpop.permute.xlu0 %4001
      %4003 = vrot.lane.b32.xlu0 %v3751, 12
      %v4004 = vpop.permute.xlu0 %4003
      %4005 = vrot.lane.b32.xlu0 %v3752, 12
      %v4006 = vpop.permute.xlu0 %4005
      %4007 = vrot.lane.b32.xlu0 %v3753, 12
      %v4008 = vpop.permute.xlu0 %4007
      %4009 = vrot.lane.b32.xlu0 %v3754, 12
      %v4010 = vpop.permute.xlu0 %4009
      %4011 = vrot.lane.b32.xlu0 %v3755, 12
      %v4012 = vpop.permute.xlu0 %4011
      %4045 = vrot.lane.b32.xlu0 %v3756, 16
      %v4046 = vpop.permute.xlu0 %4045
      %4047 = vrot.lane.b32.xlu0 %v3757, 16
      %v4048 = vpop.permute.xlu0 %4047
      %4049 = vrot.lane.b32.xlu0 %v3758, 16
      %v4050 = vpop.permute.xlu0 %4049
      %4051 = vrot.lane.b32.xlu0 %v3759, 16
      %v4052 = vpop.permute.xlu0 %4051
      %4053 = vrot.lane.b32.xlu0 %v3760, 16
      %v4054 = vpop.permute.xlu0 %4053
      %4055 = vrot.lane.b32.xlu0 %v3761, 16
      %v4056 = vpop.permute.xlu0 %4055
      %4057 = vrot.lane.b32.xlu0 %v3762, 16
      %v4058 = vpop.permute.xlu0 %4057
      %4059 = vrot.lane.b32.xlu0 %v3763, 16
      %v4060 = vpop.permute.xlu0 %4059
      %4061 = vrot.lane.b32.xlu0 %v3764, 16
      %v4062 = vpop.permute.xlu0 %4061
      %4063 = vrot.lane.b32.xlu0 %v3765, 16
      %v4064 = vpop.permute.xlu0 %4063
      %4065 = vrot.lane.b32.xlu0 %v3766, 16
      %v4066 = vpop.permute.xlu0 %4065
      %4067 = vrot.lane.b32.xlu0 %v3767, 16
      %v4068 = vpop.permute.xlu0 %4067
      %4069 = vrot.lane.b32.xlu0 %v3768, 16
      %v4070 = vpop.permute.xlu0 %4069
      %4071 = vrot.lane.b32.xlu0 %v3769, 16
      %v4072 = vpop.permute.xlu0 %4071
      %4073 = vrot.lane.b32.xlu0 %v3770, 16
      %v4074 = vpop.permute.xlu0 %4073
      %4075 = vrot.lane.b32.xlu0 %v3771, 16
      %v4076 = vpop.permute.xlu0 %4075
      %4109 = vrot.lane.b32.xlu0 %v3772, 20
      %v4110 = vpop.permute.xlu0 %4109
      %4111 = vrot.lane.b32.xlu0 %v3773, 20
      %v4112 = vpop.permute.xlu0 %4111
      %4113 = vrot.lane.b32.xlu0 %v3774, 20
      %v4114 = vpop.permute.xlu0 %4113
      %4115 = vrot.lane.b32.xlu0 %v3775, 20
      %v4116 = vpop.permute.xlu0 %4115
      %4117 = vrot.lane.b32.xlu0 %v3776, 20
      %v4118 = vpop.permute.xlu0 %4117
      %4119 = vrot.lane.b32.xlu0 %v3777, 20
      %v4120 = vpop.permute.xlu0 %4119
      %4121 = vrot.lane.b32.xlu0 %v3778, 20
      %v4122 = vpop.permute.xlu0 %4121
      %4123 = vrot.lane.b32.xlu0 %v3779, 20
      %v4124 = vpop.permute.xlu0 %4123
      %4125 = vrot.lane.b32.xlu0 %v3780, 20
      %v4126 = vpop.permute.xlu0 %4125
      %4127 = vrot.lane.b32.xlu0 %v3781, 20
      %v4128 = vpop.permute.xlu0 %4127
      %4129 = vrot.lane.b32.xlu0 %v3782, 20
      %v4130 = vpop.permute.xlu0 %4129
      %4131 = vrot.lane.b32.xlu0 %v3783, 20
      %v4132 = vpop.permute.xlu0 %4131
      %4133 = vrot.lane.b32.xlu0 %v3784, 20
      %v4134 = vpop.permute.xlu0 %4133
      %4135 = vrot.lane.b32.xlu0 %v3785, 20
      %v4136 = vpop.permute.xlu0 %4135
      %4137 = vrot.lane.b32.xlu0 %v3786, 20
      %v4138 = vpop.permute.xlu0 %4137
      %4139 = vrot.lane.b32.xlu0 %v3787, 20
      %v4140 = vpop.permute.xlu0 %4139
      %4173 = vrot.lane.b32.xlu0 %v3789, 24
      %v4174 = vpop.permute.xlu0 %4173
      %4175 = vrot.lane.b32.xlu0 %v3790, 24
      %v4176 = vpop.permute.xlu0 %4175
      %4177 = vrot.lane.b32.xlu0 %v3791, 24
      %v4178 = vpop.permute.xlu0 %4177
      %4179 = vrot.lane.b32.xlu0 %v3792, 24
      %v4180 = vpop.permute.xlu0 %4179
      %4181 = vrot.lane.b32.xlu0 %v3793, 24
      %v4182 = vpop.permute.xlu0 %4181
      %4183 = vrot.lane.b32.xlu0 %v3794, 24
      %v4184 = vpop.permute.xlu0 %4183
      %4185 = vrot.lane.b32.xlu0 %v3795, 24
      %v4186 = vpop.permute.xlu0 %4185
      %4187 = vrot.lane.b32.xlu0 %v3796, 24
      %v4188 = vpop.permute.xlu0 %4187
      %4189 = vrot.lane.b32.xlu0 %v3797, 24
      %v4190 = vpop.permute.xlu0 %4189
      %4191 = vrot.lane.b32.xlu0 %v3798, 24
      %v4192 = vpop.permute.xlu0 %4191
      %4193 = vrot.lane.b32.xlu0 %v3799, 24
      %v4194 = vpop.permute.xlu0 %4193
      %4195 = vrot.lane.b32.xlu0 %v3800, 24
      %v4196 = vpop.permute.xlu0 %4195
      %4197 = vrot.lane.b32.xlu0 %v3801, 24
      %v4198 = vpop.permute.xlu0 %4197
      %4199 = vrot.lane.b32.xlu0 %v3802, 24
      %v4200 = vpop.permute.xlu0 %4199
      %4201 = vrot.lane.b32.xlu0 %v3803, 24
      %v4202 = vpop.permute.xlu0 %4201
      %4203 = vrot.lane.b32.xlu0 %v3804, 24
      %v4204 = vpop.permute.xlu0 %4203
      %4237 = vrot.lane.b32.xlu0 %v3805, 28
      %v4238 = vpop.permute.xlu0 %4237
      %4239 = vrot.lane.b32.xlu0 %v3806, 28
      %v4240 = vpop.permute.xlu0 %4239
      %4241 = vrot.lane.b32.xlu0 %v3807, 28
      %v4242 = vpop.permute.xlu0 %4241
      %4243 = vrot.lane.b32.xlu0 %v3808, 28
      %v4244 = vpop.permute.xlu0 %4243
      %4245 = vrot.lane.b32.xlu0 %v3809, 28
      %v4246 = vpop.permute.xlu0 %4245
      %4247 = vrot.lane.b32.xlu0 %v3810, 28
      %v4248 = vpop.permute.xlu0 %4247
      %4249 = vrot.lane.b32.xlu0 %v3811, 28
      %v4250 = vpop.permute.xlu0 %4249
      %4251 = vrot.lane.b32.xlu0 %v3812, 28
      %v4252 = vpop.permute.xlu0 %4251
      %4253 = vrot.lane.b32.xlu0 %v3813, 28
      %v4254 = vpop.permute.xlu0 %4253
      %4255 = vrot.lane.b32.xlu0 %v3814, 28
      %v4256 = vpop.permute.xlu0 %4255
      %4257 = vrot.lane.b32.xlu0 %v3815, 28
      %v4258 = vpop.permute.xlu0 %4257
      %4259 = vrot.lane.b32.xlu0 %v3816, 28
      %v4260 = vpop.permute.xlu0 %4259
      %4261 = vrot.lane.b32.xlu0 %v3817, 28
      %v4262 = vpop.permute.xlu0 %4261
      %4263 = vrot.lane.b32.xlu0 %v3818, 28
      %v4264 = vpop.permute.xlu0 %4263
      %4265 = vrot.lane.b32.xlu0 %v3819, 28
      %v4266 = vpop.permute.xlu0 %4265
      %4267 = vrot.lane.b32.xlu0 %v3820, 28
      %v4268 = vpop.permute.xlu0 %4267
      %4301 = vrot.lane.b32.xlu0 %v3821, 32
      %v4302 = vpop.permute.xlu0 %4301
      %4303 = vrot.lane.b32.xlu0 %v3822, 32
      %v4304 = vpop.permute.xlu0 %4303
      %4305 = vrot.lane.b32.xlu0 %v3823, 32
      %v4306 = vpop.permute.xlu0 %4305
      %4307 = vrot.lane.b32.xlu0 %v3824, 32
      %v4308 = vpop.permute.xlu0 %4307
      %4309 = vrot.lane.b32.xlu0 %v3825, 32
      %v4310 = vpop.permute.xlu0 %4309
      %4311 = vrot.lane.b32.xlu0 %v3826, 32
      %v4312 = vpop.permute.xlu0 %4311
      %4313 = vrot.lane.b32.xlu0 %v3827, 32
      %v4314 = vpop.permute.xlu0 %4313
      %4315 = vrot.lane.b32.xlu0 %v3828, 32
      %v4316 = vpop.permute.xlu0 %4315
      %4317 = vrot.lane.b32.xlu0 %v3829, 32
      %v4318 = vpop.permute.xlu0 %4317
      %4319 = vrot.lane.b32.xlu0 %v3830, 32
      %v4320 = vpop.permute.xlu0 %4319
      %4321 = vrot.lane.b32.xlu0 %v3831, 32
      %v4322 = vpop.permute.xlu0 %4321
      %4323 = vrot.lane.b32.xlu0 %v3832, 32
      %v4324 = vpop.permute.xlu0 %4323
      %4325 = vrot.lane.b32.xlu0 %v3833, 32
      %v4326 = vpop.permute.xlu0 %4325
      %4327 = vrot.lane.b32.xlu0 %v3834, 32
      %v4328 = vpop.permute.xlu0 %4327
      %4329 = vrot.lane.b32.xlu0 %v3835, 32
      %v4330 = vpop.permute.xlu0 %4329
      %4331 = vrot.lane.b32.xlu0 %v3836, 32
      %v4332 = vpop.permute.xlu0 %4331
      %v4349 = vsel %vm225, %v3692, %v3854
      %v4350 = vsel %vm225, %v3693, %v3856
      %v4351 = vsel %vm225, %v3694, %v3858
      %v4352 = vsel %vm225, %v3695, %v3860
      %v4353 = vsel %vm225, %v3696, %v3862
      %v4354 = vsel %vm225, %v3697, %v3864
      %v4355 = vsel %vm225, %v3698, %v3866
      %v4356 = vsel %vm225, %v3699, %v3868
      %v4357 = vsel %vm225, %v3700, %v3870
      %v4358 = vsel %vm225, %v3701, %v3872
      %v4359 = vsel %vm225, %v3702, %v3874
      %v4360 = vsel %vm225, %v3703, %v3876
      %v4361 = vsel %vm225, %v3704, %v3878
      %v4362 = vsel %vm225, %v3705, %v3880
      %v4363 = vsel %vm225, %v3706, %v3882
      %v4364 = vsel %vm225, %v3707, %v3884
      %v4365 = vsel %vm1052, %v4349, %v3918
      %v4366 = vsel %vm1052, %v4350, %v3920
      %v4367 = vsel %vm1052, %v4351, %v3922
      %v4368 = vsel %vm1052, %v4352, %v3924
      %v4369 = vsel %vm1052, %v4353, %v3926
      %v4370 = vsel %vm1052, %v4354, %v3928
      %v4371 = vsel %vm1052, %v4355, %v3930
      %v4372 = vsel %vm1052, %v4356, %v3932
      %v4373 = vsel %vm1052, %v4357, %v3934
      %v4374 = vsel %vm1052, %v4358, %v3936
      %v4375 = vsel %vm1052, %v4359, %v3938
      %v4376 = vsel %vm1052, %v4360, %v3940
      %v4377 = vsel %vm1052, %v4361, %v3942
      %v4378 = vsel %vm1052, %v4362, %v3944
      %v4379 = vsel %vm1052, %v4363, %v3946
      %v4380 = vsel %vm1052, %v4364, %v3948
      %v4381 = vsel %vm1069, %v4365, %v3982
      %v4382 = vsel %vm1069, %v4366, %v3984
      %v4383 = vsel %vm1069, %v4367, %v3986
      %v4384 = vsel %vm1069, %v4368, %v3988
      %v4385 = vsel %vm1069, %v4369, %v3990
      %v4386 = vsel %vm1069, %v4370, %v3992
      %v4387 = vsel %vm1069, %v4371, %v3994
      %v4388 = vsel %vm1069, %v4372, %v3996
      %v4389 = vsel %vm1069, %v4373, %v3998
      %v4390 = vsel %vm1069, %v4374, %v4000
      %v4391 = vsel %vm1069, %v4375, %v4002
      %v4392 = vsel %vm1069, %v4376, %v4004
      %v4393 = vsel %vm1069, %v4377, %v4006
      %v4394 = vsel %vm1069, %v4378, %v4008
      %v4395 = vsel %vm1069, %v4379, %v4010
      %v4396 = vsel %vm1069, %v4380, %v4012
      %v4397 = vsel %vm1086, %v4381, %v4046
      %v4398 = vsel %vm1086, %v4382, %v4048
      %v4399 = vsel %vm1086, %v4383, %v4050
      %v4400 = vsel %vm1086, %v4384, %v4052
      %v4401 = vsel %vm1086, %v4385, %v4054
      %v4402 = vsel %vm1086, %v4386, %v4056
      %v4403 = vsel %vm1086, %v4387, %v4058
      %v4404 = vsel %vm1086, %v4388, %v4060
      %v4405 = vsel %vm1086, %v4389, %v4062
      %v4406 = vsel %vm1086, %v4390, %v4064
      %v4407 = vsel %vm1086, %v4391, %v4066
      %v4408 = vsel %vm1086, %v4392, %v4068
      %v4409 = vsel %vm1086, %v4393, %v4070
      %v4410 = vsel %vm1086, %v4394, %v4072
      %v4411 = vsel %vm1086, %v4395, %v4074
      %v4412 = vsel %vm1086, %v4396, %v4076
      %v4413 = vsel %vm1103, %v4397, %v4110
      %v4414 = vsel %vm1103, %v4398, %v4112
      %v4415 = vsel %vm1103, %v4399, %v4114
      %v4416 = vsel %vm1103, %v4400, %v4116
      %v4417 = vsel %vm1103, %v4401, %v4118
      %v4418 = vsel %vm1103, %v4402, %v4120
      %v4419 = vsel %vm1103, %v4403, %v4122
      %v4420 = vsel %vm1103, %v4404, %v4124
      %v4421 = vsel %vm1103, %v4405, %v4126
      %v4422 = vsel %vm1103, %v4406, %v4128
      %v4423 = vsel %vm1103, %v4407, %v4130
      %v4424 = vsel %vm1103, %v4408, %v4132
      %v4425 = vsel %vm1103, %v4409, %v4134
      %v4426 = vsel %vm1103, %v4410, %v4136
      %v4427 = vsel %vm1103, %v4411, %v4138
      %v4428 = vsel %vm1103, %v4412, %v4140
      %v4429 = vsel %vm1120, %v4413, %v4174
      %v4430 = vsel %vm1120, %v4414, %v4176
      %v4431 = vsel %vm1120, %v4415, %v4178
      %v4432 = vsel %vm1120, %v4416, %v4180
      %v4433 = vsel %vm1120, %v4417, %v4182
      %v4434 = vsel %vm1120, %v4418, %v4184
      %v4435 = vsel %vm1120, %v4419, %v4186
      %v4436 = vsel %vm1120, %v4420, %v4188
      %v4437 = vsel %vm1120, %v4421, %v4190
      %v4438 = vsel %vm1120, %v4422, %v4192
      %v4439 = vsel %vm1120, %v4423, %v4194
      %v4440 = vsel %vm1120, %v4424, %v4196
      %v4441 = vsel %vm1120, %v4425, %v4198
      %v4442 = vsel %vm1120, %v4426, %v4200
      %v4443 = vsel %vm1120, %v4427, %v4202
      %v4444 = vsel %vm1120, %v4428, %v4204
      %v4445 = vsel %vm1137, %v4429, %v4238
      %v4446 = vsel %vm1137, %v4430, %v4240
      %v4447 = vsel %vm1137, %v4431, %v4242
      %v4448 = vsel %vm1137, %v4432, %v4244
      %v4449 = vsel %vm1137, %v4433, %v4246
      %v4450 = vsel %vm1137, %v4434, %v4248
      %v4451 = vsel %vm1137, %v4435, %v4250
      %v4452 = vsel %vm1137, %v4436, %v4252
      %v4453 = vsel %vm1137, %v4437, %v4254
      %v4454 = vsel %vm1137, %v4438, %v4256
      %v4455 = vsel %vm1137, %v4439, %v4258
      %v4456 = vsel %vm1137, %v4440, %v4260
      %v4457 = vsel %vm1137, %v4441, %v4262
      %v4458 = vsel %vm1137, %v4442, %v4264
      %v4459 = vsel %vm1137, %v4443, %v4266
      %v4460 = vsel %vm1137, %v4444, %v4268
      %v4461 = vsel %vm1154, %v4445, %v4302
      %v4462 = vsel %vm1154, %v4446, %v4304
      %v4463 = vsel %vm1154, %v4447, %v4306
      %v4464 = vsel %vm1154, %v4448, %v4308
      %v4465 = vsel %vm1154, %v4449, %v4310
      %v4466 = vsel %vm1154, %v4450, %v4312
      %v4467 = vsel %vm1154, %v4451, %v4314
      %v4468 = vsel %vm1154, %v4452, %v4316
      %v4469 = vsel %vm1154, %v4453, %v4318
      %v4470 = vsel %vm1154, %v4454, %v4320
      %v4471 = vsel %vm1154, %v4455, %v4322
      %v4472 = vsel %vm1154, %v4456, %v4324
      %v4473 = vsel %vm1154, %v4457, %v4326
      %v4474 = vsel %vm1154, %v4458, %v4328
      %v4475 = vsel %vm1154, %v4459, %v4330
      %v4476 = vsel %vm1154, %v4460, %v4332
      %v4477 = vld [vmem:[%s3] sm:$0xff]
      %v4478 = vld [vmem:[%s3 + $0x8] sm:$0xff]
      %v4479 = vld [vmem:[%s3 + $0x10] sm:$0xff]
      %v4480 = vld [vmem:[%s3 + $0x18] sm:$0xff]
      %v4481 = vld [vmem:[%s3 + $0x20] sm:$0xf]
      %v4482 = vld [vmem:[%s4] sm:$0x1]
      %v4484 = vlaneseq
      %v4485 = vshrl.u32 %v4484, 7
      %v4486 = vsub.s32 0, %v4485
      %v4487 = vrot.slane %v4482, %v4486
      %v4490 = vsel %vm1183, %v4461, 0
      %v4493 = vsel %vm1183, %v4462, 0
      %v4496 = vsel %vm1183, %v4463, 0
      %v4499 = vsel %vm1183, %v4464, 0
      %v4502 = vsel %vm1183, %v4465, 0
      %v4505 = vsel %vm1183, %v4466, 0
      %v4508 = vsel %vm1183, %v4467, 0
      %v4511 = vsel %vm1183, %v4468, 0
      %v4514 = vsel %vm1183, %v4469, 0
      %v4517 = vsel %vm1183, %v4470, 0
      %v4520 = vsel %vm1183, %v4471, 0
      %v4523 = vsel %vm1183, %v4472, 0
      %v4526 = vsel %vm1183, %v4473, 0
      %v4529 = vsel %vm1183, %v4474, 0
      %v4532 = vsel %vm1183, %v4475, 0
      %v4535 = vsel %vm1183, %v4476, 0
      %v4538 = vsel %vm1232, %v4481, 0
      %4540 = vmatprep.subr.mxu0 0.0
      %4541 = vmatpush1.msra.mxu0 %v4477
      %4542 = vmatprep.subr.mxu0 0.0
      %4543 = vmatpush1.msra.mxu0 %v4478
      %4544 = vmatprep.subr.mxu0 0.0
      %4545 = vmatpush1.msra.mxu0 %v4479
      %4546 = vmatprep.subr.mxu0 0.0
      %4547 = vmatpush1.msra.mxu0 %v4480
      %4548 = vmatprep.subr.mxu0 0.0
      %4549 = vmatpush1.msra.mxu0 %v4538
      %4550 = vmatprep.subr.mxu0 0.0
      %4551 = vmatpush1.msra.mxu0 0.0
      %4552 = vmatprep.subr.mxu0 0.0
      %4553 = vmatpush1.msra.mxu0 0.0
      %4554 = vmatprep.subr.mxu0 0.0
      %4555 = vmatpush1.msra.mxu0 0.0
      %4556 = vmatprep.subr.mxu0 0.0
      %4557 = vmatpush1.msra.mxu0 0.0
      %4558 = vmatprep.subr.mxu0 0.0
      %4559 = vmatpush1.msra.mxu0 0.0
      %4560 = vmatprep.subr.mxu0 0.0
      %4561 = vmatpush1.msra.mxu0 0.0
      %4562 = vmatprep.subr.mxu0 0.0
      %4563 = vmatpush1.msra.mxu0 0.0
      %4564 = vmatprep.subr.mxu0 0.0
      %4565 = vmatpush1.msra.mxu0 0.0
      %4566 = vmatprep.subr.mxu0 0.0
      %4567 = vmatpush1.msra.mxu0 0.0
      %4568 = vmatprep.subr.mxu0 0.0
      %4569 = vmatpush1.msra.mxu0 0.0
      %4570 = vmatprep.subr.mxu0 0.0
      %4571 = vmatpush1.msra.mxu0 0.0
      %4572 = vmatprep.subr.mxu0 0.0
      %4573 = vmatpush1.msra.mxu0 0.0
      %4574 = vmatprep.subr.mxu0 0.0
      %4575 = vmatpush1.msra.mxu0 0.0
      %4576 = vmatprep.subr.mxu0 0.0
      %4577 = vmatpush1.msra.mxu0 0.0
      %4578 = vmatprep.subr.mxu0 0.0
      %4579 = vmatpush1.msra.mxu0 0.0
      %4580 = vmatprep.subr.mxu0 0.0
      %4581 = vmatpush1.msra.mxu0 0.0
      %4582 = vmatprep.subr.mxu0 0.0
      %4583 = vmatpush1.msra.mxu0 0.0
      %4584 = vmatprep.subr.mxu0 0.0
      %4585 = vmatpush1.msra.mxu0 0.0
      %4586 = vmatprep.subr.mxu0 0.0
      %4587 = vmatpush1.msra.mxu0 0.0
      %4588 = vmatprep.subr.mxu0 0.0
      %4589 = vmatpush1.msra.mxu0 0.0
      %4590 = vmatprep.subr.mxu0 0.0
      %4591 = vmatpush1.msra.mxu0 0.0
      %4592 = vmatprep.subr.mxu0 0.0
      %4593 = vmatpush1.msra.mxu0 0.0
      %4594 = vmatprep.subr.mxu0 0.0
      %4595 = vmatpush1.msra.mxu0 0.0
      %4596 = vmatprep.subr.mxu0 0.0
      %4597 = vmatpush1.msra.mxu0 0.0
      %4598 = vmatprep.subr.mxu0 0.0
      %4599 = vmatpush1.msra.mxu0 0.0
      %4600 = vmatprep.subr.mxu0 0.0
      %4601 = vmatpush1.msra.mxu0 0.0
      %4602 = vmatprep.subr.mxu0 0.0
      %4603 = vmatpush1.msra.mxu0 0.0
      %4604 = vmatprep.mubr.f32.mxu0 0.0
      %4605 = vmatmul.mubr.f32.gmra.mrb[0].mxu0 %v4490
      %v4606 = vpop.f32.mrb[0].mxu0
      %v4607 = vadd.f32 %v4487, %v4606
      %v4608 = vpop.f32.mrb[0].mxu0
      %4609 = vmatprep.mubr.f32.mxu0 0.0
      %4610 = vmatmul.mubr.f32.gmra.mrb[0].mxu0 %v4493
      %v4611 = vpop.f32.mrb[0].mxu0
      %v4612 = vadd.f32 %v4487, %v4611
      %v4613 = vpop.f32.mrb[0].mxu0
      %4614 = vmatprep.mubr.f32.mxu0 0.0
      %4615 = vmatmul.mubr.f32.gmra.mrb[0].mxu0 %v4496
      %v4616 = vpop.f32.mrb[0].mxu0
      %v4617 = vadd.f32 %v4487, %v4616
      %v4618 = vpop.f32.mrb[0].mxu0
      %4619 = vmatprep.mubr.f32.mxu0 0.0
      %4620 = vmatmul.mubr.f32.gmra.mrb[0].mxu0 %v4499
      %v4621 = vpop.f32.mrb[0].mxu0
      %v4622 = vadd.f32 %v4487, %v4621
      %v4623 = vpop.f32.mrb[0].mxu0
      %4624 = vmatprep.mubr.f32.mxu0 0.0
      %4625 = vmatmul.mubr.f32.gmra.mrb[0].mxu0 %v4502
      %v4626 = vpop.f32.mrb[0].mxu0
      %v4627 = vadd.f32 %v4487, %v4626
      %v4628 = vpop.f32.mrb[0].mxu0
      %4629 = vmatprep.mubr.f32.mxu0 0.0
      %4630 = vmatmul.mubr.f32.gmra.mrb[0].mxu0 %v4505
      %v4631 = vpop.f32.mrb[0].mxu0
      %v4632 = vadd.f32 %v4487, %v4631
      %v4633 = vpop.f32.mrb[0].mxu0
      %4634 = vmatprep.mubr.f32.mxu0 0.0
      %4635 = vmatmul.mubr.f32.gmra.mrb[0].mxu0 %v4508
      %v4636 = vpop.f32.mrb[0].mxu0
      %v4637 = vadd.f32 %v4487, %v4636
      %v4638 = vpop.f32.mrb[0].mxu0
      %4639 = vmatprep.mubr.f32.mxu0 0.0
      %4640 = vmatmul.mubr.f32.gmra.mrb[0].mxu0 %v4511
      %v4641 = vpop.f32.mrb[0].mxu0
      %v4642 = vadd.f32 %v4487, %v4641
      %v4643 = vpop.f32.mrb[0].mxu0
      %4644 = vmatprep.mubr.f32.mxu0 0.0
      %4645 = vmatmul.mubr.f32.gmra.mrb[0].mxu0 %v4514
      %v4646 = vpop.f32.mrb[0].mxu0
      %v4647 = vadd.f32 %v4487, %v4646
      %v4648 = vpop.f32.mrb[0].mxu0
      %4649 = vmatprep.mubr.f32.mxu0 0.0
      %4650 = vmatmul.mubr.f32.gmra.mrb[0].mxu0 %v4517
      %v4651 = vpop.f32.mrb[0].mxu0
      %v4652 = vadd.f32 %v4487, %v4651
      %v4653 = vpop.f32.mrb[0].mxu0
      %4654 = vmatprep.mubr.f32.mxu0 0.0
      %4655 = vmatmul.mubr.f32.gmra.mrb[0].mxu0 %v4520
      %v4656 = vpop.f32.mrb[0].mxu0
      %v4657 = vadd.f32 %v4487, %v4656
      %v4658 = vpop.f32.mrb[0].mxu0
      %4659 = vmatprep.mubr.f32.mxu0 0.0
      %4660 = vmatmul.mubr.f32.gmra.mrb[0].mxu0 %v4523
      %v4661 = vpop.f32.mrb[0].mxu0
      %v4662 = vadd.f32 %v4487, %v4661
      %v4663 = vpop.f32.mrb[0].mxu0
      %4664 = vmatprep.mubr.f32.mxu0 0.0
      %4665 = vmatmul.mubr.f32.gmra.mrb[0].mxu0 %v4526
      %v4666 = vpop.f32.mrb[0].mxu0
      %v4667 = vadd.f32 %v4487, %v4666
      %v4668 = vpop.f32.mrb[0].mxu0
      %4669 = vmatprep.mubr.f32.mxu0 0.0
      %4670 = vmatmul.mubr.f32.gmra.mrb[0].mxu0 %v4529
      %v4671 = vpop.f32.mrb[0].mxu0
      %v4672 = vadd.f32 %v4487, %v4671
      %v4673 = vpop.f32.mrb[0].mxu0
      %4674 = vmatprep.mubr.f32.mxu0 0.0
      %4675 = vmatmul.mubr.f32.gmra.mrb[0].mxu0 %v4532
      %v4676 = vpop.f32.mrb[0].mxu0
      %v4677 = vadd.f32 %v4487, %v4676
      %v4678 = vpop.f32.mrb[0].mxu0
      %4679 = vmatprep.mubr.f32.mxu0 0.0
      %4680 = vmatmul.mubr.f32.gmra.mrb[0].mxu0 %v4535
      %v4681 = vpop.f32.mrb[0].mxu0
      %v4682 = vadd.f32 %v4487, %v4681
      %v4683 = vpop.f32.mrb[0].mxu0
      %4684 = vdwg.mxu0
      %4701 = vrot.lane.b32.xlu0 %v4607, 124
      %v4702 = vpop.permute.xlu0 %4701
      %4703 = vrot.lane.b32.xlu0 %v4612, 124
      %v4704 = vpop.permute.xlu0 %4703
      %4705 = vrot.lane.b32.xlu0 %v4617, 124
      %v4706 = vpop.permute.xlu0 %4705
      %4707 = vrot.lane.b32.xlu0 %v4622, 124
      %v4708 = vpop.permute.xlu0 %4707
      %4709 = vrot.lane.b32.xlu0 %v4627, 124
      %v4710 = vpop.permute.xlu0 %4709
      %4711 = vrot.lane.b32.xlu0 %v4632, 124
      %v4712 = vpop.permute.xlu0 %4711
      %4713 = vrot.lane.b32.xlu0 %v4637, 124
      %v4714 = vpop.permute.xlu0 %4713
      %4715 = vrot.lane.b32.xlu0 %v4642, 124
      %v4716 = vpop.permute.xlu0 %4715
      %4717 = vrot.lane.b32.xlu0 %v4647, 124
      %v4718 = vpop.permute.xlu0 %4717
      %4719 = vrot.lane.b32.xlu0 %v4652, 124
      %v4720 = vpop.permute.xlu0 %4719
      %4721 = vrot.lane.b32.xlu0 %v4657, 124
      %v4722 = vpop.permute.xlu0 %4721
      %4723 = vrot.lane.b32.xlu0 %v4662, 124
      %v4724 = vpop.permute.xlu0 %4723
      %4725 = vrot.lane.b32.xlu0 %v4667, 124
      %v4726 = vpop.permute.xlu0 %4725
      %4727 = vrot.lane.b32.xlu0 %v4672, 124
      %v4728 = vpop.permute.xlu0 %4727
      %4729 = vrot.lane.b32.xlu0 %v4677, 124
      %v4730 = vpop.permute.xlu0 %4729
      %4731 = vrot.lane.b32.xlu0 %v4682, 124
      %v4732 = vpop.permute.xlu0 %4731
      %v4749 = vmax.f32 %v4607, %v4702
      %v4750 = vmax.f32 %v4612, %v4704
      %v4751 = vmax.f32 %v4617, %v4706
      %v4752 = vmax.f32 %v4622, %v4708
      %v4753 = vmax.f32 %v4627, %v4710
      %v4754 = vmax.f32 %v4632, %v4712
      %v4755 = vmax.f32 %v4637, %v4714
      %v4756 = vmax.f32 %v4642, %v4716
      %v4757 = vmax.f32 %v4647, %v4718
      %v4758 = vmax.f32 %v4652, %v4720
      %v4759 = vmax.f32 %v4657, %v4722
      %v4760 = vmax.f32 %v4662, %v4724
      %v4761 = vmax.f32 %v4667, %v4726
      %v4762 = vmax.f32 %v4672, %v4728
      %v4763 = vmax.f32 %v4677, %v4730
      %v4764 = vmax.f32 %v4682, %v4732
      %s4765 = scalar_lea.vmem %s219, 128
      %v4766 = vld [vmem:[%s4765] sm:$0xff]
      %v4767 = vld [vmem:[%s4765 + $0x8] sm:$0xff]
      %v4768 = vld [vmem:[%s4765 + $0x10] sm:$0xff]
      %v4769 = vld [vmem:[%s4765 + $0x18] sm:$0xff]
      %v4770 = vld [vmem:[%s4765 + $0x20] sm:$0xff]
      %v4771 = vld [vmem:[%s4765 + $0x28] sm:$0xff]
      %v4772 = vld [vmem:[%s4765 + $0x30] sm:$0xff]
      %v4773 = vld [vmem:[%s4765 + $0x38] sm:$0xff]
      %v4774 = vld [vmem:[%s4765 + $0x40] sm:$0xff]
      %v4775 = vld [vmem:[%s4765 + $0x48] sm:$0xff]
      %v4776 = vld [vmem:[%s4765 + $0x50] sm:$0xff]
      %v4777 = vld [vmem:[%s4765 + $0x58] sm:$0xff]
      %v4778 = vld [vmem:[%s4765 + $0x60] sm:$0xff]
      %v4779 = vld [vmem:[%s4765 + $0x68] sm:$0xff]
      %v4780 = vld [vmem:[%s4765 + $0x70] sm:$0xff]
      %v4781 = vld [vmem:[%s4765 + $0x78] sm:$0xff]
      %v4782 = vadd.f32 %v4749, %v4766
      %v4783 = vadd.f32 %v4750, %v4767
      %v4784 = vadd.f32 %v4751, %v4768
      %v4785 = vadd.f32 %v4752, %v4769
      %v4786 = vadd.f32 %v4753, %v4770
      %v4787 = vadd.f32 %v4754, %v4771
      %v4788 = vadd.f32 %v4755, %v4772
      %v4789 = vadd.f32 %v4756, %v4773
      %v4790 = vadd.f32 %v4757, %v4774
      %v4791 = vadd.f32 %v4758, %v4775
      %v4792 = vadd.f32 %v4759, %v4776
      %v4793 = vadd.f32 %v4760, %v4777
      %v4794 = vadd.f32 %v4761, %v4778
      %v4795 = vadd.f32 %v4762, %v4779
      %v4796 = vadd.f32 %v4763, %v4780
      %v4797 = vadd.f32 %v4764, %v4781
      %4798 = vst.msk [vmem:[%s224 + $0x80] sm:$0xff] %vm225, %v4782
      %4799 = vst.msk [vmem:[%s224 + $0x88] sm:$0xff] %vm225, %v4783
      %4800 = vst.msk [vmem:[%s224 + $0x90] sm:$0xff] %vm225, %v4784
      %4801 = vst.msk [vmem:[%s224 + $0x98] sm:$0xff] %vm225, %v4785
      %4802 = vst.msk [vmem:[%s224 + $0xa0] sm:$0xff] %vm225, %v4786
      %4803 = vst.msk [vmem:[%s224 + $0xa8] sm:$0xff] %vm225, %v4787
      %4804 = vst.msk [vmem:[%s224 + $0xb0] sm:$0xff] %vm225, %v4788
      %4805 = vst.msk [vmem:[%s224 + $0xb8] sm:$0xff] %vm225, %v4789
      %4806 = vst.msk [vmem:[%s224 + $0xc0] sm:$0xff] %vm225, %v4790
      %4807 = vst.msk [vmem:[%s224 + $0xc8] sm:$0xff] %vm225, %v4791
      %4808 = vst.msk [vmem:[%s224 + $0xd0] sm:$0xff] %vm225, %v4792
      %4809 = vst.msk [vmem:[%s224 + $0xd8] sm:$0xff] %vm225, %v4793
      %4810 = vst.msk [vmem:[%s224 + $0xe0] sm:$0xff] %vm225, %v4794
      %4811 = vst.msk [vmem:[%s224 + $0xe8] sm:$0xff] %vm225, %v4795
      %4812 = vst.msk [vmem:[%s224 + $0xf0] sm:$0xff] %vm225, %v4796
      %4813 = vst.msk [vmem:[%s224 + $0xf8] sm:$0xff] %vm225, %v4797
      %p4814 = scmp.lt.s32.totalorder %s16, 1
      %s4815 = scalar_select %p4814, %s16, 1
      %s4816 = smul.addr %s4815, 32
      %s4817 = smul.addr %s4816, 8
      %s4818 = scalar_lea.vmem %s5, %s4817
      // Predicated region
      $region41: #{tpu_custom_call.1} parent=39 // pred_check
        %p4819 = pneg %p144
      $region42: #{tpu_custom_call.1} parent=39 // pred_check_branch
        %4821 = sbr.rel (%p4819) target = $region44
      $region43: #{tpu_custom_call.1} parent=39 // pred_region
        _
      $region44: #{tpu_custom_call.1} parent=39 // pred_fallthru
        _
    $region40: #{tpu_custom_call.1} parent=5 // pred_fallthru
      _
    %p4822 = scmp.le.s32.totalorder 2, %s11
    // Predicated region
    $region45: #{tpu_custom_call.1} parent=5 // pred_check
      %p4823 = pneg %p4822
    $region46: #{tpu_custom_call.1} parent=5 // pred_check_branch
      %4825 = sbr.rel (%p4823) target = $region48
    $region47: #{tpu_custom_call.1} parent=5 // pred_region
      %s4826 = ssub.s32 %s11, 2
      // Predicated region
      $region49: #{tpu_custom_call.1} parent=47 // pred_check
        %p4827 = pneg %p150
      $region50: #{tpu_custom_call.1} parent=47 // pred_check_branch
        %4829 = sbr.rel (%p4827) target = $region52
      $region51: #{tpu_custom_call.1} parent=47 // pred_region
        %p4830 = scmp.lt.s32.totalorder %s17, 1
        %s4831 = scalar_select %p4830, %s17, 1
        %s4832 = smul.addr %s4831, 32
        %s4833 = smul.addr %s4832, 8
        %s4834 = scalar_lea.vmem %s5, %s4833
      $region52: #{tpu_custom_call.1} parent=47 // pred_fallthru
        _
    $region48: #{tpu_custom_call.1} parent=5 // pred_fallthru
      _
  $region6: #{tpu_custom_call.1} parent=0 // loop_footer
    %s15 = sadd.s32 1, %s11
  $region7: #{tpu_custom_call.1} parent=0 // loop_footer_branch
    %10 = sbr.rel target = $region3
  $region8: #{tpu_custom_call.1} parent=0 // loop_exit
    _

</llo_original>
